<compile_context>
chip_gen: v6e
topology: v6e:2x2x1
jax: 0.10.0
libtpu: 0.0.40
codegen_flags: <defaults>
</compile_context>

<pallas_src>
import math

import jax
import jax.numpy as jnp
import numpy as np
from jax.experimental import pallas as pl
from jax.experimental.pallas import tpu as pltpu


def _equal_conv_scale(w):
    # EqualConv2d: scale = 1 / sqrt(in_channel * kernel_size**2); w is (O, I, kh, kw).
    return 1.0 / math.sqrt(w.shape[1] * w.shape[2] * w.shape[3])


def _zero_halo(pad_ref, h, w):
    """Zero only the 1-pixel border of an (h+2, w+2, C) padded scratch buffer.

    The interior is fully overwritten every grid step, so only the border strips need
    zeroing.  Done every step (not just step 0) so the kernel stays correct when the
    "parallel" grid axis is sharded across TensorCores (each core has its own scratch
    and may never see program_id == 0).
    """
    c = pad_ref.shape[-1]
    dt = pad_ref.dtype
    pad_ref[0:1, :, :] = jnp.zeros((1, w + 2, c), dt)            # top row
    pad_ref[h + 1:h + 2, :, :] = jnp.zeros((1, w + 2, c), dt)    # bottom row
    pad_ref[:, 0:1, :] = jnp.zeros((h + 2, 1, c), dt)            # left column
    pad_ref[:, w + 1:w + 2, :] = jnp.zeros((h + 2, 1, c), dt)    # right column


def _resblock_kernel(x_ref, w1_ref, w2_ref, ws_ref, b_ref, o_ref,
                     xpad_ref, hpad_ref, col1_ref, col2_ref):
    # x_ref : (1, H, W, Cin)     VMEM, bf16, one image per grid step
    # w1_ref: (9*Cin, Cmid)      VMEM, bf16 (conv1, taps folded into K)
    # w2_ref: (9*Cmid, Cout)     VMEM, bf16 (conv2)
    # w s_ref: (Cin, Cout)        VMEM, bf16 (1x1 skip conv)
    # b_ref : (1, Cout)          VMEM, f32  (skip conv bias)
    # o_ref : (1, H, W, Cout)    VMEM, output dtype
    # xpad/hpad: (H+2, W+2, C)   bf16 zero-halo scratch
    # col1/col2: (H*W, 9*C)      bf16 im2col scratch
    _, h, w, cin = x_ref.shape
    cmid = w1_ref.shape[-1]
    cout = o_ref.shape[-1]
    slope = 0.2

    x = x_ref[0]                                                  # (H, W, Cin) bf16

    # ---- conv1: 3x3 'same', no bias -> LeakyReLU(0.2); single K=9*Cin MXU matmul ----
    _zero_halo(xpad_ref, h, w)
    xpad_ref[1:h + 1, 1:w + 1, :] = x
    for dy in range(3):                     # statically unrolled tap copies (write-only)
        for dx in range(3):
            t = dy * 3 + dx
            col1_ref[:, t * cin:(t + 1) * cin] = (
                xpad_ref[dy:dy + h, dx:dx + w, :].reshape(h * w, cin))
    a1 = jnp.dot(col1_ref[...], w1_ref[...], preferred_element_type=jnp.float32)
    h1 = jnp.where(a1 >= 0, a1, slope * a1).astype(jnp.bfloat16)  # (H*W, Cmid)

    # ---- conv2: 3x3 'same', no bias -> LeakyReLU(0.2) ----
    _zero_halo(hpad_ref, h, w)
    hpad_ref[1:h + 1, 1:w + 1, :] = h1.reshape(h, w, cmid)
    for dy in range(3):
        for dx in range(3):
            t = dy * 3 + dx
            col2_ref[:, t * cmid:(t + 1) * cmid] = (
                hpad_ref[dy:dy + h, dx:dx + w, :].reshape(h * w, cmid))
    a2 = jnp.dot(col2_ref[...], w2_ref[...], preferred_element_type=jnp.float32)
    h2 = jnp.where(a2 >= 0, a2, slope * a2)                       # (H*W, Cout) f32

    # ---- skip path: 1x1 conv + bias, then residual add ----
    skip = jnp.dot(x.reshape(h * w, cin), ws_ref[...],
                   preferred_element_type=jnp.float32) + b_ref[...]

    o_ref[0] = (h2 + skip).reshape(h, w, cout).astype(o_ref.dtype)


@jax.jit
def resblock_forward(x, w1, w2, ws, bias):
    """x: (N, Cin, H, W) NCHW; weights in PyTorch OIHW layout. Returns (N, Cout, H, W)."""
    n, cin, h, w = x.shape
    cmid = w1.shape[0]
    cout = w2.shape[0]

    # Layout plumbing at the PyTorch boundary: channels-last activations (bf16) and
    # weights pre-folded to lane-dense 2D (9*Cin, Cout) blocks with the EqualConv2d
    # scale applied in f32 before the bf16 cast.
    x_nhwc = jnp.transpose(x, (0, 2, 3, 1)).astype(jnp.bfloat16)
    w1_col = (jnp.transpose(w1, (2, 3, 1, 0)) * _equal_conv_scale(w1)
              ).reshape(9 * cin, cmid).astype(jnp.bfloat16)       # (9*Cin, Cmid)
    w2_col = (jnp.transpose(w2, (2, 3, 1, 0)) * _equal_conv_scale(w2)
              ).reshape(9 * cmid, cout).astype(jnp.bfloat16)      # (9*Cmid, Cout)
    ws_t = (jnp.transpose(ws[:, :, 0, 0], (1, 0)) * _equal_conv_scale(ws)
            ).astype(jnp.bfloat16)                                # (Cin, Cout)
    b_t = bias.reshape(1, cout).astype(jnp.float32)

    out_nhwc = pl.pallas_call(
        _resblock_kernel,
        out_shape=jax.ShapeDtypeStruct((n, h, w, cout), x.dtype),
        grid_spec=pltpu.PrefetchScalarGridSpec(
            num_scalar_prefetch=0,
            grid=(n,),
            in_specs=[
                pl.BlockSpec((1, h, w, cin), lambda i: (i, 0, 0, 0)),
                pl.BlockSpec((9 * cin, cmid), lambda i: (0, 0)),
                pl.BlockSpec((9 * cmid, cout), lambda i: (0, 0)),
                pl.BlockSpec((cin, cout), lambda i: (0, 0)),
                pl.BlockSpec((1, cout), lambda i: (0, 0)),
            ],
            out_specs=pl.BlockSpec((1, h, w, cout), lambda i: (i, 0, 0, 0)),
            scratch_shapes=[
                pltpu.VMEM((h + 2, w + 2, cin), jnp.bfloat16),    # x  + zero halo
                pltpu.VMEM((h + 2, w + 2, cmid), jnp.bfloat16),   # h1 + zero halo
                pltpu.VMEM((h * w, 9 * cin), jnp.bfloat16),       # conv1 im2col lhs
                pltpu.VMEM((h * w, 9 * cmid), jnp.bfloat16),      # conv2 im2col lhs
            ],
        ),
        compiler_params=pltpu.CompilerParams(
            # Images are independent -> shard the grid across TensorCores (v7x has 2).
            dimension_semantics=("parallel",),
        ),
    )(x_nhwc, w1_col, w2_col, ws_t, b_t)

    return jnp.transpose(out_nhwc, (0, 3, 1, 2))


def _reference_resblock(x, w1, w2, ws, bias):
    """Plain-JAX/XLA reference (NCHW convs, full-f32 contractions)."""
    prec = jax.lax.Precision.HIGHEST

    def conv(inp, wgt, pad, b=None):
        out = jax.lax.conv_general_dilated(
            inp.astype(jnp.float32),
            wgt.astype(jnp.float32) * _equal_conv_scale(wgt),
            window_strides=(1, 1), padding=[(pad, pad), (pad, pad)],
            dimension_numbers=("NCHW", "OIHW", "NCHW"), precision=prec)
        if b is not None:
            out = out + b[None, :, None, None]
        return out

    lrelu = lambda v: jnp.where(v >= 0, v, 0.2 * v)
    h1 = lrelu(conv(x, w1, 1))
    h2 = lrelu(conv(h1, w2, 1))
    skip = conv(x, ws, 0, b=bias)
    return (h2 + skip).astype(x.dtype)


if __name__ == "__main__":
    key = jax.random.PRNGKey(0)
    kx, k1, k2, k3, kb = jax.random.split(key, 5)

    N, C_IN, C_OUT, H, W = 2, 64, 128, 16, 16

    # Snap the test data to the bf16 grid so the bf16-operand MXU path stays close to
    # the full-f32 reference (conv1/skip products are then exact in the f32 acc; the
    # only extra rounding is the bf16 re-quantization of h1 and of the scaled weights).
    snap = lambda a: a.astype(jnp.bfloat16).astype(jnp.float32)

    x = snap(jax.random.normal(kx, (N, C_IN, H, W), dtype=jnp.float32))
    w1 = snap(jax.random.normal(k1, (C_IN, C_IN, 3, 3), dtype=jnp.float32))
    w2 = snap(jax.random.normal(k2, (C_OUT, C_IN, 3, 3), dtype=jnp.float32))
    ws = snap(jax.random.normal(k3, (C_OUT, C_IN, 1, 1), dtype=jnp.float32))
    # PyTorch initializes the skip-conv bias to zeros; use a random bias here so the
    # bias-add path is actually exercised by the numerical check.
    bias = snap(0.1 * jax.random.normal(kb, (C_OUT,), dtype=jnp.float32))

    out = jax.block_until_ready(resblock_forward(x, w1, w2, ws, bias))
    ref = jax.block_until_ready(_reference_resblock(x, w1, w2, ws, bias))

    assert out.shape == ref.shape, (out.shape, ref.shape)
    # Tolerance covers the bf16 operand quantization (weights*scale, h1) vs the
    # full-f32 reference; typical observed error is ~1e-3.
    np.testing.assert_allclose(np.asarray(out), np.asarray(ref), rtol=2e-2, atol=2e-2)

    print("KERNEL_OK")
</pallas_src>

<mosaic_0001>
module attributes {stable_mosaic.version = 11 : i64} {
  func.func @_resblock_kernel(%arg0: i32, %arg1: memref<1x16x16x64xbf16, #tpu.memory_space<vmem>>, %arg2: memref<576x64xbf16, #tpu.memory_space<vmem>>, %arg3: memref<576x128xbf16, #tpu.memory_space<vmem>>, %arg4: memref<64x128xbf16, #tpu.memory_space<vmem>>, %arg5: memref<1x128xf32, #tpu.memory_space<vmem>>, %arg6: memref<1x16x16x128xf32, #tpu.memory_space<vmem>>, %arg7: memref<18x18x64xbf16, #tpu.memory_space<vmem>>, %arg8: memref<18x18x64xbf16, #tpu.memory_space<vmem>>, %arg9: memref<256x576xbf16, #tpu.memory_space<vmem>>, %arg10: memref<256x576xbf16, #tpu.memory_space<vmem>>) attributes {dimension_semantics = [#tpu.dimension_semantics<parallel>], iteration_bounds = array<i64: 2>, scalar_prefetch = 0 : i64, scratch_operands = 4 : i64, tpu.core_type = #tpu.core_type<tc>, window_params = [{transform_indices = @transform_0, window_bounds = array<i64: 1, 16, 16, 64>}, {pipeline_mode = #tpu.pipeline_mode<synchronous>, transform_indices = @transform_1, window_bounds = array<i64: 576, 64>}, {pipeline_mode = #tpu.pipeline_mode<synchronous>, transform_indices = @transform_2, window_bounds = array<i64: 576, 128>}, {pipeline_mode = #tpu.pipeline_mode<synchronous>, transform_indices = @transform_3, window_bounds = array<i64: 64, 128>}, {pipeline_mode = #tpu.pipeline_mode<synchronous>, transform_indices = @transform_4, window_bounds = array<i64: 1, 128>}, {transform_indices = @transform_5, window_bounds = array<i64: 1, 16, 16, 128>}]} {
    %c0 = arith.constant 0 : index
    %c0_0 = arith.constant 0 : index
    %c0_1 = arith.constant 0 : index
    %c0_2 = arith.constant 0 : index
    %0 = vector.load %arg1[%c0, %c0_0, %c0_1, %c0_2] : memref<1x16x16x64xbf16, #tpu.memory_space<vmem>>, vector<1x16x16x64xbf16>
    %1 = vector.shape_cast %0 : vector<1x16x16x64xbf16> to vector<16x16x64xbf16>
    %cst = arith.constant 0.000000e+00 : bf16
    %2 = vector.broadcast %cst : bf16 to vector<1x18x64xbf16>
    %c0_3 = arith.constant 0 : index
    %c0_4 = arith.constant 0 : index
    %c0_5 = arith.constant 0 : index
    %3 = vector.load %arg7[%c0_3, %c0_4, %c0_5] : memref<18x18x64xbf16, #tpu.memory_space<vmem>>, vector<1x18x64xbf16>
    tpu.vector_store %arg7[%c0_3, %c0_4, %c0_5], %2 {strides = array<i32>} : memref<18x18x64xbf16, #tpu.memory_space<vmem>>, vector<1x18x64xbf16>,
    %cst_6 = arith.constant 0.000000e+00 : bf16
    %4 = vector.broadcast %cst_6 : bf16 to vector<1x18x64xbf16>
    %c17 = arith.constant 17 : index
    %c0_7 = arith.constant 0 : index
    %c0_8 = arith.constant 0 : index
    %5 = vector.load %arg7[%c17, %c0_7, %c0_8] : memref<18x18x64xbf16, #tpu.memory_space<vmem>>, vector<1x18x64xbf16>
    tpu.vector_store %arg7[%c17, %c0_7, %c0_8], %4 {strides = array<i32>} : memref<18x18x64xbf16, #tpu.memory_space<vmem>>, vector<1x18x64xbf16>,
    %cst_9 = arith.constant 0.000000e+00 : bf16
    %6 = vector.broadcast %cst_9 : bf16 to vector<18x1x64xbf16>
    %c0_10 = arith.constant 0 : index
    %c0_11 = arith.constant 0 : index
    %c0_12 = arith.constant 0 : index
    %7 = vector.load %arg7[%c0_10, %c0_11, %c0_12] : memref<18x18x64xbf16, #tpu.memory_space<vmem>>, vector<18x1x64xbf16>
    tpu.vector_store %arg7[%c0_10, %c0_11, %c0_12], %6 {strides = array<i32>} : memref<18x18x64xbf16, #tpu.memory_space<vmem>>, vector<18x1x64xbf16>,
    %cst_13 = arith.constant 0.000000e+00 : bf16
    %8 = vector.broadcast %cst_13 : bf16 to vector<18x1x64xbf16>
    %c0_14 = arith.constant 0 : index
    %c17_15 = arith.constant 17 : index
    %c0_16 = arith.constant 0 : index
    %9 = vector.load %arg7[%c0_14, %c17_15, %c0_16] : memref<18x18x64xbf16, #tpu.memory_space<vmem>>, vector<18x1x64xbf16>
    tpu.vector_store %arg7[%c0_14, %c17_15, %c0_16], %8 {strides = array<i32>} : memref<18x18x64xbf16, #tpu.memory_space<vmem>>, vector<18x1x64xbf16>,
    %c1 = arith.constant 1 : index
    %c1_17 = arith.constant 1 : index
    %c0_18 = arith.constant 0 : index
    %10 = vector.load %arg7[%c1, %c1_17, %c0_18] : memref<18x18x64xbf16, #tpu.memory_space<vmem>>, vector<16x16x64xbf16>
    tpu.vector_store %arg7[%c1, %c1_17, %c0_18], %1 {strides = array<i32>} : memref<18x18x64xbf16, #tpu.memory_space<vmem>>, vector<16x16x64xbf16>,
    %c0_19 = arith.constant 0 : index
    %c0_20 = arith.constant 0 : index
    %c0_21 = arith.constant 0 : index
    %11 = vector.load %arg7[%c0_19, %c0_20, %c0_21] : memref<18x18x64xbf16, #tpu.memory_space<vmem>>, vector<16x16x64xbf16>
    %12 = vector.shape_cast %11 : vector<16x16x64xbf16> to vector<256x64xbf16>
    %c0_22 = arith.constant 0 : index
    %c0_23 = arith.constant 0 : index
    %13 = vector.load %arg9[%c0_22, %c0_23] : memref<256x576xbf16, #tpu.memory_space<vmem>>, vector<256x64xbf16>
    tpu.vector_store %arg9[%c0_22, %c0_23], %12 {strides = array<i32>} : memref<256x576xbf16, #tpu.memory_space<vmem>>, vector<256x64xbf16>,
    %c0_24 = arith.constant 0 : index
    %c1_25 = arith.constant 1 : index
    %c0_26 = arith.constant 0 : index
    %14 = vector.load %arg7[%c0_24, %c1_25, %c0_26] : memref<18x18x64xbf16, #tpu.memory_space<vmem>>, vector<16x16x64xbf16>
    %15 = vector.shape_cast %14 : vector<16x16x64xbf16> to vector<256x64xbf16>
    %c0_27 = arith.constant 0 : index
    %c64 = arith.constant 64 : index
    %16 = vector.load %arg9[%c0_27, %c64] : memref<256x576xbf16, #tpu.memory_space<vmem>>, vector<256x64xbf16>
    tpu.vector_store %arg9[%c0_27, %c64], %15 {strides = array<i32>} : memref<256x576xbf16, #tpu.memory_space<vmem>>, vector<256x64xbf16>,
    %c0_28 = arith.constant 0 : index
    %c2 = arith.constant 2 : index
    %c0_29 = arith.constant 0 : index
    %17 = vector.load %arg7[%c0_28, %c2, %c0_29] : memref<18x18x64xbf16, #tpu.memory_space<vmem>>, vector<16x16x64xbf16>
    %18 = vector.shape_cast %17 : vector<16x16x64xbf16> to vector<256x64xbf16>
    %c0_30 = arith.constant 0 : index
    %c128 = arith.constant 128 : index
    %19 = vector.load %arg9[%c0_30, %c128] : memref<256x576xbf16, #tpu.memory_space<vmem>>, vector<256x64xbf16>
    tpu.vector_store %arg9[%c0_30, %c128], %18 {strides = array<i32>} : memref<256x576xbf16, #tpu.memory_space<vmem>>, vector<256x64xbf16>,
    %c1_31 = arith.constant 1 : index
    %c0_32 = arith.constant 0 : index
    %c0_33 = arith.constant 0 : index
    %20 = vector.load %arg7[%c1_31, %c0_32, %c0_33] : memref<18x18x64xbf16, #tpu.memory_space<vmem>>, vector<16x16x64xbf16>
    %21 = vector.shape_cast %20 : vector<16x16x64xbf16> to vector<256x64xbf16>
    %c0_34 = arith.constant 0 : index
    %c192 = arith.constant 192 : index
    %22 = vector.load %arg9[%c0_34, %c192] : memref<256x576xbf16, #tpu.memory_space<vmem>>, vector<256x64xbf16>
    tpu.vector_store %arg9[%c0_34, %c192], %21 {strides = array<i32>} : memref<256x576xbf16, #tpu.memory_space<vmem>>, vector<256x64xbf16>,
    %c1_35 = arith.constant 1 : index
    %c1_36 = arith.constant 1 : index
    %c0_37 = arith.constant 0 : index
    %23 = vector.load %arg7[%c1_35, %c1_36, %c0_37] : memref<18x18x64xbf16, #tpu.memory_space<vmem>>, vector<16x16x64xbf16>
    %24 = vector.shape_cast %23 : vector<16x16x64xbf16> to vector<256x64xbf16>
    %c0_38 = arith.constant 0 : index
    %c256 = arith.constant 256 : index
    %25 = vector.load %arg9[%c0_38, %c256] : memref<256x576xbf16, #tpu.memory_space<vmem>>, vector<256x64xbf16>
    tpu.vector_store %arg9[%c0_38, %c256], %24 {strides = array<i32>} : memref<256x576xbf16, #tpu.memory_space<vmem>>, vector<256x64xbf16>,
    %c1_39 = arith.constant 1 : index
    %c2_40 = arith.constant 2 : index
    %c0_41 = arith.constant 0 : index
    %26 = vector.load %arg7[%c1_39, %c2_40, %c0_41] : memref<18x18x64xbf16, #tpu.memory_space<vmem>>, vector<16x16x64xbf16>
    %27 = vector.shape_cast %26 : vector<16x16x64xbf16> to vector<256x64xbf16>
    %c0_42 = arith.constant 0 : index
    %c320 = arith.constant 320 : index
    %28 = vector.load %arg9[%c0_42, %c320] : memref<256x576xbf16, #tpu.memory_space<vmem>>, vector<256x64xbf16>
    tpu.vector_store %arg9[%c0_42, %c320], %27 {strides = array<i32>} : memref<256x576xbf16, #tpu.memory_space<vmem>>, vector<256x64xbf16>,
    %c2_43 = arith.constant 2 : index
    %c0_44 = arith.constant 0 : index
    %c0_45 = arith.constant 0 : index
    %29 = vector.load %arg7[%c2_43, %c0_44, %c0_45] : memref<18x18x64xbf16, #tpu.memory_space<vmem>>, vector<16x16x64xbf16>
    %30 = vector.shape_cast %29 : vector<16x16x64xbf16> to vector<256x64xbf16>
    %c0_46 = arith.constant 0 : index
    %c384 = arith.constant 384 : index
    %31 = vector.load %arg9[%c0_46, %c384] : memref<256x576xbf16, #tpu.memory_space<vmem>>, vector<256x64xbf16>
    tpu.vector_store %arg9[%c0_46, %c384], %30 {strides = array<i32>} : memref<256x576xbf16, #tpu.memory_space<vmem>>, vector<256x64xbf16>,
    %c2_47 = arith.constant 2 : index
    %c1_48 = arith.constant 1 : index
    %c0_49 = arith.constant 0 : index
    %32 = vector.load %arg7[%c2_47, %c1_48, %c0_49] : memref<18x18x64xbf16, #tpu.memory_space<vmem>>, vector<16x16x64xbf16>
    %33 = vector.shape_cast %32 : vector<16x16x64xbf16> to vector<256x64xbf16>
    %c0_50 = arith.constant 0 : index
    %c448 = arith.constant 448 : index
    %34 = vector.load %arg9[%c0_50, %c448] : memref<256x576xbf16, #tpu.memory_space<vmem>>, vector<256x64xbf16>
    tpu.vector_store %arg9[%c0_50, %c448], %33 {strides = array<i32>} : memref<256x576xbf16, #tpu.memory_space<vmem>>, vector<256x64xbf16>,
    %c2_51 = arith.constant 2 : index
    %c2_52 = arith.constant 2 : index
    %c0_53 = arith.constant 0 : index
    %35 = vector.load %arg7[%c2_51, %c2_52, %c0_53] : memref<18x18x64xbf16, #tpu.memory_space<vmem>>, vector<16x16x64xbf16>
    %36 = vector.shape_cast %35 : vector<16x16x64xbf16> to vector<256x64xbf16>
    %c0_54 = arith.constant 0 : index
    %c512 = arith.constant 512 : index
    %37 = vector.load %arg9[%c0_54, %c512] : memref<256x576xbf16, #tpu.memory_space<vmem>>, vector<256x64xbf16>
    tpu.vector_store %arg9[%c0_54, %c512], %36 {strides = array<i32>} : memref<256x576xbf16, #tpu.memory_space<vmem>>, vector<256x64xbf16>,
    %c0_55 = arith.constant 0 : index
    %c0_56 = arith.constant 0 : index
    %38 = vector.load %arg9[%c0_55, %c0_56] : memref<256x576xbf16, #tpu.memory_space<vmem>>, vector<256x576xbf16>
    %c0_57 = arith.constant 0 : index
    %c0_58 = arith.constant 0 : index
    %39 = vector.load %arg2[%c0_57, %c0_58] : memref<576x64xbf16, #tpu.memory_space<vmem>>, vector<576x64xbf16>
    %cst_59 = arith.constant dense<0.000000e+00> : vector<256x64xf32>
    %40 = tpu.matmul %38, %39, %cst_59 {dimension_numbers = #tpu.dot_dimension_numbers<[1], [0], [0], [1], [0, 0, 1, 1], [], []>} : vector<256x576xbf16>, vector<576x64xbf16>, vector<256x64xf32> -> vector<256x64xf32>
    %cst_60 = arith.constant 0.000000e+00 : f32
    %41 = vector.broadcast %cst_60 : f32 to vector<256x64xf32>
    %42 = arith.cmpf oge, %40, %41 : vector<256x64xf32>
    %cst_61 = arith.constant 2.000000e-01 : f32
    %43 = vector.broadcast %cst_61 : f32 to vector<256x64xf32>
    %44 = arith.mulf %43, %40 : vector<256x64xf32>
    %45 = arith.select %42, %40, %44 : vector<256x64xi1>, vector<256x64xf32>
    %46 = arith.truncf %45 : vector<256x64xf32> to vector<256x64xbf16>
    %cst_62 = arith.constant 0.000000e+00 : bf16
    %47 = vector.broadcast %cst_62 : bf16 to vector<1x18x64xbf16>
    %c0_63 = arith.constant 0 : index
    %c0_64 = arith.constant 0 : index
    %c0_65 = arith.constant 0 : index
    %48 = vector.load %arg8[%c0_63, %c0_64, %c0_65] : memref<18x18x64xbf16, #tpu.memory_space<vmem>>, vector<1x18x64xbf16>
    tpu.vector_store %arg8[%c0_63, %c0_64, %c0_65], %47 {strides = array<i32>} : memref<18x18x64xbf16, #tpu.memory_space<vmem>>, vector<1x18x64xbf16>,
    %cst_66 = arith.constant 0.000000e+00 : bf16
    %49 = vector.broadcast %cst_66 : bf16 to vector<1x18x64xbf16>
    %c17_67 = arith.constant 17 : index
    %c0_68 = arith.constant 0 : index
    %c0_69 = arith.constant 0 : index
    %50 = vector.load %arg8[%c17_67, %c0_68, %c0_69] : memref<18x18x64xbf16, #tpu.memory_space<vmem>>, vector<1x18x64xbf16>
    tpu.vector_store %arg8[%c17_67, %c0_68, %c0_69], %49 {strides = array<i32>} : memref<18x18x64xbf16, #tpu.memory_space<vmem>>, vector<1x18x64xbf16>,
    %cst_70 = arith.constant 0.000000e+00 : bf16
    %51 = vector.broadcast %cst_70 : bf16 to vector<18x1x64xbf16>
    %c0_71 = arith.constant 0 : index
    %c0_72 = arith.constant 0 : index
    %c0_73 = arith.constant 0 : index
    %52 = vector.load %arg8[%c0_71, %c0_72, %c0_73] : memref<18x18x64xbf16, #tpu.memory_space<vmem>>, vector<18x1x64xbf16>
    tpu.vector_store %arg8[%c0_71, %c0_72, %c0_73], %51 {strides = array<i32>} : memref<18x18x64xbf16, #tpu.memory_space<vmem>>, vector<18x1x64xbf16>,
    %cst_74 = arith.constant 0.000000e+00 : bf16
    %53 = vector.broadcast %cst_74 : bf16 to vector<18x1x64xbf16>
    %c0_75 = arith.constant 0 : index
    %c17_76 = arith.constant 17 : index
    %c0_77 = arith.constant 0 : index
    %54 = vector.load %arg8[%c0_75, %c17_76, %c0_77] : memref<18x18x64xbf16, #tpu.memory_space<vmem>>, vector<18x1x64xbf16>
    tpu.vector_store %arg8[%c0_75, %c17_76, %c0_77], %53 {strides = array<i32>} : memref<18x18x64xbf16, #tpu.memory_space<vmem>>, vector<18x1x64xbf16>,
    %55 = vector.shape_cast %46 : vector<256x64xbf16> to vector<16x16x64xbf16>
    %c1_78 = arith.constant 1 : index
    %c1_79 = arith.constant 1 : index
    %c0_80 = arith.constant 0 : index
    %56 = vector.load %arg8[%c1_78, %c1_79, %c0_80] : memref<18x18x64xbf16, #tpu.memory_space<vmem>>, vector<16x16x64xbf16>
    tpu.vector_store %arg8[%c1_78, %c1_79, %c0_80], %55 {strides = array<i32>} : memref<18x18x64xbf16, #tpu.memory_space<vmem>>, vector<16x16x64xbf16>,
    %c0_81 = arith.constant 0 : index
    %c0_82 = arith.constant 0 : index
    %c0_83 = arith.constant 0 : index
    %57 = vector.load %arg8[%c0_81, %c0_82, %c0_83] : memref<18x18x64xbf16, #tpu.memory_space<vmem>>, vector<16x16x64xbf16>
    %58 = vector.shape_cast %57 : vector<16x16x64xbf16> to vector<256x64xbf16>
    %c0_84 = arith.constant 0 : index
    %c0_85 = arith.constant 0 : index
    %59 = vector.load %arg10[%c0_84, %c0_85] : memref<256x576xbf16, #tpu.memory_space<vmem>>, vector<256x64xbf16>
    tpu.vector_store %arg10[%c0_84, %c0_85], %58 {strides = array<i32>} : memref<256x576xbf16, #tpu.memory_space<vmem>>, vector<256x64xbf16>,
    %c0_86 = arith.constant 0 : index
    %c1_87 = arith.constant 1 : index
    %c0_88 = arith.constant 0 : index
    %60 = vector.load %arg8[%c0_86, %c1_87, %c0_88] : memref<18x18x64xbf16, #tpu.memory_space<vmem>>, vector<16x16x64xbf16>
    %61 = vector.shape_cast %60 : vector<16x16x64xbf16> to vector<256x64xbf16>
    %c0_89 = arith.constant 0 : index
    %c64_90 = arith.constant 64 : index
    %62 = vector.load %arg10[%c0_89, %c64_90] : memref<256x576xbf16, #tpu.memory_space<vmem>>, vector<256x64xbf16>
    tpu.vector_store %arg10[%c0_89, %c64_90], %61 {strides = array<i32>} : memref<256x576xbf16, #tpu.memory_space<vmem>>, vector<256x64xbf16>,
    %c0_91 = arith.constant 0 : index
    %c2_92 = arith.constant 2 : index
    %c0_93 = arith.constant 0 : index
    %63 = vector.load %arg8[%c0_91, %c2_92, %c0_93] : memref<18x18x64xbf16, #tpu.memory_space<vmem>>, vector<16x16x64xbf16>
    %64 = vector.shape_cast %63 : vector<16x16x64xbf16> to vector<256x64xbf16>
    %c0_94 = arith.constant 0 : index
    %c128_95 = arith.constant 128 : index
    %65 = vector.load %arg10[%c0_94, %c128_95] : memref<256x576xbf16, #tpu.memory_space<vmem>>, vector<256x64xbf16>
    tpu.vector_store %arg10[%c0_94, %c128_95], %64 {strides = array<i32>} : memref<256x576xbf16, #tpu.memory_space<vmem>>, vector<256x64xbf16>,
    %c1_96 = arith.constant 1 : index
    %c0_97 = arith.constant 0 : index
    %c0_98 = arith.constant 0 : index
    %66 = vector.load %arg8[%c1_96, %c0_97, %c0_98] : memref<18x18x64xbf16, #tpu.memory_space<vmem>>, vector<16x16x64xbf16>
    %67 = vector.shape_cast %66 : vector<16x16x64xbf16> to vector<256x64xbf16>
    %c0_99 = arith.constant 0 : index
    %c192_100 = arith.constant 192 : index
    %68 = vector.load %arg10[%c0_99, %c192_100] : memref<256x576xbf16, #tpu.memory_space<vmem>>, vector<256x64xbf16>
    tpu.vector_store %arg10[%c0_99, %c192_100], %67 {strides = array<i32>} : memref<256x576xbf16, #tpu.memory_space<vmem>>, vector<256x64xbf16>,
    %c1_101 = arith.constant 1 : index
    %c1_102 = arith.constant 1 : index
    %c0_103 = arith.constant 0 : index
    %69 = vector.load %arg8[%c1_101, %c1_102, %c0_103] : memref<18x18x64xbf16, #tpu.memory_space<vmem>>, vector<16x16x64xbf16>
    %70 = vector.shape_cast %69 : vector<16x16x64xbf16> to vector<256x64xbf16>
    %c0_104 = arith.constant 0 : index
    %c256_105 = arith.constant 256 : index
    %71 = vector.load %arg10[%c0_104, %c256_105] : memref<256x576xbf16, #tpu.memory_space<vmem>>, vector<256x64xbf16>
    tpu.vector_store %arg10[%c0_104, %c256_105], %70 {strides = array<i32>} : memref<256x576xbf16, #tpu.memory_space<vmem>>, vector<256x64xbf16>,
    %c1_106 = arith.constant 1 : index
    %c2_107 = arith.constant 2 : index
    %c0_108 = arith.constant 0 : index
    %72 = vector.load %arg8[%c1_106, %c2_107, %c0_108] : memref<18x18x64xbf16, #tpu.memory_space<vmem>>, vector<16x16x64xbf16>
    %73 = vector.shape_cast %72 : vector<16x16x64xbf16> to vector<256x64xbf16>
    %c0_109 = arith.constant 0 : index
    %c320_110 = arith.constant 320 : index
    %74 = vector.load %arg10[%c0_109, %c320_110] : memref<256x576xbf16, #tpu.memory_space<vmem>>, vector<256x64xbf16>
    tpu.vector_store %arg10[%c0_109, %c320_110], %73 {strides = array<i32>} : memref<256x576xbf16, #tpu.memory_space<vmem>>, vector<256x64xbf16>,
    %c2_111 = arith.constant 2 : index
    %c0_112 = arith.constant 0 : index
    %c0_113 = arith.constant 0 : index
    %75 = vector.load %arg8[%c2_111, %c0_112, %c0_113] : memref<18x18x64xbf16, #tpu.memory_space<vmem>>, vector<16x16x64xbf16>
    %76 = vector.shape_cast %75 : vector<16x16x64xbf16> to vector<256x64xbf16>
    %c0_114 = arith.constant 0 : index
    %c384_115 = arith.constant 384 : index
    %77 = vector.load %arg10[%c0_114, %c384_115] : memref<256x576xbf16, #tpu.memory_space<vmem>>, vector<256x64xbf16>
    tpu.vector_store %arg10[%c0_114, %c384_115], %76 {strides = array<i32>} : memref<256x576xbf16, #tpu.memory_space<vmem>>, vector<256x64xbf16>,
    %c2_116 = arith.constant 2 : index
    %c1_117 = arith.constant 1 : index
    %c0_118 = arith.constant 0 : index
    %78 = vector.load %arg8[%c2_116, %c1_117, %c0_118] : memref<18x18x64xbf16, #tpu.memory_space<vmem>>, vector<16x16x64xbf16>
    %79 = vector.shape_cast %78 : vector<16x16x64xbf16> to vector<256x64xbf16>
    %c0_119 = arith.constant 0 : index
    %c448_120 = arith.constant 448 : index
    %80 = vector.load %arg10[%c0_119, %c448_120] : memref<256x576xbf16, #tpu.memory_space<vmem>>, vector<256x64xbf16>
    tpu.vector_store %arg10[%c0_119, %c448_120], %79 {strides = array<i32>} : memref<256x576xbf16, #tpu.memory_space<vmem>>, vector<256x64xbf16>,
    %c2_121 = arith.constant 2 : index
    %c2_122 = arith.constant 2 : index
    %c0_123 = arith.constant 0 : index
    %81 = vector.load %arg8[%c2_121, %c2_122, %c0_123] : memref<18x18x64xbf16, #tpu.memory_space<vmem>>, vector<16x16x64xbf16>
    %82 = vector.shape_cast %81 : vector<16x16x64xbf16> to vector<256x64xbf16>
    %c0_124 = arith.constant 0 : index
    %c512_125 = arith.constant 512 : index
    %83 = vector.load %arg10[%c0_124, %c512_125] : memref<256x576xbf16, #tpu.memory_space<vmem>>, vector<256x64xbf16>
    tpu.vector_store %arg10[%c0_124, %c512_125], %82 {strides = array<i32>} : memref<256x576xbf16, #tpu.memory_space<vmem>>, vector<256x64xbf16>,
    %c0_126 = arith.constant 0 : index
    %c0_127 = arith.constant 0 : index
    %84 = vector.load %arg10[%c0_126, %c0_127] : memref<256x576xbf16, #tpu.memory_space<vmem>>, vector<256x576xbf16>
    %c0_128 = arith.constant 0 : index
    %c0_129 = arith.constant 0 : index
    %85 = vector.load %arg3[%c0_128, %c0_129] : memref<576x128xbf16, #tpu.memory_space<vmem>>, vector<576x128xbf16>
    %cst_130 = arith.constant dense<0.000000e+00> : vector<256x128xf32>
    %86 = tpu.matmul %84, %85, %cst_130 {dimension_numbers = #tpu.dot_dimension_numbers<[1], [0], [0], [1], [0, 0, 1, 1], [], []>} : vector<256x576xbf16>, vector<576x128xbf16>, vector<256x128xf32> -> vector<256x128xf32>
    %cst_131 = arith.constant 0.000000e+00 : f32
    %87 = vector.broadcast %cst_131 : f32 to vector<256x128xf32>
    %88 = arith.cmpf oge, %86, %87 : vector<256x128xf32>
    %cst_132 = arith.constant 2.000000e-01 : f32
    %89 = vector.broadcast %cst_132 : f32 to vector<256x128xf32>
    %90 = arith.mulf %89, %86 : vector<256x128xf32>
    %91 = arith.select %88, %86, %90 : vector<256x128xi1>, vector<256x128xf32>
    %92 = vector.shape_cast %1 : vector<16x16x64xbf16> to vector<256x64xbf16>
    %c0_133 = arith.constant 0 : index
    %c0_134 = arith.constant 0 : index
    %93 = vector.load %arg4[%c0_133, %c0_134] : memref<64x128xbf16, #tpu.memory_space<vmem>>, vector<64x128xbf16>
    %cst_135 = arith.constant dense<0.000000e+00> : vector<256x128xf32>
    %94 = tpu.matmul %92, %93, %cst_135 {dimension_numbers = #tpu.dot_dimension_numbers<[1], [0], [0], [1], [0, 0, 1, 1], [], []>} : vector<256x64xbf16>, vector<64x128xbf16>, vector<256x128xf32> -> vector<256x128xf32>
    %c0_136 = arith.constant 0 : index
    %c0_137 = arith.constant 0 : index
    %95 = vector.load %arg5[%c0_136, %c0_137] : memref<1x128xf32, #tpu.memory_space<vmem>>, vector<1x128xf32>
    %96 = vector.broadcast %95 : vector<1x128xf32> to vector<256x128xf32>
    %97 = arith.addf %94, %96 : vector<256x128xf32>
    %98 = arith.addf %91, %97 : vector<256x128xf32>
    %99 = vector.shape_cast %98 : vector<256x128xf32> to vector<16x16x128xf32>
    %c0_138 = arith.constant 0 : index
    %c0_139 = arith.constant 0 : index
    %c0_140 = arith.constant 0 : index
    %c0_141 = arith.constant 0 : index
    %100 = vector.load %arg6[%c0_138, %c0_139, %c0_140, %c0_141] : memref<1x16x16x128xf32, #tpu.memory_space<vmem>>, vector<1x16x16x128xf32>
    %101 = vector.shape_cast %100 : vector<1x16x16x128xf32> to vector<16x16x128xf32>
    %102 = vector.shape_cast %99 : vector<16x16x128xf32> to vector<1x16x16x128xf32>
    tpu.vector_store %arg6[%c0_138, %c0_139, %c0_140, %c0_141], %102 {strides = array<i32>} : memref<1x16x16x128xf32, #tpu.memory_space<vmem>>, vector<1x16x16x128xf32>,
    return
  }
  func.func @transform_0(%arg0: i32) -> (i32, i32, i32, i32) {
    %c0_i32 = arith.constant 0 : i32
    %c0_i32_0 = arith.constant 0 : i32
    %c0_i32_1 = arith.constant 0 : i32
    %c0_i32_2 = arith.constant 0 : i32
    return %arg0, %c0_i32, %c0_i32_0, %c0_i32_1 : i32, i32, i32, i32
  }
  func.func @transform_1(%arg0: i32) -> (i32, i32) {
    %c0_i32 = arith.constant 0 : i32
    %c0_i32_0 = arith.constant 0 : i32
    %c0_i32_1 = arith.constant 0 : i32
    return %c0_i32, %c0_i32_0 : i32, i32
  }
  func.func @transform_2(%arg0: i32) -> (i32, i32) {
    %c0_i32 = arith.constant 0 : i32
    %c0_i32_0 = arith.constant 0 : i32
    %c0_i32_1 = arith.constant 0 : i32
    return %c0_i32, %c0_i32_0 : i32, i32
  }
  func.func @transform_3(%arg0: i32) -> (i32, i32) {
    %c0_i32 = arith.constant 0 : i32
    %c0_i32_0 = arith.constant 0 : i32
    %c0_i32_1 = arith.constant 0 : i32
    return %c0_i32, %c0_i32_0 : i32, i32
  }
  func.func @transform_4(%arg0: i32) -> (i32, i32) {
    %c0_i32 = arith.constant 0 : i32
    %c0_i32_0 = arith.constant 0 : i32
    %c0_i32_1 = arith.constant 0 : i32
    return %c0_i32, %c0_i32_0 : i32, i32
  }
  func.func @transform_5(%arg0: i32) -> (i32, i32, i32, i32) {
    %c0_i32 = arith.constant 0 : i32
    %c0_i32_0 = arith.constant 0 : i32
    %c0_i32_1 = arith.constant 0 : i32
    %c0_i32_2 = arith.constant 0 : i32
    return %arg0, %c0_i32, %c0_i32_0, %c0_i32_1 : i32, i32, i32, i32
  }
}

</mosaic_0001>

<llo_original>
// kernel: resblock_forward.1
$region0: #{resblock_forward.1}
  #allocation0 [shape = 'u32[]', space=smem, size = 0x4, offset = 0x4, fixed_abs, tag = 'smem constant byte address 0x4 - core index']
  #allocation1 [shape = 'u32[144,128]{1,0:T(1,128)}', space=vmem, size = 0x12000, scoped, tag = 'internal scratch']
  #allocation2 [shape = 'bf16[18,18,64]{2,1,0:T(8,128)(2,1)}', space=vmem, size = 0x1b000, scoped, tag = 'scratch operand']
  #allocation3 [shape = 'bf16[18,18,64]{2,1,0:T(8,128)(2,1)}', space=vmem, size = 0x1b000, scoped, tag = 'scratch operand']
  #allocation4 [shape = 'bf16[256,576]{1,0:T(8,128)(2,1)}', space=vmem, size = 0x50000, scoped, tag = 'scratch operand']
  #allocation5 [shape = 'bf16[256,576]{1,0:T(8,128)(2,1)}', space=vmem, size = 0x50000, scoped, tag = 'scratch operand']
  %s0 = inlined_call_operand.vmem [shape: bf16[2,16,16,64], index: 0, kind: input, shape index: {}]
  %s1 = inlined_call_operand.vmem [shape: bf16[576,64], index: 1, kind: input, shape index: {}]
  %s2 = inlined_call_operand.vmem [shape: bf16[576,128], index: 2, kind: input, shape index: {}]
  %s3 = inlined_call_operand.vmem [shape: bf16[64,128], index: 3, kind: input, shape index: {}]
  %s4 = inlined_call_operand.vmem [shape: f32[1,128], index: 4, kind: input, shape index: {}]
  %s5 = inlined_call_operand.hbm [shape: f32[2,16,16,128], index: 5, kind: output, shape index: {}]
  %s6 = sld [smem:[#allocation0]]
  $region53: #{resblock_forward.1} parent=0
    _
  %s8 = ssub.s32 1, %s6
  %s9 = scalar_select 0, %s8, %s6
  $region1: #{resblock_forward.1} parent=0
    #allocation6 [shape = 'u8[262144]{0}', space=vmem, size = 0x40000, scoped, tag = 'output window, operand 0']
    #allocation7 [shape = 's32[2]{0}', space=sflag, size = 0x8, scoped, tag = 'scoped memory for resblock_forward.1']
    %10 = vsyncpa [#allocation7], 0
    %s11 = scalar_lea.sflag [#allocation7], 1
    %12 = vsyncpa %s11, 0
    loop: start=0, step=1, limit=4
    $region2: #{resblock_forward.1} parent=1 // loop_pre_header
      _
    $region3: #{resblock_forward.1} parent=1 // loop_header
      %s14 = sphi 0, %s18
      %p15 = scmp.ge.s32.totalorder %s14, 4
      %s24 = sphi 0, %s26
      %s27 = sphi 0, %s24
      %s28 = sphi 0, %s27
      %s44 = sphi 0, %s28
      %s48 = sphi 0, %s48
      %s50 = sphi 0, %s48
      %s51 = sphi 0, %s50
      %s65 = sphi 0, %s51
      %s69 = sphi 0, %s69
      %s71 = sphi 0, %s69
      %s72 = sphi 0, %s71
      %s86 = sphi 0, %s72
      %s90 = sphi 0, %s90
      %s92 = sphi 0, %s90
      %s93 = sphi 0, %s92
      %s107 = sphi 0, %s93
      %s111 = sphi 0, %s111
      %s113 = sphi 0, %s111
      %s114 = sphi 0, %s113
      %s128 = sphi 0, %s114
      %s134 = sphi 0, %s136
      %s137 = sphi 0, %s134
      %s138 = sphi 0, %s137
      %s154 = sphi 0, %s138
    $region4: #{resblock_forward.1} parent=1 // loop_header_branch
      %17 = sbr.rel (%p15) target = $region8
    $region5: #{resblock_forward.1} parent=1 // loop_body
      %s19 = ssub.s32 %s14, 1
      %s20 = ssub.s32 %s14, 2
      %s21 = sadd.s32 %s14, 1
      %s22 = ssub.s32 %s14, %s21
      %p23 = scmp.eq.s32.totalorder %s22, 0
      %s25 = sadd.s32 %s24, 1
      %s26 = scalar_select %p23, %s24, %s25
      %p29 = pneg %p23
      %p30 = scmp.eq.s32.totalorder %s14, 1
      %p31 = por %p29, %p30
      %p32 = scmp.ne.s32.totalorder %s24, %s27
      %p33 = scmp.eq.s32.totalorder %s14, 0
      %p34 = por %p32, %p33
      %p35 = scmp.ne.s32.totalorder %s24, %s27
      %p36 = scmp.eq.s32.totalorder %s19, 1
      %p37 = por %p35, %p36
      %p38 = scmp.ne.s32.totalorder %s27, %s28
      %p39 = scmp.eq.s32.totalorder %s19, 0
      %p40 = por %p38, %p39
      %p41 = scmp.ne.s32.totalorder %s27, %s28
      %p42 = scmp.eq.s32.totalorder %s20, 1
      %p43 = por %p41, %p42
      %p45 = scmp.ne.s32.totalorder %s28, %s44
      %p46 = scmp.eq.s32.totalorder %s20, 0
      %p47 = por %p45, %p46
      %s49 = sadd.s32 %s48, 1
      %p52 = scmp.eq.s32.totalorder %s14, 1
      %p53 = scmp.ne.s32.totalorder %s48, %s50
      %p54 = scmp.eq.s32.totalorder %s14, 0
      %p55 = por %p53, %p54
      %p56 = scmp.ne.s32.totalorder %s48, %s50
      %p57 = scmp.eq.s32.totalorder %s19, 1
      %p58 = por %p56, %p57
      %p59 = scmp.ne.s32.totalorder %s50, %s51
      %p60 = scmp.eq.s32.totalorder %s19, 0
      %p61 = por %p59, %p60
      %p62 = scmp.ne.s32.totalorder %s50, %s51
      %p63 = scmp.eq.s32.totalorder %s20, 1
      %p64 = por %p62, %p63
      %p66 = scmp.ne.s32.totalorder %s51, %s65
      %p67 = scmp.eq.s32.totalorder %s20, 0
      %p68 = por %p66, %p67
      %s70 = sadd.s32 %s69, 1
      %p73 = scmp.eq.s32.totalorder %s14, 1
      %p74 = scmp.ne.s32.totalorder %s69, %s71
      %p75 = scmp.eq.s32.totalorder %s14, 0
      %p76 = por %p74, %p75
      %p77 = scmp.ne.s32.totalorder %s69, %s71
      %p78 = scmp.eq.s32.totalorder %s19, 1
      %p79 = por %p77, %p78
      %p80 = scmp.ne.s32.totalorder %s71, %s72
      %p81 = scmp.eq.s32.totalorder %s19, 0
      %p82 = por %p80, %p81
      %p83 = scmp.ne.s32.totalorder %s71, %s72
      %p84 = scmp.eq.s32.totalorder %s20, 1
      %p85 = por %p83, %p84
      %p87 = scmp.ne.s32.totalorder %s72, %s86
      %p88 = scmp.eq.s32.totalorder %s20, 0
      %p89 = por %p87, %p88
      %s91 = sadd.s32 %s90, 1
      %p94 = scmp.eq.s32.totalorder %s14, 1
      %p95 = scmp.ne.s32.totalorder %s90, %s92
      %p96 = scmp.eq.s32.totalorder %s14, 0
      %p97 = por %p95, %p96
      %p98 = scmp.ne.s32.totalorder %s90, %s92
      %p99 = scmp.eq.s32.totalorder %s19, 1
      %p100 = por %p98, %p99
      %p101 = scmp.ne.s32.totalorder %s92, %s93
      %p102 = scmp.eq.s32.totalorder %s19, 0
      %p103 = por %p101, %p102
      %p104 = scmp.ne.s32.totalorder %s92, %s93
      %p105 = scmp.eq.s32.totalorder %s20, 1
      %p106 = por %p104, %p105
      %p108 = scmp.ne.s32.totalorder %s93, %s107
      %p109 = scmp.eq.s32.totalorder %s20, 0
      %p110 = por %p108, %p109
      %s112 = sadd.s32 %s111, 1
      %p115 = scmp.eq.s32.totalorder %s14, 1
      %p116 = scmp.ne.s32.totalorder %s111, %s113
      %p117 = scmp.eq.s32.totalorder %s14, 0
      %p118 = por %p116, %p117
      %p119 = scmp.ne.s32.totalorder %s111, %s113
      %p120 = scmp.eq.s32.totalorder %s19, 1
      %p121 = por %p119, %p120
      %p122 = scmp.ne.s32.totalorder %s113, %s114
      %p123 = scmp.eq.s32.totalorder %s19, 0
      %p124 = por %p122, %p123
      %p125 = scmp.ne.s32.totalorder %s113, %s114
      %p126 = scmp.eq.s32.totalorder %s20, 1
      %p127 = por %p125, %p126
      %p129 = scmp.ne.s32.totalorder %s114, %s128
      %p130 = scmp.eq.s32.totalorder %s20, 0
      %p131 = por %p129, %p130
      %s132 = ssub.s32 %s14, %s21
      %p133 = scmp.eq.s32.totalorder %s132, 0
      %s135 = sadd.s32 %s134, 1
      %s136 = scalar_select %p133, %s134, %s135
      %p139 = pneg %p133
      %p140 = scmp.eq.s32.totalorder %s14, 1
      %p141 = por %p139, %p140
      %p142 = scmp.ne.s32.totalorder %s134, %s137
      %p143 = scmp.eq.s32.totalorder %s14, 0
      %p144 = por %p142, %p143
      %p145 = scmp.ne.s32.totalorder %s134, %s137
      %p146 = scmp.eq.s32.totalorder %s19, 1
      %p147 = por %p145, %p146
      %p148 = scmp.ne.s32.totalorder %s137, %s138
      %p149 = scmp.eq.s32.totalorder %s19, 0
      %p150 = por %p148, %p149
      %p151 = scmp.ne.s32.totalorder %s137, %s138
      %p152 = scmp.eq.s32.totalorder %s20, 1
      %p153 = por %p151, %p152
      %p155 = scmp.ne.s32.totalorder %s138, %s154
      %p156 = scmp.eq.s32.totalorder %s20, 0
      %p157 = por %p155, %p156
      %p158 = scmp.le.s32.totalorder 1, %s14
      %p159 = scmp.lt.s32.totalorder %s14, 3
      %p160 = pnand %p158, %p159
      %p161 = pneg %p160
      // Predicated region
      $region9: #{resblock_forward.1} parent=5 // pred_check
        _
      $region10: #{resblock_forward.1} parent=5 // pred_check_branch
        %163 = sbr.rel (%p160) target = $region12
      $region11: #{resblock_forward.1} parent=5 // pred_region
        %s164 = ssub.s32 %s14, 1
        // Predicated region
        $region13: #{resblock_forward.1} parent=11 // pred_check
          %p165 = pneg %p61
        $region14: #{resblock_forward.1} parent=11 // pred_check_branch
          %167 = sbr.rel (%p165) target = $region16
        $region15: #{resblock_forward.1} parent=11 // pred_region
          _
        $region16: #{resblock_forward.1} parent=11 // pred_fallthru
          _
        // Predicated region
        $region17: #{resblock_forward.1} parent=11 // pred_check
          %p168 = pneg %p82
        $region18: #{resblock_forward.1} parent=11 // pred_check_branch
          %170 = sbr.rel (%p168) target = $region20
        $region19: #{resblock_forward.1} parent=11 // pred_region
          _
        $region20: #{resblock_forward.1} parent=11 // pred_fallthru
          _
        // Predicated region
        $region21: #{resblock_forward.1} parent=11 // pred_check
          %p171 = pneg %p103
        $region22: #{resblock_forward.1} parent=11 // pred_check_branch
          %173 = sbr.rel (%p171) target = $region24
        $region23: #{resblock_forward.1} parent=11 // pred_region
          _
        $region24: #{resblock_forward.1} parent=11 // pred_fallthru
          _
        // Predicated region
        $region25: #{resblock_forward.1} parent=11 // pred_check
          %p174 = pneg %p124
        $region26: #{resblock_forward.1} parent=11 // pred_check_branch
          %176 = sbr.rel (%p174) target = $region28
        $region27: #{resblock_forward.1} parent=11 // pred_region
          _
        $region28: #{resblock_forward.1} parent=11 // pred_fallthru
          _
      $region12: #{resblock_forward.1} parent=5 // pred_fallthru
        _
      %p177 = scmp.lt.s32.totalorder %s14, 2
      // Predicated region
      $region29: #{resblock_forward.1} parent=5 // pred_check
        %p178 = pneg %p177
      $region30: #{resblock_forward.1} parent=5 // pred_check_branch
        %180 = sbr.rel (%p178) target = $region32
      $region31: #{resblock_forward.1} parent=5 // pred_region
        // Predicated region
        $region33: #{resblock_forward.1} parent=31 // pred_check
          %p181 = pneg %p34
        $region34: #{resblock_forward.1} parent=31 // pred_check_branch
          %183 = sbr.rel (%p181) target = $region36
        $region35: #{resblock_forward.1} parent=31 // pred_region
          %p184 = scmp.lt.s32.totalorder %s14, 1
          %s185 = scalar_select %p184, %s14, 1
          %s186 = smul.addr %s185, 32
          %s187 = smul.addr %s186, 4
          %s188 = scalar_lea.vmem %s0, %s187
        $region36: #{resblock_forward.1} parent=31 // pred_fallthru
          _
      $region32: #{resblock_forward.1} parent=5 // pred_fallthru
        _
      %p189 = scmp.le.s32.totalorder 1, %s14
      %p190 = scmp.lt.s32.totalorder %s14, 3
      %p191 = pnand %p189, %p190
      %p192 = pneg %p191
      // Predicated region
      $region37: #{resblock_forward.1} parent=5 // pred_check
        _
      $region38: #{resblock_forward.1} parent=5 // pred_check_branch
        %194 = sbr.rel (%p191) target = $region40
      $region39: #{resblock_forward.1} parent=5 // pred_region
        %s195 = ssub.s32 %s14, 1
        %p196 = scmp.lt.s32.totalorder %s19, 1
        %s197 = scalar_select %p196, %s19, 1
        %s198 = smul.addr %s197, 32
        %s199 = smul.addr %s198, 4
        %s200 = scalar_lea.vmem %s0, %s199
        %p201 = pneg %p40
        %p202 = pneg %p37
        %p203 = pneg %p61
        %p204 = pneg %p58
        %p205 = pneg %p82
        %p206 = pneg %p79
        %p207 = pneg %p103
        %p208 = pneg %p100
        %p209 = pneg %p124
        %p210 = pneg %p121
        %p211 = pneg %p150
        %p212 = pneg %p147
        %s213 = sand.u32 %s137, 1
        %s214 = scalar_lea.sflag [#allocation7], %s213
        %s215 = sand.u32 %s137, 1
        %s216 = smul.addr %s215, 256
        %s217 = scalar_lea.vmem [#allocation6], %s216
        %p218 = scmp.lt.s32.totalorder %s19, 1
        %s219 = scalar_select %p218, %s19, 1
        %s220 = smul.addr %s219, 32
        %s221 = smul.addr %s220, 4
        %s222 = scalar_lea.vmem %s0, %s221
        %v224 = vld [vmem:[%s222] sm:$0xf]
        %v225 = vld [vmem:[%s222 + $0x4] sm:$0xf]
        %v226 = vld [vmem:[%s222 + $0x8] sm:$0xf]
        %v227 = vld [vmem:[%s222 + $0xc] sm:$0xf]
        %v228 = vld [vmem:[%s222 + $0x10] sm:$0xf]
        %v229 = vld [vmem:[%s222 + $0x14] sm:$0xf]
        %v230 = vld [vmem:[%s222 + $0x18] sm:$0xf]
        %v231 = vld [vmem:[%s222 + $0x1c] sm:$0xf]
        %v232 = vld [vmem:[%s222 + $0x20] sm:$0xf]
        %v233 = vld [vmem:[%s222 + $0x24] sm:$0xf]
        %v234 = vld [vmem:[%s222 + $0x28] sm:$0xf]
        %v235 = vld [vmem:[%s222 + $0x2c] sm:$0xf]
        %v236 = vld [vmem:[%s222 + $0x30] sm:$0xf]
        %v237 = vld [vmem:[%s222 + $0x34] sm:$0xf]
        %v238 = vld [vmem:[%s222 + $0x38] sm:$0xf]
        %v239 = vld [vmem:[%s222 + $0x3c] sm:$0xf]
        %v240 = vld [vmem:[%s222 + $0x40] sm:$0xf]
        %v241 = vld [vmem:[%s222 + $0x44] sm:$0xf]
        %v242 = vld [vmem:[%s222 + $0x48] sm:$0xf]
        %v243 = vld [vmem:[%s222 + $0x4c] sm:$0xf]
        %v244 = vld [vmem:[%s222 + $0x50] sm:$0xf]
        %v245 = vld [vmem:[%s222 + $0x54] sm:$0xf]
        %v246 = vld [vmem:[%s222 + $0x58] sm:$0xf]
        %v247 = vld [vmem:[%s222 + $0x5c] sm:$0xf]
        %v248 = vld [vmem:[%s222 + $0x60] sm:$0xf]
        %v249 = vld [vmem:[%s222 + $0x64] sm:$0xf]
        %v250 = vld [vmem:[%s222 + $0x68] sm:$0xf]
        %v251 = vld [vmem:[%s222 + $0x6c] sm:$0xf]
        %v252 = vld [vmem:[%s222 + $0x70] sm:$0xf]
        %v253 = vld [vmem:[%s222 + $0x74] sm:$0xf]
        %v254 = vld [vmem:[%s222 + $0x78] sm:$0xf]
        %v255 = vld [vmem:[%s222 + $0x7c] sm:$0xf]
        %vm256 = vcmask 519168
        %257 = vst.msk [vmem:[#allocation2] sm:$0xf] %vm256, 0
        %258 = vst.msk [vmem:[#allocation2 + $0x4] sm:$0xf] %vm256, 0
        %vm259 = vcmask 516096
        %260 = vst.msk [vmem:[#allocation2 + $0x8] sm:$0x1] %vm259, 0
        %s261 = scalar_lea.vmem [#allocation2], 204
        %262 = vst.msk [vmem:[%s261] sm:$0xf] %vm256, 0
        %263 = vst.msk [vmem:[%s261 + $0x4] sm:$0xf] %vm256, 0
        %264 = vst.msk [vmem:[%s261 + $0x8] sm:$0x1] %vm259, 0
        %vm265 = vcmask 516096
        %vm266 = vsmask.f32 256
        %vm267 = vmand %vm265, %vm266
        %v268 = vld [vmem:[#allocation2] sm:$0x1]
        %v269 = vsel %vm267, 0, %v268
        %270 = vst [vmem:[#allocation2] sm:$0x1] %v269
        %v271 = vld [vmem:[#allocation2 + $0xc] sm:$0x1]
        %v272 = vsel %vm267, 0, %v271
        %273 = vst [vmem:[#allocation2 + $0xc] sm:$0x1] %v272
        %v274 = vld [vmem:[#allocation2 + $0x18] sm:$0x1]
        %v275 = vsel %vm267, 0, %v274
        %276 = vst [vmem:[#allocation2 + $0x18] sm:$0x1] %v275
        %v277 = vld [vmem:[#allocation2 + $0x24] sm:$0x1]
        %v278 = vsel %vm267, 0, %v277
        %279 = vst [vmem:[#allocation2 + $0x24] sm:$0x1] %v278
        %v280 = vld [vmem:[#allocation2 + $0x30] sm:$0x1]
        %v281 = vsel %vm267, 0, %v280
        %282 = vst [vmem:[#allocation2 + $0x30] sm:$0x1] %v281
        %v283 = vld [vmem:[#allocation2 + $0x3c] sm:$0x1]
        %v284 = vsel %vm267, 0, %v283
        %285 = vst [vmem:[#allocation2 + $0x3c] sm:$0x1] %v284
        %v286 = vld [vmem:[#allocation2 + $0x48] sm:$0x1]
        %v287 = vsel %vm267, 0, %v286
        %288 = vst [vmem:[#allocation2 + $0x48] sm:$0x1] %v287
        %v289 = vld [vmem:[#allocation2 + $0x54] sm:$0x1]
        %v290 = vsel %vm267, 0, %v289
        %291 = vst [vmem:[#allocation2 + $0x54] sm:$0x1] %v290
        %v292 = vld [vmem:[#allocation2 + $0x60] sm:$0x1]
        %v293 = vsel %vm267, 0, %v292
        %294 = vst [vmem:[#allocation2 + $0x60] sm:$0x1] %v293
        %v295 = vld [vmem:[#allocation2 + $0x6c] sm:$0x1]
        %v296 = vsel %vm267, 0, %v295
        %297 = vst [vmem:[#allocation2 + $0x6c] sm:$0x1] %v296
        %v298 = vld [vmem:[#allocation2 + $0x78] sm:$0x1]
        %v299 = vsel %vm267, 0, %v298
        %300 = vst [vmem:[#allocation2 + $0x78] sm:$0x1] %v299
        %v301 = vld [vmem:[#allocation2 + $0x84] sm:$0x1]
        %v302 = vsel %vm267, 0, %v301
        %303 = vst [vmem:[#allocation2 + $0x84] sm:$0x1] %v302
        %v304 = vld [vmem:[#allocation2 + $0x90] sm:$0x1]
        %v305 = vsel %vm267, 0, %v304
        %306 = vst [vmem:[#allocation2 + $0x90] sm:$0x1] %v305
        %v307 = vld [vmem:[#allocation2 + $0x9c] sm:$0x1]
        %v308 = vsel %vm267, 0, %v307
        %309 = vst [vmem:[#allocation2 + $0x9c] sm:$0x1] %v308
        %v310 = vld [vmem:[#allocation2 + $0xa8] sm:$0x1]
        %v311 = vsel %vm267, 0, %v310
        %312 = vst [vmem:[#allocation2 + $0xa8] sm:$0x1] %v311
        %v313 = vld [vmem:[#allocation2 + $0xb4] sm:$0x1]
        %v314 = vsel %vm267, 0, %v313
        %315 = vst [vmem:[#allocation2 + $0xb4] sm:$0x1] %v314
        %v316 = vld [vmem:[#allocation2 + $0xc0] sm:$0x1]
        %v317 = vsel %vm267, 0, %v316
        %318 = vst [vmem:[#allocation2 + $0xc0] sm:$0x1] %v317
        %v319 = vld [vmem:[#allocation2 + $0xcc] sm:$0x1]
        %v320 = vsel %vm267, 0, %v319
        %321 = vst [vmem:[#allocation2 + $0xcc] sm:$0x1] %v320
        %vm322 = vsmask.f32 7938
        %vm323 = vmand %vm265, %vm322
        %v324 = vld [vmem:[#allocation2 + $0x8] sm:$0x1]
        %v325 = vsel %vm323, 0, %v324
        %326 = vst [vmem:[#allocation2 + $0x8] sm:$0x1] %v325
        %v327 = vld [vmem:[#allocation2 + $0x14] sm:$0x1]
        %v328 = vsel %vm323, 0, %v327
        %329 = vst [vmem:[#allocation2 + $0x14] sm:$0x1] %v328
        %v330 = vld [vmem:[#allocation2 + $0x20] sm:$0x1]
        %v331 = vsel %vm323, 0, %v330
        %332 = vst [vmem:[#allocation2 + $0x20] sm:$0x1] %v331
        %v333 = vld [vmem:[#allocation2 + $0x2c] sm:$0x1]
        %v334 = vsel %vm323, 0, %v333
        %335 = vst [vmem:[#allocation2 + $0x2c] sm:$0x1] %v334
        %v336 = vld [vmem:[#allocation2 + $0x38] sm:$0x1]
        %v337 = vsel %vm323, 0, %v336
        %338 = vst [vmem:[#allocation2 + $0x38] sm:$0x1] %v337
        %v339 = vld [vmem:[#allocation2 + $0x44] sm:$0x1]
        %v340 = vsel %vm323, 0, %v339
        %341 = vst [vmem:[#allocation2 + $0x44] sm:$0x1] %v340
        %v342 = vld [vmem:[#allocation2 + $0x50] sm:$0x1]
        %v343 = vsel %vm323, 0, %v342
        %344 = vst [vmem:[#allocation2 + $0x50] sm:$0x1] %v343
        %v345 = vld [vmem:[#allocation2 + $0x5c] sm:$0x1]
        %v346 = vsel %vm323, 0, %v345
        %347 = vst [vmem:[#allocation2 + $0x5c] sm:$0x1] %v346
        %v348 = vld [vmem:[#allocation2 + $0x68] sm:$0x1]
        %v349 = vsel %vm323, 0, %v348
        %350 = vst [vmem:[#allocation2 + $0x68] sm:$0x1] %v349
        %v351 = vld [vmem:[#allocation2 + $0x74] sm:$0x1]
        %v352 = vsel %vm323, 0, %v351
        %353 = vst [vmem:[#allocation2 + $0x74] sm:$0x1] %v352
        %v354 = vld [vmem:[#allocation2 + $0x80] sm:$0x1]
        %v355 = vsel %vm323, 0, %v354
        %356 = vst [vmem:[#allocation2 + $0x80] sm:$0x1] %v355
        %v357 = vld [vmem:[#allocation2 + $0x8c] sm:$0x1]
        %v358 = vsel %vm323, 0, %v357
        %359 = vst [vmem:[#allocation2 + $0x8c] sm:$0x1] %v358
        %v360 = vld [vmem:[#allocation2 + $0x98] sm:$0x1]
        %v361 = vsel %vm323, 0, %v360
        %362 = vst [vmem:[#allocation2 + $0x98] sm:$0x1] %v361
        %v363 = vld [vmem:[#allocation2 + $0xa4] sm:$0x1]
        %v364 = vsel %vm323, 0, %v363
        %365 = vst [vmem:[#allocation2 + $0xa4] sm:$0x1] %v364
        %v366 = vld [vmem:[#allocation2 + $0xb0] sm:$0x1]
        %v367 = vsel %vm323, 0, %v366
        %368 = vst [vmem:[#allocation2 + $0xb0] sm:$0x1] %v367
        %v369 = vld [vmem:[#allocation2 + $0xbc] sm:$0x1]
        %v370 = vsel %vm323, 0, %v369
        %371 = vst [vmem:[#allocation2 + $0xbc] sm:$0x1] %v370
        %v372 = vld [vmem:[#allocation2 + $0xc8] sm:$0x1]
        %v373 = vsel %vm323, 0, %v372
        %374 = vst [vmem:[#allocation2 + $0xc8] sm:$0x1] %v373
        %v375 = vld [vmem:[#allocation2 + $0xd4] sm:$0x1]
        %v376 = vsel %vm323, 0, %v375
        %377 = vst [vmem:[#allocation2 + $0xd4] sm:$0x1] %v376
        %vm378 = vsmask.f32 4368
        %vm379 = vmor %vm266, %vm378
        %v381 = vshrl.u32 %v224, 16
        %v383 = vrot.slane %v381, 7
        %v384 = vshll.u32 %v224, 16
        %v386 = vor.u32 %v383, %v384
        %v387 = vrot.slane %v383, 4
        %v389 = vshrl.u32 %v225, 16
        %v391 = vrot.slane %v389, 7
        %v392 = vshll.u32 %v225, 16
        %v394 = vor.u32 %v391, %v392
        %v395 = vsel %vm379, %v387, %v394
        %v396 = vrot.slane %v391, 4
        %v398 = vshrl.u32 %v226, 16
        %v400 = vrot.slane %v398, 7
        %v401 = vshll.u32 %v226, 16
        %v403 = vor.u32 %v400, %v401
        %v404 = vrot.slane %v400, 4
        %v406 = vshrl.u32 %v227, 16
        %v408 = vrot.slane %v406, 7
        %v409 = vshll.u32 %v227, 16
        %v411 = vor.u32 %v408, %v409
        %v412 = vsel %vm379, %v404, %v411
        %v413 = vrot.slane %v408, 4
        %v415 = vshrl.u32 %v228, 16
        %v417 = vrot.slane %v415, 7
        %v418 = vshll.u32 %v228, 16
        %v420 = vor.u32 %v417, %v418
        %v421 = vrot.slane %v417, 4
        %v423 = vshrl.u32 %v229, 16
        %v425 = vrot.slane %v423, 7
        %v426 = vshll.u32 %v229, 16
        %v428 = vor.u32 %v425, %v426
        %v429 = vsel %vm379, %v421, %v428
        %v430 = vrot.slane %v425, 4
        %v432 = vshrl.u32 %v230, 16
        %v434 = vrot.slane %v432, 7
        %v435 = vshll.u32 %v230, 16
        %v437 = vor.u32 %v434, %v435
        %v438 = vrot.slane %v434, 4
        %v440 = vshrl.u32 %v231, 16
        %v442 = vrot.slane %v440, 7
        %v443 = vshll.u32 %v231, 16
        %v445 = vor.u32 %v442, %v443
        %v446 = vsel %vm379, %v438, %v445
        %v447 = vrot.slane %v442, 4
        %v449 = vshrl.u32 %v232, 16
        %v451 = vrot.slane %v449, 7
        %v452 = vshll.u32 %v232, 16
        %v454 = vor.u32 %v451, %v452
        %v455 = vrot.slane %v451, 4
        %v457 = vshrl.u32 %v233, 16
        %v459 = vrot.slane %v457, 7
        %v460 = vshll.u32 %v233, 16
        %v462 = vor.u32 %v459, %v460
        %v463 = vsel %vm379, %v455, %v462
        %v464 = vrot.slane %v459, 4
        %v466 = vshrl.u32 %v234, 16
        %v468 = vrot.slane %v466, 7
        %v469 = vshll.u32 %v234, 16
        %v471 = vor.u32 %v468, %v469
        %v472 = vrot.slane %v468, 4
        %v474 = vshrl.u32 %v235, 16
        %v476 = vrot.slane %v474, 7
        %v477 = vshll.u32 %v235, 16
        %v479 = vor.u32 %v476, %v477
        %v480 = vsel %vm379, %v472, %v479
        %v481 = vrot.slane %v476, 4
        %v483 = vshrl.u32 %v236, 16
        %v485 = vrot.slane %v483, 7
        %v486 = vshll.u32 %v236, 16
        %v488 = vor.u32 %v485, %v486
        %v489 = vrot.slane %v485, 4
        %v491 = vshrl.u32 %v237, 16
        %v493 = vrot.slane %v491, 7
        %v494 = vshll.u32 %v237, 16
        %v496 = vor.u32 %v493, %v494
        %v497 = vsel %vm379, %v489, %v496
        %v498 = vrot.slane %v493, 4
        %v500 = vshrl.u32 %v238, 16
        %v502 = vrot.slane %v500, 7
        %v503 = vshll.u32 %v238, 16
        %v505 = vor.u32 %v502, %v503
        %v506 = vrot.slane %v502, 4
        %v508 = vshrl.u32 %v239, 16
        %v510 = vrot.slane %v508, 7
        %v511 = vshll.u32 %v239, 16
        %v513 = vor.u32 %v510, %v511
        %v514 = vsel %vm379, %v506, %v513
        %v515 = vrot.slane %v510, 4
        %v517 = vshrl.u32 %v240, 16
        %v519 = vrot.slane %v517, 7
        %v520 = vshll.u32 %v240, 16
        %v522 = vor.u32 %v519, %v520
        %v523 = vrot.slane %v519, 4
        %v525 = vshrl.u32 %v241, 16
        %v527 = vrot.slane %v525, 7
        %v528 = vshll.u32 %v241, 16
        %v530 = vor.u32 %v527, %v528
        %v531 = vsel %vm379, %v523, %v530
        %v532 = vrot.slane %v527, 4
        %v534 = vshrl.u32 %v242, 16
        %v536 = vrot.slane %v534, 7
        %v537 = vshll.u32 %v242, 16
        %v539 = vor.u32 %v536, %v537
        %v540 = vrot.slane %v536, 4
        %v542 = vshrl.u32 %v243, 16
        %v544 = vrot.slane %v542, 7
        %v545 = vshll.u32 %v243, 16
        %v547 = vor.u32 %v544, %v545
        %v548 = vsel %vm379, %v540, %v547
        %v549 = vrot.slane %v544, 4
        %v551 = vshrl.u32 %v244, 16
        %v553 = vrot.slane %v551, 7
        %v554 = vshll.u32 %v244, 16
        %v556 = vor.u32 %v553, %v554
        %v557 = vrot.slane %v553, 4
        %v559 = vshrl.u32 %v245, 16
        %v561 = vrot.slane %v559, 7
        %v562 = vshll.u32 %v245, 16
        %v564 = vor.u32 %v561, %v562
        %v565 = vsel %vm379, %v557, %v564
        %v566 = vrot.slane %v561, 4
        %v568 = vshrl.u32 %v246, 16
        %v570 = vrot.slane %v568, 7
        %v571 = vshll.u32 %v246, 16
        %v573 = vor.u32 %v570, %v571
        %v574 = vrot.slane %v570, 4
        %v576 = vshrl.u32 %v247, 16
        %v578 = vrot.slane %v576, 7
        %v579 = vshll.u32 %v247, 16
        %v581 = vor.u32 %v578, %v579
        %v582 = vsel %vm379, %v574, %v581
        %v583 = vrot.slane %v578, 4
        %v585 = vshrl.u32 %v248, 16
        %v587 = vrot.slane %v585, 7
        %v588 = vshll.u32 %v248, 16
        %v590 = vor.u32 %v587, %v588
        %v591 = vrot.slane %v587, 4
        %v593 = vshrl.u32 %v249, 16
        %v595 = vrot.slane %v593, 7
        %v596 = vshll.u32 %v249, 16
        %v598 = vor.u32 %v595, %v596
        %v599 = vsel %vm379, %v591, %v598
        %v600 = vrot.slane %v595, 4
        %v602 = vshrl.u32 %v250, 16
        %v604 = vrot.slane %v602, 7
        %v605 = vshll.u32 %v250, 16
        %v607 = vor.u32 %v604, %v605
        %v608 = vrot.slane %v604, 4
        %v610 = vshrl.u32 %v251, 16
        %v612 = vrot.slane %v610, 7
        %v613 = vshll.u32 %v251, 16
        %v615 = vor.u32 %v612, %v613
        %v616 = vsel %vm379, %v608, %v615
        %v617 = vrot.slane %v612, 4
        %v619 = vshrl.u32 %v252, 16
        %v621 = vrot.slane %v619, 7
        %v622 = vshll.u32 %v252, 16
        %v624 = vor.u32 %v621, %v622
        %v625 = vrot.slane %v621, 4
        %v627 = vshrl.u32 %v253, 16
        %v629 = vrot.slane %v627, 7
        %v630 = vshll.u32 %v253, 16
        %v632 = vor.u32 %v629, %v630
        %v633 = vsel %vm379, %v625, %v632
        %v634 = vrot.slane %v629, 4
        %v636 = vshrl.u32 %v254, 16
        %v638 = vrot.slane %v636, 7
        %v639 = vshll.u32 %v254, 16
        %v641 = vor.u32 %v638, %v639
        %v642 = vrot.slane %v638, 4
        %v644 = vshrl.u32 %v255, 16
        %v646 = vrot.slane %v644, 7
        %v647 = vshll.u32 %v255, 16
        %v649 = vor.u32 %v646, %v647
        %v650 = vsel %vm379, %v642, %v649
        %v651 = vrot.slane %v646, 4
        %s700 = scalar_lea.vmem [#allocation2], 12
        %vm701 = vcmask 519168
        %vm702 = vmand %vm701, %vm322
        %v703 = vld [vmem:[%s700] sm:$0xf]
        %v704 = vsel %vm702, %v386, %v703
        %705 = vst [vmem:[%s700] sm:$0xf] %v704
        %706 = vst.msk [vmem:[%s700 + $0x4] sm:$0xf] %vm256, %v395
        %v707 = vld [vmem:[%s700 + $0x8] sm:$0x1]
        %v708 = vsel %vm267, %v396, %v707
        %709 = vst [vmem:[%s700 + $0x8] sm:$0x1] %v708
        %v710 = vld [vmem:[%s700 + $0xc] sm:$0xf]
        %v711 = vsel %vm702, %v403, %v710
        %712 = vst [vmem:[%s700 + $0xc] sm:$0xf] %v711
        %713 = vst.msk [vmem:[%s700 + $0x10] sm:$0xf] %vm256, %v412
        %v714 = vld [vmem:[%s700 + $0x14] sm:$0x1]
        %v715 = vsel %vm267, %v413, %v714
        %716 = vst [vmem:[%s700 + $0x14] sm:$0x1] %v715
        %v717 = vld [vmem:[%s700 + $0x18] sm:$0xf]
        %v718 = vsel %vm702, %v420, %v717
        %719 = vst [vmem:[%s700 + $0x18] sm:$0xf] %v718
        %720 = vst.msk [vmem:[%s700 + $0x1c] sm:$0xf] %vm256, %v429
        %v721 = vld [vmem:[%s700 + $0x20] sm:$0x1]
        %v722 = vsel %vm267, %v430, %v721
        %723 = vst [vmem:[%s700 + $0x20] sm:$0x1] %v722
        %v724 = vld [vmem:[%s700 + $0x24] sm:$0xf]
        %v725 = vsel %vm702, %v437, %v724
        %726 = vst [vmem:[%s700 + $0x24] sm:$0xf] %v725
        %727 = vst.msk [vmem:[%s700 + $0x28] sm:$0xf] %vm256, %v446
        %v728 = vld [vmem:[%s700 + $0x2c] sm:$0x1]
        %v729 = vsel %vm267, %v447, %v728
        %730 = vst [vmem:[%s700 + $0x2c] sm:$0x1] %v729
        %v731 = vld [vmem:[%s700 + $0x30] sm:$0xf]
        %v732 = vsel %vm702, %v454, %v731
        %733 = vst [vmem:[%s700 + $0x30] sm:$0xf] %v732
        %734 = vst.msk [vmem:[%s700 + $0x34] sm:$0xf] %vm256, %v463
        %v735 = vld [vmem:[%s700 + $0x38] sm:$0x1]
        %v736 = vsel %vm267, %v464, %v735
        %737 = vst [vmem:[%s700 + $0x38] sm:$0x1] %v736
        %v738 = vld [vmem:[%s700 + $0x3c] sm:$0xf]
        %v739 = vsel %vm702, %v471, %v738
        %740 = vst [vmem:[%s700 + $0x3c] sm:$0xf] %v739
        %741 = vst.msk [vmem:[%s700 + $0x40] sm:$0xf] %vm256, %v480
        %v742 = vld [vmem:[%s700 + $0x44] sm:$0x1]
        %v743 = vsel %vm267, %v481, %v742
        %744 = vst [vmem:[%s700 + $0x44] sm:$0x1] %v743
        %v745 = vld [vmem:[%s700 + $0x48] sm:$0xf]
        %v746 = vsel %vm702, %v488, %v745
        %747 = vst [vmem:[%s700 + $0x48] sm:$0xf] %v746
        %748 = vst.msk [vmem:[%s700 + $0x4c] sm:$0xf] %vm256, %v497
        %v749 = vld [vmem:[%s700 + $0x50] sm:$0x1]
        %v750 = vsel %vm267, %v498, %v749
        %751 = vst [vmem:[%s700 + $0x50] sm:$0x1] %v750
        %v752 = vld [vmem:[%s700 + $0x54] sm:$0xf]
        %v753 = vsel %vm702, %v505, %v752
        %754 = vst [vmem:[%s700 + $0x54] sm:$0xf] %v753
        %755 = vst.msk [vmem:[%s700 + $0x58] sm:$0xf] %vm256, %v514
        %v756 = vld [vmem:[%s700 + $0x5c] sm:$0x1]
        %v757 = vsel %vm267, %v515, %v756
        %758 = vst [vmem:[%s700 + $0x5c] sm:$0x1] %v757
        %v759 = vld [vmem:[%s700 + $0x60] sm:$0xf]
        %v760 = vsel %vm702, %v522, %v759
        %761 = vst [vmem:[%s700 + $0x60] sm:$0xf] %v760
        %762 = vst.msk [vmem:[%s700 + $0x64] sm:$0xf] %vm256, %v531
        %v763 = vld [vmem:[%s700 + $0x68] sm:$0x1]
        %v764 = vsel %vm267, %v532, %v763
        %765 = vst [vmem:[%s700 + $0x68] sm:$0x1] %v764
        %v766 = vld [vmem:[%s700 + $0x6c] sm:$0xf]
        %v767 = vsel %vm702, %v539, %v766
        %768 = vst [vmem:[%s700 + $0x6c] sm:$0xf] %v767
        %769 = vst.msk [vmem:[%s700 + $0x70] sm:$0xf] %vm256, %v548
        %v770 = vld [vmem:[%s700 + $0x74] sm:$0x1]
        %v771 = vsel %vm267, %v549, %v770
        %772 = vst [vmem:[%s700 + $0x74] sm:$0x1] %v771
        %v773 = vld [vmem:[%s700 + $0x78] sm:$0xf]
        %v774 = vsel %vm702, %v556, %v773
        %775 = vst [vmem:[%s700 + $0x78] sm:$0xf] %v774
        %776 = vst.msk [vmem:[%s700 + $0x7c] sm:$0xf] %vm256, %v565
        %v777 = vld [vmem:[%s700 + $0x80] sm:$0x1]
        %v778 = vsel %vm267, %v566, %v777
        %779 = vst [vmem:[%s700 + $0x80] sm:$0x1] %v778
        %v780 = vld [vmem:[%s700 + $0x84] sm:$0xf]
        %v781 = vsel %vm702, %v573, %v780
        %782 = vst [vmem:[%s700 + $0x84] sm:$0xf] %v781
        %783 = vst.msk [vmem:[%s700 + $0x88] sm:$0xf] %vm256, %v582
        %v784 = vld [vmem:[%s700 + $0x8c] sm:$0x1]
        %v785 = vsel %vm267, %v583, %v784
        %786 = vst [vmem:[%s700 + $0x8c] sm:$0x1] %v785
        %v787 = vld [vmem:[%s700 + $0x90] sm:$0xf]
        %v788 = vsel %vm702, %v590, %v787
        %789 = vst [vmem:[%s700 + $0x90] sm:$0xf] %v788
        %790 = vst.msk [vmem:[%s700 + $0x94] sm:$0xf] %vm256, %v599
        %v791 = vld [vmem:[%s700 + $0x98] sm:$0x1]
        %v792 = vsel %vm267, %v600, %v791
        %793 = vst [vmem:[%s700 + $0x98] sm:$0x1] %v792
        %v794 = vld [vmem:[%s700 + $0x9c] sm:$0xf]
        %v795 = vsel %vm702, %v607, %v794
        %796 = vst [vmem:[%s700 + $0x9c] sm:$0xf] %v795
        %797 = vst.msk [vmem:[%s700 + $0xa0] sm:$0xf] %vm256, %v616
        %v798 = vld [vmem:[%s700 + $0xa4] sm:$0x1]
        %v799 = vsel %vm267, %v617, %v798
        %800 = vst [vmem:[%s700 + $0xa4] sm:$0x1] %v799
        %v801 = vld [vmem:[%s700 + $0xa8] sm:$0xf]
        %v802 = vsel %vm702, %v624, %v801
        %803 = vst [vmem:[%s700 + $0xa8] sm:$0xf] %v802
        %804 = vst.msk [vmem:[%s700 + $0xac] sm:$0xf] %vm256, %v633
        %v805 = vld [vmem:[%s700 + $0xb0] sm:$0x1]
        %v806 = vsel %vm267, %v634, %v805
        %807 = vst [vmem:[%s700 + $0xb0] sm:$0x1] %v806
        %v808 = vld [vmem:[%s700 + $0xb4] sm:$0xf]
        %v809 = vsel %vm702, %v641, %v808
        %810 = vst [vmem:[%s700 + $0xb4] sm:$0xf] %v809
        %811 = vst.msk [vmem:[%s700 + $0xb8] sm:$0xf] %vm256, %v650
        %v812 = vld [vmem:[%s700 + $0xbc] sm:$0x1]
        %v813 = vsel %vm267, %v651, %v812
        %814 = vst [vmem:[%s700 + $0xbc] sm:$0x1] %v813
        %v815 = vld [vmem:[#allocation2] sm:$0xf]
        %v816 = vld [vmem:[#allocation2 + $0x4] sm:$0xf]
        %v817 = vld [vmem:[#allocation2 + $0xc] sm:$0xf]
        %v818 = vld [vmem:[#allocation2 + $0x10] sm:$0xf]
        %v819 = vld [vmem:[#allocation2 + $0x18] sm:$0xf]
        %v820 = vld [vmem:[#allocation2 + $0x1c] sm:$0xf]
        %v821 = vld [vmem:[#allocation2 + $0x24] sm:$0xf]
        %v822 = vld [vmem:[#allocation2 + $0x28] sm:$0xf]
        %v823 = vld [vmem:[#allocation2 + $0x30] sm:$0xf]
        %v824 = vld [vmem:[#allocation2 + $0x34] sm:$0xf]
        %v825 = vld [vmem:[#allocation2 + $0x3c] sm:$0xf]
        %v826 = vld [vmem:[#allocation2 + $0x40] sm:$0xf]
        %v827 = vld [vmem:[#allocation2 + $0x48] sm:$0xf]
        %v828 = vld [vmem:[#allocation2 + $0x4c] sm:$0xf]
        %v829 = vld [vmem:[#allocation2 + $0x54] sm:$0xf]
        %v830 = vld [vmem:[#allocation2 + $0x58] sm:$0xf]
        %v831 = vld [vmem:[#allocation2 + $0x60] sm:$0xf]
        %v832 = vld [vmem:[#allocation2 + $0x64] sm:$0xf]
        %v833 = vld [vmem:[#allocation2 + $0x6c] sm:$0xf]
        %v834 = vld [vmem:[#allocation2 + $0x70] sm:$0xf]
        %v835 = vld [vmem:[#allocation2 + $0x78] sm:$0xf]
        %v836 = vld [vmem:[#allocation2 + $0x7c] sm:$0xf]
        %v837 = vld [vmem:[#allocation2 + $0x84] sm:$0xf]
        %v838 = vld [vmem:[#allocation2 + $0x88] sm:$0xf]
        %v839 = vld [vmem:[#allocation2 + $0x90] sm:$0xf]
        %v840 = vld [vmem:[#allocation2 + $0x94] sm:$0xf]
        %v841 = vld [vmem:[#allocation2 + $0x9c] sm:$0xf]
        %v842 = vld [vmem:[#allocation2 + $0xa0] sm:$0xf]
        %v843 = vld [vmem:[#allocation2 + $0xa8] sm:$0xf]
        %v844 = vld [vmem:[#allocation2 + $0xac] sm:$0xf]
        %v845 = vld [vmem:[#allocation2 + $0xb4] sm:$0xf]
        %v846 = vld [vmem:[#allocation2 + $0xb8] sm:$0xf]
        %847 = vst.msk [vmem:[#allocation4] sm:$0xf] %vm256, %v815
        %848 = vst.msk [vmem:[#allocation4 + $0x14] sm:$0xf] %vm256, %v816
        %849 = vst.msk [vmem:[#allocation4 + $0x28] sm:$0xf] %vm256, %v817
        %850 = vst.msk [vmem:[#allocation4 + $0x3c] sm:$0xf] %vm256, %v818
        %851 = vst.msk [vmem:[#allocation4 + $0x50] sm:$0xf] %vm256, %v819
        %852 = vst.msk [vmem:[#allocation4 + $0x64] sm:$0xf] %vm256, %v820
        %853 = vst.msk [vmem:[#allocation4 + $0x78] sm:$0xf] %vm256, %v821
        %854 = vst.msk [vmem:[#allocation4 + $0x8c] sm:$0xf] %vm256, %v822
        %855 = vst.msk [vmem:[#allocation4 + $0xa0] sm:$0xf] %vm256, %v823
        %856 = vst.msk [vmem:[#allocation4 + $0xb4] sm:$0xf] %vm256, %v824
        %857 = vst.msk [vmem:[#allocation4 + $0xc8] sm:$0xf] %vm256, %v825
        %858 = vst.msk [vmem:[#allocation4 + $0xdc] sm:$0xf] %vm256, %v826
        %859 = vst.msk [vmem:[#allocation4 + $0xf0] sm:$0xf] %vm256, %v827
        %860 = vst.msk [vmem:[#allocation4 + $0x104] sm:$0xf] %vm256, %v828
        %861 = vst.msk [vmem:[#allocation4 + $0x118] sm:$0xf] %vm256, %v829
        %862 = vst.msk [vmem:[#allocation4 + $0x12c] sm:$0xf] %vm256, %v830
        %863 = vst.msk [vmem:[#allocation4 + $0x140] sm:$0xf] %vm256, %v831
        %864 = vst.msk [vmem:[#allocation4 + $0x154] sm:$0xf] %vm256, %v832
        %865 = vst.msk [vmem:[#allocation4 + $0x168] sm:$0xf] %vm256, %v833
        %866 = vst.msk [vmem:[#allocation4 + $0x17c] sm:$0xf] %vm256, %v834
        %867 = vst.msk [vmem:[#allocation4 + $0x190] sm:$0xf] %vm256, %v835
        %868 = vst.msk [vmem:[#allocation4 + $0x1a4] sm:$0xf] %vm256, %v836
        %869 = vst.msk [vmem:[#allocation4 + $0x1b8] sm:$0xf] %vm256, %v837
        %870 = vst.msk [vmem:[#allocation4 + $0x1cc] sm:$0xf] %vm256, %v838
        %871 = vst.msk [vmem:[#allocation4 + $0x1e0] sm:$0xf] %vm256, %v839
        %872 = vst.msk [vmem:[#allocation4 + $0x1f4] sm:$0xf] %vm256, %v840
        %873 = vst.msk [vmem:[#allocation4 + $0x208] sm:$0xf] %vm256, %v841
        %874 = vst.msk [vmem:[#allocation4 + $0x21c] sm:$0xf] %vm256, %v842
        %875 = vst.msk [vmem:[#allocation4 + $0x230] sm:$0xf] %vm256, %v843
        %876 = vst.msk [vmem:[#allocation4 + $0x244] sm:$0xf] %vm256, %v844
        %877 = vst.msk [vmem:[#allocation4 + $0x258] sm:$0xf] %vm256, %v845
        %878 = vst.msk [vmem:[#allocation4 + $0x26c] sm:$0xf] %vm256, %v846
        %v879 = vld [vmem:[#allocation2] sm:$0xf]
        %v880 = vld [vmem:[#allocation2 + $0x4] sm:$0xf]
        %v881 = vld [vmem:[#allocation2 + $0x8] sm:$0x1]
        %v882 = vld [vmem:[#allocation2 + $0xc] sm:$0xf]
        %v883 = vld [vmem:[#allocation2 + $0x10] sm:$0xf]
        %v884 = vld [vmem:[#allocation2 + $0x14] sm:$0x1]
        %v885 = vld [vmem:[#allocation2 + $0x18] sm:$0xf]
        %v886 = vld [vmem:[#allocation2 + $0x1c] sm:$0xf]
        %v887 = vld [vmem:[#allocation2 + $0x20] sm:$0x1]
        %v888 = vld [vmem:[#allocation2 + $0x24] sm:$0xf]
        %v889 = vld [vmem:[#allocation2 + $0x28] sm:$0xf]
        %v890 = vld [vmem:[#allocation2 + $0x2c] sm:$0x1]
        %v891 = vld [vmem:[#allocation2 + $0x30] sm:$0xf]
        %v892 = vld [vmem:[#allocation2 + $0x34] sm:$0xf]
        %v893 = vld [vmem:[#allocation2 + $0x38] sm:$0x1]
        %v894 = vld [vmem:[#allocation2 + $0x3c] sm:$0xf]
        %v895 = vld [vmem:[#allocation2 + $0x40] sm:$0xf]
        %v896 = vld [vmem:[#allocation2 + $0x44] sm:$0x1]
        %v897 = vld [vmem:[#allocation2 + $0x48] sm:$0xf]
        %v898 = vld [vmem:[#allocation2 + $0x4c] sm:$0xf]
        %v899 = vld [vmem:[#allocation2 + $0x50] sm:$0x1]
        %v900 = vld [vmem:[#allocation2 + $0x54] sm:$0xf]
        %v901 = vld [vmem:[#allocation2 + $0x58] sm:$0xf]
        %v902 = vld [vmem:[#allocation2 + $0x5c] sm:$0x1]
        %v903 = vld [vmem:[#allocation2 + $0x60] sm:$0xf]
        %v904 = vld [vmem:[#allocation2 + $0x64] sm:$0xf]
        %v905 = vld [vmem:[#allocation2 + $0x68] sm:$0x1]
        %v906 = vld [vmem:[#allocation2 + $0x6c] sm:$0xf]
        %v907 = vld [vmem:[#allocation2 + $0x70] sm:$0xf]
        %v908 = vld [vmem:[#allocation2 + $0x74] sm:$0x1]
        %v909 = vld [vmem:[#allocation2 + $0x78] sm:$0xf]
        %v910 = vld [vmem:[#allocation2 + $0x7c] sm:$0xf]
        %v911 = vld [vmem:[#allocation2 + $0x80] sm:$0x1]
        %v912 = vld [vmem:[#allocation2 + $0x84] sm:$0xf]
        %v913 = vld [vmem:[#allocation2 + $0x88] sm:$0xf]
        %v914 = vld [vmem:[#allocation2 + $0x8c] sm:$0x1]
        %v915 = vld [vmem:[#allocation2 + $0x90] sm:$0xf]
        %v916 = vld [vmem:[#allocation2 + $0x94] sm:$0xf]
        %v917 = vld [vmem:[#allocation2 + $0x98] sm:$0x1]
        %v918 = vld [vmem:[#allocation2 + $0x9c] sm:$0xf]
        %v919 = vld [vmem:[#allocation2 + $0xa0] sm:$0xf]
        %v920 = vld [vmem:[#allocation2 + $0xa4] sm:$0x1]
        %v921 = vld [vmem:[#allocation2 + $0xa8] sm:$0xf]
        %v922 = vld [vmem:[#allocation2 + $0xac] sm:$0xf]
        %v923 = vld [vmem:[#allocation2 + $0xb0] sm:$0x1]
        %v924 = vld [vmem:[#allocation2 + $0xb4] sm:$0xf]
        %v925 = vld [vmem:[#allocation2 + $0xb8] sm:$0xf]
        %v926 = vld [vmem:[#allocation2 + $0xbc] sm:$0x1]
        %vm927 = vsmask.f32 3328
        %vm928 = vsmask.f32 7440
        %vm929 = vmor %vm927, %vm928
        %v931 = vshrl.u32 %v879, 16
        %v933 = vrot.slane %v931, 4
        %v934 = vshll.u32 %v879, 16
        %v936 = vrot.slane %v934, 5
        %v937 = vor.u32 %v933, %v936
        %v938 = vrot.slane %v937, 4
        %v940 = vshll.u32 %v880, 16
        %v942 = vrot.slane %v940, 5
        %v943 = vsel %vm929, %v938, %v942
        %v944 = vshrl.u32 %v880, 16
        %v946 = vrot.slane %v944, 4
        %v947 = vor.u32 %v946, %v942
        %v948 = vrot.slane %v947, 4
        %v950 = vshll.u32 %v881, 16
        %v952 = vrot.slane %v950, 5
        %v953 = vsel %vm929, %v948, %v952
        %v955 = vshrl.u32 %v882, 16
        %v957 = vrot.slane %v955, 4
        %v958 = vshll.u32 %v882, 16
        %v960 = vrot.slane %v958, 5
        %v961 = vor.u32 %v957, %v960
        %v962 = vrot.slane %v961, 4
        %v964 = vshll.u32 %v883, 16
        %v966 = vrot.slane %v964, 5
        %v967 = vsel %vm929, %v962, %v966
        %v968 = vshrl.u32 %v883, 16
        %v970 = vrot.slane %v968, 4
        %v971 = vor.u32 %v970, %v966
        %v972 = vrot.slane %v971, 4
        %v974 = vshll.u32 %v884, 16
        %v976 = vrot.slane %v974, 5
        %v977 = vsel %vm929, %v972, %v976
        %v979 = vshrl.u32 %v885, 16
        %v981 = vrot.slane %v979, 4
        %v982 = vshll.u32 %v885, 16
        %v984 = vrot.slane %v982, 5
        %v985 = vor.u32 %v981, %v984
        %v986 = vrot.slane %v985, 4
        %v988 = vshll.u32 %v886, 16
        %v990 = vrot.slane %v988, 5
        %v991 = vsel %vm929, %v986, %v990
        %v992 = vshrl.u32 %v886, 16
        %v994 = vrot.slane %v992, 4
        %v995 = vor.u32 %v994, %v990
        %v996 = vrot.slane %v995, 4
        %v998 = vshll.u32 %v887, 16
        %v1000 = vrot.slane %v998, 5
        %v1001 = vsel %vm929, %v996, %v1000
        %v1003 = vshrl.u32 %v888, 16
        %v1005 = vrot.slane %v1003, 4
        %v1006 = vshll.u32 %v888, 16
        %v1008 = vrot.slane %v1006, 5
        %v1009 = vor.u32 %v1005, %v1008
        %v1010 = vrot.slane %v1009, 4
        %v1012 = vshll.u32 %v889, 16
        %v1014 = vrot.slane %v1012, 5
        %v1015 = vsel %vm929, %v1010, %v1014
        %v1016 = vshrl.u32 %v889, 16
        %v1018 = vrot.slane %v1016, 4
        %v1019 = vor.u32 %v1018, %v1014
        %v1020 = vrot.slane %v1019, 4
        %v1022 = vshll.u32 %v890, 16
        %v1024 = vrot.slane %v1022, 5
        %v1025 = vsel %vm929, %v1020, %v1024
        %v1027 = vshrl.u32 %v891, 16
        %v1029 = vrot.slane %v1027, 4
        %v1030 = vshll.u32 %v891, 16
        %v1032 = vrot.slane %v1030, 5
        %v1033 = vor.u32 %v1029, %v1032
        %v1034 = vrot.slane %v1033, 4
        %v1036 = vshll.u32 %v892, 16
        %v1038 = vrot.slane %v1036, 5
        %v1039 = vsel %vm929, %v1034, %v1038
        %v1040 = vshrl.u32 %v892, 16
        %v1042 = vrot.slane %v1040, 4
        %v1043 = vor.u32 %v1042, %v1038
        %v1044 = vrot.slane %v1043, 4
        %v1046 = vshll.u32 %v893, 16
        %v1048 = vrot.slane %v1046, 5
        %v1049 = vsel %vm929, %v1044, %v1048
        %v1051 = vshrl.u32 %v894, 16
        %v1053 = vrot.slane %v1051, 4
        %v1054 = vshll.u32 %v894, 16
        %v1056 = vrot.slane %v1054, 5
        %v1057 = vor.u32 %v1053, %v1056
        %v1058 = vrot.slane %v1057, 4
        %v1060 = vshll.u32 %v895, 16
        %v1062 = vrot.slane %v1060, 5
        %v1063 = vsel %vm929, %v1058, %v1062
        %v1064 = vshrl.u32 %v895, 16
        %v1066 = vrot.slane %v1064, 4
        %v1067 = vor.u32 %v1066, %v1062
        %v1068 = vrot.slane %v1067, 4
        %v1070 = vshll.u32 %v896, 16
        %v1072 = vrot.slane %v1070, 5
        %v1073 = vsel %vm929, %v1068, %v1072
        %v1075 = vshrl.u32 %v897, 16
        %v1077 = vrot.slane %v1075, 4
        %v1078 = vshll.u32 %v897, 16
        %v1080 = vrot.slane %v1078, 5
        %v1081 = vor.u32 %v1077, %v1080
        %v1082 = vrot.slane %v1081, 4
        %v1084 = vshll.u32 %v898, 16
        %v1086 = vrot.slane %v1084, 5
        %v1087 = vsel %vm929, %v1082, %v1086
        %v1088 = vshrl.u32 %v898, 16
        %v1090 = vrot.slane %v1088, 4
        %v1091 = vor.u32 %v1090, %v1086
        %v1092 = vrot.slane %v1091, 4
        %v1094 = vshll.u32 %v899, 16
        %v1096 = vrot.slane %v1094, 5
        %v1097 = vsel %vm929, %v1092, %v1096
        %v1099 = vshrl.u32 %v900, 16
        %v1101 = vrot.slane %v1099, 4
        %v1102 = vshll.u32 %v900, 16
        %v1104 = vrot.slane %v1102, 5
        %v1105 = vor.u32 %v1101, %v1104
        %v1106 = vrot.slane %v1105, 4
        %v1108 = vshll.u32 %v901, 16
        %v1110 = vrot.slane %v1108, 5
        %v1111 = vsel %vm929, %v1106, %v1110
        %v1112 = vshrl.u32 %v901, 16
        %v1114 = vrot.slane %v1112, 4
        %v1115 = vor.u32 %v1114, %v1110
        %v1116 = vrot.slane %v1115, 4
        %v1118 = vshll.u32 %v902, 16
        %v1120 = vrot.slane %v1118, 5
        %v1121 = vsel %vm929, %v1116, %v1120
        %v1123 = vshrl.u32 %v903, 16
        %v1125 = vrot.slane %v1123, 4
        %v1126 = vshll.u32 %v903, 16
        %v1128 = vrot.slane %v1126, 5
        %v1129 = vor.u32 %v1125, %v1128
        %v1130 = vrot.slane %v1129, 4
        %v1132 = vshll.u32 %v904, 16
        %v1134 = vrot.slane %v1132, 5
        %v1135 = vsel %vm929, %v1130, %v1134
        %v1136 = vshrl.u32 %v904, 16
        %v1138 = vrot.slane %v1136, 4
        %v1139 = vor.u32 %v1138, %v1134
        %v1140 = vrot.slane %v1139, 4
        %v1142 = vshll.u32 %v905, 16
        %v1144 = vrot.slane %v1142, 5
        %v1145 = vsel %vm929, %v1140, %v1144
        %v1147 = vshrl.u32 %v906, 16
        %v1149 = vrot.slane %v1147, 4
        %v1150 = vshll.u32 %v906, 16
        %v1152 = vrot.slane %v1150, 5
        %v1153 = vor.u32 %v1149, %v1152
        %v1154 = vrot.slane %v1153, 4
        %v1156 = vshll.u32 %v907, 16
        %v1158 = vrot.slane %v1156, 5
        %v1159 = vsel %vm929, %v1154, %v1158
        %v1160 = vshrl.u32 %v907, 16
        %v1162 = vrot.slane %v1160, 4
        %v1163 = vor.u32 %v1162, %v1158
        %v1164 = vrot.slane %v1163, 4
        %v1166 = vshll.u32 %v908, 16
        %v1168 = vrot.slane %v1166, 5
        %v1169 = vsel %vm929, %v1164, %v1168
        %v1171 = vshrl.u32 %v909, 16
        %v1173 = vrot.slane %v1171, 4
        %v1174 = vshll.u32 %v909, 16
        %v1176 = vrot.slane %v1174, 5
        %v1177 = vor.u32 %v1173, %v1176
        %v1178 = vrot.slane %v1177, 4
        %v1180 = vshll.u32 %v910, 16
        %v1182 = vrot.slane %v1180, 5
        %v1183 = vsel %vm929, %v1178, %v1182
        %v1184 = vshrl.u32 %v910, 16
        %v1186 = vrot.slane %v1184, 4
        %v1187 = vor.u32 %v1186, %v1182
        %v1188 = vrot.slane %v1187, 4
        %v1190 = vshll.u32 %v911, 16
        %v1192 = vrot.slane %v1190, 5
        %v1193 = vsel %vm929, %v1188, %v1192
        %v1195 = vshrl.u32 %v912, 16
        %v1197 = vrot.slane %v1195, 4
        %v1198 = vshll.u32 %v912, 16
        %v1200 = vrot.slane %v1198, 5
        %v1201 = vor.u32 %v1197, %v1200
        %v1202 = vrot.slane %v1201, 4
        %v1204 = vshll.u32 %v913, 16
        %v1206 = vrot.slane %v1204, 5
        %v1207 = vsel %vm929, %v1202, %v1206
        %v1208 = vshrl.u32 %v913, 16
        %v1210 = vrot.slane %v1208, 4
        %v1211 = vor.u32 %v1210, %v1206
        %v1212 = vrot.slane %v1211, 4
        %v1214 = vshll.u32 %v914, 16
        %v1216 = vrot.slane %v1214, 5
        %v1217 = vsel %vm929, %v1212, %v1216
        %v1219 = vshrl.u32 %v915, 16
        %v1221 = vrot.slane %v1219, 4
        %v1222 = vshll.u32 %v915, 16
        %v1224 = vrot.slane %v1222, 5
        %v1225 = vor.u32 %v1221, %v1224
        %v1226 = vrot.slane %v1225, 4
        %v1228 = vshll.u32 %v916, 16
        %v1230 = vrot.slane %v1228, 5
        %v1231 = vsel %vm929, %v1226, %v1230
        %v1232 = vshrl.u32 %v916, 16
        %v1234 = vrot.slane %v1232, 4
        %v1235 = vor.u32 %v1234, %v1230
        %v1236 = vrot.slane %v1235, 4
        %v1238 = vshll.u32 %v917, 16
        %v1240 = vrot.slane %v1238, 5
        %v1241 = vsel %vm929, %v1236, %v1240
        %v1243 = vshrl.u32 %v918, 16
        %v1245 = vrot.slane %v1243, 4
        %v1246 = vshll.u32 %v918, 16
        %v1248 = vrot.slane %v1246, 5
        %v1249 = vor.u32 %v1245, %v1248
        %v1250 = vrot.slane %v1249, 4
        %v1252 = vshll.u32 %v919, 16
        %v1254 = vrot.slane %v1252, 5
        %v1255 = vsel %vm929, %v1250, %v1254
        %v1256 = vshrl.u32 %v919, 16
        %v1258 = vrot.slane %v1256, 4
        %v1259 = vor.u32 %v1258, %v1254
        %v1260 = vrot.slane %v1259, 4
        %v1262 = vshll.u32 %v920, 16
        %v1264 = vrot.slane %v1262, 5
        %v1265 = vsel %vm929, %v1260, %v1264
        %v1267 = vshrl.u32 %v921, 16
        %v1269 = vrot.slane %v1267, 4
        %v1270 = vshll.u32 %v921, 16
        %v1272 = vrot.slane %v1270, 5
        %v1273 = vor.u32 %v1269, %v1272
        %v1274 = vrot.slane %v1273, 4
        %v1276 = vshll.u32 %v922, 16
        %v1278 = vrot.slane %v1276, 5
        %v1279 = vsel %vm929, %v1274, %v1278
        %v1280 = vshrl.u32 %v922, 16
        %v1282 = vrot.slane %v1280, 4
        %v1283 = vor.u32 %v1282, %v1278
        %v1284 = vrot.slane %v1283, 4
        %v1286 = vshll.u32 %v923, 16
        %v1288 = vrot.slane %v1286, 5
        %v1289 = vsel %vm929, %v1284, %v1288
        %v1291 = vshrl.u32 %v924, 16
        %v1293 = vrot.slane %v1291, 4
        %v1294 = vshll.u32 %v924, 16
        %v1296 = vrot.slane %v1294, 5
        %v1297 = vor.u32 %v1293, %v1296
        %v1298 = vrot.slane %v1297, 4
        %v1300 = vshll.u32 %v925, 16
        %v1302 = vrot.slane %v1300, 5
        %v1303 = vsel %vm929, %v1298, %v1302
        %v1304 = vshrl.u32 %v925, 16
        %v1306 = vrot.slane %v1304, 4
        %v1307 = vor.u32 %v1306, %v1302
        %v1308 = vrot.slane %v1307, 4
        %v1310 = vshll.u32 %v926, 16
        %v1312 = vrot.slane %v1310, 5
        %v1313 = vsel %vm929, %v1308, %v1312
        %1314 = vrot.lane.b32.xlu0 %v943, 64
        %v1315 = vpop.permute.xlu0 %1314
        %1316 = vrot.lane.b32.xlu0 %v953, 64
        %v1317 = vpop.permute.xlu0 %1316
        %1318 = vrot.lane.b32.xlu0 %v967, 64
        %v1319 = vpop.permute.xlu0 %1318
        %1320 = vrot.lane.b32.xlu0 %v977, 64
        %v1321 = vpop.permute.xlu0 %1320
        %1322 = vrot.lane.b32.xlu0 %v991, 64
        %v1323 = vpop.permute.xlu0 %1322
        %1324 = vrot.lane.b32.xlu0 %v1001, 64
        %v1325 = vpop.permute.xlu0 %1324
        %1326 = vrot.lane.b32.xlu0 %v1015, 64
        %v1327 = vpop.permute.xlu0 %1326
        %1328 = vrot.lane.b32.xlu0 %v1025, 64
        %v1329 = vpop.permute.xlu0 %1328
        %1330 = vrot.lane.b32.xlu0 %v1039, 64
        %v1331 = vpop.permute.xlu0 %1330
        %1332 = vrot.lane.b32.xlu0 %v1049, 64
        %v1333 = vpop.permute.xlu0 %1332
        %1334 = vrot.lane.b32.xlu0 %v1063, 64
        %v1335 = vpop.permute.xlu0 %1334
        %1336 = vrot.lane.b32.xlu0 %v1073, 64
        %v1337 = vpop.permute.xlu0 %1336
        %1338 = vrot.lane.b32.xlu0 %v1087, 64
        %v1339 = vpop.permute.xlu0 %1338
        %1340 = vrot.lane.b32.xlu0 %v1097, 64
        %v1341 = vpop.permute.xlu0 %1340
        %1342 = vrot.lane.b32.xlu0 %v1111, 64
        %v1343 = vpop.permute.xlu0 %1342
        %1344 = vrot.lane.b32.xlu0 %v1121, 64
        %v1345 = vpop.permute.xlu0 %1344
        %1346 = vrot.lane.b32.xlu0 %v1135, 64
        %v1347 = vpop.permute.xlu0 %1346
        %1348 = vrot.lane.b32.xlu0 %v1145, 64
        %v1349 = vpop.permute.xlu0 %1348
        %1350 = vrot.lane.b32.xlu0 %v1159, 64
        %v1351 = vpop.permute.xlu0 %1350
        %1352 = vrot.lane.b32.xlu0 %v1169, 64
        %v1353 = vpop.permute.xlu0 %1352
        %1354 = vrot.lane.b32.xlu0 %v1183, 64
        %v1355 = vpop.permute.xlu0 %1354
        %1356 = vrot.lane.b32.xlu0 %v1193, 64
        %v1357 = vpop.permute.xlu0 %1356
        %1358 = vrot.lane.b32.xlu0 %v1207, 64
        %v1359 = vpop.permute.xlu0 %1358
        %1360 = vrot.lane.b32.xlu0 %v1217, 64
        %v1361 = vpop.permute.xlu0 %1360
        %1362 = vrot.lane.b32.xlu0 %v1231, 64
        %v1363 = vpop.permute.xlu0 %1362
        %1364 = vrot.lane.b32.xlu0 %v1241, 64
        %v1365 = vpop.permute.xlu0 %1364
        %1366 = vrot.lane.b32.xlu0 %v1255, 64
        %v1367 = vpop.permute.xlu0 %1366
        %1368 = vrot.lane.b32.xlu0 %v1265, 64
        %v1369 = vpop.permute.xlu0 %1368
        %1370 = vrot.lane.b32.xlu0 %v1279, 64
        %v1371 = vpop.permute.xlu0 %1370
        %1372 = vrot.lane.b32.xlu0 %v1289, 64
        %v1373 = vpop.permute.xlu0 %1372
        %1374 = vrot.lane.b32.xlu0 %v1303, 64
        %v1375 = vpop.permute.xlu0 %1374
        %1376 = vrot.lane.b32.xlu0 %v1313, 64
        %v1377 = vpop.permute.xlu0 %1376
        %vm1410 = vcmask 1043968
        %1411 = vst.msk [vmem:[#allocation4] sm:$0xf] %vm1410, %v1315
        %1412 = vst.msk [vmem:[#allocation4 + $0x14] sm:$0xf] %vm1410, %v1317
        %1413 = vst.msk [vmem:[#allocation4 + $0x28] sm:$0xf] %vm1410, %v1319
        %1414 = vst.msk [vmem:[#allocation4 + $0x3c] sm:$0xf] %vm1410, %v1321
        %1415 = vst.msk [vmem:[#allocation4 + $0x50] sm:$0xf] %vm1410, %v1323
        %1416 = vst.msk [vmem:[#allocation4 + $0x64] sm:$0xf] %vm1410, %v1325
        %1417 = vst.msk [vmem:[#allocation4 + $0x78] sm:$0xf] %vm1410, %v1327
        %1418 = vst.msk [vmem:[#allocation4 + $0x8c] sm:$0xf] %vm1410, %v1329
        %1419 = vst.msk [vmem:[#allocation4 + $0xa0] sm:$0xf] %vm1410, %v1331
        %1420 = vst.msk [vmem:[#allocation4 + $0xb4] sm:$0xf] %vm1410, %v1333
        %1421 = vst.msk [vmem:[#allocation4 + $0xc8] sm:$0xf] %vm1410, %v1335
        %1422 = vst.msk [vmem:[#allocation4 + $0xdc] sm:$0xf] %vm1410, %v1337
        %1423 = vst.msk [vmem:[#allocation4 + $0xf0] sm:$0xf] %vm1410, %v1339
        %1424 = vst.msk [vmem:[#allocation4 + $0x104] sm:$0xf] %vm1410, %v1341
        %1425 = vst.msk [vmem:[#allocation4 + $0x118] sm:$0xf] %vm1410, %v1343
        %1426 = vst.msk [vmem:[#allocation4 + $0x12c] sm:$0xf] %vm1410, %v1345
        %1427 = vst.msk [vmem:[#allocation4 + $0x140] sm:$0xf] %vm1410, %v1347
        %1428 = vst.msk [vmem:[#allocation4 + $0x154] sm:$0xf] %vm1410, %v1349
        %1429 = vst.msk [vmem:[#allocation4 + $0x168] sm:$0xf] %vm1410, %v1351
        %1430 = vst.msk [vmem:[#allocation4 + $0x17c] sm:$0xf] %vm1410, %v1353
        %1431 = vst.msk [vmem:[#allocation4 + $0x190] sm:$0xf] %vm1410, %v1355
        %1432 = vst.msk [vmem:[#allocation4 + $0x1a4] sm:$0xf] %vm1410, %v1357
        %1433 = vst.msk [vmem:[#allocation4 + $0x1b8] sm:$0xf] %vm1410, %v1359
        %1434 = vst.msk [vmem:[#allocation4 + $0x1cc] sm:$0xf] %vm1410, %v1361
        %1435 = vst.msk [vmem:[#allocation4 + $0x1e0] sm:$0xf] %vm1410, %v1363
        %1436 = vst.msk [vmem:[#allocation4 + $0x1f4] sm:$0xf] %vm1410, %v1365
        %1437 = vst.msk [vmem:[#allocation4 + $0x208] sm:$0xf] %vm1410, %v1367
        %1438 = vst.msk [vmem:[#allocation4 + $0x21c] sm:$0xf] %vm1410, %v1369
        %1439 = vst.msk [vmem:[#allocation4 + $0x230] sm:$0xf] %vm1410, %v1371
        %1440 = vst.msk [vmem:[#allocation4 + $0x244] sm:$0xf] %vm1410, %v1373
        %1441 = vst.msk [vmem:[#allocation4 + $0x258] sm:$0xf] %vm1410, %v1375
        %1442 = vst.msk [vmem:[#allocation4 + $0x26c] sm:$0xf] %vm1410, %v1377
        %v1443 = vld [vmem:[#allocation2] sm:$0xe]
        %v1444 = vld [vmem:[#allocation2 + $0x4] sm:$0xf]
        %v1445 = vld [vmem:[#allocation2 + $0x8] sm:$0x1]
        %v1446 = vld [vmem:[#allocation2 + $0xc] sm:$0xe]
        %v1447 = vld [vmem:[#allocation2 + $0x10] sm:$0xf]
        %v1448 = vld [vmem:[#allocation2 + $0x14] sm:$0x1]
        %v1449 = vld [vmem:[#allocation2 + $0x18] sm:$0xe]
        %v1450 = vld [vmem:[#allocation2 + $0x1c] sm:$0xf]
        %v1451 = vld [vmem:[#allocation2 + $0x20] sm:$0x1]
        %v1452 = vld [vmem:[#allocation2 + $0x24] sm:$0xe]
        %v1453 = vld [vmem:[#allocation2 + $0x28] sm:$0xf]
        %v1454 = vld [vmem:[#allocation2 + $0x2c] sm:$0x1]
        %v1455 = vld [vmem:[#allocation2 + $0x30] sm:$0xe]
        %v1456 = vld [vmem:[#allocation2 + $0x34] sm:$0xf]
        %v1457 = vld [vmem:[#allocation2 + $0x38] sm:$0x1]
        %v1458 = vld [vmem:[#allocation2 + $0x3c] sm:$0xe]
        %v1459 = vld [vmem:[#allocation2 + $0x40] sm:$0xf]
        %v1460 = vld [vmem:[#allocation2 + $0x44] sm:$0x1]
        %v1461 = vld [vmem:[#allocation2 + $0x48] sm:$0xe]
        %v1462 = vld [vmem:[#allocation2 + $0x4c] sm:$0xf]
        %v1463 = vld [vmem:[#allocation2 + $0x50] sm:$0x1]
        %v1464 = vld [vmem:[#allocation2 + $0x54] sm:$0xe]
        %v1465 = vld [vmem:[#allocation2 + $0x58] sm:$0xf]
        %v1466 = vld [vmem:[#allocation2 + $0x5c] sm:$0x1]
        %v1467 = vld [vmem:[#allocation2 + $0x60] sm:$0xe]
        %v1468 = vld [vmem:[#allocation2 + $0x64] sm:$0xf]
        %v1469 = vld [vmem:[#allocation2 + $0x68] sm:$0x1]
        %v1470 = vld [vmem:[#allocation2 + $0x6c] sm:$0xe]
        %v1471 = vld [vmem:[#allocation2 + $0x70] sm:$0xf]
        %v1472 = vld [vmem:[#allocation2 + $0x74] sm:$0x1]
        %v1473 = vld [vmem:[#allocation2 + $0x78] sm:$0xe]
        %v1474 = vld [vmem:[#allocation2 + $0x7c] sm:$0xf]
        %v1475 = vld [vmem:[#allocation2 + $0x80] sm:$0x1]
        %v1476 = vld [vmem:[#allocation2 + $0x84] sm:$0xe]
        %v1477 = vld [vmem:[#allocation2 + $0x88] sm:$0xf]
        %v1478 = vld [vmem:[#allocation2 + $0x8c] sm:$0x1]
        %v1479 = vld [vmem:[#allocation2 + $0x90] sm:$0xe]
        %v1480 = vld [vmem:[#allocation2 + $0x94] sm:$0xf]
        %v1481 = vld [vmem:[#allocation2 + $0x98] sm:$0x1]
        %v1482 = vld [vmem:[#allocation2 + $0x9c] sm:$0xe]
        %v1483 = vld [vmem:[#allocation2 + $0xa0] sm:$0xf]
        %v1484 = vld [vmem:[#allocation2 + $0xa4] sm:$0x1]
        %v1485 = vld [vmem:[#allocation2 + $0xa8] sm:$0xe]
        %v1486 = vld [vmem:[#allocation2 + $0xac] sm:$0xf]
        %v1487 = vld [vmem:[#allocation2 + $0xb0] sm:$0x1]
        %v1488 = vld [vmem:[#allocation2 + $0xb4] sm:$0xe]
        %v1489 = vld [vmem:[#allocation2 + $0xb8] sm:$0xf]
        %v1490 = vld [vmem:[#allocation2 + $0xbc] sm:$0x1]
        %vm1539 = vcmask 1042432
        %vm1540 = vcmask 1046532
        %vm1541 = vmor %vm1539, %vm1540
        %v1542 = vrot.slane %v1443, 5
        %v1543 = vrot.slane %v1542, 4
        %v1544 = vrot.slane %v1444, 5
        %v1545 = vsel %vm1541, %v1543, %v1544
        %v1546 = vrot.slane %v1544, 4
        %v1547 = vrot.slane %v1445, 5
        %v1548 = vsel %vm1541, %v1546, %v1547
        %v1549 = vrot.slane %v1446, 5
        %v1550 = vrot.slane %v1549, 4
        %v1551 = vrot.slane %v1447, 5
        %v1552 = vsel %vm1541, %v1550, %v1551
        %v1553 = vrot.slane %v1551, 4
        %v1554 = vrot.slane %v1448, 5
        %v1555 = vsel %vm1541, %v1553, %v1554
        %v1556 = vrot.slane %v1449, 5
        %v1557 = vrot.slane %v1556, 4
        %v1558 = vrot.slane %v1450, 5
        %v1559 = vsel %vm1541, %v1557, %v1558
        %v1560 = vrot.slane %v1558, 4
        %v1561 = vrot.slane %v1451, 5
        %v1562 = vsel %vm1541, %v1560, %v1561
        %v1563 = vrot.slane %v1452, 5
        %v1564 = vrot.slane %v1563, 4
        %v1565 = vrot.slane %v1453, 5
        %v1566 = vsel %vm1541, %v1564, %v1565
        %v1567 = vrot.slane %v1565, 4
        %v1568 = vrot.slane %v1454, 5
        %v1569 = vsel %vm1541, %v1567, %v1568
        %v1570 = vrot.slane %v1455, 5
        %v1571 = vrot.slane %v1570, 4
        %v1572 = vrot.slane %v1456, 5
        %v1573 = vsel %vm1541, %v1571, %v1572
        %v1574 = vrot.slane %v1572, 4
        %v1575 = vrot.slane %v1457, 5
        %v1576 = vsel %vm1541, %v1574, %v1575
        %v1577 = vrot.slane %v1458, 5
        %v1578 = vrot.slane %v1577, 4
        %v1579 = vrot.slane %v1459, 5
        %v1580 = vsel %vm1541, %v1578, %v1579
        %v1581 = vrot.slane %v1579, 4
        %v1582 = vrot.slane %v1460, 5
        %v1583 = vsel %vm1541, %v1581, %v1582
        %v1584 = vrot.slane %v1461, 5
        %v1585 = vrot.slane %v1584, 4
        %v1586 = vrot.slane %v1462, 5
        %v1587 = vsel %vm1541, %v1585, %v1586
        %v1588 = vrot.slane %v1586, 4
        %v1589 = vrot.slane %v1463, 5
        %v1590 = vsel %vm1541, %v1588, %v1589
        %v1591 = vrot.slane %v1464, 5
        %v1592 = vrot.slane %v1591, 4
        %v1593 = vrot.slane %v1465, 5
        %v1594 = vsel %vm1541, %v1592, %v1593
        %v1595 = vrot.slane %v1593, 4
        %v1596 = vrot.slane %v1466, 5
        %v1597 = vsel %vm1541, %v1595, %v1596
        %v1598 = vrot.slane %v1467, 5
        %v1599 = vrot.slane %v1598, 4
        %v1600 = vrot.slane %v1468, 5
        %v1601 = vsel %vm1541, %v1599, %v1600
        %v1602 = vrot.slane %v1600, 4
        %v1603 = vrot.slane %v1469, 5
        %v1604 = vsel %vm1541, %v1602, %v1603
        %v1605 = vrot.slane %v1470, 5
        %v1606 = vrot.slane %v1605, 4
        %v1607 = vrot.slane %v1471, 5
        %v1608 = vsel %vm1541, %v1606, %v1607
        %v1609 = vrot.slane %v1607, 4
        %v1610 = vrot.slane %v1472, 5
        %v1611 = vsel %vm1541, %v1609, %v1610
        %v1612 = vrot.slane %v1473, 5
        %v1613 = vrot.slane %v1612, 4
        %v1614 = vrot.slane %v1474, 5
        %v1615 = vsel %vm1541, %v1613, %v1614
        %v1616 = vrot.slane %v1614, 4
        %v1617 = vrot.slane %v1475, 5
        %v1618 = vsel %vm1541, %v1616, %v1617
        %v1619 = vrot.slane %v1476, 5
        %v1620 = vrot.slane %v1619, 4
        %v1621 = vrot.slane %v1477, 5
        %v1622 = vsel %vm1541, %v1620, %v1621
        %v1623 = vrot.slane %v1621, 4
        %v1624 = vrot.slane %v1478, 5
        %v1625 = vsel %vm1541, %v1623, %v1624
        %v1626 = vrot.slane %v1479, 5
        %v1627 = vrot.slane %v1626, 4
        %v1628 = vrot.slane %v1480, 5
        %v1629 = vsel %vm1541, %v1627, %v1628
        %v1630 = vrot.slane %v1628, 4
        %v1631 = vrot.slane %v1481, 5
        %v1632 = vsel %vm1541, %v1630, %v1631
        %v1633 = vrot.slane %v1482, 5
        %v1634 = vrot.slane %v1633, 4
        %v1635 = vrot.slane %v1483, 5
        %v1636 = vsel %vm1541, %v1634, %v1635
        %v1637 = vrot.slane %v1635, 4
        %v1638 = vrot.slane %v1484, 5
        %v1639 = vsel %vm1541, %v1637, %v1638
        %v1640 = vrot.slane %v1485, 5
        %v1641 = vrot.slane %v1640, 4
        %v1642 = vrot.slane %v1486, 5
        %v1643 = vsel %vm1541, %v1641, %v1642
        %v1644 = vrot.slane %v1642, 4
        %v1645 = vrot.slane %v1487, 5
        %v1646 = vsel %vm1541, %v1644, %v1645
        %v1647 = vrot.slane %v1488, 5
        %v1648 = vrot.slane %v1647, 4
        %v1649 = vrot.slane %v1489, 5
        %v1650 = vsel %vm1541, %v1648, %v1649
        %v1651 = vrot.slane %v1649, 4
        %v1652 = vrot.slane %v1490, 5
        %v1653 = vsel %vm1541, %v1651, %v1652
        %1686 = vst.msk [vmem:[#allocation4 + $0x4] sm:$0xf] %vm256, %v1545
        %1687 = vst.msk [vmem:[#allocation4 + $0x18] sm:$0xf] %vm256, %v1548
        %1688 = vst.msk [vmem:[#allocation4 + $0x2c] sm:$0xf] %vm256, %v1552
        %1689 = vst.msk [vmem:[#allocation4 + $0x40] sm:$0xf] %vm256, %v1555
        %1690 = vst.msk [vmem:[#allocation4 + $0x54] sm:$0xf] %vm256, %v1559
        %1691 = vst.msk [vmem:[#allocation4 + $0x68] sm:$0xf] %vm256, %v1562
        %1692 = vst.msk [vmem:[#allocation4 + $0x7c] sm:$0xf] %vm256, %v1566
        %1693 = vst.msk [vmem:[#allocation4 + $0x90] sm:$0xf] %vm256, %v1569
        %1694 = vst.msk [vmem:[#allocation4 + $0xa4] sm:$0xf] %vm256, %v1573
        %1695 = vst.msk [vmem:[#allocation4 + $0xb8] sm:$0xf] %vm256, %v1576
        %1696 = vst.msk [vmem:[#allocation4 + $0xcc] sm:$0xf] %vm256, %v1580
        %1697 = vst.msk [vmem:[#allocation4 + $0xe0] sm:$0xf] %vm256, %v1583
        %1698 = vst.msk [vmem:[#allocation4 + $0xf4] sm:$0xf] %vm256, %v1587
        %1699 = vst.msk [vmem:[#allocation4 + $0x108] sm:$0xf] %vm256, %v1590
        %1700 = vst.msk [vmem:[#allocation4 + $0x11c] sm:$0xf] %vm256, %v1594
        %1701 = vst.msk [vmem:[#allocation4 + $0x130] sm:$0xf] %vm256, %v1597
        %1702 = vst.msk [vmem:[#allocation4 + $0x144] sm:$0xf] %vm256, %v1601
        %1703 = vst.msk [vmem:[#allocation4 + $0x158] sm:$0xf] %vm256, %v1604
        %1704 = vst.msk [vmem:[#allocation4 + $0x16c] sm:$0xf] %vm256, %v1608
        %1705 = vst.msk [vmem:[#allocation4 + $0x180] sm:$0xf] %vm256, %v1611
        %1706 = vst.msk [vmem:[#allocation4 + $0x194] sm:$0xf] %vm256, %v1615
        %1707 = vst.msk [vmem:[#allocation4 + $0x1a8] sm:$0xf] %vm256, %v1618
        %1708 = vst.msk [vmem:[#allocation4 + $0x1bc] sm:$0xf] %vm256, %v1622
        %1709 = vst.msk [vmem:[#allocation4 + $0x1d0] sm:$0xf] %vm256, %v1625
        %1710 = vst.msk [vmem:[#allocation4 + $0x1e4] sm:$0xf] %vm256, %v1629
        %1711 = vst.msk [vmem:[#allocation4 + $0x1f8] sm:$0xf] %vm256, %v1632
        %1712 = vst.msk [vmem:[#allocation4 + $0x20c] sm:$0xf] %vm256, %v1636
        %1713 = vst.msk [vmem:[#allocation4 + $0x220] sm:$0xf] %vm256, %v1639
        %1714 = vst.msk [vmem:[#allocation4 + $0x234] sm:$0xf] %vm256, %v1643
        %1715 = vst.msk [vmem:[#allocation4 + $0x248] sm:$0xf] %vm256, %v1646
        %1716 = vst.msk [vmem:[#allocation4 + $0x25c] sm:$0xf] %vm256, %v1650
        %1717 = vst.msk [vmem:[#allocation4 + $0x270] sm:$0xf] %vm256, %v1653
        %v1718 = vld [vmem:[%s700] sm:$0xf]
        %v1719 = vld [vmem:[%s700 + $0x4] sm:$0xf]
        %v1720 = vld [vmem:[%s700 + $0xc] sm:$0xf]
        %v1721 = vld [vmem:[%s700 + $0x10] sm:$0xf]
        %v1722 = vld [vmem:[%s700 + $0x18] sm:$0xf]
        %v1723 = vld [vmem:[%s700 + $0x1c] sm:$0xf]
        %v1724 = vld [vmem:[%s700 + $0x24] sm:$0xf]
        %v1725 = vld [vmem:[%s700 + $0x28] sm:$0xf]
        %v1726 = vld [vmem:[%s700 + $0x30] sm:$0xf]
        %v1727 = vld [vmem:[%s700 + $0x34] sm:$0xf]
        %v1728 = vld [vmem:[%s700 + $0x3c] sm:$0xf]
        %v1729 = vld [vmem:[%s700 + $0x40] sm:$0xf]
        %v1730 = vld [vmem:[%s700 + $0x48] sm:$0xf]
        %v1731 = vld [vmem:[%s700 + $0x4c] sm:$0xf]
        %v1732 = vld [vmem:[%s700 + $0x54] sm:$0xf]
        %v1733 = vld [vmem:[%s700 + $0x58] sm:$0xf]
        %v1734 = vld [vmem:[%s700 + $0x60] sm:$0xf]
        %v1735 = vld [vmem:[%s700 + $0x64] sm:$0xf]
        %v1736 = vld [vmem:[%s700 + $0x6c] sm:$0xf]
        %v1737 = vld [vmem:[%s700 + $0x70] sm:$0xf]
        %v1738 = vld [vmem:[%s700 + $0x78] sm:$0xf]
        %v1739 = vld [vmem:[%s700 + $0x7c] sm:$0xf]
        %v1740 = vld [vmem:[%s700 + $0x84] sm:$0xf]
        %v1741 = vld [vmem:[%s700 + $0x88] sm:$0xf]
        %v1742 = vld [vmem:[%s700 + $0x90] sm:$0xf]
        %v1743 = vld [vmem:[%s700 + $0x94] sm:$0xf]
        %v1744 = vld [vmem:[%s700 + $0x9c] sm:$0xf]
        %v1745 = vld [vmem:[%s700 + $0xa0] sm:$0xf]
        %v1746 = vld [vmem:[%s700 + $0xa8] sm:$0xf]
        %v1747 = vld [vmem:[%s700 + $0xac] sm:$0xf]
        %v1748 = vld [vmem:[%s700 + $0xb4] sm:$0xf]
        %v1749 = vld [vmem:[%s700 + $0xb8] sm:$0xf]
        %1782 = vrot.lane.b32.xlu0 %v1718, 64
        %v1783 = vpop.permute.xlu0 %1782
        %1784 = vrot.lane.b32.xlu0 %v1719, 64
        %v1785 = vpop.permute.xlu0 %1784
        %1786 = vrot.lane.b32.xlu0 %v1720, 64
        %v1787 = vpop.permute.xlu0 %1786
        %1788 = vrot.lane.b32.xlu0 %v1721, 64
        %v1789 = vpop.permute.xlu0 %1788
        %1790 = vrot.lane.b32.xlu0 %v1722, 64
        %v1791 = vpop.permute.xlu0 %1790
        %1792 = vrot.lane.b32.xlu0 %v1723, 64
        %v1793 = vpop.permute.xlu0 %1792
        %1794 = vrot.lane.b32.xlu0 %v1724, 64
        %v1795 = vpop.permute.xlu0 %1794
        %1796 = vrot.lane.b32.xlu0 %v1725, 64
        %v1797 = vpop.permute.xlu0 %1796
        %1798 = vrot.lane.b32.xlu0 %v1726, 64
        %v1799 = vpop.permute.xlu0 %1798
        %1800 = vrot.lane.b32.xlu0 %v1727, 64
        %v1801 = vpop.permute.xlu0 %1800
        %1802 = vrot.lane.b32.xlu0 %v1728, 64
        %v1803 = vpop.permute.xlu0 %1802
        %1804 = vrot.lane.b32.xlu0 %v1729, 64
        %v1805 = vpop.permute.xlu0 %1804
        %1806 = vrot.lane.b32.xlu0 %v1730, 64
        %v1807 = vpop.permute.xlu0 %1806
        %1808 = vrot.lane.b32.xlu0 %v1731, 64
        %v1809 = vpop.permute.xlu0 %1808
        %1810 = vrot.lane.b32.xlu0 %v1732, 64
        %v1811 = vpop.permute.xlu0 %1810
        %1812 = vrot.lane.b32.xlu0 %v1733, 64
        %v1813 = vpop.permute.xlu0 %1812
        %1814 = vrot.lane.b32.xlu0 %v1734, 64
        %v1815 = vpop.permute.xlu0 %1814
        %1816 = vrot.lane.b32.xlu0 %v1735, 64
        %v1817 = vpop.permute.xlu0 %1816
        %1818 = vrot.lane.b32.xlu0 %v1736, 64
        %v1819 = vpop.permute.xlu0 %1818
        %1820 = vrot.lane.b32.xlu0 %v1737, 64
        %v1821 = vpop.permute.xlu0 %1820
        %1822 = vrot.lane.b32.xlu0 %v1738, 64
        %v1823 = vpop.permute.xlu0 %1822
        %1824 = vrot.lane.b32.xlu0 %v1739, 64
        %v1825 = vpop.permute.xlu0 %1824
        %1826 = vrot.lane.b32.xlu0 %v1740, 64
        %v1827 = vpop.permute.xlu0 %1826
        %1828 = vrot.lane.b32.xlu0 %v1741, 64
        %v1829 = vpop.permute.xlu0 %1828
        %1830 = vrot.lane.b32.xlu0 %v1742, 64
        %v1831 = vpop.permute.xlu0 %1830
        %1832 = vrot.lane.b32.xlu0 %v1743, 64
        %v1833 = vpop.permute.xlu0 %1832
        %1834 = vrot.lane.b32.xlu0 %v1744, 64
        %v1835 = vpop.permute.xlu0 %1834
        %1836 = vrot.lane.b32.xlu0 %v1745, 64
        %v1837 = vpop.permute.xlu0 %1836
        %1838 = vrot.lane.b32.xlu0 %v1746, 64
        %v1839 = vpop.permute.xlu0 %1838
        %1840 = vrot.lane.b32.xlu0 %v1747, 64
        %v1841 = vpop.permute.xlu0 %1840
        %1842 = vrot.lane.b32.xlu0 %v1748, 64
        %v1843 = vpop.permute.xlu0 %1842
        %1844 = vrot.lane.b32.xlu0 %v1749, 64
        %v1845 = vpop.permute.xlu0 %1844
        %1878 = vst.msk [vmem:[#allocation4 + $0x4] sm:$0xf] %vm1410, %v1783
        %1879 = vst.msk [vmem:[#allocation4 + $0x18] sm:$0xf] %vm1410, %v1785
        %1880 = vst.msk [vmem:[#allocation4 + $0x2c] sm:$0xf] %vm1410, %v1787
        %1881 = vst.msk [vmem:[#allocation4 + $0x40] sm:$0xf] %vm1410, %v1789
        %1882 = vst.msk [vmem:[#allocation4 + $0x54] sm:$0xf] %vm1410, %v1791
        %1883 = vst.msk [vmem:[#allocation4 + $0x68] sm:$0xf] %vm1410, %v1793
        %1884 = vst.msk [vmem:[#allocation4 + $0x7c] sm:$0xf] %vm1410, %v1795
        %1885 = vst.msk [vmem:[#allocation4 + $0x90] sm:$0xf] %vm1410, %v1797
        %1886 = vst.msk [vmem:[#allocation4 + $0xa4] sm:$0xf] %vm1410, %v1799
        %1887 = vst.msk [vmem:[#allocation4 + $0xb8] sm:$0xf] %vm1410, %v1801
        %1888 = vst.msk [vmem:[#allocation4 + $0xcc] sm:$0xf] %vm1410, %v1803
        %1889 = vst.msk [vmem:[#allocation4 + $0xe0] sm:$0xf] %vm1410, %v1805
        %1890 = vst.msk [vmem:[#allocation4 + $0xf4] sm:$0xf] %vm1410, %v1807
        %1891 = vst.msk [vmem:[#allocation4 + $0x108] sm:$0xf] %vm1410, %v1809
        %1892 = vst.msk [vmem:[#allocation4 + $0x11c] sm:$0xf] %vm1410, %v1811
        %1893 = vst.msk [vmem:[#allocation4 + $0x130] sm:$0xf] %vm1410, %v1813
        %1894 = vst.msk [vmem:[#allocation4 + $0x144] sm:$0xf] %vm1410, %v1815
        %1895 = vst.msk [vmem:[#allocation4 + $0x158] sm:$0xf] %vm1410, %v1817
        %1896 = vst.msk [vmem:[#allocation4 + $0x16c] sm:$0xf] %vm1410, %v1819
        %1897 = vst.msk [vmem:[#allocation4 + $0x180] sm:$0xf] %vm1410, %v1821
        %1898 = vst.msk [vmem:[#allocation4 + $0x194] sm:$0xf] %vm1410, %v1823
        %1899 = vst.msk [vmem:[#allocation4 + $0x1a8] sm:$0xf] %vm1410, %v1825
        %1900 = vst.msk [vmem:[#allocation4 + $0x1bc] sm:$0xf] %vm1410, %v1827
        %1901 = vst.msk [vmem:[#allocation4 + $0x1d0] sm:$0xf] %vm1410, %v1829
        %1902 = vst.msk [vmem:[#allocation4 + $0x1e4] sm:$0xf] %vm1410, %v1831
        %1903 = vst.msk [vmem:[#allocation4 + $0x1f8] sm:$0xf] %vm1410, %v1833
        %1904 = vst.msk [vmem:[#allocation4 + $0x20c] sm:$0xf] %vm1410, %v1835
        %1905 = vst.msk [vmem:[#allocation4 + $0x220] sm:$0xf] %vm1410, %v1837
        %1906 = vst.msk [vmem:[#allocation4 + $0x234] sm:$0xf] %vm1410, %v1839
        %1907 = vst.msk [vmem:[#allocation4 + $0x248] sm:$0xf] %vm1410, %v1841
        %1908 = vst.msk [vmem:[#allocation4 + $0x25c] sm:$0xf] %vm1410, %v1843
        %1909 = vst.msk [vmem:[#allocation4 + $0x270] sm:$0xf] %vm1410, %v1845
        %v1910 = vld [vmem:[%s700] sm:$0xf]
        %v1911 = vld [vmem:[%s700 + $0x4] sm:$0xf]
        %v1912 = vld [vmem:[%s700 + $0x8] sm:$0x1]
        %v1913 = vld [vmem:[%s700 + $0xc] sm:$0xf]
        %v1914 = vld [vmem:[%s700 + $0x10] sm:$0xf]
        %v1915 = vld [vmem:[%s700 + $0x14] sm:$0x1]
        %v1916 = vld [vmem:[%s700 + $0x18] sm:$0xf]
        %v1917 = vld [vmem:[%s700 + $0x1c] sm:$0xf]
        %v1918 = vld [vmem:[%s700 + $0x20] sm:$0x1]
        %v1919 = vld [vmem:[%s700 + $0x24] sm:$0xf]
        %v1920 = vld [vmem:[%s700 + $0x28] sm:$0xf]
        %v1921 = vld [vmem:[%s700 + $0x2c] sm:$0x1]
        %v1922 = vld [vmem:[%s700 + $0x30] sm:$0xf]
        %v1923 = vld [vmem:[%s700 + $0x34] sm:$0xf]
        %v1924 = vld [vmem:[%s700 + $0x38] sm:$0x1]
        %v1925 = vld [vmem:[%s700 + $0x3c] sm:$0xf]
        %v1926 = vld [vmem:[%s700 + $0x40] sm:$0xf]
        %v1927 = vld [vmem:[%s700 + $0x44] sm:$0x1]
        %v1928 = vld [vmem:[%s700 + $0x48] sm:$0xf]
        %v1929 = vld [vmem:[%s700 + $0x4c] sm:$0xf]
        %v1930 = vld [vmem:[%s700 + $0x50] sm:$0x1]
        %v1931 = vld [vmem:[%s700 + $0x54] sm:$0xf]
        %v1932 = vld [vmem:[%s700 + $0x58] sm:$0xf]
        %v1933 = vld [vmem:[%s700 + $0x5c] sm:$0x1]
        %v1934 = vld [vmem:[%s700 + $0x60] sm:$0xf]
        %v1935 = vld [vmem:[%s700 + $0x64] sm:$0xf]
        %v1936 = vld [vmem:[%s700 + $0x68] sm:$0x1]
        %v1937 = vld [vmem:[%s700 + $0x6c] sm:$0xf]
        %v1938 = vld [vmem:[%s700 + $0x70] sm:$0xf]
        %v1939 = vld [vmem:[%s700 + $0x74] sm:$0x1]
        %v1940 = vld [vmem:[%s700 + $0x78] sm:$0xf]
        %v1941 = vld [vmem:[%s700 + $0x7c] sm:$0xf]
        %v1942 = vld [vmem:[%s700 + $0x80] sm:$0x1]
        %v1943 = vld [vmem:[%s700 + $0x84] sm:$0xf]
        %v1944 = vld [vmem:[%s700 + $0x88] sm:$0xf]
        %v1945 = vld [vmem:[%s700 + $0x8c] sm:$0x1]
        %v1946 = vld [vmem:[%s700 + $0x90] sm:$0xf]
        %v1947 = vld [vmem:[%s700 + $0x94] sm:$0xf]
        %v1948 = vld [vmem:[%s700 + $0x98] sm:$0x1]
        %v1949 = vld [vmem:[%s700 + $0x9c] sm:$0xf]
        %v1950 = vld [vmem:[%s700 + $0xa0] sm:$0xf]
        %v1951 = vld [vmem:[%s700 + $0xa4] sm:$0x1]
        %v1952 = vld [vmem:[%s700 + $0xa8] sm:$0xf]
        %v1953 = vld [vmem:[%s700 + $0xac] sm:$0xf]
        %v1954 = vld [vmem:[%s700 + $0xb0] sm:$0x1]
        %v1955 = vld [vmem:[%s700 + $0xb4] sm:$0xf]
        %v1956 = vld [vmem:[%s700 + $0xb8] sm:$0xf]
        %v1957 = vld [vmem:[%s700 + $0xbc] sm:$0x1]
        %v1959 = vshrl.u32 %v1910, 16
        %v1961 = vrot.slane %v1959, 4
        %v1962 = vshll.u32 %v1910, 16
        %v1964 = vrot.slane %v1962, 5
        %v1965 = vor.u32 %v1961, %v1964
        %v1966 = vrot.slane %v1965, 4
        %v1968 = vshll.u32 %v1911, 16
        %v1970 = vrot.slane %v1968, 5
        %v1971 = vsel %vm929, %v1966, %v1970
        %v1972 = vshrl.u32 %v1911, 16
        %v1974 = vrot.slane %v1972, 4
        %v1975 = vor.u32 %v1974, %v1970
        %v1976 = vrot.slane %v1975, 4
        %v1978 = vshll.u32 %v1912, 16
        %v1980 = vrot.slane %v1978, 5
        %v1981 = vsel %vm929, %v1976, %v1980
        %v1983 = vshrl.u32 %v1913, 16
        %v1985 = vrot.slane %v1983, 4
        %v1986 = vshll.u32 %v1913, 16
        %v1988 = vrot.slane %v1986, 5
        %v1989 = vor.u32 %v1985, %v1988
        %v1990 = vrot.slane %v1989, 4
        %v1992 = vshll.u32 %v1914, 16
        %v1994 = vrot.slane %v1992, 5
        %v1995 = vsel %vm929, %v1990, %v1994
        %v1996 = vshrl.u32 %v1914, 16
        %v1998 = vrot.slane %v1996, 4
        %v1999 = vor.u32 %v1998, %v1994
        %v2000 = vrot.slane %v1999, 4
        %v2002 = vshll.u32 %v1915, 16
        %v2004 = vrot.slane %v2002, 5
        %v2005 = vsel %vm929, %v2000, %v2004
        %v2007 = vshrl.u32 %v1916, 16
        %v2009 = vrot.slane %v2007, 4
        %v2010 = vshll.u32 %v1916, 16
        %v2012 = vrot.slane %v2010, 5
        %v2013 = vor.u32 %v2009, %v2012
        %v2014 = vrot.slane %v2013, 4
        %v2016 = vshll.u32 %v1917, 16
        %v2018 = vrot.slane %v2016, 5
        %v2019 = vsel %vm929, %v2014, %v2018
        %v2020 = vshrl.u32 %v1917, 16
        %v2022 = vrot.slane %v2020, 4
        %v2023 = vor.u32 %v2022, %v2018
        %v2024 = vrot.slane %v2023, 4
        %v2026 = vshll.u32 %v1918, 16
        %v2028 = vrot.slane %v2026, 5
        %v2029 = vsel %vm929, %v2024, %v2028
        %v2031 = vshrl.u32 %v1919, 16
        %v2033 = vrot.slane %v2031, 4
        %v2034 = vshll.u32 %v1919, 16
        %v2036 = vrot.slane %v2034, 5
        %v2037 = vor.u32 %v2033, %v2036
        %v2038 = vrot.slane %v2037, 4
        %v2040 = vshll.u32 %v1920, 16
        %v2042 = vrot.slane %v2040, 5
        %v2043 = vsel %vm929, %v2038, %v2042
        %v2044 = vshrl.u32 %v1920, 16
        %v2046 = vrot.slane %v2044, 4
        %v2047 = vor.u32 %v2046, %v2042
        %v2048 = vrot.slane %v2047, 4
        %v2050 = vshll.u32 %v1921, 16
        %v2052 = vrot.slane %v2050, 5
        %v2053 = vsel %vm929, %v2048, %v2052
        %v2055 = vshrl.u32 %v1922, 16
        %v2057 = vrot.slane %v2055, 4
        %v2058 = vshll.u32 %v1922, 16
        %v2060 = vrot.slane %v2058, 5
        %v2061 = vor.u32 %v2057, %v2060
        %v2062 = vrot.slane %v2061, 4
        %v2064 = vshll.u32 %v1923, 16
        %v2066 = vrot.slane %v2064, 5
        %v2067 = vsel %vm929, %v2062, %v2066
        %v2068 = vshrl.u32 %v1923, 16
        %v2070 = vrot.slane %v2068, 4
        %v2071 = vor.u32 %v2070, %v2066
        %v2072 = vrot.slane %v2071, 4
        %v2074 = vshll.u32 %v1924, 16
        %v2076 = vrot.slane %v2074, 5
        %v2077 = vsel %vm929, %v2072, %v2076
        %v2079 = vshrl.u32 %v1925, 16
        %v2081 = vrot.slane %v2079, 4
        %v2082 = vshll.u32 %v1925, 16
        %v2084 = vrot.slane %v2082, 5
        %v2085 = vor.u32 %v2081, %v2084
        %v2086 = vrot.slane %v2085, 4
        %v2088 = vshll.u32 %v1926, 16
        %v2090 = vrot.slane %v2088, 5
        %v2091 = vsel %vm929, %v2086, %v2090
        %v2092 = vshrl.u32 %v1926, 16
        %v2094 = vrot.slane %v2092, 4
        %v2095 = vor.u32 %v2094, %v2090
        %v2096 = vrot.slane %v2095, 4
        %v2098 = vshll.u32 %v1927, 16
        %v2100 = vrot.slane %v2098, 5
        %v2101 = vsel %vm929, %v2096, %v2100
        %v2103 = vshrl.u32 %v1928, 16
        %v2105 = vrot.slane %v2103, 4
        %v2106 = vshll.u32 %v1928, 16
        %v2108 = vrot.slane %v2106, 5
        %v2109 = vor.u32 %v2105, %v2108
        %v2110 = vrot.slane %v2109, 4
        %v2112 = vshll.u32 %v1929, 16
        %v2114 = vrot.slane %v2112, 5
        %v2115 = vsel %vm929, %v2110, %v2114
        %v2116 = vshrl.u32 %v1929, 16
        %v2118 = vrot.slane %v2116, 4
        %v2119 = vor.u32 %v2118, %v2114
        %v2120 = vrot.slane %v2119, 4
        %v2122 = vshll.u32 %v1930, 16
        %v2124 = vrot.slane %v2122, 5
        %v2125 = vsel %vm929, %v2120, %v2124
        %v2127 = vshrl.u32 %v1931, 16
        %v2129 = vrot.slane %v2127, 4
        %v2130 = vshll.u32 %v1931, 16
        %v2132 = vrot.slane %v2130, 5
        %v2133 = vor.u32 %v2129, %v2132
        %v2134 = vrot.slane %v2133, 4
        %v2136 = vshll.u32 %v1932, 16
        %v2138 = vrot.slane %v2136, 5
        %v2139 = vsel %vm929, %v2134, %v2138
        %v2140 = vshrl.u32 %v1932, 16
        %v2142 = vrot.slane %v2140, 4
        %v2143 = vor.u32 %v2142, %v2138
        %v2144 = vrot.slane %v2143, 4
        %v2146 = vshll.u32 %v1933, 16
        %v2148 = vrot.slane %v2146, 5
        %v2149 = vsel %vm929, %v2144, %v2148
        %v2151 = vshrl.u32 %v1934, 16
        %v2153 = vrot.slane %v2151, 4
        %v2154 = vshll.u32 %v1934, 16
        %v2156 = vrot.slane %v2154, 5
        %v2157 = vor.u32 %v2153, %v2156
        %v2158 = vrot.slane %v2157, 4
        %v2160 = vshll.u32 %v1935, 16
        %v2162 = vrot.slane %v2160, 5
        %v2163 = vsel %vm929, %v2158, %v2162
        %v2164 = vshrl.u32 %v1935, 16
        %v2166 = vrot.slane %v2164, 4
        %v2167 = vor.u32 %v2166, %v2162
        %v2168 = vrot.slane %v2167, 4
        %v2170 = vshll.u32 %v1936, 16
        %v2172 = vrot.slane %v2170, 5
        %v2173 = vsel %vm929, %v2168, %v2172
        %v2175 = vshrl.u32 %v1937, 16
        %v2177 = vrot.slane %v2175, 4
        %v2178 = vshll.u32 %v1937, 16
        %v2180 = vrot.slane %v2178, 5
        %v2181 = vor.u32 %v2177, %v2180
        %v2182 = vrot.slane %v2181, 4
        %v2184 = vshll.u32 %v1938, 16
        %v2186 = vrot.slane %v2184, 5
        %v2187 = vsel %vm929, %v2182, %v2186
        %v2188 = vshrl.u32 %v1938, 16
        %v2190 = vrot.slane %v2188, 4
        %v2191 = vor.u32 %v2190, %v2186
        %v2192 = vrot.slane %v2191, 4
        %v2194 = vshll.u32 %v1939, 16
        %v2196 = vrot.slane %v2194, 5
        %v2197 = vsel %vm929, %v2192, %v2196
        %v2199 = vshrl.u32 %v1940, 16
        %v2201 = vrot.slane %v2199, 4
        %v2202 = vshll.u32 %v1940, 16
        %v2204 = vrot.slane %v2202, 5
        %v2205 = vor.u32 %v2201, %v2204
        %v2206 = vrot.slane %v2205, 4
        %v2208 = vshll.u32 %v1941, 16
        %v2210 = vrot.slane %v2208, 5
        %v2211 = vsel %vm929, %v2206, %v2210
        %v2212 = vshrl.u32 %v1941, 16
        %v2214 = vrot.slane %v2212, 4
        %v2215 = vor.u32 %v2214, %v2210
        %v2216 = vrot.slane %v2215, 4
        %v2218 = vshll.u32 %v1942, 16
        %v2220 = vrot.slane %v2218, 5
        %v2221 = vsel %vm929, %v2216, %v2220
        %v2223 = vshrl.u32 %v1943, 16
        %v2225 = vrot.slane %v2223, 4
        %v2226 = vshll.u32 %v1943, 16
        %v2228 = vrot.slane %v2226, 5
        %v2229 = vor.u32 %v2225, %v2228
        %v2230 = vrot.slane %v2229, 4
        %v2232 = vshll.u32 %v1944, 16
        %v2234 = vrot.slane %v2232, 5
        %v2235 = vsel %vm929, %v2230, %v2234
        %v2236 = vshrl.u32 %v1944, 16
        %v2238 = vrot.slane %v2236, 4
        %v2239 = vor.u32 %v2238, %v2234
        %v2240 = vrot.slane %v2239, 4
        %v2242 = vshll.u32 %v1945, 16
        %v2244 = vrot.slane %v2242, 5
        %v2245 = vsel %vm929, %v2240, %v2244
        %v2247 = vshrl.u32 %v1946, 16
        %v2249 = vrot.slane %v2247, 4
        %v2250 = vshll.u32 %v1946, 16
        %v2252 = vrot.slane %v2250, 5
        %v2253 = vor.u32 %v2249, %v2252
        %v2254 = vrot.slane %v2253, 4
        %v2256 = vshll.u32 %v1947, 16
        %v2258 = vrot.slane %v2256, 5
        %v2259 = vsel %vm929, %v2254, %v2258
        %v2260 = vshrl.u32 %v1947, 16
        %v2262 = vrot.slane %v2260, 4
        %v2263 = vor.u32 %v2262, %v2258
        %v2264 = vrot.slane %v2263, 4
        %v2266 = vshll.u32 %v1948, 16
        %v2268 = vrot.slane %v2266, 5
        %v2269 = vsel %vm929, %v2264, %v2268
        %v2271 = vshrl.u32 %v1949, 16
        %v2273 = vrot.slane %v2271, 4
        %v2274 = vshll.u32 %v1949, 16
        %v2276 = vrot.slane %v2274, 5
        %v2277 = vor.u32 %v2273, %v2276
        %v2278 = vrot.slane %v2277, 4
        %v2280 = vshll.u32 %v1950, 16
        %v2282 = vrot.slane %v2280, 5
        %v2283 = vsel %vm929, %v2278, %v2282
        %v2284 = vshrl.u32 %v1950, 16
        %v2286 = vrot.slane %v2284, 4
        %v2287 = vor.u32 %v2286, %v2282
        %v2288 = vrot.slane %v2287, 4
        %v2290 = vshll.u32 %v1951, 16
        %v2292 = vrot.slane %v2290, 5
        %v2293 = vsel %vm929, %v2288, %v2292
        %v2295 = vshrl.u32 %v1952, 16
        %v2297 = vrot.slane %v2295, 4
        %v2298 = vshll.u32 %v1952, 16
        %v2300 = vrot.slane %v2298, 5
        %v2301 = vor.u32 %v2297, %v2300
        %v2302 = vrot.slane %v2301, 4
        %v2304 = vshll.u32 %v1953, 16
        %v2306 = vrot.slane %v2304, 5
        %v2307 = vsel %vm929, %v2302, %v2306
        %v2308 = vshrl.u32 %v1953, 16
        %v2310 = vrot.slane %v2308, 4
        %v2311 = vor.u32 %v2310, %v2306
        %v2312 = vrot.slane %v2311, 4
        %v2314 = vshll.u32 %v1954, 16
        %v2316 = vrot.slane %v2314, 5
        %v2317 = vsel %vm929, %v2312, %v2316
        %v2319 = vshrl.u32 %v1955, 16
        %v2321 = vrot.slane %v2319, 4
        %v2322 = vshll.u32 %v1955, 16
        %v2324 = vrot.slane %v2322, 5
        %v2325 = vor.u32 %v2321, %v2324
        %v2326 = vrot.slane %v2325, 4
        %v2328 = vshll.u32 %v1956, 16
        %v2330 = vrot.slane %v2328, 5
        %v2331 = vsel %vm929, %v2326, %v2330
        %v2332 = vshrl.u32 %v1956, 16
        %v2334 = vrot.slane %v2332, 4
        %v2335 = vor.u32 %v2334, %v2330
        %v2336 = vrot.slane %v2335, 4
        %v2338 = vshll.u32 %v1957, 16
        %v2340 = vrot.slane %v2338, 5
        %v2341 = vsel %vm929, %v2336, %v2340
        %2374 = vst.msk [vmem:[#allocation4 + $0x8] sm:$0xf] %vm256, %v1971
        %2375 = vst.msk [vmem:[#allocation4 + $0x1c] sm:$0xf] %vm256, %v1981
        %2376 = vst.msk [vmem:[#allocation4 + $0x30] sm:$0xf] %vm256, %v1995
        %2377 = vst.msk [vmem:[#allocation4 + $0x44] sm:$0xf] %vm256, %v2005
        %2378 = vst.msk [vmem:[#allocation4 + $0x58] sm:$0xf] %vm256, %v2019
        %2379 = vst.msk [vmem:[#allocation4 + $0x6c] sm:$0xf] %vm256, %v2029
        %2380 = vst.msk [vmem:[#allocation4 + $0x80] sm:$0xf] %vm256, %v2043
        %2381 = vst.msk [vmem:[#allocation4 + $0x94] sm:$0xf] %vm256, %v2053
        %2382 = vst.msk [vmem:[#allocation4 + $0xa8] sm:$0xf] %vm256, %v2067
        %2383 = vst.msk [vmem:[#allocation4 + $0xbc] sm:$0xf] %vm256, %v2077
        %2384 = vst.msk [vmem:[#allocation4 + $0xd0] sm:$0xf] %vm256, %v2091
        %2385 = vst.msk [vmem:[#allocation4 + $0xe4] sm:$0xf] %vm256, %v2101
        %2386 = vst.msk [vmem:[#allocation4 + $0xf8] sm:$0xf] %vm256, %v2115
        %2387 = vst.msk [vmem:[#allocation4 + $0x10c] sm:$0xf] %vm256, %v2125
        %2388 = vst.msk [vmem:[#allocation4 + $0x120] sm:$0xf] %vm256, %v2139
        %2389 = vst.msk [vmem:[#allocation4 + $0x134] sm:$0xf] %vm256, %v2149
        %2390 = vst.msk [vmem:[#allocation4 + $0x148] sm:$0xf] %vm256, %v2163
        %2391 = vst.msk [vmem:[#allocation4 + $0x15c] sm:$0xf] %vm256, %v2173
        %2392 = vst.msk [vmem:[#allocation4 + $0x170] sm:$0xf] %vm256, %v2187
        %2393 = vst.msk [vmem:[#allocation4 + $0x184] sm:$0xf] %vm256, %v2197
        %2394 = vst.msk [vmem:[#allocation4 + $0x198] sm:$0xf] %vm256, %v2211
        %2395 = vst.msk [vmem:[#allocation4 + $0x1ac] sm:$0xf] %vm256, %v2221
        %2396 = vst.msk [vmem:[#allocation4 + $0x1c0] sm:$0xf] %vm256, %v2235
        %2397 = vst.msk [vmem:[#allocation4 + $0x1d4] sm:$0xf] %vm256, %v2245
        %2398 = vst.msk [vmem:[#allocation4 + $0x1e8] sm:$0xf] %vm256, %v2259
        %2399 = vst.msk [vmem:[#allocation4 + $0x1fc] sm:$0xf] %vm256, %v2269
        %2400 = vst.msk [vmem:[#allocation4 + $0x210] sm:$0xf] %vm256, %v2283
        %2401 = vst.msk [vmem:[#allocation4 + $0x224] sm:$0xf] %vm256, %v2293
        %2402 = vst.msk [vmem:[#allocation4 + $0x238] sm:$0xf] %vm256, %v2307
        %2403 = vst.msk [vmem:[#allocation4 + $0x24c] sm:$0xf] %vm256, %v2317
        %2404 = vst.msk [vmem:[#allocation4 + $0x260] sm:$0xf] %vm256, %v2331
        %2405 = vst.msk [vmem:[#allocation4 + $0x274] sm:$0xf] %vm256, %v2341
        %v2406 = vld [vmem:[%s700] sm:$0xe]
        %v2407 = vld [vmem:[%s700 + $0x4] sm:$0xf]
        %v2408 = vld [vmem:[%s700 + $0x8] sm:$0x1]
        %v2409 = vld [vmem:[%s700 + $0xc] sm:$0xe]
        %v2410 = vld [vmem:[%s700 + $0x10] sm:$0xf]
        %v2411 = vld [vmem:[%s700 + $0x14] sm:$0x1]
        %v2412 = vld [vmem:[%s700 + $0x18] sm:$0xe]
        %v2413 = vld [vmem:[%s700 + $0x1c] sm:$0xf]
        %v2414 = vld [vmem:[%s700 + $0x20] sm:$0x1]
        %v2415 = vld [vmem:[%s700 + $0x24] sm:$0xe]
        %v2416 = vld [vmem:[%s700 + $0x28] sm:$0xf]
        %v2417 = vld [vmem:[%s700 + $0x2c] sm:$0x1]
        %v2418 = vld [vmem:[%s700 + $0x30] sm:$0xe]
        %v2419 = vld [vmem:[%s700 + $0x34] sm:$0xf]
        %v2420 = vld [vmem:[%s700 + $0x38] sm:$0x1]
        %v2421 = vld [vmem:[%s700 + $0x3c] sm:$0xe]
        %v2422 = vld [vmem:[%s700 + $0x40] sm:$0xf]
        %v2423 = vld [vmem:[%s700 + $0x44] sm:$0x1]
        %v2424 = vld [vmem:[%s700 + $0x48] sm:$0xe]
        %v2425 = vld [vmem:[%s700 + $0x4c] sm:$0xf]
        %v2426 = vld [vmem:[%s700 + $0x50] sm:$0x1]
        %v2427 = vld [vmem:[%s700 + $0x54] sm:$0xe]
        %v2428 = vld [vmem:[%s700 + $0x58] sm:$0xf]
        %v2429 = vld [vmem:[%s700 + $0x5c] sm:$0x1]
        %v2430 = vld [vmem:[%s700 + $0x60] sm:$0xe]
        %v2431 = vld [vmem:[%s700 + $0x64] sm:$0xf]
        %v2432 = vld [vmem:[%s700 + $0x68] sm:$0x1]
        %v2433 = vld [vmem:[%s700 + $0x6c] sm:$0xe]
        %v2434 = vld [vmem:[%s700 + $0x70] sm:$0xf]
        %v2435 = vld [vmem:[%s700 + $0x74] sm:$0x1]
        %v2436 = vld [vmem:[%s700 + $0x78] sm:$0xe]
        %v2437 = vld [vmem:[%s700 + $0x7c] sm:$0xf]
        %v2438 = vld [vmem:[%s700 + $0x80] sm:$0x1]
        %v2439 = vld [vmem:[%s700 + $0x84] sm:$0xe]
        %v2440 = vld [vmem:[%s700 + $0x88] sm:$0xf]
        %v2441 = vld [vmem:[%s700 + $0x8c] sm:$0x1]
        %v2442 = vld [vmem:[%s700 + $0x90] sm:$0xe]
        %v2443 = vld [vmem:[%s700 + $0x94] sm:$0xf]
        %v2444 = vld [vmem:[%s700 + $0x98] sm:$0x1]
        %v2445 = vld [vmem:[%s700 + $0x9c] sm:$0xe]
        %v2446 = vld [vmem:[%s700 + $0xa0] sm:$0xf]
        %v2447 = vld [vmem:[%s700 + $0xa4] sm:$0x1]
        %v2448 = vld [vmem:[%s700 + $0xa8] sm:$0xe]
        %v2449 = vld [vmem:[%s700 + $0xac] sm:$0xf]
        %v2450 = vld [vmem:[%s700 + $0xb0] sm:$0x1]
        %v2451 = vld [vmem:[%s700 + $0xb4] sm:$0xe]
        %v2452 = vld [vmem:[%s700 + $0xb8] sm:$0xf]
        %v2453 = vld [vmem:[%s700 + $0xbc] sm:$0x1]
        %v2502 = vrot.slane %v2406, 5
        %v2503 = vrot.slane %v2502, 4
        %v2504 = vrot.slane %v2407, 5
        %v2505 = vsel %vm1541, %v2503, %v2504
        %v2506 = vrot.slane %v2504, 4
        %v2507 = vrot.slane %v2408, 5
        %v2508 = vsel %vm1541, %v2506, %v2507
        %v2509 = vrot.slane %v2409, 5
        %v2510 = vrot.slane %v2509, 4
        %v2511 = vrot.slane %v2410, 5
        %v2512 = vsel %vm1541, %v2510, %v2511
        %v2513 = vrot.slane %v2511, 4
        %v2514 = vrot.slane %v2411, 5
        %v2515 = vsel %vm1541, %v2513, %v2514
        %v2516 = vrot.slane %v2412, 5
        %v2517 = vrot.slane %v2516, 4
        %v2518 = vrot.slane %v2413, 5
        %v2519 = vsel %vm1541, %v2517, %v2518
        %v2520 = vrot.slane %v2518, 4
        %v2521 = vrot.slane %v2414, 5
        %v2522 = vsel %vm1541, %v2520, %v2521
        %v2523 = vrot.slane %v2415, 5
        %v2524 = vrot.slane %v2523, 4
        %v2525 = vrot.slane %v2416, 5
        %v2526 = vsel %vm1541, %v2524, %v2525
        %v2527 = vrot.slane %v2525, 4
        %v2528 = vrot.slane %v2417, 5
        %v2529 = vsel %vm1541, %v2527, %v2528
        %v2530 = vrot.slane %v2418, 5
        %v2531 = vrot.slane %v2530, 4
        %v2532 = vrot.slane %v2419, 5
        %v2533 = vsel %vm1541, %v2531, %v2532
        %v2534 = vrot.slane %v2532, 4
        %v2535 = vrot.slane %v2420, 5
        %v2536 = vsel %vm1541, %v2534, %v2535
        %v2537 = vrot.slane %v2421, 5
        %v2538 = vrot.slane %v2537, 4
        %v2539 = vrot.slane %v2422, 5
        %v2540 = vsel %vm1541, %v2538, %v2539
        %v2541 = vrot.slane %v2539, 4
        %v2542 = vrot.slane %v2423, 5
        %v2543 = vsel %vm1541, %v2541, %v2542
        %v2544 = vrot.slane %v2424, 5
        %v2545 = vrot.slane %v2544, 4
        %v2546 = vrot.slane %v2425, 5
        %v2547 = vsel %vm1541, %v2545, %v2546
        %v2548 = vrot.slane %v2546, 4
        %v2549 = vrot.slane %v2426, 5
        %v2550 = vsel %vm1541, %v2548, %v2549
        %v2551 = vrot.slane %v2427, 5
        %v2552 = vrot.slane %v2551, 4
        %v2553 = vrot.slane %v2428, 5
        %v2554 = vsel %vm1541, %v2552, %v2553
        %v2555 = vrot.slane %v2553, 4
        %v2556 = vrot.slane %v2429, 5
        %v2557 = vsel %vm1541, %v2555, %v2556
        %v2558 = vrot.slane %v2430, 5
        %v2559 = vrot.slane %v2558, 4
        %v2560 = vrot.slane %v2431, 5
        %v2561 = vsel %vm1541, %v2559, %v2560
        %v2562 = vrot.slane %v2560, 4
        %v2563 = vrot.slane %v2432, 5
        %v2564 = vsel %vm1541, %v2562, %v2563
        %v2565 = vrot.slane %v2433, 5
        %v2566 = vrot.slane %v2565, 4
        %v2567 = vrot.slane %v2434, 5
        %v2568 = vsel %vm1541, %v2566, %v2567
        %v2569 = vrot.slane %v2567, 4
        %v2570 = vrot.slane %v2435, 5
        %v2571 = vsel %vm1541, %v2569, %v2570
        %v2572 = vrot.slane %v2436, 5
        %v2573 = vrot.slane %v2572, 4
        %v2574 = vrot.slane %v2437, 5
        %v2575 = vsel %vm1541, %v2573, %v2574
        %v2576 = vrot.slane %v2574, 4
        %v2577 = vrot.slane %v2438, 5
        %v2578 = vsel %vm1541, %v2576, %v2577
        %v2579 = vrot.slane %v2439, 5
        %v2580 = vrot.slane %v2579, 4
        %v2581 = vrot.slane %v2440, 5
        %v2582 = vsel %vm1541, %v2580, %v2581
        %v2583 = vrot.slane %v2581, 4
        %v2584 = vrot.slane %v2441, 5
        %v2585 = vsel %vm1541, %v2583, %v2584
        %v2586 = vrot.slane %v2442, 5
        %v2587 = vrot.slane %v2586, 4
        %v2588 = vrot.slane %v2443, 5
        %v2589 = vsel %vm1541, %v2587, %v2588
        %v2590 = vrot.slane %v2588, 4
        %v2591 = vrot.slane %v2444, 5
        %v2592 = vsel %vm1541, %v2590, %v2591
        %v2593 = vrot.slane %v2445, 5
        %v2594 = vrot.slane %v2593, 4
        %v2595 = vrot.slane %v2446, 5
        %v2596 = vsel %vm1541, %v2594, %v2595
        %v2597 = vrot.slane %v2595, 4
        %v2598 = vrot.slane %v2447, 5
        %v2599 = vsel %vm1541, %v2597, %v2598
        %v2600 = vrot.slane %v2448, 5
        %v2601 = vrot.slane %v2600, 4
        %v2602 = vrot.slane %v2449, 5
        %v2603 = vsel %vm1541, %v2601, %v2602
        %v2604 = vrot.slane %v2602, 4
        %v2605 = vrot.slane %v2450, 5
        %v2606 = vsel %vm1541, %v2604, %v2605
        %v2607 = vrot.slane %v2451, 5
        %v2608 = vrot.slane %v2607, 4
        %v2609 = vrot.slane %v2452, 5
        %v2610 = vsel %vm1541, %v2608, %v2609
        %v2611 = vrot.slane %v2609, 4
        %v2612 = vrot.slane %v2453, 5
        %v2613 = vsel %vm1541, %v2611, %v2612
        %2614 = vrot.lane.b32.xlu0 %v2505, 64
        %v2615 = vpop.permute.xlu0 %2614
        %2616 = vrot.lane.b32.xlu0 %v2508, 64
        %v2617 = vpop.permute.xlu0 %2616
        %2618 = vrot.lane.b32.xlu0 %v2512, 64
        %v2619 = vpop.permute.xlu0 %2618
        %2620 = vrot.lane.b32.xlu0 %v2515, 64
        %v2621 = vpop.permute.xlu0 %2620
        %2622 = vrot.lane.b32.xlu0 %v2519, 64
        %v2623 = vpop.permute.xlu0 %2622
        %2624 = vrot.lane.b32.xlu0 %v2522, 64
        %v2625 = vpop.permute.xlu0 %2624
        %2626 = vrot.lane.b32.xlu0 %v2526, 64
        %v2627 = vpop.permute.xlu0 %2626
        %2628 = vrot.lane.b32.xlu0 %v2529, 64
        %v2629 = vpop.permute.xlu0 %2628
        %2630 = vrot.lane.b32.xlu0 %v2533, 64
        %v2631 = vpop.permute.xlu0 %2630
        %2632 = vrot.lane.b32.xlu0 %v2536, 64
        %v2633 = vpop.permute.xlu0 %2632
        %2634 = vrot.lane.b32.xlu0 %v2540, 64
        %v2635 = vpop.permute.xlu0 %2634
        %2636 = vrot.lane.b32.xlu0 %v2543, 64
        %v2637 = vpop.permute.xlu0 %2636
        %2638 = vrot.lane.b32.xlu0 %v2547, 64
        %v2639 = vpop.permute.xlu0 %2638
        %2640 = vrot.lane.b32.xlu0 %v2550, 64
        %v2641 = vpop.permute.xlu0 %2640
        %2642 = vrot.lane.b32.xlu0 %v2554, 64
        %v2643 = vpop.permute.xlu0 %2642
        %2644 = vrot.lane.b32.xlu0 %v2557, 64
        %v2645 = vpop.permute.xlu0 %2644
        %2646 = vrot.lane.b32.xlu0 %v2561, 64
        %v2647 = vpop.permute.xlu0 %2646
        %2648 = vrot.lane.b32.xlu0 %v2564, 64
        %v2649 = vpop.permute.xlu0 %2648
        %2650 = vrot.lane.b32.xlu0 %v2568, 64
        %v2651 = vpop.permute.xlu0 %2650
        %2652 = vrot.lane.b32.xlu0 %v2571, 64
        %v2653 = vpop.permute.xlu0 %2652
        %2654 = vrot.lane.b32.xlu0 %v2575, 64
        %v2655 = vpop.permute.xlu0 %2654
        %2656 = vrot.lane.b32.xlu0 %v2578, 64
        %v2657 = vpop.permute.xlu0 %2656
        %2658 = vrot.lane.b32.xlu0 %v2582, 64
        %v2659 = vpop.permute.xlu0 %2658
        %2660 = vrot.lane.b32.xlu0 %v2585, 64
        %v2661 = vpop.permute.xlu0 %2660
        %2662 = vrot.lane.b32.xlu0 %v2589, 64
        %v2663 = vpop.permute.xlu0 %2662
        %2664 = vrot.lane.b32.xlu0 %v2592, 64
        %v2665 = vpop.permute.xlu0 %2664
        %2666 = vrot.lane.b32.xlu0 %v2596, 64
        %v2667 = vpop.permute.xlu0 %2666
        %2668 = vrot.lane.b32.xlu0 %v2599, 64
        %v2669 = vpop.permute.xlu0 %2668
        %2670 = vrot.lane.b32.xlu0 %v2603, 64
        %v2671 = vpop.permute.xlu0 %2670
        %2672 = vrot.lane.b32.xlu0 %v2606, 64
        %v2673 = vpop.permute.xlu0 %2672
        %2674 = vrot.lane.b32.xlu0 %v2610, 64
        %v2675 = vpop.permute.xlu0 %2674
        %2676 = vrot.lane.b32.xlu0 %v2613, 64
        %v2677 = vpop.permute.xlu0 %2676
        %2710 = vst.msk [vmem:[#allocation4 + $0x8] sm:$0xf] %vm1410, %v2615
        %2711 = vst.msk [vmem:[#allocation4 + $0x1c] sm:$0xf] %vm1410, %v2617
        %2712 = vst.msk [vmem:[#allocation4 + $0x30] sm:$0xf] %vm1410, %v2619
        %2713 = vst.msk [vmem:[#allocation4 + $0x44] sm:$0xf] %vm1410, %v2621
        %2714 = vst.msk [vmem:[#allocation4 + $0x58] sm:$0xf] %vm1410, %v2623
        %2715 = vst.msk [vmem:[#allocation4 + $0x6c] sm:$0xf] %vm1410, %v2625
        %2716 = vst.msk [vmem:[#allocation4 + $0x80] sm:$0xf] %vm1410, %v2627
        %2717 = vst.msk [vmem:[#allocation4 + $0x94] sm:$0xf] %vm1410, %v2629
        %2718 = vst.msk [vmem:[#allocation4 + $0xa8] sm:$0xf] %vm1410, %v2631
        %2719 = vst.msk [vmem:[#allocation4 + $0xbc] sm:$0xf] %vm1410, %v2633
        %2720 = vst.msk [vmem:[#allocation4 + $0xd0] sm:$0xf] %vm1410, %v2635
        %2721 = vst.msk [vmem:[#allocation4 + $0xe4] sm:$0xf] %vm1410, %v2637
        %2722 = vst.msk [vmem:[#allocation4 + $0xf8] sm:$0xf] %vm1410, %v2639
        %2723 = vst.msk [vmem:[#allocation4 + $0x10c] sm:$0xf] %vm1410, %v2641
        %2724 = vst.msk [vmem:[#allocation4 + $0x120] sm:$0xf] %vm1410, %v2643
        %2725 = vst.msk [vmem:[#allocation4 + $0x134] sm:$0xf] %vm1410, %v2645
        %2726 = vst.msk [vmem:[#allocation4 + $0x148] sm:$0xf] %vm1410, %v2647
        %2727 = vst.msk [vmem:[#allocation4 + $0x15c] sm:$0xf] %vm1410, %v2649
        %2728 = vst.msk [vmem:[#allocation4 + $0x170] sm:$0xf] %vm1410, %v2651
        %2729 = vst.msk [vmem:[#allocation4 + $0x184] sm:$0xf] %vm1410, %v2653
        %2730 = vst.msk [vmem:[#allocation4 + $0x198] sm:$0xf] %vm1410, %v2655
        %2731 = vst.msk [vmem:[#allocation4 + $0x1ac] sm:$0xf] %vm1410, %v2657
        %2732 = vst.msk [vmem:[#allocation4 + $0x1c0] sm:$0xf] %vm1410, %v2659
        %2733 = vst.msk [vmem:[#allocation4 + $0x1d4] sm:$0xf] %vm1410, %v2661
        %2734 = vst.msk [vmem:[#allocation4 + $0x1e8] sm:$0xf] %vm1410, %v2663
        %2735 = vst.msk [vmem:[#allocation4 + $0x1fc] sm:$0xf] %vm1410, %v2665
        %2736 = vst.msk [vmem:[#allocation4 + $0x210] sm:$0xf] %vm1410, %v2667
        %2737 = vst.msk [vmem:[#allocation4 + $0x224] sm:$0xf] %vm1410, %v2669
        %2738 = vst.msk [vmem:[#allocation4 + $0x238] sm:$0xf] %vm1410, %v2671
        %2739 = vst.msk [vmem:[#allocation4 + $0x24c] sm:$0xf] %vm1410, %v2673
        %2740 = vst.msk [vmem:[#allocation4 + $0x260] sm:$0xf] %vm1410, %v2675
        %2741 = vst.msk [vmem:[#allocation4 + $0x274] sm:$0xf] %vm1410, %v2677
        %s2742 = scalar_lea.vmem [#allocation2], 24
        %v2743 = vld [vmem:[%s2742] sm:$0xf]
        %v2744 = vld [vmem:[%s2742 + $0x4] sm:$0xf]
        %v2745 = vld [vmem:[%s2742 + $0xc] sm:$0xf]
        %v2746 = vld [vmem:[%s2742 + $0x10] sm:$0xf]
        %v2747 = vld [vmem:[%s2742 + $0x18] sm:$0xf]
        %v2748 = vld [vmem:[%s2742 + $0x1c] sm:$0xf]
        %v2749 = vld [vmem:[%s2742 + $0x24] sm:$0xf]
        %v2750 = vld [vmem:[%s2742 + $0x28] sm:$0xf]
        %v2751 = vld [vmem:[%s2742 + $0x30] sm:$0xf]
        %v2752 = vld [vmem:[%s2742 + $0x34] sm:$0xf]
        %v2753 = vld [vmem:[%s2742 + $0x3c] sm:$0xf]
        %v2754 = vld [vmem:[%s2742 + $0x40] sm:$0xf]
        %v2755 = vld [vmem:[%s2742 + $0x48] sm:$0xf]
        %v2756 = vld [vmem:[%s2742 + $0x4c] sm:$0xf]
        %v2757 = vld [vmem:[%s2742 + $0x54] sm:$0xf]
        %v2758 = vld [vmem:[%s2742 + $0x58] sm:$0xf]
        %v2759 = vld [vmem:[%s2742 + $0x60] sm:$0xf]
        %v2760 = vld [vmem:[%s2742 + $0x64] sm:$0xf]
        %v2761 = vld [vmem:[%s2742 + $0x6c] sm:$0xf]
        %v2762 = vld [vmem:[%s2742 + $0x70] sm:$0xf]
        %v2763 = vld [vmem:[%s2742 + $0x78] sm:$0xf]
        %v2764 = vld [vmem:[%s2742 + $0x7c] sm:$0xf]
        %v2765 = vld [vmem:[%s2742 + $0x84] sm:$0xf]
        %v2766 = vld [vmem:[%s2742 + $0x88] sm:$0xf]
        %v2767 = vld [vmem:[%s2742 + $0x90] sm:$0xf]
        %v2768 = vld [vmem:[%s2742 + $0x94] sm:$0xf]
        %v2769 = vld [vmem:[%s2742 + $0x9c] sm:$0xf]
        %v2770 = vld [vmem:[%s2742 + $0xa0] sm:$0xf]
        %v2771 = vld [vmem:[%s2742 + $0xa8] sm:$0xf]
        %v2772 = vld [vmem:[%s2742 + $0xac] sm:$0xf]
        %v2773 = vld [vmem:[%s2742 + $0xb4] sm:$0xf]
        %v2774 = vld [vmem:[%s2742 + $0xb8] sm:$0xf]
        %2775 = vst.msk [vmem:[#allocation4 + $0xc] sm:$0xf] %vm256, %v2743
        %2776 = vst.msk [vmem:[#allocation4 + $0x20] sm:$0xf] %vm256, %v2744
        %2777 = vst.msk [vmem:[#allocation4 + $0x34] sm:$0xf] %vm256, %v2745
        %2778 = vst.msk [vmem:[#allocation4 + $0x48] sm:$0xf] %vm256, %v2746
        %2779 = vst.msk [vmem:[#allocation4 + $0x5c] sm:$0xf] %vm256, %v2747
        %2780 = vst.msk [vmem:[#allocation4 + $0x70] sm:$0xf] %vm256, %v2748
        %2781 = vst.msk [vmem:[#allocation4 + $0x84] sm:$0xf] %vm256, %v2749
        %2782 = vst.msk [vmem:[#allocation4 + $0x98] sm:$0xf] %vm256, %v2750
        %2783 = vst.msk [vmem:[#allocation4 + $0xac] sm:$0xf] %vm256, %v2751
        %2784 = vst.msk [vmem:[#allocation4 + $0xc0] sm:$0xf] %vm256, %v2752
        %2785 = vst.msk [vmem:[#allocation4 + $0xd4] sm:$0xf] %vm256, %v2753
        %2786 = vst.msk [vmem:[#allocation4 + $0xe8] sm:$0xf] %vm256, %v2754
        %2787 = vst.msk [vmem:[#allocation4 + $0xfc] sm:$0xf] %vm256, %v2755
        %2788 = vst.msk [vmem:[#allocation4 + $0x110] sm:$0xf] %vm256, %v2756
        %2789 = vst.msk [vmem:[#allocation4 + $0x124] sm:$0xf] %vm256, %v2757
        %2790 = vst.msk [vmem:[#allocation4 + $0x138] sm:$0xf] %vm256, %v2758
        %2791 = vst.msk [vmem:[#allocation4 + $0x14c] sm:$0xf] %vm256, %v2759
        %2792 = vst.msk [vmem:[#allocation4 + $0x160] sm:$0xf] %vm256, %v2760
        %2793 = vst.msk [vmem:[#allocation4 + $0x174] sm:$0xf] %vm256, %v2761
        %2794 = vst.msk [vmem:[#allocation4 + $0x188] sm:$0xf] %vm256, %v2762
        %2795 = vst.msk [vmem:[#allocation4 + $0x19c] sm:$0xf] %vm256, %v2763
        %2796 = vst.msk [vmem:[#allocation4 + $0x1b0] sm:$0xf] %vm256, %v2764
        %2797 = vst.msk [vmem:[#allocation4 + $0x1c4] sm:$0xf] %vm256, %v2765
        %2798 = vst.msk [vmem:[#allocation4 + $0x1d8] sm:$0xf] %vm256, %v2766
        %2799 = vst.msk [vmem:[#allocation4 + $0x1ec] sm:$0xf] %vm256, %v2767
        %2800 = vst.msk [vmem:[#allocation4 + $0x200] sm:$0xf] %vm256, %v2768
        %2801 = vst.msk [vmem:[#allocation4 + $0x214] sm:$0xf] %vm256, %v2769
        %2802 = vst.msk [vmem:[#allocation4 + $0x228] sm:$0xf] %vm256, %v2770
        %2803 = vst.msk [vmem:[#allocation4 + $0x23c] sm:$0xf] %vm256, %v2771
        %2804 = vst.msk [vmem:[#allocation4 + $0x250] sm:$0xf] %vm256, %v2772
        %2805 = vst.msk [vmem:[#allocation4 + $0x264] sm:$0xf] %vm256, %v2773
        %2806 = vst.msk [vmem:[#allocation4 + $0x278] sm:$0xf] %vm256, %v2774
        %v2807 = vld [vmem:[%s2742] sm:$0xf]
        %v2808 = vld [vmem:[%s2742 + $0x4] sm:$0xf]
        %v2809 = vld [vmem:[%s2742 + $0x8] sm:$0x1]
        %v2810 = vld [vmem:[%s2742 + $0xc] sm:$0xf]
        %v2811 = vld [vmem:[%s2742 + $0x10] sm:$0xf]
        %v2812 = vld [vmem:[%s2742 + $0x14] sm:$0x1]
        %v2813 = vld [vmem:[%s2742 + $0x18] sm:$0xf]
        %v2814 = vld [vmem:[%s2742 + $0x1c] sm:$0xf]
        %v2815 = vld [vmem:[%s2742 + $0x20] sm:$0x1]
        %v2816 = vld [vmem:[%s2742 + $0x24] sm:$0xf]
        %v2817 = vld [vmem:[%s2742 + $0x28] sm:$0xf]
        %v2818 = vld [vmem:[%s2742 + $0x2c] sm:$0x1]
        %v2819 = vld [vmem:[%s2742 + $0x30] sm:$0xf]
        %v2820 = vld [vmem:[%s2742 + $0x34] sm:$0xf]
        %v2821 = vld [vmem:[%s2742 + $0x38] sm:$0x1]
        %v2822 = vld [vmem:[%s2742 + $0x3c] sm:$0xf]
        %v2823 = vld [vmem:[%s2742 + $0x40] sm:$0xf]
        %v2824 = vld [vmem:[%s2742 + $0x44] sm:$0x1]
        %v2825 = vld [vmem:[%s2742 + $0x48] sm:$0xf]
        %v2826 = vld [vmem:[%s2742 + $0x4c] sm:$0xf]
        %v2827 = vld [vmem:[%s2742 + $0x50] sm:$0x1]
        %v2828 = vld [vmem:[%s2742 + $0x54] sm:$0xf]
        %v2829 = vld [vmem:[%s2742 + $0x58] sm:$0xf]
        %v2830 = vld [vmem:[%s2742 + $0x5c] sm:$0x1]
        %v2831 = vld [vmem:[%s2742 + $0x60] sm:$0xf]
        %v2832 = vld [vmem:[%s2742 + $0x64] sm:$0xf]
        %v2833 = vld [vmem:[%s2742 + $0x68] sm:$0x1]
        %v2834 = vld [vmem:[%s2742 + $0x6c] sm:$0xf]
        %v2835 = vld [vmem:[%s2742 + $0x70] sm:$0xf]
        %v2836 = vld [vmem:[%s2742 + $0x74] sm:$0x1]
        %v2837 = vld [vmem:[%s2742 + $0x78] sm:$0xf]
        %v2838 = vld [vmem:[%s2742 + $0x7c] sm:$0xf]
        %v2839 = vld [vmem:[%s2742 + $0x80] sm:$0x1]
        %v2840 = vld [vmem:[%s2742 + $0x84] sm:$0xf]
        %v2841 = vld [vmem:[%s2742 + $0x88] sm:$0xf]
        %v2842 = vld [vmem:[%s2742 + $0x8c] sm:$0x1]
        %v2843 = vld [vmem:[%s2742 + $0x90] sm:$0xf]
        %v2844 = vld [vmem:[%s2742 + $0x94] sm:$0xf]
        %v2845 = vld [vmem:[%s2742 + $0x98] sm:$0x1]
        %v2846 = vld [vmem:[%s2742 + $0x9c] sm:$0xf]
        %v2847 = vld [vmem:[%s2742 + $0xa0] sm:$0xf]
        %v2848 = vld [vmem:[%s2742 + $0xa4] sm:$0x1]
        %v2849 = vld [vmem:[%s2742 + $0xa8] sm:$0xf]
        %v2850 = vld [vmem:[%s2742 + $0xac] sm:$0xf]
        %v2851 = vld [vmem:[%s2742 + $0xb0] sm:$0x1]
        %v2852 = vld [vmem:[%s2742 + $0xb4] sm:$0xf]
        %v2853 = vld [vmem:[%s2742 + $0xb8] sm:$0xf]
        %v2854 = vld [vmem:[%s2742 + $0xbc] sm:$0x1]
        %v2856 = vshrl.u32 %v2807, 16
        %v2858 = vrot.slane %v2856, 4
        %v2859 = vshll.u32 %v2807, 16
        %v2861 = vrot.slane %v2859, 5
        %v2862 = vor.u32 %v2858, %v2861
        %v2863 = vrot.slane %v2862, 4
        %v2865 = vshll.u32 %v2808, 16
        %v2867 = vrot.slane %v2865, 5
        %v2868 = vsel %vm929, %v2863, %v2867
        %v2869 = vshrl.u32 %v2808, 16
        %v2871 = vrot.slane %v2869, 4
        %v2872 = vor.u32 %v2871, %v2867
        %v2873 = vrot.slane %v2872, 4
        %v2875 = vshll.u32 %v2809, 16
        %v2877 = vrot.slane %v2875, 5
        %v2878 = vsel %vm929, %v2873, %v2877
        %v2880 = vshrl.u32 %v2810, 16
        %v2882 = vrot.slane %v2880, 4
        %v2883 = vshll.u32 %v2810, 16
        %v2885 = vrot.slane %v2883, 5
        %v2886 = vor.u32 %v2882, %v2885
        %v2887 = vrot.slane %v2886, 4
        %v2889 = vshll.u32 %v2811, 16
        %v2891 = vrot.slane %v2889, 5
        %v2892 = vsel %vm929, %v2887, %v2891
        %v2893 = vshrl.u32 %v2811, 16
        %v2895 = vrot.slane %v2893, 4
        %v2896 = vor.u32 %v2895, %v2891
        %v2897 = vrot.slane %v2896, 4
        %v2899 = vshll.u32 %v2812, 16
        %v2901 = vrot.slane %v2899, 5
        %v2902 = vsel %vm929, %v2897, %v2901
        %v2904 = vshrl.u32 %v2813, 16
        %v2906 = vrot.slane %v2904, 4
        %v2907 = vshll.u32 %v2813, 16
        %v2909 = vrot.slane %v2907, 5
        %v2910 = vor.u32 %v2906, %v2909
        %v2911 = vrot.slane %v2910, 4
        %v2913 = vshll.u32 %v2814, 16
        %v2915 = vrot.slane %v2913, 5
        %v2916 = vsel %vm929, %v2911, %v2915
        %v2917 = vshrl.u32 %v2814, 16
        %v2919 = vrot.slane %v2917, 4
        %v2920 = vor.u32 %v2919, %v2915
        %v2921 = vrot.slane %v2920, 4
        %v2923 = vshll.u32 %v2815, 16
        %v2925 = vrot.slane %v2923, 5
        %v2926 = vsel %vm929, %v2921, %v2925
        %v2928 = vshrl.u32 %v2816, 16
        %v2930 = vrot.slane %v2928, 4
        %v2931 = vshll.u32 %v2816, 16
        %v2933 = vrot.slane %v2931, 5
        %v2934 = vor.u32 %v2930, %v2933
        %v2935 = vrot.slane %v2934, 4
        %v2937 = vshll.u32 %v2817, 16
        %v2939 = vrot.slane %v2937, 5
        %v2940 = vsel %vm929, %v2935, %v2939
        %v2941 = vshrl.u32 %v2817, 16
        %v2943 = vrot.slane %v2941, 4
        %v2944 = vor.u32 %v2943, %v2939
        %v2945 = vrot.slane %v2944, 4
        %v2947 = vshll.u32 %v2818, 16
        %v2949 = vrot.slane %v2947, 5
        %v2950 = vsel %vm929, %v2945, %v2949
        %v2952 = vshrl.u32 %v2819, 16
        %v2954 = vrot.slane %v2952, 4
        %v2955 = vshll.u32 %v2819, 16
        %v2957 = vrot.slane %v2955, 5
        %v2958 = vor.u32 %v2954, %v2957
        %v2959 = vrot.slane %v2958, 4
        %v2961 = vshll.u32 %v2820, 16
        %v2963 = vrot.slane %v2961, 5
        %v2964 = vsel %vm929, %v2959, %v2963
        %v2965 = vshrl.u32 %v2820, 16
        %v2967 = vrot.slane %v2965, 4
        %v2968 = vor.u32 %v2967, %v2963
        %v2969 = vrot.slane %v2968, 4
        %v2971 = vshll.u32 %v2821, 16
        %v2973 = vrot.slane %v2971, 5
        %v2974 = vsel %vm929, %v2969, %v2973
        %v2976 = vshrl.u32 %v2822, 16
        %v2978 = vrot.slane %v2976, 4
        %v2979 = vshll.u32 %v2822, 16
        %v2981 = vrot.slane %v2979, 5
        %v2982 = vor.u32 %v2978, %v2981
        %v2983 = vrot.slane %v2982, 4
        %v2985 = vshll.u32 %v2823, 16
        %v2987 = vrot.slane %v2985, 5
        %v2988 = vsel %vm929, %v2983, %v2987
        %v2989 = vshrl.u32 %v2823, 16
        %v2991 = vrot.slane %v2989, 4
        %v2992 = vor.u32 %v2991, %v2987
        %v2993 = vrot.slane %v2992, 4
        %v2995 = vshll.u32 %v2824, 16
        %v2997 = vrot.slane %v2995, 5
        %v2998 = vsel %vm929, %v2993, %v2997
        %v3000 = vshrl.u32 %v2825, 16
        %v3002 = vrot.slane %v3000, 4
        %v3003 = vshll.u32 %v2825, 16
        %v3005 = vrot.slane %v3003, 5
        %v3006 = vor.u32 %v3002, %v3005
        %v3007 = vrot.slane %v3006, 4
        %v3009 = vshll.u32 %v2826, 16
        %v3011 = vrot.slane %v3009, 5
        %v3012 = vsel %vm929, %v3007, %v3011
        %v3013 = vshrl.u32 %v2826, 16
        %v3015 = vrot.slane %v3013, 4
        %v3016 = vor.u32 %v3015, %v3011
        %v3017 = vrot.slane %v3016, 4
        %v3019 = vshll.u32 %v2827, 16
        %v3021 = vrot.slane %v3019, 5
        %v3022 = vsel %vm929, %v3017, %v3021
        %v3024 = vshrl.u32 %v2828, 16
        %v3026 = vrot.slane %v3024, 4
        %v3027 = vshll.u32 %v2828, 16
        %v3029 = vrot.slane %v3027, 5
        %v3030 = vor.u32 %v3026, %v3029
        %v3031 = vrot.slane %v3030, 4
        %v3033 = vshll.u32 %v2829, 16
        %v3035 = vrot.slane %v3033, 5
        %v3036 = vsel %vm929, %v3031, %v3035
        %v3037 = vshrl.u32 %v2829, 16
        %v3039 = vrot.slane %v3037, 4
        %v3040 = vor.u32 %v3039, %v3035
        %v3041 = vrot.slane %v3040, 4
        %v3043 = vshll.u32 %v2830, 16
        %v3045 = vrot.slane %v3043, 5
        %v3046 = vsel %vm929, %v3041, %v3045
        %v3048 = vshrl.u32 %v2831, 16
        %v3050 = vrot.slane %v3048, 4
        %v3051 = vshll.u32 %v2831, 16
        %v3053 = vrot.slane %v3051, 5
        %v3054 = vor.u32 %v3050, %v3053
        %v3055 = vrot.slane %v3054, 4
        %v3057 = vshll.u32 %v2832, 16
        %v3059 = vrot.slane %v3057, 5
        %v3060 = vsel %vm929, %v3055, %v3059
        %v3061 = vshrl.u32 %v2832, 16
        %v3063 = vrot.slane %v3061, 4
        %v3064 = vor.u32 %v3063, %v3059
        %v3065 = vrot.slane %v3064, 4
        %v3067 = vshll.u32 %v2833, 16
        %v3069 = vrot.slane %v3067, 5
        %v3070 = vsel %vm929, %v3065, %v3069
        %v3072 = vshrl.u32 %v2834, 16
        %v3074 = vrot.slane %v3072, 4
        %v3075 = vshll.u32 %v2834, 16
        %v3077 = vrot.slane %v3075, 5
        %v3078 = vor.u32 %v3074, %v3077
        %v3079 = vrot.slane %v3078, 4
        %v3081 = vshll.u32 %v2835, 16
        %v3083 = vrot.slane %v3081, 5
        %v3084 = vsel %vm929, %v3079, %v3083
        %v3085 = vshrl.u32 %v2835, 16
        %v3087 = vrot.slane %v3085, 4
        %v3088 = vor.u32 %v3087, %v3083
        %v3089 = vrot.slane %v3088, 4
        %v3091 = vshll.u32 %v2836, 16
        %v3093 = vrot.slane %v3091, 5
        %v3094 = vsel %vm929, %v3089, %v3093
        %v3096 = vshrl.u32 %v2837, 16
        %v3098 = vrot.slane %v3096, 4
        %v3099 = vshll.u32 %v2837, 16
        %v3101 = vrot.slane %v3099, 5
        %v3102 = vor.u32 %v3098, %v3101
        %v3103 = vrot.slane %v3102, 4
        %v3105 = vshll.u32 %v2838, 16
        %v3107 = vrot.slane %v3105, 5
        %v3108 = vsel %vm929, %v3103, %v3107
        %v3109 = vshrl.u32 %v2838, 16
        %v3111 = vrot.slane %v3109, 4
        %v3112 = vor.u32 %v3111, %v3107
        %v3113 = vrot.slane %v3112, 4
        %v3115 = vshll.u32 %v2839, 16
        %v3117 = vrot.slane %v3115, 5
        %v3118 = vsel %vm929, %v3113, %v3117
        %v3120 = vshrl.u32 %v2840, 16
        %v3122 = vrot.slane %v3120, 4
        %v3123 = vshll.u32 %v2840, 16
        %v3125 = vrot.slane %v3123, 5
        %v3126 = vor.u32 %v3122, %v3125
        %v3127 = vrot.slane %v3126, 4
        %v3129 = vshll.u32 %v2841, 16
        %v3131 = vrot.slane %v3129, 5
        %v3132 = vsel %vm929, %v3127, %v3131
        %v3133 = vshrl.u32 %v2841, 16
        %v3135 = vrot.slane %v3133, 4
        %v3136 = vor.u32 %v3135, %v3131
        %v3137 = vrot.slane %v3136, 4
        %v3139 = vshll.u32 %v2842, 16
        %v3141 = vrot.slane %v3139, 5
        %v3142 = vsel %vm929, %v3137, %v3141
        %v3144 = vshrl.u32 %v2843, 16
        %v3146 = vrot.slane %v3144, 4
        %v3147 = vshll.u32 %v2843, 16
        %v3149 = vrot.slane %v3147, 5
        %v3150 = vor.u32 %v3146, %v3149
        %v3151 = vrot.slane %v3150, 4
        %v3153 = vshll.u32 %v2844, 16
        %v3155 = vrot.slane %v3153, 5
        %v3156 = vsel %vm929, %v3151, %v3155
        %v3157 = vshrl.u32 %v2844, 16
        %v3159 = vrot.slane %v3157, 4
        %v3160 = vor.u32 %v3159, %v3155
        %v3161 = vrot.slane %v3160, 4
        %v3163 = vshll.u32 %v2845, 16
        %v3165 = vrot.slane %v3163, 5
        %v3166 = vsel %vm929, %v3161, %v3165
        %v3168 = vshrl.u32 %v2846, 16
        %v3170 = vrot.slane %v3168, 4
        %v3171 = vshll.u32 %v2846, 16
        %v3173 = vrot.slane %v3171, 5
        %v3174 = vor.u32 %v3170, %v3173
        %v3175 = vrot.slane %v3174, 4
        %v3177 = vshll.u32 %v2847, 16
        %v3179 = vrot.slane %v3177, 5
        %v3180 = vsel %vm929, %v3175, %v3179
        %v3181 = vshrl.u32 %v2847, 16
        %v3183 = vrot.slane %v3181, 4
        %v3184 = vor.u32 %v3183, %v3179
        %v3185 = vrot.slane %v3184, 4
        %v3187 = vshll.u32 %v2848, 16
        %v3189 = vrot.slane %v3187, 5
        %v3190 = vsel %vm929, %v3185, %v3189
        %v3192 = vshrl.u32 %v2849, 16
        %v3194 = vrot.slane %v3192, 4
        %v3195 = vshll.u32 %v2849, 16
        %v3197 = vrot.slane %v3195, 5
        %v3198 = vor.u32 %v3194, %v3197
        %v3199 = vrot.slane %v3198, 4
        %v3201 = vshll.u32 %v2850, 16
        %v3203 = vrot.slane %v3201, 5
        %v3204 = vsel %vm929, %v3199, %v3203
        %v3205 = vshrl.u32 %v2850, 16
        %v3207 = vrot.slane %v3205, 4
        %v3208 = vor.u32 %v3207, %v3203
        %v3209 = vrot.slane %v3208, 4
        %v3211 = vshll.u32 %v2851, 16
        %v3213 = vrot.slane %v3211, 5
        %v3214 = vsel %vm929, %v3209, %v3213
        %v3216 = vshrl.u32 %v2852, 16
        %v3218 = vrot.slane %v3216, 4
        %v3219 = vshll.u32 %v2852, 16
        %v3221 = vrot.slane %v3219, 5
        %v3222 = vor.u32 %v3218, %v3221
        %v3223 = vrot.slane %v3222, 4
        %v3225 = vshll.u32 %v2853, 16
        %v3227 = vrot.slane %v3225, 5
        %v3228 = vsel %vm929, %v3223, %v3227
        %v3229 = vshrl.u32 %v2853, 16
        %v3231 = vrot.slane %v3229, 4
        %v3232 = vor.u32 %v3231, %v3227
        %v3233 = vrot.slane %v3232, 4
        %v3235 = vshll.u32 %v2854, 16
        %v3237 = vrot.slane %v3235, 5
        %v3238 = vsel %vm929, %v3233, %v3237
        %3239 = vrot.lane.b32.xlu0 %v2868, 64
        %v3240 = vpop.permute.xlu0 %3239
        %3241 = vrot.lane.b32.xlu0 %v2878, 64
        %v3242 = vpop.permute.xlu0 %3241
        %3243 = vrot.lane.b32.xlu0 %v2892, 64
        %v3244 = vpop.permute.xlu0 %3243
        %3245 = vrot.lane.b32.xlu0 %v2902, 64
        %v3246 = vpop.permute.xlu0 %3245
        %3247 = vrot.lane.b32.xlu0 %v2916, 64
        %v3248 = vpop.permute.xlu0 %3247
        %3249 = vrot.lane.b32.xlu0 %v2926, 64
        %v3250 = vpop.permute.xlu0 %3249
        %3251 = vrot.lane.b32.xlu0 %v2940, 64
        %v3252 = vpop.permute.xlu0 %3251
        %3253 = vrot.lane.b32.xlu0 %v2950, 64
        %v3254 = vpop.permute.xlu0 %3253
        %3255 = vrot.lane.b32.xlu0 %v2964, 64
        %v3256 = vpop.permute.xlu0 %3255
        %3257 = vrot.lane.b32.xlu0 %v2974, 64
        %v3258 = vpop.permute.xlu0 %3257
        %3259 = vrot.lane.b32.xlu0 %v2988, 64
        %v3260 = vpop.permute.xlu0 %3259
        %3261 = vrot.lane.b32.xlu0 %v2998, 64
        %v3262 = vpop.permute.xlu0 %3261
        %3263 = vrot.lane.b32.xlu0 %v3012, 64
        %v3264 = vpop.permute.xlu0 %3263
        %3265 = vrot.lane.b32.xlu0 %v3022, 64
        %v3266 = vpop.permute.xlu0 %3265
        %3267 = vrot.lane.b32.xlu0 %v3036, 64
        %v3268 = vpop.permute.xlu0 %3267
        %3269 = vrot.lane.b32.xlu0 %v3046, 64
        %v3270 = vpop.permute.xlu0 %3269
        %3271 = vrot.lane.b32.xlu0 %v3060, 64
        %v3272 = vpop.permute.xlu0 %3271
        %3273 = vrot.lane.b32.xlu0 %v3070, 64
        %v3274 = vpop.permute.xlu0 %3273
        %3275 = vrot.lane.b32.xlu0 %v3084, 64
        %v3276 = vpop.permute.xlu0 %3275
        %3277 = vrot.lane.b32.xlu0 %v3094, 64
        %v3278 = vpop.permute.xlu0 %3277
        %3279 = vrot.lane.b32.xlu0 %v3108, 64
        %v3280 = vpop.permute.xlu0 %3279
        %3281 = vrot.lane.b32.xlu0 %v3118, 64
        %v3282 = vpop.permute.xlu0 %3281
        %3283 = vrot.lane.b32.xlu0 %v3132, 64
        %v3284 = vpop.permute.xlu0 %3283
        %3285 = vrot.lane.b32.xlu0 %v3142, 64
        %v3286 = vpop.permute.xlu0 %3285
        %3287 = vrot.lane.b32.xlu0 %v3156, 64
        %v3288 = vpop.permute.xlu0 %3287
        %3289 = vrot.lane.b32.xlu0 %v3166, 64
        %v3290 = vpop.permute.xlu0 %3289
        %3291 = vrot.lane.b32.xlu0 %v3180, 64
        %v3292 = vpop.permute.xlu0 %3291
        %3293 = vrot.lane.b32.xlu0 %v3190, 64
        %v3294 = vpop.permute.xlu0 %3293
        %3295 = vrot.lane.b32.xlu0 %v3204, 64
        %v3296 = vpop.permute.xlu0 %3295
        %3297 = vrot.lane.b32.xlu0 %v3214, 64
        %v3298 = vpop.permute.xlu0 %3297
        %3299 = vrot.lane.b32.xlu0 %v3228, 64
        %v3300 = vpop.permute.xlu0 %3299
        %3301 = vrot.lane.b32.xlu0 %v3238, 64
        %v3302 = vpop.permute.xlu0 %3301
        %3335 = vst.msk [vmem:[#allocation4 + $0xc] sm:$0xf] %vm1410, %v3240
        %3336 = vst.msk [vmem:[#allocation4 + $0x20] sm:$0xf] %vm1410, %v3242
        %3337 = vst.msk [vmem:[#allocation4 + $0x34] sm:$0xf] %vm1410, %v3244
        %3338 = vst.msk [vmem:[#allocation4 + $0x48] sm:$0xf] %vm1410, %v3246
        %3339 = vst.msk [vmem:[#allocation4 + $0x5c] sm:$0xf] %vm1410, %v3248
        %3340 = vst.msk [vmem:[#allocation4 + $0x70] sm:$0xf] %vm1410, %v3250
        %3341 = vst.msk [vmem:[#allocation4 + $0x84] sm:$0xf] %vm1410, %v3252
        %3342 = vst.msk [vmem:[#allocation4 + $0x98] sm:$0xf] %vm1410, %v3254
        %3343 = vst.msk [vmem:[#allocation4 + $0xac] sm:$0xf] %vm1410, %v3256
        %3344 = vst.msk [vmem:[#allocation4 + $0xc0] sm:$0xf] %vm1410, %v3258
        %3345 = vst.msk [vmem:[#allocation4 + $0xd4] sm:$0xf] %vm1410, %v3260
        %3346 = vst.msk [vmem:[#allocation4 + $0xe8] sm:$0xf] %vm1410, %v3262
        %3347 = vst.msk [vmem:[#allocation4 + $0xfc] sm:$0xf] %vm1410, %v3264
        %3348 = vst.msk [vmem:[#allocation4 + $0x110] sm:$0xf] %vm1410, %v3266
        %3349 = vst.msk [vmem:[#allocation4 + $0x124] sm:$0xf] %vm1410, %v3268
        %3350 = vst.msk [vmem:[#allocation4 + $0x138] sm:$0xf] %vm1410, %v3270
        %3351 = vst.msk [vmem:[#allocation4 + $0x14c] sm:$0xf] %vm1410, %v3272
        %3352 = vst.msk [vmem:[#allocation4 + $0x160] sm:$0xf] %vm1410, %v3274
        %3353 = vst.msk [vmem:[#allocation4 + $0x174] sm:$0xf] %vm1410, %v3276
        %3354 = vst.msk [vmem:[#allocation4 + $0x188] sm:$0xf] %vm1410, %v3278
        %3355 = vst.msk [vmem:[#allocation4 + $0x19c] sm:$0xf] %vm1410, %v3280
        %3356 = vst.msk [vmem:[#allocation4 + $0x1b0] sm:$0xf] %vm1410, %v3282
        %3357 = vst.msk [vmem:[#allocation4 + $0x1c4] sm:$0xf] %vm1410, %v3284
        %3358 = vst.msk [vmem:[#allocation4 + $0x1d8] sm:$0xf] %vm1410, %v3286
        %3359 = vst.msk [vmem:[#allocation4 + $0x1ec] sm:$0xf] %vm1410, %v3288
        %3360 = vst.msk [vmem:[#allocation4 + $0x200] sm:$0xf] %vm1410, %v3290
        %3361 = vst.msk [vmem:[#allocation4 + $0x214] sm:$0xf] %vm1410, %v3292
        %3362 = vst.msk [vmem:[#allocation4 + $0x228] sm:$0xf] %vm1410, %v3294
        %3363 = vst.msk [vmem:[#allocation4 + $0x23c] sm:$0xf] %vm1410, %v3296
        %3364 = vst.msk [vmem:[#allocation4 + $0x250] sm:$0xf] %vm1410, %v3298
        %3365 = vst.msk [vmem:[#allocation4 + $0x264] sm:$0xf] %vm1410, %v3300
        %3366 = vst.msk [vmem:[#allocation4 + $0x278] sm:$0xf] %vm1410, %v3302
        %v3367 = vld [vmem:[%s2742] sm:$0xe]
        %v3368 = vld [vmem:[%s2742 + $0x4] sm:$0xf]
        %v3369 = vld [vmem:[%s2742 + $0x8] sm:$0x1]
        %v3370 = vld [vmem:[%s2742 + $0xc] sm:$0xe]
        %v3371 = vld [vmem:[%s2742 + $0x10] sm:$0xf]
        %v3372 = vld [vmem:[%s2742 + $0x14] sm:$0x1]
        %v3373 = vld [vmem:[%s2742 + $0x18] sm:$0xe]
        %v3374 = vld [vmem:[%s2742 + $0x1c] sm:$0xf]
        %v3375 = vld [vmem:[%s2742 + $0x20] sm:$0x1]
        %v3376 = vld [vmem:[%s2742 + $0x24] sm:$0xe]
        %v3377 = vld [vmem:[%s2742 + $0x28] sm:$0xf]
        %v3378 = vld [vmem:[%s2742 + $0x2c] sm:$0x1]
        %v3379 = vld [vmem:[%s2742 + $0x30] sm:$0xe]
        %v3380 = vld [vmem:[%s2742 + $0x34] sm:$0xf]
        %v3381 = vld [vmem:[%s2742 + $0x38] sm:$0x1]
        %v3382 = vld [vmem:[%s2742 + $0x3c] sm:$0xe]
        %v3383 = vld [vmem:[%s2742 + $0x40] sm:$0xf]
        %v3384 = vld [vmem:[%s2742 + $0x44] sm:$0x1]
        %v3385 = vld [vmem:[%s2742 + $0x48] sm:$0xe]
        %v3386 = vld [vmem:[%s2742 + $0x4c] sm:$0xf]
        %v3387 = vld [vmem:[%s2742 + $0x50] sm:$0x1]
        %v3388 = vld [vmem:[%s2742 + $0x54] sm:$0xe]
        %v3389 = vld [vmem:[%s2742 + $0x58] sm:$0xf]
        %v3390 = vld [vmem:[%s2742 + $0x5c] sm:$0x1]
        %v3391 = vld [vmem:[%s2742 + $0x60] sm:$0xe]
        %v3392 = vld [vmem:[%s2742 + $0x64] sm:$0xf]
        %v3393 = vld [vmem:[%s2742 + $0x68] sm:$0x1]
        %v3394 = vld [vmem:[%s2742 + $0x6c] sm:$0xe]
        %v3395 = vld [vmem:[%s2742 + $0x70] sm:$0xf]
        %v3396 = vld [vmem:[%s2742 + $0x74] sm:$0x1]
        %v3397 = vld [vmem:[%s2742 + $0x78] sm:$0xe]
        %v3398 = vld [vmem:[%s2742 + $0x7c] sm:$0xf]
        %v3399 = vld [vmem:[%s2742 + $0x80] sm:$0x1]
        %v3400 = vld [vmem:[%s2742 + $0x84] sm:$0xe]
        %v3401 = vld [vmem:[%s2742 + $0x88] sm:$0xf]
        %v3402 = vld [vmem:[%s2742 + $0x8c] sm:$0x1]
        %v3403 = vld [vmem:[%s2742 + $0x90] sm:$0xe]
        %v3404 = vld [vmem:[%s2742 + $0x94] sm:$0xf]
        %v3405 = vld [vmem:[%s2742 + $0x98] sm:$0x1]
        %v3406 = vld [vmem:[%s2742 + $0x9c] sm:$0xe]
        %v3407 = vld [vmem:[%s2742 + $0xa0] sm:$0xf]
        %v3408 = vld [vmem:[%s2742 + $0xa4] sm:$0x1]
        %v3409 = vld [vmem:[%s2742 + $0xa8] sm:$0xe]
        %v3410 = vld [vmem:[%s2742 + $0xac] sm:$0xf]
        %v3411 = vld [vmem:[%s2742 + $0xb0] sm:$0x1]
        %v3412 = vld [vmem:[%s2742 + $0xb4] sm:$0xe]
        %v3413 = vld [vmem:[%s2742 + $0xb8] sm:$0xf]
        %v3414 = vld [vmem:[%s2742 + $0xbc] sm:$0x1]
        %v3463 = vrot.slane %v3367, 5
        %v3464 = vrot.slane %v3463, 4
        %v3465 = vrot.slane %v3368, 5
        %v3466 = vsel %vm1541, %v3464, %v3465
        %v3467 = vrot.slane %v3465, 4
        %v3468 = vrot.slane %v3369, 5
        %v3469 = vsel %vm1541, %v3467, %v3468
        %v3470 = vrot.slane %v3370, 5
        %v3471 = vrot.slane %v3470, 4
        %v3472 = vrot.slane %v3371, 5
        %v3473 = vsel %vm1541, %v3471, %v3472
        %v3474 = vrot.slane %v3472, 4
        %v3475 = vrot.slane %v3372, 5
        %v3476 = vsel %vm1541, %v3474, %v3475
        %v3477 = vrot.slane %v3373, 5
        %v3478 = vrot.slane %v3477, 4
        %v3479 = vrot.slane %v3374, 5
        %v3480 = vsel %vm1541, %v3478, %v3479
        %v3481 = vrot.slane %v3479, 4
        %v3482 = vrot.slane %v3375, 5
        %v3483 = vsel %vm1541, %v3481, %v3482
        %v3484 = vrot.slane %v3376, 5
        %v3485 = vrot.slane %v3484, 4
        %v3486 = vrot.slane %v3377, 5
        %v3487 = vsel %vm1541, %v3485, %v3486
        %v3488 = vrot.slane %v3486, 4
        %v3489 = vrot.slane %v3378, 5
        %v3490 = vsel %vm1541, %v3488, %v3489
        %v3491 = vrot.slane %v3379, 5
        %v3492 = vrot.slane %v3491, 4
        %v3493 = vrot.slane %v3380, 5
        %v3494 = vsel %vm1541, %v3492, %v3493
        %v3495 = vrot.slane %v3493, 4
        %v3496 = vrot.slane %v3381, 5
        %v3497 = vsel %vm1541, %v3495, %v3496
        %v3498 = vrot.slane %v3382, 5
        %v3499 = vrot.slane %v3498, 4
        %v3500 = vrot.slane %v3383, 5
        %v3501 = vsel %vm1541, %v3499, %v3500
        %v3502 = vrot.slane %v3500, 4
        %v3503 = vrot.slane %v3384, 5
        %v3504 = vsel %vm1541, %v3502, %v3503
        %v3505 = vrot.slane %v3385, 5
        %v3506 = vrot.slane %v3505, 4
        %v3507 = vrot.slane %v3386, 5
        %v3508 = vsel %vm1541, %v3506, %v3507
        %v3509 = vrot.slane %v3507, 4
        %v3510 = vrot.slane %v3387, 5
        %v3511 = vsel %vm1541, %v3509, %v3510
        %v3512 = vrot.slane %v3388, 5
        %v3513 = vrot.slane %v3512, 4
        %v3514 = vrot.slane %v3389, 5
        %v3515 = vsel %vm1541, %v3513, %v3514
        %v3516 = vrot.slane %v3514, 4
        %v3517 = vrot.slane %v3390, 5
        %v3518 = vsel %vm1541, %v3516, %v3517
        %v3519 = vrot.slane %v3391, 5
        %v3520 = vrot.slane %v3519, 4
        %v3521 = vrot.slane %v3392, 5
        %v3522 = vsel %vm1541, %v3520, %v3521
        %v3523 = vrot.slane %v3521, 4
        %v3524 = vrot.slane %v3393, 5
        %v3525 = vsel %vm1541, %v3523, %v3524
        %v3526 = vrot.slane %v3394, 5
        %v3527 = vrot.slane %v3526, 4
        %v3528 = vrot.slane %v3395, 5
        %v3529 = vsel %vm1541, %v3527, %v3528
        %v3530 = vrot.slane %v3528, 4
        %v3531 = vrot.slane %v3396, 5
        %v3532 = vsel %vm1541, %v3530, %v3531
        %v3533 = vrot.slane %v3397, 5
        %v3534 = vrot.slane %v3533, 4
        %v3535 = vrot.slane %v3398, 5
        %v3536 = vsel %vm1541, %v3534, %v3535
        %v3537 = vrot.slane %v3535, 4
        %v3538 = vrot.slane %v3399, 5
        %v3539 = vsel %vm1541, %v3537, %v3538
        %v3540 = vrot.slane %v3400, 5
        %v3541 = vrot.slane %v3540, 4
        %v3542 = vrot.slane %v3401, 5
        %v3543 = vsel %vm1541, %v3541, %v3542
        %v3544 = vrot.slane %v3542, 4
        %v3545 = vrot.slane %v3402, 5
        %v3546 = vsel %vm1541, %v3544, %v3545
        %v3547 = vrot.slane %v3403, 5
        %v3548 = vrot.slane %v3547, 4
        %v3549 = vrot.slane %v3404, 5
        %v3550 = vsel %vm1541, %v3548, %v3549
        %v3551 = vrot.slane %v3549, 4
        %v3552 = vrot.slane %v3405, 5
        %v3553 = vsel %vm1541, %v3551, %v3552
        %v3554 = vrot.slane %v3406, 5
        %v3555 = vrot.slane %v3554, 4
        %v3556 = vrot.slane %v3407, 5
        %v3557 = vsel %vm1541, %v3555, %v3556
        %v3558 = vrot.slane %v3556, 4
        %v3559 = vrot.slane %v3408, 5
        %v3560 = vsel %vm1541, %v3558, %v3559
        %v3561 = vrot.slane %v3409, 5
        %v3562 = vrot.slane %v3561, 4
        %v3563 = vrot.slane %v3410, 5
        %v3564 = vsel %vm1541, %v3562, %v3563
        %v3565 = vrot.slane %v3563, 4
        %v3566 = vrot.slane %v3411, 5
        %v3567 = vsel %vm1541, %v3565, %v3566
        %v3568 = vrot.slane %v3412, 5
        %v3569 = vrot.slane %v3568, 4
        %v3570 = vrot.slane %v3413, 5
        %v3571 = vsel %vm1541, %v3569, %v3570
        %v3572 = vrot.slane %v3570, 4
        %v3573 = vrot.slane %v3414, 5
        %v3574 = vsel %vm1541, %v3572, %v3573
        %3607 = vst.msk [vmem:[#allocation4 + $0x10] sm:$0xf] %vm256, %v3466
        %3608 = vst.msk [vmem:[#allocation4 + $0x24] sm:$0xf] %vm256, %v3469
        %3609 = vst.msk [vmem:[#allocation4 + $0x38] sm:$0xf] %vm256, %v3473
        %3610 = vst.msk [vmem:[#allocation4 + $0x4c] sm:$0xf] %vm256, %v3476
        %3611 = vst.msk [vmem:[#allocation4 + $0x60] sm:$0xf] %vm256, %v3480
        %3612 = vst.msk [vmem:[#allocation4 + $0x74] sm:$0xf] %vm256, %v3483
        %3613 = vst.msk [vmem:[#allocation4 + $0x88] sm:$0xf] %vm256, %v3487
        %3614 = vst.msk [vmem:[#allocation4 + $0x9c] sm:$0xf] %vm256, %v3490
        %3615 = vst.msk [vmem:[#allocation4 + $0xb0] sm:$0xf] %vm256, %v3494
        %3616 = vst.msk [vmem:[#allocation4 + $0xc4] sm:$0xf] %vm256, %v3497
        %3617 = vst.msk [vmem:[#allocation4 + $0xd8] sm:$0xf] %vm256, %v3501
        %3618 = vst.msk [vmem:[#allocation4 + $0xec] sm:$0xf] %vm256, %v3504
        %3619 = vst.msk [vmem:[#allocation4 + $0x100] sm:$0xf] %vm256, %v3508
        %3620 = vst.msk [vmem:[#allocation4 + $0x114] sm:$0xf] %vm256, %v3511
        %3621 = vst.msk [vmem:[#allocation4 + $0x128] sm:$0xf] %vm256, %v3515
        %3622 = vst.msk [vmem:[#allocation4 + $0x13c] sm:$0xf] %vm256, %v3518
        %3623 = vst.msk [vmem:[#allocation4 + $0x150] sm:$0xf] %vm256, %v3522
        %3624 = vst.msk [vmem:[#allocation4 + $0x164] sm:$0xf] %vm256, %v3525
        %3625 = vst.msk [vmem:[#allocation4 + $0x178] sm:$0xf] %vm256, %v3529
        %3626 = vst.msk [vmem:[#allocation4 + $0x18c] sm:$0xf] %vm256, %v3532
        %3627 = vst.msk [vmem:[#allocation4 + $0x1a0] sm:$0xf] %vm256, %v3536
        %3628 = vst.msk [vmem:[#allocation4 + $0x1b4] sm:$0xf] %vm256, %v3539
        %3629 = vst.msk [vmem:[#allocation4 + $0x1c8] sm:$0xf] %vm256, %v3543
        %3630 = vst.msk [vmem:[#allocation4 + $0x1dc] sm:$0xf] %vm256, %v3546
        %3631 = vst.msk [vmem:[#allocation4 + $0x1f0] sm:$0xf] %vm256, %v3550
        %3632 = vst.msk [vmem:[#allocation4 + $0x204] sm:$0xf] %vm256, %v3553
        %3633 = vst.msk [vmem:[#allocation4 + $0x218] sm:$0xf] %vm256, %v3557
        %3634 = vst.msk [vmem:[#allocation4 + $0x22c] sm:$0xf] %vm256, %v3560
        %3635 = vst.msk [vmem:[#allocation4 + $0x240] sm:$0xf] %vm256, %v3564
        %3636 = vst.msk [vmem:[#allocation4 + $0x254] sm:$0xf] %vm256, %v3567
        %3637 = vst.msk [vmem:[#allocation4 + $0x268] sm:$0xf] %vm256, %v3571
        %3638 = vst.msk [vmem:[#allocation4 + $0x27c] sm:$0xf] %vm256, %v3574
        %v3639 = vld [vmem:[#allocation4] sm:$0xff]
        %v3640 = vld [vmem:[#allocation4 + $0x8] sm:$0xff]
        %v3641 = vld [vmem:[#allocation4 + $0x10] sm:$0xf]
        %v3642 = vld [vmem:[#allocation4 + $0x14] sm:$0xff]
        %v3643 = vld [vmem:[#allocation4 + $0x1c] sm:$0xff]
        %v3644 = vld [vmem:[#allocation4 + $0x24] sm:$0xf]
        %v3645 = vld [vmem:[#allocation4 + $0x28] sm:$0xff]
        %v3646 = vld [vmem:[#allocation4 + $0x30] sm:$0xff]
        %v3647 = vld [vmem:[#allocation4 + $0x38] sm:$0xf]
        %v3648 = vld [vmem:[#allocation4 + $0x3c] sm:$0xff]
        %v3649 = vld [vmem:[#allocation4 + $0x44] sm:$0xff]
        %v3650 = vld [vmem:[#allocation4 + $0x4c] sm:$0xf]
        %v3651 = vld [vmem:[#allocation4 + $0x50] sm:$0xff]
        %v3652 = vld [vmem:[#allocation4 + $0x58] sm:$0xff]
        %v3653 = vld [vmem:[#allocation4 + $0x60] sm:$0xf]
        %v3654 = vld [vmem:[#allocation4 + $0x64] sm:$0xff]
        %v3655 = vld [vmem:[#allocation4 + $0x6c] sm:$0xff]
        %v3656 = vld [vmem:[#allocation4 + $0x74] sm:$0xf]
        %v3657 = vld [vmem:[#allocation4 + $0x78] sm:$0xff]
        %v3658 = vld [vmem:[#allocation4 + $0x80] sm:$0xff]
        %v3659 = vld [vmem:[#allocation4 + $0x88] sm:$0xf]
        %v3660 = vld [vmem:[#allocation4 + $0x8c] sm:$0xff]
        %v3661 = vld [vmem:[#allocation4 + $0x94] sm:$0xff]
        %v3662 = vld [vmem:[#allocation4 + $0x9c] sm:$0xf]
        %v3663 = vld [vmem:[#allocation4 + $0xa0] sm:$0xff]
        %v3664 = vld [vmem:[#allocation4 + $0xa8] sm:$0xff]
        %v3665 = vld [vmem:[#allocation4 + $0xb0] sm:$0xf]
        %v3666 = vld [vmem:[#allocation4 + $0xb4] sm:$0xff]
        %v3667 = vld [vmem:[#allocation4 + $0xbc] sm:$0xff]
        %v3668 = vld [vmem:[#allocation4 + $0xc4] sm:$0xf]
        %v3669 = vld [vmem:[#allocation4 + $0xc8] sm:$0xff]
        %v3670 = vld [vmem:[#allocation4 + $0xd0] sm:$0xff]
        %v3671 = vld [vmem:[#allocation4 + $0xd8] sm:$0xf]
        %v3672 = vld [vmem:[#allocation4 + $0xdc] sm:$0xff]
        %v3673 = vld [vmem:[#allocation4 + $0xe4] sm:$0xff]
        %v3674 = vld [vmem:[#allocation4 + $0xec] sm:$0xf]
        %v3675 = vld [vmem:[#allocation4 + $0xf0] sm:$0xff]
        %v3676 = vld [vmem:[#allocation4 + $0xf8] sm:$0xff]
        %v3677 = vld [vmem:[#allocation4 + $0x100] sm:$0xf]
        %v3678 = vld [vmem:[#allocation4 + $0x104] sm:$0xff]
        %v3679 = vld [vmem:[#allocation4 + $0x10c] sm:$0xff]
        %v3680 = vld [vmem:[#allocation4 + $0x114] sm:$0xf]
        %v3681 = vld [vmem:[#allocation4 + $0x118] sm:$0xff]
        %v3682 = vld [vmem:[#allocation4 + $0x120] sm:$0xff]
        %v3683 = vld [vmem:[#allocation4 + $0x128] sm:$0xf]
        %v3684 = vld [vmem:[#allocation4 + $0x12c] sm:$0xff]
        %v3685 = vld [vmem:[#allocation4 + $0x134] sm:$0xff]
        %v3686 = vld [vmem:[#allocation4 + $0x13c] sm:$0xf]
        %v3687 = vld [vmem:[#allocation4 + $0x140] sm:$0xff]
        %v3688 = vld [vmem:[#allocation4 + $0x148] sm:$0xff]
        %v3689 = vld [vmem:[#allocation4 + $0x150] sm:$0xf]
        %v3690 = vld [vmem:[#allocation4 + $0x154] sm:$0xff]
        %v3691 = vld [vmem:[#allocation4 + $0x15c] sm:$0xff]
        %v3692 = vld [vmem:[#allocation4 + $0x164] sm:$0xf]
        %v3693 = vld [vmem:[#allocation4 + $0x168] sm:$0xff]
        %v3694 = vld [vmem:[#allocation4 + $0x170] sm:$0xff]
        %v3695 = vld [vmem:[#allocation4 + $0x178] sm:$0xf]
        %v3696 = vld [vmem:[#allocation4 + $0x17c] sm:$0xff]
        %v3697 = vld [vmem:[#allocation4 + $0x184] sm:$0xff]
        %v3698 = vld [vmem:[#allocation4 + $0x18c] sm:$0xf]
        %v3699 = vld [vmem:[#allocation4 + $0x190] sm:$0xff]
        %v3700 = vld [vmem:[#allocation4 + $0x198] sm:$0xff]
        %v3701 = vld [vmem:[#allocation4 + $0x1a0] sm:$0xf]
        %v3702 = vld [vmem:[#allocation4 + $0x1a4] sm:$0xff]
        %v3703 = vld [vmem:[#allocation4 + $0x1ac] sm:$0xff]
        %v3704 = vld [vmem:[#allocation4 + $0x1b4] sm:$0xf]
        %v3705 = vld [vmem:[#allocation4 + $0x1b8] sm:$0xff]
        %v3706 = vld [vmem:[#allocation4 + $0x1c0] sm:$0xff]
        %v3707 = vld [vmem:[#allocation4 + $0x1c8] sm:$0xf]
        %v3708 = vld [vmem:[#allocation4 + $0x1cc] sm:$0xff]
        %v3709 = vld [vmem:[#allocation4 + $0x1d4] sm:$0xff]
        %v3710 = vld [vmem:[#allocation4 + $0x1dc] sm:$0xf]
        %v3711 = vld [vmem:[#allocation4 + $0x1e0] sm:$0xff]
        %v3712 = vld [vmem:[#allocation4 + $0x1e8] sm:$0xff]
        %v3713 = vld [vmem:[#allocation4 + $0x1f0] sm:$0xf]
        %v3714 = vld [vmem:[#allocation4 + $0x1f4] sm:$0xff]
        %v3715 = vld [vmem:[#allocation4 + $0x1fc] sm:$0xff]
        %v3716 = vld [vmem:[#allocation4 + $0x204] sm:$0xf]
        %v3717 = vld [vmem:[#allocation4 + $0x208] sm:$0xff]
        %v3718 = vld [vmem:[#allocation4 + $0x210] sm:$0xff]
        %v3719 = vld [vmem:[#allocation4 + $0x218] sm:$0xf]
        %v3720 = vld [vmem:[#allocation4 + $0x21c] sm:$0xff]
        %v3721 = vld [vmem:[#allocation4 + $0x224] sm:$0xff]
        %v3722 = vld [vmem:[#allocation4 + $0x22c] sm:$0xf]
        %v3723 = vld [vmem:[#allocation4 + $0x230] sm:$0xff]
        %v3724 = vld [vmem:[#allocation4 + $0x238] sm:$0xff]
        %v3725 = vld [vmem:[#allocation4 + $0x240] sm:$0xf]
        %v3726 = vld [vmem:[#allocation4 + $0x244] sm:$0xff]
        %v3727 = vld [vmem:[#allocation4 + $0x24c] sm:$0xff]
        %v3728 = vld [vmem:[#allocation4 + $0x254] sm:$0xf]
        %v3729 = vld [vmem:[#allocation4 + $0x258] sm:$0xff]
        %v3730 = vld [vmem:[#allocation4 + $0x260] sm:$0xff]
        %v3731 = vld [vmem:[#allocation4 + $0x268] sm:$0xf]
        %v3732 = vld [vmem:[#allocation4 + $0x26c] sm:$0xff]
        %v3733 = vld [vmem:[#allocation4 + $0x274] sm:$0xff]
        %v3734 = vld [vmem:[#allocation4 + $0x27c] sm:$0xf]
        %v3735 = vld [vmem:[%s1] sm:$0xf]
        %v3736 = vld [vmem:[%s1 + $0x4] sm:$0xf]
        %v3737 = vld [vmem:[%s1 + $0x8] sm:$0xf]
        %v3738 = vld [vmem:[%s1 + $0xc] sm:$0xf]
        %v3739 = vld [vmem:[%s1 + $0x10] sm:$0xf]
        %v3740 = vld [vmem:[%s1 + $0x14] sm:$0xf]
        %v3741 = vld [vmem:[%s1 + $0x18] sm:$0xf]
        %v3742 = vld [vmem:[%s1 + $0x1c] sm:$0xf]
        %v3743 = vld [vmem:[%s1 + $0x20] sm:$0xf]
        %v3744 = vld [vmem:[%s1 + $0x24] sm:$0xf]
        %v3745 = vld [vmem:[%s1 + $0x28] sm:$0xf]
        %v3746 = vld [vmem:[%s1 + $0x2c] sm:$0xf]
        %v3747 = vld [vmem:[%s1 + $0x30] sm:$0xf]
        %v3748 = vld [vmem:[%s1 + $0x34] sm:$0xf]
        %v3749 = vld [vmem:[%s1 + $0x38] sm:$0xf]
        %v3750 = vld [vmem:[%s1 + $0x3c] sm:$0xf]
        %v3751 = vld [vmem:[%s1 + $0x40] sm:$0xf]
        %v3752 = vld [vmem:[%s1 + $0x44] sm:$0xf]
        %v3753 = vld [vmem:[%s1 + $0x48] sm:$0xf]
        %v3754 = vld [vmem:[%s1 + $0x4c] sm:$0xf]
        %v3755 = vld [vmem:[%s1 + $0x50] sm:$0xf]
        %v3756 = vld [vmem:[%s1 + $0x54] sm:$0xf]
        %v3757 = vld [vmem:[%s1 + $0x58] sm:$0xf]
        %v3758 = vld [vmem:[%s1 + $0x5c] sm:$0xf]
        %v3759 = vld [vmem:[%s1 + $0x60] sm:$0xf]
        %v3760 = vld [vmem:[%s1 + $0x64] sm:$0xf]
        %v3761 = vld [vmem:[%s1 + $0x68] sm:$0xf]
        %v3762 = vld [vmem:[%s1 + $0x6c] sm:$0xf]
        %v3763 = vld [vmem:[%s1 + $0x70] sm:$0xf]
        %v3764 = vld [vmem:[%s1 + $0x74] sm:$0xf]
        %v3765 = vld [vmem:[%s1 + $0x78] sm:$0xf]
        %v3766 = vld [vmem:[%s1 + $0x7c] sm:$0xf]
        %v3767 = vld [vmem:[%s1 + $0x80] sm:$0xf]
        %v3768 = vld [vmem:[%s1 + $0x84] sm:$0xf]
        %v3769 = vld [vmem:[%s1 + $0x88] sm:$0xf]
        %v3770 = vld [vmem:[%s1 + $0x8c] sm:$0xf]
        %v3771 = vld [vmem:[%s1 + $0x90] sm:$0xf]
        %v3772 = vld [vmem:[%s1 + $0x94] sm:$0xf]
        %v3773 = vld [vmem:[%s1 + $0x98] sm:$0xf]
        %v3774 = vld [vmem:[%s1 + $0x9c] sm:$0xf]
        %v3775 = vld [vmem:[%s1 + $0xa0] sm:$0xf]
        %v3776 = vld [vmem:[%s1 + $0xa4] sm:$0xf]
        %v3777 = vld [vmem:[%s1 + $0xa8] sm:$0xf]
        %v3778 = vld [vmem:[%s1 + $0xac] sm:$0xf]
        %v3779 = vld [vmem:[%s1 + $0xb0] sm:$0xf]
        %v3780 = vld [vmem:[%s1 + $0xb4] sm:$0xf]
        %v3781 = vld [vmem:[%s1 + $0xb8] sm:$0xf]
        %v3782 = vld [vmem:[%s1 + $0xbc] sm:$0xf]
        %v3783 = vld [vmem:[%s1 + $0xc0] sm:$0xf]
        %v3784 = vld [vmem:[%s1 + $0xc4] sm:$0xf]
        %v3785 = vld [vmem:[%s1 + $0xc8] sm:$0xf]
        %v3786 = vld [vmem:[%s1 + $0xcc] sm:$0xf]
        %v3787 = vld [vmem:[%s1 + $0xd0] sm:$0xf]
        %v3788 = vld [vmem:[%s1 + $0xd4] sm:$0xf]
        %v3789 = vld [vmem:[%s1 + $0xd8] sm:$0xf]
        %v3790 = vld [vmem:[%s1 + $0xdc] sm:$0xf]
        %v3791 = vld [vmem:[%s1 + $0xe0] sm:$0xf]
        %v3792 = vld [vmem:[%s1 + $0xe4] sm:$0xf]
        %v3793 = vld [vmem:[%s1 + $0xe8] sm:$0xf]
        %v3794 = vld [vmem:[%s1 + $0xec] sm:$0xf]
        %v3795 = vld [vmem:[%s1 + $0xf0] sm:$0xf]
        %v3796 = vld [vmem:[%s1 + $0xf4] sm:$0xf]
        %v3797 = vld [vmem:[%s1 + $0xf8] sm:$0xf]
        %v3798 = vld [vmem:[%s1 + $0xfc] sm:$0xf]
        %v3799 = vld [vmem:[%s1 + $0x100] sm:$0xf]
        %v3800 = vld [vmem:[%s1 + $0x104] sm:$0xf]
        %v3801 = vld [vmem:[%s1 + $0x108] sm:$0xf]
        %v3802 = vld [vmem:[%s1 + $0x10c] sm:$0xf]
        %v3803 = vld [vmem:[%s1 + $0x110] sm:$0xf]
        %v3804 = vld [vmem:[%s1 + $0x114] sm:$0xf]
        %v3805 = vld [vmem:[%s1 + $0x118] sm:$0xf]
        %v3806 = vld [vmem:[%s1 + $0x11c] sm:$0xf]
        %v3903 = vunpack.c.l.b16 %v3639
        %v3904 = vunpack.c.h.b16 %v3639
        %v3905 = vunpack.c.l.b16 %v3640
        %v3906 = vunpack.c.h.b16 %v3640
        %v3907 = vunpack.c.l.b16 %v3641
        %v3908 = vunpack.c.l.b16 %v3642
        %v3909 = vunpack.c.h.b16 %v3642
        %v3910 = vunpack.c.l.b16 %v3643
        %v3911 = vunpack.c.h.b16 %v3643
        %v3912 = vunpack.c.l.b16 %v3644
        %v3913 = vunpack.c.l.b16 %v3645
        %v3914 = vunpack.c.h.b16 %v3645
        %v3915 = vunpack.c.l.b16 %v3646
        %v3916 = vunpack.c.h.b16 %v3646
        %v3917 = vunpack.c.l.b16 %v3647
        %v3918 = vunpack.c.l.b16 %v3648
        %v3919 = vunpack.c.h.b16 %v3648
        %v3920 = vunpack.c.l.b16 %v3649
        %v3921 = vunpack.c.h.b16 %v3649
        %v3922 = vunpack.c.l.b16 %v3650
        %v3923 = vunpack.c.l.b16 %v3651
        %v3924 = vunpack.c.h.b16 %v3651
        %v3925 = vunpack.c.l.b16 %v3652
        %v3926 = vunpack.c.h.b16 %v3652
        %v3927 = vunpack.c.l.b16 %v3653
        %v3928 = vunpack.c.l.b16 %v3654
        %v3929 = vunpack.c.h.b16 %v3654
        %v3930 = vunpack.c.l.b16 %v3655
        %v3931 = vunpack.c.h.b16 %v3655
        %v3932 = vunpack.c.l.b16 %v3656
        %v3933 = vunpack.c.l.b16 %v3657
        %v3934 = vunpack.c.h.b16 %v3657
        %v3935 = vunpack.c.l.b16 %v3658
        %v3936 = vunpack.c.h.b16 %v3658
        %v3937 = vunpack.c.l.b16 %v3659
        %v3938 = vunpack.c.l.b16 %v3660
        %v3939 = vunpack.c.h.b16 %v3660
        %v3940 = vunpack.c.l.b16 %v3661
        %v3941 = vunpack.c.h.b16 %v3661
        %v3942 = vunpack.c.l.b16 %v3662
        %v3943 = vunpack.c.l.b16 %v3663
        %v3944 = vunpack.c.h.b16 %v3663
        %v3945 = vunpack.c.l.b16 %v3664
        %v3946 = vunpack.c.h.b16 %v3664
        %v3947 = vunpack.c.l.b16 %v3665
        %v3948 = vunpack.c.l.b16 %v3666
        %v3949 = vunpack.c.h.b16 %v3666
        %v3950 = vunpack.c.l.b16 %v3667
        %v3951 = vunpack.c.h.b16 %v3667
        %v3952 = vunpack.c.l.b16 %v3668
        %v3953 = vunpack.c.l.b16 %v3669
        %v3954 = vunpack.c.h.b16 %v3669
        %v3955 = vunpack.c.l.b16 %v3670
        %v3956 = vunpack.c.h.b16 %v3670
        %v3957 = vunpack.c.l.b16 %v3671
        %v3958 = vunpack.c.l.b16 %v3672
        %v3959 = vunpack.c.h.b16 %v3672
        %v3960 = vunpack.c.l.b16 %v3673
        %v3961 = vunpack.c.h.b16 %v3673
        %v3962 = vunpack.c.l.b16 %v3674
        %v3963 = vunpack.c.l.b16 %v3675
        %v3964 = vunpack.c.h.b16 %v3675
        %v3965 = vunpack.c.l.b16 %v3676
        %v3966 = vunpack.c.h.b16 %v3676
        %v3967 = vunpack.c.l.b16 %v3677
        %v3968 = vunpack.c.l.b16 %v3678
        %v3969 = vunpack.c.h.b16 %v3678
        %v3970 = vunpack.c.l.b16 %v3679
        %v3971 = vunpack.c.h.b16 %v3679
        %v3972 = vunpack.c.l.b16 %v3680
        %v3973 = vunpack.c.l.b16 %v3681
        %v3974 = vunpack.c.h.b16 %v3681
        %v3975 = vunpack.c.l.b16 %v3682
        %v3976 = vunpack.c.h.b16 %v3682
        %v3977 = vunpack.c.l.b16 %v3683
        %v3978 = vunpack.c.l.b16 %v3684
        %v3979 = vunpack.c.h.b16 %v3684
        %v3980 = vunpack.c.l.b16 %v3685
        %v3981 = vunpack.c.h.b16 %v3685
        %v3982 = vunpack.c.l.b16 %v3686
        %v3983 = vunpack.c.l.b16 %v3687
        %v3984 = vunpack.c.h.b16 %v3687
        %v3985 = vunpack.c.l.b16 %v3688
        %v3986 = vunpack.c.h.b16 %v3688
        %v3987 = vunpack.c.l.b16 %v3689
        %v3988 = vunpack.c.l.b16 %v3690
        %v3989 = vunpack.c.h.b16 %v3690
        %v3990 = vunpack.c.l.b16 %v3691
        %v3991 = vunpack.c.h.b16 %v3691
        %v3992 = vunpack.c.l.b16 %v3692
        %v3993 = vunpack.c.l.b16 %v3693
        %v3994 = vunpack.c.h.b16 %v3693
        %v3995 = vunpack.c.l.b16 %v3694
        %v3996 = vunpack.c.h.b16 %v3694
        %v3997 = vunpack.c.l.b16 %v3695
        %v3998 = vunpack.c.l.b16 %v3696
        %v3999 = vunpack.c.h.b16 %v3696
        %v4000 = vunpack.c.l.b16 %v3697
        %v4001 = vunpack.c.h.b16 %v3697
        %v4002 = vunpack.c.l.b16 %v3698
        %v4003 = vunpack.c.l.b16 %v3699
        %v4004 = vunpack.c.h.b16 %v3699
        %v4005 = vunpack.c.l.b16 %v3700
        %v4006 = vunpack.c.h.b16 %v3700
        %v4007 = vunpack.c.l.b16 %v3701
        %v4008 = vunpack.c.l.b16 %v3702
        %v4009 = vunpack.c.h.b16 %v3702
        %v4010 = vunpack.c.l.b16 %v3703
        %v4011 = vunpack.c.h.b16 %v3703
        %v4012 = vunpack.c.l.b16 %v3704
        %v4013 = vunpack.c.l.b16 %v3705
        %v4014 = vunpack.c.h.b16 %v3705
        %v4015 = vunpack.c.l.b16 %v3706
        %v4016 = vunpack.c.h.b16 %v3706
        %v4017 = vunpack.c.l.b16 %v3707
        %v4018 = vunpack.c.l.b16 %v3708
        %v4019 = vunpack.c.h.b16 %v3708
        %v4020 = vunpack.c.l.b16 %v3709
        %v4021 = vunpack.c.h.b16 %v3709
        %v4022 = vunpack.c.l.b16 %v3710
        %v4023 = vunpack.c.l.b16 %v3711
        %v4024 = vunpack.c.h.b16 %v3711
        %v4025 = vunpack.c.l.b16 %v3712
        %v4026 = vunpack.c.h.b16 %v3712
        %v4027 = vunpack.c.l.b16 %v3713
        %v4028 = vunpack.c.l.b16 %v3714
        %v4029 = vunpack.c.h.b16 %v3714
        %v4030 = vunpack.c.l.b16 %v3715
        %v4031 = vunpack.c.h.b16 %v3715
        %v4032 = vunpack.c.l.b16 %v3716
        %v4033 = vunpack.c.l.b16 %v3717
        %v4034 = vunpack.c.h.b16 %v3717
        %v4035 = vunpack.c.l.b16 %v3718
        %v4036 = vunpack.c.h.b16 %v3718
        %v4037 = vunpack.c.l.b16 %v3719
        %v4038 = vunpack.c.l.b16 %v3720
        %v4039 = vunpack.c.h.b16 %v3720
        %v4040 = vunpack.c.l.b16 %v3721
        %v4041 = vunpack.c.h.b16 %v3721
        %v4042 = vunpack.c.l.b16 %v3722
        %v4043 = vunpack.c.l.b16 %v3723
        %v4044 = vunpack.c.h.b16 %v3723
        %v4045 = vunpack.c.l.b16 %v3724
        %v4046 = vunpack.c.h.b16 %v3724
        %v4047 = vunpack.c.l.b16 %v3725
        %v4048 = vunpack.c.l.b16 %v3726
        %v4049 = vunpack.c.h.b16 %v3726
        %v4050 = vunpack.c.l.b16 %v3727
        %v4051 = vunpack.c.h.b16 %v3727
        %v4052 = vunpack.c.l.b16 %v3728
        %v4053 = vunpack.c.l.b16 %v3729
        %v4054 = vunpack.c.h.b16 %v3729
        %v4055 = vunpack.c.l.b16 %v3730
        %v4056 = vunpack.c.h.b16 %v3730
        %v4057 = vunpack.c.l.b16 %v3731
        %v4058 = vunpack.c.l.b16 %v3732
        %v4059 = vunpack.c.h.b16 %v3732
        %v4060 = vunpack.c.l.b16 %v3733
        %v4061 = vunpack.c.h.b16 %v3733
        %v4062 = vunpack.c.l.b16 %v3734
        %v4063 = vpack.c.b16 %v3908, %v3903
        %v4064 = vpack.c.b16 %v3909, %v3904
        %v4065 = vpack.c.b16 %v3910, %v3905
        %v4066 = vpack.c.b16 %v3911, %v3906
        %v4067 = vpack.c.b16 %v3912, %v3907
        %v4068 = vpack.c.b16 %v3918, %v3913
        %v4069 = vpack.c.b16 %v3919, %v3914
        %v4070 = vpack.c.b16 %v3920, %v3915
        %v4071 = vpack.c.b16 %v3921, %v3916
        %v4072 = vpack.c.b16 %v3922, %v3917
        %v4073 = vpack.c.b16 %v3928, %v3923
        %v4074 = vpack.c.b16 %v3929, %v3924
        %v4075 = vpack.c.b16 %v3930, %v3925
        %v4076 = vpack.c.b16 %v3931, %v3926
        %v4077 = vpack.c.b16 %v3932, %v3927
        %v4078 = vpack.c.b16 %v3938, %v3933
        %v4079 = vpack.c.b16 %v3939, %v3934
        %v4080 = vpack.c.b16 %v3940, %v3935
        %v4081 = vpack.c.b16 %v3941, %v3936
        %v4082 = vpack.c.b16 %v3942, %v3937
        %v4083 = vpack.c.b16 %v3948, %v3943
        %v4084 = vpack.c.b16 %v3949, %v3944
        %v4085 = vpack.c.b16 %v3950, %v3945
        %v4086 = vpack.c.b16 %v3951, %v3946
        %v4087 = vpack.c.b16 %v3952, %v3947
        %v4088 = vpack.c.b16 %v3958, %v3953
        %v4089 = vpack.c.b16 %v3959, %v3954
        %v4090 = vpack.c.b16 %v3960, %v3955
        %v4091 = vpack.c.b16 %v3961, %v3956
        %v4092 = vpack.c.b16 %v3962, %v3957
        %v4093 = vpack.c.b16 %v3968, %v3963
        %v4094 = vpack.c.b16 %v3969, %v3964
        %v4095 = vpack.c.b16 %v3970, %v3965
        %v4096 = vpack.c.b16 %v3971, %v3966
        %v4097 = vpack.c.b16 %v3972, %v3967
        %v4098 = vpack.c.b16 %v3978, %v3973
        %v4099 = vpack.c.b16 %v3979, %v3974
        %v4100 = vpack.c.b16 %v3980, %v3975
        %v4101 = vpack.c.b16 %v3981, %v3976
        %v4102 = vpack.c.b16 %v3982, %v3977
        %v4103 = vpack.c.b16 %v3988, %v3983
        %v4104 = vpack.c.b16 %v3989, %v3984
        %v4105 = vpack.c.b16 %v3990, %v3985
        %v4106 = vpack.c.b16 %v3991, %v3986
        %v4107 = vpack.c.b16 %v3992, %v3987
        %v4108 = vpack.c.b16 %v3998, %v3993
        %v4109 = vpack.c.b16 %v3999, %v3994
        %v4110 = vpack.c.b16 %v4000, %v3995
        %v4111 = vpack.c.b16 %v4001, %v3996
        %v4112 = vpack.c.b16 %v4002, %v3997
        %v4113 = vpack.c.b16 %v4008, %v4003
        %v4114 = vpack.c.b16 %v4009, %v4004
        %v4115 = vpack.c.b16 %v4010, %v4005
        %v4116 = vpack.c.b16 %v4011, %v4006
        %v4117 = vpack.c.b16 %v4012, %v4007
        %v4118 = vpack.c.b16 %v4018, %v4013
        %v4119 = vpack.c.b16 %v4019, %v4014
        %v4120 = vpack.c.b16 %v4020, %v4015
        %v4121 = vpack.c.b16 %v4021, %v4016
        %v4122 = vpack.c.b16 %v4022, %v4017
        %v4123 = vpack.c.b16 %v4028, %v4023
        %v4124 = vpack.c.b16 %v4029, %v4024
        %v4125 = vpack.c.b16 %v4030, %v4025
        %v4126 = vpack.c.b16 %v4031, %v4026
        %v4127 = vpack.c.b16 %v4032, %v4027
        %v4128 = vpack.c.b16 %v4038, %v4033
        %v4129 = vpack.c.b16 %v4039, %v4034
        %v4130 = vpack.c.b16 %v4040, %v4035
        %v4131 = vpack.c.b16 %v4041, %v4036
        %v4132 = vpack.c.b16 %v4042, %v4037
        %v4133 = vpack.c.b16 %v4048, %v4043
        %v4134 = vpack.c.b16 %v4049, %v4044
        %v4135 = vpack.c.b16 %v4050, %v4045
        %v4136 = vpack.c.b16 %v4051, %v4046
        %v4137 = vpack.c.b16 %v4052, %v4047
        %v4138 = vpack.c.b16 %v4058, %v4053
        %v4139 = vpack.c.b16 %v4059, %v4054
        %v4140 = vpack.c.b16 %v4060, %v4055
        %v4141 = vpack.c.b16 %v4061, %v4056
        %v4142 = vpack.c.b16 %v4062, %v4057
        %v4279 = vunpack.c.l.b16 %v3735
        %v4280 = vunpack.c.l.b16 %v3736
        %v4281 = vunpack.c.l.b16 %v3737
        %v4282 = vunpack.c.l.b16 %v3738
        %v4283 = vunpack.c.l.b16 %v3739
        %v4284 = vunpack.c.l.b16 %v3740
        %v4285 = vunpack.c.l.b16 %v3741
        %v4286 = vunpack.c.l.b16 %v3742
        %v4287 = vunpack.c.l.b16 %v3743
        %v4288 = vunpack.c.l.b16 %v3744
        %v4289 = vunpack.c.l.b16 %v3745
        %v4290 = vunpack.c.l.b16 %v3746
        %v4291 = vunpack.c.l.b16 %v3747
        %v4292 = vunpack.c.l.b16 %v3748
        %v4293 = vunpack.c.l.b16 %v3749
        %v4294 = vunpack.c.l.b16 %v3750
        %v4295 = vunpack.c.l.b16 %v3751
        %v4296 = vunpack.c.l.b16 %v3752
        %v4297 = vunpack.c.l.b16 %v3753
        %v4298 = vunpack.c.l.b16 %v3754
        %v4299 = vunpack.c.l.b16 %v3755
        %v4300 = vunpack.c.l.b16 %v3756
        %v4301 = vunpack.c.l.b16 %v3757
        %v4302 = vunpack.c.l.b16 %v3758
        %v4303 = vunpack.c.l.b16 %v3759
        %v4304 = vunpack.c.l.b16 %v3760
        %v4305 = vunpack.c.l.b16 %v3761
        %v4306 = vunpack.c.l.b16 %v3762
        %v4307 = vunpack.c.l.b16 %v3763
        %v4308 = vunpack.c.l.b16 %v3764
        %v4309 = vunpack.c.l.b16 %v3765
        %v4310 = vunpack.c.l.b16 %v3766
        %v4311 = vunpack.c.l.b16 %v3767
        %v4312 = vunpack.c.l.b16 %v3768
        %v4313 = vunpack.c.l.b16 %v3769
        %v4314 = vunpack.c.l.b16 %v3770
        %v4315 = vunpack.c.l.b16 %v3771
        %v4316 = vunpack.c.l.b16 %v3772
        %v4317 = vunpack.c.l.b16 %v3773
        %v4318 = vunpack.c.l.b16 %v3774
        %v4319 = vunpack.c.l.b16 %v3775
        %v4320 = vunpack.c.l.b16 %v3776
        %v4321 = vunpack.c.l.b16 %v3777
        %v4322 = vunpack.c.l.b16 %v3778
        %v4323 = vunpack.c.l.b16 %v3779
        %v4324 = vunpack.c.l.b16 %v3780
        %v4325 = vunpack.c.l.b16 %v3781
        %v4326 = vunpack.c.l.b16 %v3782
        %v4327 = vunpack.c.l.b16 %v3783
        %v4328 = vunpack.c.l.b16 %v3784
        %v4329 = vunpack.c.l.b16 %v3785
        %v4330 = vunpack.c.l.b16 %v3786
        %v4331 = vunpack.c.l.b16 %v3787
        %v4332 = vunpack.c.l.b16 %v3788
        %v4333 = vunpack.c.l.b16 %v3789
        %v4334 = vunpack.c.l.b16 %v3790
        %v4335 = vunpack.c.l.b16 %v3791
        %v4336 = vunpack.c.l.b16 %v3792
        %v4337 = vunpack.c.l.b16 %v3793
        %v4338 = vunpack.c.l.b16 %v3794
        %v4339 = vunpack.c.l.b16 %v3795
        %v4340 = vunpack.c.l.b16 %v3796
        %v4341 = vunpack.c.l.b16 %v3797
        %v4342 = vunpack.c.l.b16 %v3798
        %v4343 = vunpack.c.l.b16 %v3799
        %v4344 = vunpack.c.l.b16 %v3800
        %v4345 = vunpack.c.l.b16 %v3801
        %v4346 = vunpack.c.l.b16 %v3802
        %v4347 = vunpack.c.l.b16 %v3803
        %v4348 = vunpack.c.l.b16 %v3804
        %v4349 = vunpack.c.l.b16 %v3805
        %v4350 = vunpack.c.l.b16 %v3806
        %v4351 = vpack.c.b16 %v4280, %v4279
        %v4352 = vpack.c.b16 %v4282, %v4281
        %v4353 = vpack.c.b16 %v4284, %v4283
        %v4354 = vpack.c.b16 %v4286, %v4285
        %v4355 = vpack.c.b16 %v4288, %v4287
        %v4356 = vpack.c.b16 %v4290, %v4289
        %v4357 = vpack.c.b16 %v4292, %v4291
        %v4358 = vpack.c.b16 %v4294, %v4293
        %v4359 = vpack.c.b16 %v4296, %v4295
        %v4360 = vpack.c.b16 %v4298, %v4297
        %v4361 = vpack.c.b16 %v4300, %v4299
        %v4362 = vpack.c.b16 %v4302, %v4301
        %v4363 = vpack.c.b16 %v4304, %v4303
        %v4364 = vpack.c.b16 %v4306, %v4305
        %v4365 = vpack.c.b16 %v4308, %v4307
        %v4366 = vpack.c.b16 %v4310, %v4309
        %v4367 = vpack.c.b16 %v4312, %v4311
        %v4368 = vpack.c.b16 %v4314, %v4313
        %v4369 = vpack.c.b16 %v4316, %v4315
        %v4370 = vpack.c.b16 %v4318, %v4317
        %v4371 = vpack.c.b16 %v4320, %v4319
        %v4372 = vpack.c.b16 %v4322, %v4321
        %v4373 = vpack.c.b16 %v4324, %v4323
        %v4374 = vpack.c.b16 %v4326, %v4325
        %v4375 = vpack.c.b16 %v4328, %v4327
        %v4376 = vpack.c.b16 %v4330, %v4329
        %v4377 = vpack.c.b16 %v4332, %v4331
        %v4378 = vpack.c.b16 %v4334, %v4333
        %v4379 = vpack.c.b16 %v4336, %v4335
        %v4380 = vpack.c.b16 %v4338, %v4337
        %v4381 = vpack.c.b16 %v4340, %v4339
        %v4382 = vpack.c.b16 %v4342, %v4341
        %v4383 = vpack.c.b16 %v4344, %v4343
        %v4384 = vpack.c.b16 %v4346, %v4345
        %v4385 = vpack.c.b16 %v4348, %v4347
        %v4386 = vpack.c.b16 %v4350, %v4349
        %vm4423 = vcmask 523264
        %v4425 = vsel %vm4423, %v4067, 0
        %v4428 = vsel %vm4423, %v4072, 0
        %v4431 = vsel %vm4423, %v4077, 0
        %v4434 = vsel %vm4423, %v4082, 0
        %v4437 = vsel %vm4423, %v4087, 0
        %v4440 = vsel %vm4423, %v4092, 0
        %v4443 = vsel %vm4423, %v4097, 0
        %v4446 = vsel %vm4423, %v4102, 0
        %v4449 = vsel %vm4423, %v4107, 0
        %v4452 = vsel %vm4423, %v4112, 0
        %v4455 = vsel %vm4423, %v4117, 0
        %v4458 = vsel %vm4423, %v4122, 0
        %v4461 = vsel %vm4423, %v4127, 0
        %v4464 = vsel %vm4423, %v4132, 0
        %v4467 = vsel %vm4423, %v4137, 0
        %v4470 = vsel %vm4423, %v4142, 0
        %4472 = vmatprep.subr.bf16.mxu0 0
        %4473 = vmatpush1.bf16.msra.mxu0 %v4358
        %4474 = vmatprep.subr.bf16.mxu0 0
        %4475 = vmatpush1.bf16.msra.mxu0 %v4357
        %4476 = vmatprep.subr.bf16.mxu0 0
        %4477 = vmatpush1.bf16.msra.mxu0 %v4356
        %4478 = vmatprep.subr.bf16.mxu0 0
        %4479 = vmatpush1.bf16.msra.mxu0 %v4355
        %4480 = vmatprep.subr.bf16.mxu0 0
        %4481 = vmatpush1.bf16.msra.mxu0 %v4354
        %4482 = vmatprep.subr.bf16.mxu0 0
        %4483 = vmatpush1.bf16.msra.mxu0 %v4353
        %4484 = vmatprep.subr.bf16.mxu0 0
        %4485 = vmatpush1.bf16.msra.mxu0 %v4352
        %4486 = vmatprep.subr.bf16.mxu0 0
        %4487 = vmatpush1.bf16.msra.mxu0 %v4351
        %4488 = vmatprep.subr.bf16.mxu0 0
        %4489 = vmatpush2.bf16.msra.mxu0 %v4366
        %4490 = vmatprep.subr.bf16.mxu0 0
        %4491 = vmatpush2.bf16.msra.mxu0 %v4365
        %4492 = vmatprep.subr.bf16.mxu0 0
        %4493 = vmatpush2.bf16.msra.mxu0 %v4364
        %4494 = vmatprep.subr.bf16.mxu0 0
        %4495 = vmatpush2.bf16.msra.mxu0 %v4363
        %4496 = vmatprep.subr.bf16.mxu0 0
        %4497 = vmatpush2.bf16.msra.mxu0 %v4362
        %4498 = vmatprep.subr.bf16.mxu0 0
        %4499 = vmatpush2.bf16.msra.mxu0 %v4361
        %4500 = vmatprep.subr.bf16.mxu0 0
        %4501 = vmatpush2.bf16.msra.mxu0 %v4360
        %4502 = vmatprep.subr.bf16.mxu0 0
        %4503 = vmatpush2.bf16.msra.mxu0 %v4359
        %4504 = vmatprep.mubr.bf16.mxu0 %v4064
        %4505 = vmatmul.mubr.bf16.gmra.mxu0 %v4063
        %v4506 = vpop.f32.mrf.mxu0
        %v4507 = vadd.f32 0.0, %v4506
        %v4508 = vpop.f32.mrf.mxu0
        %v4509 = vpop.f32.mrf.mxu0
        %v4510 = vadd.f32 0.0, %v4509
        %v4511 = vpop.f32.mrf.mxu0
        %4512 = vmatprep.mubr.bf16.mxu0 %v4069
        %4513 = vmatmul.mubr.bf16.gmra.mxu0 %v4068
        %v4514 = vpop.f32.mrf.mxu0
        %v4515 = vadd.f32 0.0, %v4514
        %v4516 = vpop.f32.mrf.mxu0
        %v4517 = vpop.f32.mrf.mxu0
        %v4518 = vadd.f32 0.0, %v4517
        %v4519 = vpop.f32.mrf.mxu0
        %4520 = vmatprep.mubr.bf16.mxu0 %v4074
        %4521 = vmatmul.mubr.bf16.gmra.mxu0 %v4073
        %v4522 = vpop.f32.mrf.mxu0
        %v4523 = vadd.f32 0.0, %v4522
        %v4524 = vpop.f32.mrf.mxu0
        %v4525 = vpop.f32.mrf.mxu0
        %v4526 = vadd.f32 0.0, %v4525
        %v4527 = vpop.f32.mrf.mxu0
        %4528 = vmatprep.mubr.bf16.mxu0 %v4079
        %4529 = vmatmul.mubr.bf16.gmra.mxu0 %v4078
        %v4530 = vpop.f32.mrf.mxu0
        %v4531 = vadd.f32 0.0, %v4530
        %v4532 = vpop.f32.mrf.mxu0
        %v4533 = vpop.f32.mrf.mxu0
        %v4534 = vadd.f32 0.0, %v4533
        %v4535 = vpop.f32.mrf.mxu0
        %4536 = vmatprep.mubr.bf16.mxu0 %v4084
        %4537 = vmatmul.mubr.bf16.gmra.mxu0 %v4083
        %v4538 = vpop.f32.mrf.mxu0
        %v4539 = vadd.f32 0.0, %v4538
        %v4540 = vpop.f32.mrf.mxu0
        %v4541 = vpop.f32.mrf.mxu0
        %v4542 = vadd.f32 0.0, %v4541
        %v4543 = vpop.f32.mrf.mxu0
        %4544 = vmatprep.mubr.bf16.mxu0 %v4089
        %4545 = vmatmul.mubr.bf16.gmra.mxu0 %v4088
        %v4546 = vpop.f32.mrf.mxu0
        %v4547 = vadd.f32 0.0, %v4546
        %v4548 = vpop.f32.mrf.mxu0
        %v4549 = vpop.f32.mrf.mxu0
        %v4550 = vadd.f32 0.0, %v4549
        %v4551 = vpop.f32.mrf.mxu0
        %4552 = vmatprep.mubr.bf16.mxu0 %v4094
        %4553 = vmatmul.mubr.bf16.gmra.mxu0 %v4093
        %v4554 = vpop.f32.mrf.mxu0
        %v4555 = vadd.f32 0.0, %v4554
        %v4556 = vpop.f32.mrf.mxu0
        %v4557 = vpop.f32.mrf.mxu0
        %v4558 = vadd.f32 0.0, %v4557
        %v4559 = vpop.f32.mrf.mxu0
        %4560 = vmatprep.mubr.bf16.mxu0 %v4099
        %4561 = vmatmul.mubr.bf16.gmra.mxu0 %v4098
        %v4562 = vpop.f32.mrf.mxu0
        %v4563 = vadd.f32 0.0, %v4562
        %v4564 = vpop.f32.mrf.mxu0
        %v4565 = vpop.f32.mrf.mxu0
        %v4566 = vadd.f32 0.0, %v4565
        %v4567 = vpop.f32.mrf.mxu0
        %4568 = vmatprep.mubr.bf16.mxu0 %v4104
        %4569 = vmatmul.mubr.bf16.gmra.mxu0 %v4103
        %v4570 = vpop.f32.mrf.mxu0
        %v4571 = vadd.f32 0.0, %v4570
        %v4572 = vpop.f32.mrf.mxu0
        %v4573 = vpop.f32.mrf.mxu0
        %v4574 = vadd.f32 0.0, %v4573
        %v4575 = vpop.f32.mrf.mxu0
        %4576 = vmatprep.mubr.bf16.mxu0 %v4109
        %4577 = vmatmul.mubr.bf16.gmra.mxu0 %v4108
        %v4578 = vpop.f32.mrf.mxu0
        %v4579 = vadd.f32 0.0, %v4578
        %v4580 = vpop.f32.mrf.mxu0
        %v4581 = vpop.f32.mrf.mxu0
        %v4582 = vadd.f32 0.0, %v4581
        %v4583 = vpop.f32.mrf.mxu0
        %4584 = vmatprep.mubr.bf16.mxu0 %v4114
        %4585 = vmatmul.mubr.bf16.gmra.mxu0 %v4113
        %v4586 = vpop.f32.mrf.mxu0
        %v4587 = vadd.f32 0.0, %v4586
        %v4588 = vpop.f32.mrf.mxu0
        %v4589 = vpop.f32.mrf.mxu0
        %v4590 = vadd.f32 0.0, %v4589
        %v4591 = vpop.f32.mrf.mxu0
        %4592 = vmatprep.mubr.bf16.mxu0 %v4119
        %4593 = vmatmul.mubr.bf16.gmra.mxu0 %v4118
        %v4594 = vpop.f32.mrf.mxu0
        %v4595 = vadd.f32 0.0, %v4594
        %v4596 = vpop.f32.mrf.mxu0
        %v4597 = vpop.f32.mrf.mxu0
        %v4598 = vadd.f32 0.0, %v4597
        %v4599 = vpop.f32.mrf.mxu0
        %4600 = vmatprep.mubr.bf16.mxu0 %v4124
        %4601 = vmatmul.mubr.bf16.gmra.mxu0 %v4123
        %v4602 = vpop.f32.mrf.mxu0
        %v4603 = vadd.f32 0.0, %v4602
        %v4604 = vpop.f32.mrf.mxu0
        %v4605 = vpop.f32.mrf.mxu0
        %v4606 = vadd.f32 0.0, %v4605
        %v4607 = vpop.f32.mrf.mxu0
        %4608 = vmatprep.mubr.bf16.mxu0 %v4129
        %4609 = vmatmul.mubr.bf16.gmra.mxu0 %v4128
        %v4610 = vpop.f32.mrf.mxu0
        %v4611 = vadd.f32 0.0, %v4610
        %v4612 = vpop.f32.mrf.mxu0
        %v4613 = vpop.f32.mrf.mxu0
        %v4614 = vadd.f32 0.0, %v4613
        %v4615 = vpop.f32.mrf.mxu0
        %4616 = vmatprep.mubr.bf16.mxu0 %v4134
        %4617 = vmatmul.mubr.bf16.gmra.mxu0 %v4133
        %v4618 = vpop.f32.mrf.mxu0
        %v4619 = vadd.f32 0.0, %v4618
        %v4620 = vpop.f32.mrf.mxu0
        %v4621 = vpop.f32.mrf.mxu0
        %v4622 = vadd.f32 0.0, %v4621
        %v4623 = vpop.f32.mrf.mxu0
        %4624 = vmatprep.mubr.bf16.mxu0 %v4139
        %4625 = vmatmul.mubr.bf16.gmra.mxu0 %v4138
        %v4626 = vpop.f32.mrf.mxu0
        %v4627 = vadd.f32 0.0, %v4626
        %v4628 = vpop.f32.mrf.mxu0
        %v4629 = vpop.f32.mrf.mxu0
        %v4630 = vadd.f32 0.0, %v4629
        %v4631 = vpop.f32.mrf.mxu0
        %4632 = vdwg.mxu0
        %4633 = vmatprep.subr.bf16.mxu0 0
        %4634 = vmatpush1.bf16.msra.mxu0 %v4374
        %4635 = vmatprep.subr.bf16.mxu0 0
        %4636 = vmatpush1.bf16.msra.mxu0 %v4373
        %4637 = vmatprep.subr.bf16.mxu0 0
        %4638 = vmatpush1.bf16.msra.mxu0 %v4372
        %4639 = vmatprep.subr.bf16.mxu0 0
        %4640 = vmatpush1.bf16.msra.mxu0 %v4371
        %4641 = vmatprep.subr.bf16.mxu0 0
        %4642 = vmatpush1.bf16.msra.mxu0 %v4370
        %4643 = vmatprep.subr.bf16.mxu0 0
        %4644 = vmatpush1.bf16.msra.mxu0 %v4369
        %4645 = vmatprep.subr.bf16.mxu0 0
        %4646 = vmatpush1.bf16.msra.mxu0 %v4368
        %4647 = vmatprep.subr.bf16.mxu0 0
        %4648 = vmatpush1.bf16.msra.mxu0 %v4367
        %4649 = vmatprep.subr.bf16.mxu0 0
        %4650 = vmatpush2.bf16.msra.mxu0 %v4382
        %4651 = vmatprep.subr.bf16.mxu0 0
        %4652 = vmatpush2.bf16.msra.mxu0 %v4381
        %4653 = vmatprep.subr.bf16.mxu0 0
        %4654 = vmatpush2.bf16.msra.mxu0 %v4380
        %4655 = vmatprep.subr.bf16.mxu0 0
        %4656 = vmatpush2.bf16.msra.mxu0 %v4379
        %4657 = vmatprep.subr.bf16.mxu0 0
        %4658 = vmatpush2.bf16.msra.mxu0 %v4378
        %4659 = vmatprep.subr.bf16.mxu0 0
        %4660 = vmatpush2.bf16.msra.mxu0 %v4377
        %4661 = vmatprep.subr.bf16.mxu0 0
        %4662 = vmatpush2.bf16.msra.mxu0 %v4376
        %4663 = vmatprep.subr.bf16.mxu0 0
        %4664 = vmatpush2.bf16.msra.mxu0 %v4375
        %4665 = vmatprep.mubr.bf16.mxu0 %v4066
        %4666 = vmatmul.mubr.bf16.gmra.mxu0 %v4065
        %v4667 = vpop.f32.mrf.mxu0
        %v4668 = vadd.f32 %v4507, %v4667
        %v4669 = vpop.f32.mrf.mxu0
        %v4670 = vpop.f32.mrf.mxu0
        %v4671 = vadd.f32 %v4510, %v4670
        %v4672 = vpop.f32.mrf.mxu0
        %4673 = vmatprep.mubr.bf16.mxu0 %v4071
        %4674 = vmatmul.mubr.bf16.gmra.mxu0 %v4070
        %v4675 = vpop.f32.mrf.mxu0
        %v4676 = vadd.f32 %v4515, %v4675
        %v4677 = vpop.f32.mrf.mxu0
        %v4678 = vpop.f32.mrf.mxu0
        %v4679 = vadd.f32 %v4518, %v4678
        %v4680 = vpop.f32.mrf.mxu0
        %4681 = vmatprep.mubr.bf16.mxu0 %v4076
        %4682 = vmatmul.mubr.bf16.gmra.mxu0 %v4075
        %v4683 = vpop.f32.mrf.mxu0
        %v4684 = vadd.f32 %v4523, %v4683
        %v4685 = vpop.f32.mrf.mxu0
        %v4686 = vpop.f32.mrf.mxu0
        %v4687 = vadd.f32 %v4526, %v4686
        %v4688 = vpop.f32.mrf.mxu0
        %4689 = vmatprep.mubr.bf16.mxu0 %v4081
        %4690 = vmatmul.mubr.bf16.gmra.mxu0 %v4080
        %v4691 = vpop.f32.mrf.mxu0
        %v4692 = vadd.f32 %v4531, %v4691
        %v4693 = vpop.f32.mrf.mxu0
        %v4694 = vpop.f32.mrf.mxu0
        %v4695 = vadd.f32 %v4534, %v4694
        %v4696 = vpop.f32.mrf.mxu0
        %4697 = vmatprep.mubr.bf16.mxu0 %v4086
        %4698 = vmatmul.mubr.bf16.gmra.mxu0 %v4085
        %v4699 = vpop.f32.mrf.mxu0
        %v4700 = vadd.f32 %v4539, %v4699
        %v4701 = vpop.f32.mrf.mxu0
        %v4702 = vpop.f32.mrf.mxu0
        %v4703 = vadd.f32 %v4542, %v4702
        %v4704 = vpop.f32.mrf.mxu0
        %4705 = vmatprep.mubr.bf16.mxu0 %v4091
        %4706 = vmatmul.mubr.bf16.gmra.mxu0 %v4090
        %v4707 = vpop.f32.mrf.mxu0
        %v4708 = vadd.f32 %v4547, %v4707
        %v4709 = vpop.f32.mrf.mxu0
        %v4710 = vpop.f32.mrf.mxu0
        %v4711 = vadd.f32 %v4550, %v4710
        %v4712 = vpop.f32.mrf.mxu0
        %4713 = vmatprep.mubr.bf16.mxu0 %v4096
        %4714 = vmatmul.mubr.bf16.gmra.mxu0 %v4095
        %v4715 = vpop.f32.mrf.mxu0
        %v4716 = vadd.f32 %v4555, %v4715
        %v4717 = vpop.f32.mrf.mxu0
        %v4718 = vpop.f32.mrf.mxu0
        %v4719 = vadd.f32 %v4558, %v4718
        %v4720 = vpop.f32.mrf.mxu0
        %4721 = vmatprep.mubr.bf16.mxu0 %v4101
        %4722 = vmatmul.mubr.bf16.gmra.mxu0 %v4100
        %v4723 = vpop.f32.mrf.mxu0
        %v4724 = vadd.f32 %v4563, %v4723
        %v4725 = vpop.f32.mrf.mxu0
        %v4726 = vpop.f32.mrf.mxu0
        %v4727 = vadd.f32 %v4566, %v4726
        %v4728 = vpop.f32.mrf.mxu0
        %4729 = vmatprep.mubr.bf16.mxu0 %v4106
        %4730 = vmatmul.mubr.bf16.gmra.mxu0 %v4105
        %v4731 = vpop.f32.mrf.mxu0
        %v4732 = vadd.f32 %v4571, %v4731
        %v4733 = vpop.f32.mrf.mxu0
        %v4734 = vpop.f32.mrf.mxu0
        %v4735 = vadd.f32 %v4574, %v4734
        %v4736 = vpop.f32.mrf.mxu0
        %4737 = vmatprep.mubr.bf16.mxu0 %v4111
        %4738 = vmatmul.mubr.bf16.gmra.mxu0 %v4110
        %v4739 = vpop.f32.mrf.mxu0
        %v4740 = vadd.f32 %v4579, %v4739
        %v4741 = vpop.f32.mrf.mxu0
        %v4742 = vpop.f32.mrf.mxu0
        %v4743 = vadd.f32 %v4582, %v4742
        %v4744 = vpop.f32.mrf.mxu0
        %4745 = vmatprep.mubr.bf16.mxu0 %v4116
        %4746 = vmatmul.mubr.bf16.gmra.mxu0 %v4115
        %v4747 = vpop.f32.mrf.mxu0
        %v4748 = vadd.f32 %v4587, %v4747
        %v4749 = vpop.f32.mrf.mxu0
        %v4750 = vpop.f32.mrf.mxu0
        %v4751 = vadd.f32 %v4590, %v4750
        %v4752 = vpop.f32.mrf.mxu0
        %4753 = vmatprep.mubr.bf16.mxu0 %v4121
        %4754 = vmatmul.mubr.bf16.gmra.mxu0 %v4120
        %v4755 = vpop.f32.mrf.mxu0
        %v4756 = vadd.f32 %v4595, %v4755
        %v4757 = vpop.f32.mrf.mxu0
        %v4758 = vpop.f32.mrf.mxu0
        %v4759 = vadd.f32 %v4598, %v4758
        %v4760 = vpop.f32.mrf.mxu0
        %4761 = vmatprep.mubr.bf16.mxu0 %v4126
        %4762 = vmatmul.mubr.bf16.gmra.mxu0 %v4125
        %v4763 = vpop.f32.mrf.mxu0
        %v4764 = vadd.f32 %v4603, %v4763
        %v4765 = vpop.f32.mrf.mxu0
        %v4766 = vpop.f32.mrf.mxu0
        %v4767 = vadd.f32 %v4606, %v4766
        %v4768 = vpop.f32.mrf.mxu0
        %4769 = vmatprep.mubr.bf16.mxu0 %v4131
        %4770 = vmatmul.mubr.bf16.gmra.mxu0 %v4130
        %v4771 = vpop.f32.mrf.mxu0
        %v4772 = vadd.f32 %v4611, %v4771
        %v4773 = vpop.f32.mrf.mxu0
        %v4774 = vpop.f32.mrf.mxu0
        %v4775 = vadd.f32 %v4614, %v4774
        %v4776 = vpop.f32.mrf.mxu0
        %4777 = vmatprep.mubr.bf16.mxu0 %v4136
        %4778 = vmatmul.mubr.bf16.gmra.mxu0 %v4135
        %v4779 = vpop.f32.mrf.mxu0
        %v4780 = vadd.f32 %v4619, %v4779
        %v4781 = vpop.f32.mrf.mxu0
        %v4782 = vpop.f32.mrf.mxu0
        %v4783 = vadd.f32 %v4622, %v4782
        %v4784 = vpop.f32.mrf.mxu0
        %4785 = vmatprep.mubr.bf16.mxu0 %v4141
        %4786 = vmatmul.mubr.bf16.gmra.mxu0 %v4140
        %v4787 = vpop.f32.mrf.mxu0
        %v4788 = vadd.f32 %v4627, %v4787
        %v4789 = vpop.f32.mrf.mxu0
        %v4790 = vpop.f32.mrf.mxu0
        %v4791 = vadd.f32 %v4630, %v4790
        %v4792 = vpop.f32.mrf.mxu0
        %4793 = vdwg.mxu0
        %4794 = vmatprep.subr.bf16.mxu0 0
        %4795 = vmatpush1.bf16.msra.mxu0 0
        %4796 = vmatprep.subr.bf16.mxu0 0
        %4797 = vmatpush1.bf16.msra.mxu0 0
        %4798 = vmatprep.subr.bf16.mxu0 0
        %4799 = vmatpush1.bf16.msra.mxu0 0
        %4800 = vmatprep.subr.bf16.mxu0 0
        %4801 = vmatpush1.bf16.msra.mxu0 0
        %4802 = vmatprep.subr.bf16.mxu0 0
        %4803 = vmatpush1.bf16.msra.mxu0 %v4386
        %4804 = vmatprep.subr.bf16.mxu0 0
        %4805 = vmatpush1.bf16.msra.mxu0 %v4385
        %4806 = vmatprep.subr.bf16.mxu0 0
        %4807 = vmatpush1.bf16.msra.mxu0 %v4384
        %4808 = vmatprep.subr.bf16.mxu0 0
        %4809 = vmatpush1.bf16.msra.mxu0 %v4383
        %4810 = vmatprep.subr.bf16.mxu0 0
        %4811 = vmatpush2.bf16.msra.mxu0 0
        %4812 = vmatprep.subr.bf16.mxu0 0
        %4813 = vmatpush2.bf16.msra.mxu0 0
        %4814 = vmatprep.subr.bf16.mxu0 0
        %4815 = vmatpush2.bf16.msra.mxu0 0
        %4816 = vmatprep.subr.bf16.mxu0 0
        %4817 = vmatpush2.bf16.msra.mxu0 0
        %4818 = vmatprep.subr.bf16.mxu0 0
        %4819 = vmatpush2.bf16.msra.mxu0 0
        %4820 = vmatprep.subr.bf16.mxu0 0
        %4821 = vmatpush2.bf16.msra.mxu0 0
        %4822 = vmatprep.subr.bf16.mxu0 0
        %4823 = vmatpush2.bf16.msra.mxu0 0
        %4824 = vmatprep.subr.bf16.mxu0 0
        %4825 = vmatpush2.bf16.msra.mxu0 0
        %4826 = vmatprep.mubr.bf16.mxu0 0
        %4827 = vmatmul.mubr.bf16.gmra.mxu0 %v4425
        %v4828 = vpop.f32.mrf.mxu0
        %v4829 = vadd.f32 %v4668, %v4828
        %v4830 = vpop.f32.mrf.mxu0
        %v4831 = vpop.f32.mrf.mxu0
        %v4832 = vadd.f32 %v4671, %v4831
        %v4833 = vpop.f32.mrf.mxu0
        %4834 = vmatprep.mubr.bf16.mxu0 0
        %4835 = vmatmul.mubr.bf16.gmra.mxu0 %v4428
        %v4836 = vpop.f32.mrf.mxu0
        %v4837 = vadd.f32 %v4676, %v4836
        %v4838 = vpop.f32.mrf.mxu0
        %v4839 = vpop.f32.mrf.mxu0
        %v4840 = vadd.f32 %v4679, %v4839
        %v4841 = vpop.f32.mrf.mxu0
        %4842 = vmatprep.mubr.bf16.mxu0 0
        %4843 = vmatmul.mubr.bf16.gmra.mxu0 %v4431
        %v4844 = vpop.f32.mrf.mxu0
        %v4845 = vadd.f32 %v4684, %v4844
        %v4846 = vpop.f32.mrf.mxu0
        %v4847 = vpop.f32.mrf.mxu0
        %v4848 = vadd.f32 %v4687, %v4847
        %v4849 = vpop.f32.mrf.mxu0
        %4850 = vmatprep.mubr.bf16.mxu0 0
        %4851 = vmatmul.mubr.bf16.gmra.mxu0 %v4434
        %v4852 = vpop.f32.mrf.mxu0
        %v4853 = vadd.f32 %v4692, %v4852
        %v4854 = vpop.f32.mrf.mxu0
        %v4855 = vpop.f32.mrf.mxu0
        %v4856 = vadd.f32 %v4695, %v4855
        %v4857 = vpop.f32.mrf.mxu0
        %4858 = vmatprep.mubr.bf16.mxu0 0
        %4859 = vmatmul.mubr.bf16.gmra.mxu0 %v4437
        %v4860 = vpop.f32.mrf.mxu0
        %v4861 = vadd.f32 %v4700, %v4860
        %v4862 = vpop.f32.mrf.mxu0
        %v4863 = vpop.f32.mrf.mxu0
        %v4864 = vadd.f32 %v4703, %v4863
        %v4865 = vpop.f32.mrf.mxu0
        %4866 = vmatprep.mubr.bf16.mxu0 0
        %4867 = vmatmul.mubr.bf16.gmra.mxu0 %v4440
        %v4868 = vpop.f32.mrf.mxu0
        %v4869 = vadd.f32 %v4708, %v4868
        %v4870 = vpop.f32.mrf.mxu0
        %v4871 = vpop.f32.mrf.mxu0
        %v4872 = vadd.f32 %v4711, %v4871
        %v4873 = vpop.f32.mrf.mxu0
        %4874 = vmatprep.mubr.bf16.mxu0 0
        %4875 = vmatmul.mubr.bf16.gmra.mxu0 %v4443
        %v4876 = vpop.f32.mrf.mxu0
        %v4877 = vadd.f32 %v4716, %v4876
        %v4878 = vpop.f32.mrf.mxu0
        %v4879 = vpop.f32.mrf.mxu0
        %v4880 = vadd.f32 %v4719, %v4879
        %v4881 = vpop.f32.mrf.mxu0
        %4882 = vmatprep.mubr.bf16.mxu0 0
        %4883 = vmatmul.mubr.bf16.gmra.mxu0 %v4446
        %v4884 = vpop.f32.mrf.mxu0
        %v4885 = vadd.f32 %v4724, %v4884
        %v4886 = vpop.f32.mrf.mxu0
        %v4887 = vpop.f32.mrf.mxu0
        %v4888 = vadd.f32 %v4727, %v4887
        %v4889 = vpop.f32.mrf.mxu0
        %4890 = vmatprep.mubr.bf16.mxu0 0
        %4891 = vmatmul.mubr.bf16.gmra.mxu0 %v4449
        %v4892 = vpop.f32.mrf.mxu0
        %v4893 = vadd.f32 %v4732, %v4892
        %v4894 = vpop.f32.mrf.mxu0
        %v4895 = vpop.f32.mrf.mxu0
        %v4896 = vadd.f32 %v4735, %v4895
        %v4897 = vpop.f32.mrf.mxu0
        %4898 = vmatprep.mubr.bf16.mxu0 0
        %4899 = vmatmul.mubr.bf16.gmra.mxu0 %v4452
        %v4900 = vpop.f32.mrf.mxu0
        %v4901 = vadd.f32 %v4740, %v4900
        %v4902 = vpop.f32.mrf.mxu0
        %v4903 = vpop.f32.mrf.mxu0
        %v4904 = vadd.f32 %v4743, %v4903
        %v4905 = vpop.f32.mrf.mxu0
        %4906 = vmatprep.mubr.bf16.mxu0 0
        %4907 = vmatmul.mubr.bf16.gmra.mxu0 %v4455
        %v4908 = vpop.f32.mrf.mxu0
        %v4909 = vadd.f32 %v4748, %v4908
        %v4910 = vpop.f32.mrf.mxu0
        %v4911 = vpop.f32.mrf.mxu0
        %v4912 = vadd.f32 %v4751, %v4911
        %v4913 = vpop.f32.mrf.mxu0
        %4914 = vmatprep.mubr.bf16.mxu0 0
        %4915 = vmatmul.mubr.bf16.gmra.mxu0 %v4458
        %v4916 = vpop.f32.mrf.mxu0
        %v4917 = vadd.f32 %v4756, %v4916
        %v4918 = vpop.f32.mrf.mxu0
        %v4919 = vpop.f32.mrf.mxu0
        %v4920 = vadd.f32 %v4759, %v4919
        %v4921 = vpop.f32.mrf.mxu0
        %4922 = vmatprep.mubr.bf16.mxu0 0
        %4923 = vmatmul.mubr.bf16.gmra.mxu0 %v4461
        %v4924 = vpop.f32.mrf.mxu0
        %v4925 = vadd.f32 %v4764, %v4924
        %v4926 = vpop.f32.mrf.mxu0
        %v4927 = vpop.f32.mrf.mxu0
        %v4928 = vadd.f32 %v4767, %v4927
        %v4929 = vpop.f32.mrf.mxu0
        %4930 = vmatprep.mubr.bf16.mxu0 0
        %4931 = vmatmul.mubr.bf16.gmra.mxu0 %v4464
        %v4932 = vpop.f32.mrf.mxu0
        %v4933 = vadd.f32 %v4772, %v4932
        %v4934 = vpop.f32.mrf.mxu0
        %v4935 = vpop.f32.mrf.mxu0
        %v4936 = vadd.f32 %v4775, %v4935
        %v4937 = vpop.f32.mrf.mxu0
        %4938 = vmatprep.mubr.bf16.mxu0 0
        %4939 = vmatmul.mubr.bf16.gmra.mxu0 %v4467
        %v4940 = vpop.f32.mrf.mxu0
        %v4941 = vadd.f32 %v4780, %v4940
        %v4942 = vpop.f32.mrf.mxu0
        %v4943 = vpop.f32.mrf.mxu0
        %v4944 = vadd.f32 %v4783, %v4943
        %v4945 = vpop.f32.mrf.mxu0
        %4946 = vmatprep.mubr.bf16.mxu0 0
        %4947 = vmatmul.mubr.bf16.gmra.mxu0 %v4470
        %v4948 = vpop.f32.mrf.mxu0
        %v4949 = vadd.f32 %v4788, %v4948
        %v4950 = vpop.f32.mrf.mxu0
        %v4951 = vpop.f32.mrf.mxu0
        %v4952 = vadd.f32 %v4791, %v4951
        %v4953 = vpop.f32.mrf.mxu0
        %4954 = vdwg.mxu0
        %vm4955 = vcmp.ge.f32.partialorder %v4829, 0.0
        %vm4956 = vcmp.ge.f32.partialorder %v4832, 0.0
        %vm4957 = vcmp.ge.f32.partialorder %v4837, 0.0
        %vm4958 = vcmp.ge.f32.partialorder %v4840, 0.0
        %vm4959 = vcmp.ge.f32.partialorder %v4845, 0.0
        %vm4960 = vcmp.ge.f32.partialorder %v4848, 0.0
        %vm4961 = vcmp.ge.f32.partialorder %v4853, 0.0
        %vm4962 = vcmp.ge.f32.partialorder %v4856, 0.0
        %vm4963 = vcmp.ge.f32.partialorder %v4861, 0.0
        %vm4964 = vcmp.ge.f32.partialorder %v4864, 0.0
        %vm4965 = vcmp.ge.f32.partialorder %v4869, 0.0
        %vm4966 = vcmp.ge.f32.partialorder %v4872, 0.0
        %vm4967 = vcmp.ge.f32.partialorder %v4877, 0.0
        %vm4968 = vcmp.ge.f32.partialorder %v4880, 0.0
        %vm4969 = vcmp.ge.f32.partialorder %v4885, 0.0
        %vm4970 = vcmp.ge.f32.partialorder %v4888, 0.0
        %vm4971 = vcmp.ge.f32.partialorder %v4893, 0.0
        %vm4972 = vcmp.ge.f32.partialorder %v4896, 0.0
        %vm4973 = vcmp.ge.f32.partialorder %v4901, 0.0
        %vm4974 = vcmp.ge.f32.partialorder %v4904, 0.0
        %vm4975 = vcmp.ge.f32.partialorder %v4909, 0.0
        %vm4976 = vcmp.ge.f32.partialorder %v4912, 0.0
        %vm4977 = vcmp.ge.f32.partialorder %v4917, 0.0
        %vm4978 = vcmp.ge.f32.partialorder %v4920, 0.0
        %vm4979 = vcmp.ge.f32.partialorder %v4925, 0.0
        %vm4980 = vcmp.ge.f32.partialorder %v4928, 0.0
        %vm4981 = vcmp.ge.f32.partialorder %v4933, 0.0
        %vm4982 = vcmp.ge.f32.partialorder %v4936, 0.0
        %vm4983 = vcmp.ge.f32.partialorder %v4941, 0.0
        %vm4984 = vcmp.ge.f32.partialorder %v4944, 0.0
        %vm4985 = vcmp.ge.f32.partialorder %v4949, 0.0
        %vm4986 = vcmp.ge.f32.partialorder %v4952, 0.0
        %v4987 = vmul.f32 %v4829, 0.2
        %v4988 = vmul.f32 %v4832, 0.2
        %v4989 = vmul.f32 %v4837, 0.2
        %v4990 = vmul.f32 %v4840, 0.2
        %v4991 = vmul.f32 %v4845, 0.2
        %v4992 = vmul.f32 %v4848, 0.2
        %v4993 = vmul.f32 %v4853, 0.2
        %v4994 = vmul.f32 %v4856, 0.2
        %v4995 = vmul.f32 %v4861, 0.2
        %v4996 = vmul.f32 %v4864, 0.2
        %v4997 = vmul.f32 %v4869, 0.2
        %v4998 = vmul.f32 %v4872, 0.2
        %v4999 = vmul.f32 %v4877, 0.2
        %v5000 = vmul.f32 %v4880, 0.2
        %v5001 = vmul.f32 %v4885, 0.2
        %v5002 = vmul.f32 %v4888, 0.2
        %v5003 = vmul.f32 %v4893, 0.2
        %v5004 = vmul.f32 %v4896, 0.2
        %v5005 = vmul.f32 %v4901, 0.2
        %v5006 = vmul.f32 %v4904, 0.2
        %v5007 = vmul.f32 %v4909, 0.2
        %v5008 = vmul.f32 %v4912, 0.2
        %v5009 = vmul.f32 %v4917, 0.2
        %v5010 = vmul.f32 %v4920, 0.2
        %v5011 = vmul.f32 %v4925, 0.2
        %v5012 = vmul.f32 %v4928, 0.2
        %v5013 = vmul.f32 %v4933, 0.2
        %v5014 = vmul.f32 %v4936, 0.2
        %v5015 = vmul.f32 %v4941, 0.2
        %v5016 = vmul.f32 %v4944, 0.2
        %v5017 = vmul.f32 %v4949, 0.2
        %v5018 = vmul.f32 %v4952, 0.2
        %v5019 = vsel %vm4955, %v4829, %v4987
        %v5020 = vsel %vm4956, %v4832, %v4988
        %v5021 = vsel %vm4957, %v4837, %v4989
        %v5022 = vsel %vm4958, %v4840, %v4990
        %v5023 = vsel %vm4959, %v4845, %v4991
        %v5024 = vsel %vm4960, %v4848, %v4992
        %v5025 = vsel %vm4961, %v4853, %v4993
        %v5026 = vsel %vm4962, %v4856, %v4994
        %v5027 = vsel %vm4963, %v4861, %v4995
        %v5028 = vsel %vm4964, %v4864, %v4996
        %v5029 = vsel %vm4965, %v4869, %v4997
        %v5030 = vsel %vm4966, %v4872, %v4998
        %v5031 = vsel %vm4967, %v4877, %v4999
        %v5032 = vsel %vm4968, %v4880, %v5000
        %v5033 = vsel %vm4969, %v4885, %v5001
        %v5034 = vsel %vm4970, %v4888, %v5002
        %v5035 = vsel %vm4971, %v4893, %v5003
        %v5036 = vsel %vm4972, %v4896, %v5004
        %v5037 = vsel %vm4973, %v4901, %v5005
        %v5038 = vsel %vm4974, %v4904, %v5006
        %v5039 = vsel %vm4975, %v4909, %v5007
        %v5040 = vsel %vm4976, %v4912, %v5008
        %v5041 = vsel %vm4977, %v4917, %v5009
        %v5042 = vsel %vm4978, %v4920, %v5010
        %v5043 = vsel %vm4979, %v4925, %v5011
        %v5044 = vsel %vm4980, %v4928, %v5012
        %v5045 = vsel %vm4981, %v4933, %v5013
        %v5046 = vsel %vm4982, %v4936, %v5014
        %v5047 = vsel %vm4983, %v4941, %v5015
        %v5048 = vsel %vm4984, %v4944, %v5016
        %v5049 = vsel %vm4985, %v4949, %v5017
        %v5050 = vsel %vm4986, %v4952, %v5018
        %v5051 = vpack.c.bf16 %v5020, %v5019
        %v5052 = vpack.c.bf16 %v5022, %v5021
        %v5053 = vpack.c.bf16 %v5024, %v5023
        %v5054 = vpack.c.bf16 %v5026, %v5025
        %v5055 = vpack.c.bf16 %v5028, %v5027
        %v5056 = vpack.c.bf16 %v5030, %v5029
        %v5057 = vpack.c.bf16 %v5032, %v5031
        %v5058 = vpack.c.bf16 %v5034, %v5033
        %v5059 = vpack.c.bf16 %v5036, %v5035
        %v5060 = vpack.c.bf16 %v5038, %v5037
        %v5061 = vpack.c.bf16 %v5040, %v5039
        %v5062 = vpack.c.bf16 %v5042, %v5041
        %v5063 = vpack.c.bf16 %v5044, %v5043
        %v5064 = vpack.c.bf16 %v5046, %v5045
        %v5065 = vpack.c.bf16 %v5048, %v5047
        %v5066 = vpack.c.bf16 %v5050, %v5049
        %5067 = vst.msk [vmem:[#allocation3] sm:$0xf] %vm256, 0
        %5068 = vst.msk [vmem:[#allocation3 + $0x4] sm:$0xf] %vm256, 0
        %5069 = vst.msk [vmem:[#allocation3 + $0x8] sm:$0x1] %vm259, 0
        %s5070 = scalar_lea.vmem [#allocation3], 204
        %5071 = vst.msk [vmem:[%s5070] sm:$0xf] %vm256, 0
        %5072 = vst.msk [vmem:[%s5070 + $0x4] sm:$0xf] %vm256, 0
        %5073 = vst.msk [vmem:[%s5070 + $0x8] sm:$0x1] %vm259, 0
        %v5074 = vld [vmem:[#allocation3] sm:$0x1]
        %v5075 = vsel %vm267, 0, %v5074
        %5076 = vst [vmem:[#allocation3] sm:$0x1] %v5075
        %v5077 = vld [vmem:[#allocation3 + $0xc] sm:$0x1]
        %v5078 = vsel %vm267, 0, %v5077
        %5079 = vst [vmem:[#allocation3 + $0xc] sm:$0x1] %v5078
        %v5080 = vld [vmem:[#allocation3 + $0x18] sm:$0x1]
        %v5081 = vsel %vm267, 0, %v5080
        %5082 = vst [vmem:[#allocation3 + $0x18] sm:$0x1] %v5081
        %v5083 = vld [vmem:[#allocation3 + $0x24] sm:$0x1]
        %v5084 = vsel %vm267, 0, %v5083
        %5085 = vst [vmem:[#allocation3 + $0x24] sm:$0x1] %v5084
        %v5086 = vld [vmem:[#allocation3 + $0x30] sm:$0x1]
        %v5087 = vsel %vm267, 0, %v5086
        %5088 = vst [vmem:[#allocation3 + $0x30] sm:$0x1] %v5087
        %v5089 = vld [vmem:[#allocation3 + $0x3c] sm:$0x1]
        %v5090 = vsel %vm267, 0, %v5089
        %5091 = vst [vmem:[#allocation3 + $0x3c] sm:$0x1] %v5090
        %v5092 = vld [vmem:[#allocation3 + $0x48] sm:$0x1]
        %v5093 = vsel %vm267, 0, %v5092
        %5094 = vst [vmem:[#allocation3 + $0x48] sm:$0x1] %v5093
        %v5095 = vld [vmem:[#allocation3 + $0x54] sm:$0x1]
        %v5096 = vsel %vm267, 0, %v5095
        %5097 = vst [vmem:[#allocation3 + $0x54] sm:$0x1] %v5096
        %v5098 = vld [vmem:[#allocation3 + $0x60] sm:$0x1]
        %v5099 = vsel %vm267, 0, %v5098
        %5100 = vst [vmem:[#allocation3 + $0x60] sm:$0x1] %v5099
        %v5101 = vld [vmem:[#allocation3 + $0x6c] sm:$0x1]
        %v5102 = vsel %vm267, 0, %v5101
        %5103 = vst [vmem:[#allocation3 + $0x6c] sm:$0x1] %v5102
        %v5104 = vld [vmem:[#allocation3 + $0x78] sm:$0x1]
        %v5105 = vsel %vm267, 0, %v5104
        %5106 = vst [vmem:[#allocation3 + $0x78] sm:$0x1] %v5105
        %v5107 = vld [vmem:[#allocation3 + $0x84] sm:$0x1]
        %v5108 = vsel %vm267, 0, %v5107
        %5109 = vst [vmem:[#allocation3 + $0x84] sm:$0x1] %v5108
        %v5110 = vld [vmem:[#allocation3 + $0x90] sm:$0x1]
        %v5111 = vsel %vm267, 0, %v5110
        %5112 = vst [vmem:[#allocation3 + $0x90] sm:$0x1] %v5111
        %v5113 = vld [vmem:[#allocation3 + $0x9c] sm:$0x1]
        %v5114 = vsel %vm267, 0, %v5113
        %5115 = vst [vmem:[#allocation3 + $0x9c] sm:$0x1] %v5114
        %v5116 = vld [vmem:[#allocation3 + $0xa8] sm:$0x1]
        %v5117 = vsel %vm267, 0, %v5116
        %5118 = vst [vmem:[#allocation3 + $0xa8] sm:$0x1] %v5117
        %v5119 = vld [vmem:[#allocation3 + $0xb4] sm:$0x1]
        %v5120 = vsel %vm267, 0, %v5119
        %5121 = vst [vmem:[#allocation3 + $0xb4] sm:$0x1] %v5120
        %v5122 = vld [vmem:[#allocation3 + $0xc0] sm:$0x1]
        %v5123 = vsel %vm267, 0, %v5122
        %5124 = vst [vmem:[#allocation3 + $0xc0] sm:$0x1] %v5123
        %v5125 = vld [vmem:[#allocation3 + $0xcc] sm:$0x1]
        %v5126 = vsel %vm267, 0, %v5125
        %5127 = vst [vmem:[#allocation3 + $0xcc] sm:$0x1] %v5126
        %v5128 = vld [vmem:[#allocation3 + $0x8] sm:$0x1]
        %v5129 = vsel %vm323, 0, %v5128
        %5130 = vst [vmem:[#allocation3 + $0x8] sm:$0x1] %v5129
        %v5131 = vld [vmem:[#allocation3 + $0x14] sm:$0x1]
        %v5132 = vsel %vm323, 0, %v5131
        %5133 = vst [vmem:[#allocation3 + $0x14] sm:$0x1] %v5132
        %v5134 = vld [vmem:[#allocation3 + $0x20] sm:$0x1]
        %v5135 = vsel %vm323, 0, %v5134
        %5136 = vst [vmem:[#allocation3 + $0x20] sm:$0x1] %v5135
        %v5137 = vld [vmem:[#allocation3 + $0x2c] sm:$0x1]
        %v5138 = vsel %vm323, 0, %v5137
        %5139 = vst [vmem:[#allocation3 + $0x2c] sm:$0x1] %v5138
        %v5140 = vld [vmem:[#allocation3 + $0x38] sm:$0x1]
        %v5141 = vsel %vm323, 0, %v5140
        %5142 = vst [vmem:[#allocation3 + $0x38] sm:$0x1] %v5141
        %v5143 = vld [vmem:[#allocation3 + $0x44] sm:$0x1]
        %v5144 = vsel %vm323, 0, %v5143
        %5145 = vst [vmem:[#allocation3 + $0x44] sm:$0x1] %v5144
        %v5146 = vld [vmem:[#allocation3 + $0x50] sm:$0x1]
        %v5147 = vsel %vm323, 0, %v5146
        %5148 = vst [vmem:[#allocation3 + $0x50] sm:$0x1] %v5147
        %v5149 = vld [vmem:[#allocation3 + $0x5c] sm:$0x1]
        %v5150 = vsel %vm323, 0, %v5149
        %5151 = vst [vmem:[#allocation3 + $0x5c] sm:$0x1] %v5150
        %v5152 = vld [vmem:[#allocation3 + $0x68] sm:$0x1]
        %v5153 = vsel %vm323, 0, %v5152
        %5154 = vst [vmem:[#allocation3 + $0x68] sm:$0x1] %v5153
        %v5155 = vld [vmem:[#allocation3 + $0x74] sm:$0x1]
        %v5156 = vsel %vm323, 0, %v5155
        %5157 = vst [vmem:[#allocation3 + $0x74] sm:$0x1] %v5156
        %v5158 = vld [vmem:[#allocation3 + $0x80] sm:$0x1]
        %v5159 = vsel %vm323, 0, %v5158
        %5160 = vst [vmem:[#allocation3 + $0x80] sm:$0x1] %v5159
        %v5161 = vld [vmem:[#allocation3 + $0x8c] sm:$0x1]
        %v5162 = vsel %vm323, 0, %v5161
        %5163 = vst [vmem:[#allocation3 + $0x8c] sm:$0x1] %v5162
        %v5164 = vld [vmem:[#allocation3 + $0x98] sm:$0x1]
        %v5165 = vsel %vm323, 0, %v5164
        %5166 = vst [vmem:[#allocation3 + $0x98] sm:$0x1] %v5165
        %v5167 = vld [vmem:[#allocation3 + $0xa4] sm:$0x1]
        %v5168 = vsel %vm323, 0, %v5167
        %5169 = vst [vmem:[#allocation3 + $0xa4] sm:$0x1] %v5168
        %v5170 = vld [vmem:[#allocation3 + $0xb0] sm:$0x1]
        %v5171 = vsel %vm323, 0, %v5170
        %5172 = vst [vmem:[#allocation3 + $0xb0] sm:$0x1] %v5171
        %v5173 = vld [vmem:[#allocation3 + $0xbc] sm:$0x1]
        %v5174 = vsel %vm323, 0, %v5173
        %5175 = vst [vmem:[#allocation3 + $0xbc] sm:$0x1] %v5174
        %v5176 = vld [vmem:[#allocation3 + $0xc8] sm:$0x1]
        %v5177 = vsel %vm323, 0, %v5176
        %5178 = vst [vmem:[#allocation3 + $0xc8] sm:$0x1] %v5177
        %v5179 = vld [vmem:[#allocation3 + $0xd4] sm:$0x1]
        %v5180 = vsel %vm323, 0, %v5179
        %5181 = vst [vmem:[#allocation3 + $0xd4] sm:$0x1] %v5180
        %v5198 = vunpack.c.l.b16 %v5051
        %v5199 = vunpack.c.h.b16 %v5051
        %v5200 = vunpack.c.l.b16 %v5052
        %v5201 = vunpack.c.h.b16 %v5052
        %v5202 = vunpack.c.l.b16 %v5053
        %v5203 = vunpack.c.h.b16 %v5053
        %v5204 = vunpack.c.l.b16 %v5054
        %v5205 = vunpack.c.h.b16 %v5054
        %v5206 = vunpack.c.l.b16 %v5055
        %v5207 = vunpack.c.h.b16 %v5055
        %v5208 = vunpack.c.l.b16 %v5056
        %v5209 = vunpack.c.h.b16 %v5056
        %v5210 = vunpack.c.l.b16 %v5057
        %v5211 = vunpack.c.h.b16 %v5057
        %v5212 = vunpack.c.l.b16 %v5058
        %v5213 = vunpack.c.h.b16 %v5058
        %v5214 = vunpack.c.l.b16 %v5059
        %v5215 = vunpack.c.h.b16 %v5059
        %v5216 = vunpack.c.l.b16 %v5060
        %v5217 = vunpack.c.h.b16 %v5060
        %v5218 = vunpack.c.l.b16 %v5061
        %v5219 = vunpack.c.h.b16 %v5061
        %v5220 = vunpack.c.l.b16 %v5062
        %v5221 = vunpack.c.h.b16 %v5062
        %v5222 = vunpack.c.l.b16 %v5063
        %v5223 = vunpack.c.h.b16 %v5063
        %v5224 = vunpack.c.l.b16 %v5064
        %v5225 = vunpack.c.h.b16 %v5064
        %v5226 = vunpack.c.l.b16 %v5065
        %v5227 = vunpack.c.h.b16 %v5065
        %v5228 = vunpack.c.l.b16 %v5066
        %v5229 = vunpack.c.h.b16 %v5066
        %v5230 = vpack.c.b16 %v5198, %v5198
        %v5231 = vpack.c.b16 %v5199, %v5199
        %v5232 = vpack.c.b16 %v5200, %v5200
        %v5233 = vpack.c.b16 %v5201, %v5201
        %v5234 = vpack.c.b16 %v5202, %v5202
        %v5235 = vpack.c.b16 %v5203, %v5203
        %v5236 = vpack.c.b16 %v5204, %v5204
        %v5237 = vpack.c.b16 %v5205, %v5205
        %v5238 = vpack.c.b16 %v5206, %v5206
        %v5239 = vpack.c.b16 %v5207, %v5207
        %v5240 = vpack.c.b16 %v5208, %v5208
        %v5241 = vpack.c.b16 %v5209, %v5209
        %v5242 = vpack.c.b16 %v5210, %v5210
        %v5243 = vpack.c.b16 %v5211, %v5211
        %v5244 = vpack.c.b16 %v5212, %v5212
        %v5245 = vpack.c.b16 %v5213, %v5213
        %v5246 = vpack.c.b16 %v5214, %v5214
        %v5247 = vpack.c.b16 %v5215, %v5215
        %v5248 = vpack.c.b16 %v5216, %v5216
        %v5249 = vpack.c.b16 %v5217, %v5217
        %v5250 = vpack.c.b16 %v5218, %v5218
        %v5251 = vpack.c.b16 %v5219, %v5219
        %v5252 = vpack.c.b16 %v5220, %v5220
        %v5253 = vpack.c.b16 %v5221, %v5221
        %v5254 = vpack.c.b16 %v5222, %v5222
        %v5255 = vpack.c.b16 %v5223, %v5223
        %v5256 = vpack.c.b16 %v5224, %v5224
        %v5257 = vpack.c.b16 %v5225, %v5225
        %v5258 = vpack.c.b16 %v5226, %v5226
        %v5259 = vpack.c.b16 %v5227, %v5227
        %v5260 = vpack.c.b16 %v5228, %v5228
        %v5261 = vpack.c.b16 %v5229, %v5229
        %v5263 = vshrl.u32 %v5230, 16
        %v5265 = vrot.slane %v5263, 7
        %v5266 = vshll.u32 %v5230, 16
        %v5268 = vor.u32 %v5265, %v5266
        %v5269 = vrot.slane %v5265, 4
        %v5271 = vshrl.u32 %v5231, 16
        %v5273 = vrot.slane %v5271, 7
        %v5274 = vshll.u32 %v5231, 16
        %v5276 = vor.u32 %v5273, %v5274
        %v5277 = vsel %vm379, %v5269, %v5276
        %v5278 = vrot.slane %v5273, 4
        %v5280 = vshrl.u32 %v5232, 16
        %v5282 = vrot.slane %v5280, 7
        %v5283 = vshll.u32 %v5232, 16
        %v5285 = vor.u32 %v5282, %v5283
        %v5286 = vrot.slane %v5282, 4
        %v5288 = vshrl.u32 %v5233, 16
        %v5290 = vrot.slane %v5288, 7
        %v5291 = vshll.u32 %v5233, 16
        %v5293 = vor.u32 %v5290, %v5291
        %v5294 = vsel %vm379, %v5286, %v5293
        %v5295 = vrot.slane %v5290, 4
        %v5297 = vshrl.u32 %v5234, 16
        %v5299 = vrot.slane %v5297, 7
        %v5300 = vshll.u32 %v5234, 16
        %v5302 = vor.u32 %v5299, %v5300
        %v5303 = vrot.slane %v5299, 4
        %v5305 = vshrl.u32 %v5235, 16
        %v5307 = vrot.slane %v5305, 7
        %v5308 = vshll.u32 %v5235, 16
        %v5310 = vor.u32 %v5307, %v5308
        %v5311 = vsel %vm379, %v5303, %v5310
        %v5312 = vrot.slane %v5307, 4
        %v5314 = vshrl.u32 %v5236, 16
        %v5316 = vrot.slane %v5314, 7
        %v5317 = vshll.u32 %v5236, 16
        %v5319 = vor.u32 %v5316, %v5317
        %v5320 = vrot.slane %v5316, 4
        %v5322 = vshrl.u32 %v5237, 16
        %v5324 = vrot.slane %v5322, 7
        %v5325 = vshll.u32 %v5237, 16
        %v5327 = vor.u32 %v5324, %v5325
        %v5328 = vsel %vm379, %v5320, %v5327
        %v5329 = vrot.slane %v5324, 4
        %v5331 = vshrl.u32 %v5238, 16
        %v5333 = vrot.slane %v5331, 7
        %v5334 = vshll.u32 %v5238, 16
        %v5336 = vor.u32 %v5333, %v5334
        %v5337 = vrot.slane %v5333, 4
        %v5339 = vshrl.u32 %v5239, 16
        %v5341 = vrot.slane %v5339, 7
        %v5342 = vshll.u32 %v5239, 16
        %v5344 = vor.u32 %v5341, %v5342
        %v5345 = vsel %vm379, %v5337, %v5344
        %v5346 = vrot.slane %v5341, 4
        %v5348 = vshrl.u32 %v5240, 16
        %v5350 = vrot.slane %v5348, 7
        %v5351 = vshll.u32 %v5240, 16
        %v5353 = vor.u32 %v5350, %v5351
        %v5354 = vrot.slane %v5350, 4
        %v5356 = vshrl.u32 %v5241, 16
        %v5358 = vrot.slane %v5356, 7
        %v5359 = vshll.u32 %v5241, 16
        %v5361 = vor.u32 %v5358, %v5359
        %v5362 = vsel %vm379, %v5354, %v5361
        %v5363 = vrot.slane %v5358, 4
        %v5365 = vshrl.u32 %v5242, 16
        %v5367 = vrot.slane %v5365, 7
        %v5368 = vshll.u32 %v5242, 16
        %v5370 = vor.u32 %v5367, %v5368
        %v5371 = vrot.slane %v5367, 4
        %v5373 = vshrl.u32 %v5243, 16
        %v5375 = vrot.slane %v5373, 7
        %v5376 = vshll.u32 %v5243, 16
        %v5378 = vor.u32 %v5375, %v5376
        %v5379 = vsel %vm379, %v5371, %v5378
        %v5380 = vrot.slane %v5375, 4
        %v5382 = vshrl.u32 %v5244, 16
        %v5384 = vrot.slane %v5382, 7
        %v5385 = vshll.u32 %v5244, 16
        %v5387 = vor.u32 %v5384, %v5385
        %v5388 = vrot.slane %v5384, 4
        %v5390 = vshrl.u32 %v5245, 16
        %v5392 = vrot.slane %v5390, 7
        %v5393 = vshll.u32 %v5245, 16
        %v5395 = vor.u32 %v5392, %v5393
        %v5396 = vsel %vm379, %v5388, %v5395
        %v5397 = vrot.slane %v5392, 4
        %v5399 = vshrl.u32 %v5246, 16
        %v5401 = vrot.slane %v5399, 7
        %v5402 = vshll.u32 %v5246, 16
        %v5404 = vor.u32 %v5401, %v5402
        %v5405 = vrot.slane %v5401, 4
        %v5407 = vshrl.u32 %v5247, 16
        %v5409 = vrot.slane %v5407, 7
        %v5410 = vshll.u32 %v5247, 16
        %v5412 = vor.u32 %v5409, %v5410
        %v5413 = vsel %vm379, %v5405, %v5412
        %v5414 = vrot.slane %v5409, 4
        %v5416 = vshrl.u32 %v5248, 16
        %v5418 = vrot.slane %v5416, 7
        %v5419 = vshll.u32 %v5248, 16
        %v5421 = vor.u32 %v5418, %v5419
        %v5422 = vrot.slane %v5418, 4
        %v5424 = vshrl.u32 %v5249, 16
        %v5426 = vrot.slane %v5424, 7
        %v5427 = vshll.u32 %v5249, 16
        %v5429 = vor.u32 %v5426, %v5427
        %v5430 = vsel %vm379, %v5422, %v5429
        %v5431 = vrot.slane %v5426, 4
        %v5433 = vshrl.u32 %v5250, 16
        %v5435 = vrot.slane %v5433, 7
        %v5436 = vshll.u32 %v5250, 16
        %v5438 = vor.u32 %v5435, %v5436
        %v5439 = vrot.slane %v5435, 4
        %v5441 = vshrl.u32 %v5251, 16
        %v5443 = vrot.slane %v5441, 7
        %v5444 = vshll.u32 %v5251, 16
        %v5446 = vor.u32 %v5443, %v5444
        %v5447 = vsel %vm379, %v5439, %v5446
        %v5448 = vrot.slane %v5443, 4
        %v5450 = vshrl.u32 %v5252, 16
        %v5452 = vrot.slane %v5450, 7
        %v5453 = vshll.u32 %v5252, 16
        %v5455 = vor.u32 %v5452, %v5453
        %v5456 = vrot.slane %v5452, 4
        %v5458 = vshrl.u32 %v5253, 16
        %v5460 = vrot.slane %v5458, 7
        %v5461 = vshll.u32 %v5253, 16
        %v5463 = vor.u32 %v5460, %v5461
        %v5464 = vsel %vm379, %v5456, %v5463
        %v5465 = vrot.slane %v5460, 4
        %v5467 = vshrl.u32 %v5254, 16
        %v5469 = vrot.slane %v5467, 7
        %v5470 = vshll.u32 %v5254, 16
        %v5472 = vor.u32 %v5469, %v5470
        %v5473 = vrot.slane %v5469, 4
        %v5475 = vshrl.u32 %v5255, 16
        %v5477 = vrot.slane %v5475, 7
        %v5478 = vshll.u32 %v5255, 16
        %v5480 = vor.u32 %v5477, %v5478
        %v5481 = vsel %vm379, %v5473, %v5480
        %v5482 = vrot.slane %v5477, 4
        %v5484 = vshrl.u32 %v5256, 16
        %v5486 = vrot.slane %v5484, 7
        %v5487 = vshll.u32 %v5256, 16
        %v5489 = vor.u32 %v5486, %v5487
        %v5490 = vrot.slane %v5486, 4
        %v5492 = vshrl.u32 %v5257, 16
        %v5494 = vrot.slane %v5492, 7
        %v5495 = vshll.u32 %v5257, 16
        %v5497 = vor.u32 %v5494, %v5495
        %v5498 = vsel %vm379, %v5490, %v5497
        %v5499 = vrot.slane %v5494, 4
        %v5501 = vshrl.u32 %v5258, 16
        %v5503 = vrot.slane %v5501, 7
        %v5504 = vshll.u32 %v5258, 16
        %v5506 = vor.u32 %v5503, %v5504
        %v5507 = vrot.slane %v5503, 4
        %v5509 = vshrl.u32 %v5259, 16
        %v5511 = vrot.slane %v5509, 7
        %v5512 = vshll.u32 %v5259, 16
        %v5514 = vor.u32 %v5511, %v5512
        %v5515 = vsel %vm379, %v5507, %v5514
        %v5516 = vrot.slane %v5511, 4
        %v5518 = vshrl.u32 %v5260, 16
        %v5520 = vrot.slane %v5518, 7
        %v5521 = vshll.u32 %v5260, 16
        %v5523 = vor.u32 %v5520, %v5521
        %v5524 = vrot.slane %v5520, 4
        %v5526 = vshrl.u32 %v5261, 16
        %v5528 = vrot.slane %v5526, 7
        %v5529 = vshll.u32 %v5261, 16
        %v5531 = vor.u32 %v5528, %v5529
        %v5532 = vsel %vm379, %v5524, %v5531
        %v5533 = vrot.slane %v5528, 4
        %s5582 = scalar_lea.vmem [#allocation3], 12
        %v5583 = vld [vmem:[%s5582] sm:$0xf]
        %v5584 = vsel %vm702, %v5268, %v5583
        %5585 = vst [vmem:[%s5582] sm:$0xf] %v5584
        %5586 = vst.msk [vmem:[%s5582 + $0x4] sm:$0xf] %vm256, %v5277
        %v5587 = vld [vmem:[%s5582 + $0x8] sm:$0x1]
        %v5588 = vsel %vm267, %v5278, %v5587
        %5589 = vst [vmem:[%s5582 + $0x8] sm:$0x1] %v5588
        %v5590 = vld [vmem:[%s5582 + $0xc] sm:$0xf]
        %v5591 = vsel %vm702, %v5285, %v5590
        %5592 = vst [vmem:[%s5582 + $0xc] sm:$0xf] %v5591
        %5593 = vst.msk [vmem:[%s5582 + $0x10] sm:$0xf] %vm256, %v5294
        %v5594 = vld [vmem:[%s5582 + $0x14] sm:$0x1]
        %v5595 = vsel %vm267, %v5295, %v5594
        %5596 = vst [vmem:[%s5582 + $0x14] sm:$0x1] %v5595
        %v5597 = vld [vmem:[%s5582 + $0x18] sm:$0xf]
        %v5598 = vsel %vm702, %v5302, %v5597
        %5599 = vst [vmem:[%s5582 + $0x18] sm:$0xf] %v5598
        %5600 = vst.msk [vmem:[%s5582 + $0x1c] sm:$0xf] %vm256, %v5311
        %v5601 = vld [vmem:[%s5582 + $0x20] sm:$0x1]
        %v5602 = vsel %vm267, %v5312, %v5601
        %5603 = vst [vmem:[%s5582 + $0x20] sm:$0x1] %v5602
        %v5604 = vld [vmem:[%s5582 + $0x24] sm:$0xf]
        %v5605 = vsel %vm702, %v5319, %v5604
        %5606 = vst [vmem:[%s5582 + $0x24] sm:$0xf] %v5605
        %5607 = vst.msk [vmem:[%s5582 + $0x28] sm:$0xf] %vm256, %v5328
        %v5608 = vld [vmem:[%s5582 + $0x2c] sm:$0x1]
        %v5609 = vsel %vm267, %v5329, %v5608
        %5610 = vst [vmem:[%s5582 + $0x2c] sm:$0x1] %v5609
        %v5611 = vld [vmem:[%s5582 + $0x30] sm:$0xf]
        %v5612 = vsel %vm702, %v5336, %v5611
        %5613 = vst [vmem:[%s5582 + $0x30] sm:$0xf] %v5612
        %5614 = vst.msk [vmem:[%s5582 + $0x34] sm:$0xf] %vm256, %v5345
        %v5615 = vld [vmem:[%s5582 + $0x38] sm:$0x1]
        %v5616 = vsel %vm267, %v5346, %v5615
        %5617 = vst [vmem:[%s5582 + $0x38] sm:$0x1] %v5616
        %v5618 = vld [vmem:[%s5582 + $0x3c] sm:$0xf]
        %v5619 = vsel %vm702, %v5353, %v5618
        %5620 = vst [vmem:[%s5582 + $0x3c] sm:$0xf] %v5619
        %5621 = vst.msk [vmem:[%s5582 + $0x40] sm:$0xf] %vm256, %v5362
        %v5622 = vld [vmem:[%s5582 + $0x44] sm:$0x1]
        %v5623 = vsel %vm267, %v5363, %v5622
        %5624 = vst [vmem:[%s5582 + $0x44] sm:$0x1] %v5623
        %v5625 = vld [vmem:[%s5582 + $0x48] sm:$0xf]
        %v5626 = vsel %vm702, %v5370, %v5625
        %5627 = vst [vmem:[%s5582 + $0x48] sm:$0xf] %v5626
        %5628 = vst.msk [vmem:[%s5582 + $0x4c] sm:$0xf] %vm256, %v5379
        %v5629 = vld [vmem:[%s5582 + $0x50] sm:$0x1]
        %v5630 = vsel %vm267, %v5380, %v5629
        %5631 = vst [vmem:[%s5582 + $0x50] sm:$0x1] %v5630
        %v5632 = vld [vmem:[%s5582 + $0x54] sm:$0xf]
        %v5633 = vsel %vm702, %v5387, %v5632
        %5634 = vst [vmem:[%s5582 + $0x54] sm:$0xf] %v5633
        %5635 = vst.msk [vmem:[%s5582 + $0x58] sm:$0xf] %vm256, %v5396
        %v5636 = vld [vmem:[%s5582 + $0x5c] sm:$0x1]
        %v5637 = vsel %vm267, %v5397, %v5636
        %5638 = vst [vmem:[%s5582 + $0x5c] sm:$0x1] %v5637
        %v5639 = vld [vmem:[%s5582 + $0x60] sm:$0xf]
        %v5640 = vsel %vm702, %v5404, %v5639
        %5641 = vst [vmem:[%s5582 + $0x60] sm:$0xf] %v5640
        %5642 = vst.msk [vmem:[%s5582 + $0x64] sm:$0xf] %vm256, %v5413
        %v5643 = vld [vmem:[%s5582 + $0x68] sm:$0x1]
        %v5644 = vsel %vm267, %v5414, %v5643
        %5645 = vst [vmem:[%s5582 + $0x68] sm:$0x1] %v5644
        %v5646 = vld [vmem:[%s5582 + $0x6c] sm:$0xf]
        %v5647 = vsel %vm702, %v5421, %v5646
        %5648 = vst [vmem:[%s5582 + $0x6c] sm:$0xf] %v5647
        %5649 = vst.msk [vmem:[%s5582 + $0x70] sm:$0xf] %vm256, %v5430
        %v5650 = vld [vmem:[%s5582 + $0x74] sm:$0x1]
        %v5651 = vsel %vm267, %v5431, %v5650
        %5652 = vst [vmem:[%s5582 + $0x74] sm:$0x1] %v5651
        %v5653 = vld [vmem:[%s5582 + $0x78] sm:$0xf]
        %v5654 = vsel %vm702, %v5438, %v5653
        %5655 = vst [vmem:[%s5582 + $0x78] sm:$0xf] %v5654
        %5656 = vst.msk [vmem:[%s5582 + $0x7c] sm:$0xf] %vm256, %v5447
        %v5657 = vld [vmem:[%s5582 + $0x80] sm:$0x1]
        %v5658 = vsel %vm267, %v5448, %v5657
        %5659 = vst [vmem:[%s5582 + $0x80] sm:$0x1] %v5658
        %v5660 = vld [vmem:[%s5582 + $0x84] sm:$0xf]
        %v5661 = vsel %vm702, %v5455, %v5660
        %5662 = vst [vmem:[%s5582 + $0x84] sm:$0xf] %v5661
        %5663 = vst.msk [vmem:[%s5582 + $0x88] sm:$0xf] %vm256, %v5464
        %v5664 = vld [vmem:[%s5582 + $0x8c] sm:$0x1]
        %v5665 = vsel %vm267, %v5465, %v5664
        %5666 = vst [vmem:[%s5582 + $0x8c] sm:$0x1] %v5665
        %v5667 = vld [vmem:[%s5582 + $0x90] sm:$0xf]
        %v5668 = vsel %vm702, %v5472, %v5667
        %5669 = vst [vmem:[%s5582 + $0x90] sm:$0xf] %v5668
        %5670 = vst.msk [vmem:[%s5582 + $0x94] sm:$0xf] %vm256, %v5481
        %v5671 = vld [vmem:[%s5582 + $0x98] sm:$0x1]
        %v5672 = vsel %vm267, %v5482, %v5671
        %5673 = vst [vmem:[%s5582 + $0x98] sm:$0x1] %v5672
        %v5674 = vld [vmem:[%s5582 + $0x9c] sm:$0xf]
        %v5675 = vsel %vm702, %v5489, %v5674
        %5676 = vst [vmem:[%s5582 + $0x9c] sm:$0xf] %v5675
        %5677 = vst.msk [vmem:[%s5582 + $0xa0] sm:$0xf] %vm256, %v5498
        %v5678 = vld [vmem:[%s5582 + $0xa4] sm:$0x1]
        %v5679 = vsel %vm267, %v5499, %v5678
        %5680 = vst [vmem:[%s5582 + $0xa4] sm:$0x1] %v5679
        %v5681 = vld [vmem:[%s5582 + $0xa8] sm:$0xf]
        %v5682 = vsel %vm702, %v5506, %v5681
        %5683 = vst [vmem:[%s5582 + $0xa8] sm:$0xf] %v5682
        %5684 = vst.msk [vmem:[%s5582 + $0xac] sm:$0xf] %vm256, %v5515
        %v5685 = vld [vmem:[%s5582 + $0xb0] sm:$0x1]
        %v5686 = vsel %vm267, %v5516, %v5685
        %5687 = vst [vmem:[%s5582 + $0xb0] sm:$0x1] %v5686
        %v5688 = vld [vmem:[%s5582 + $0xb4] sm:$0xf]
        %v5689 = vsel %vm702, %v5523, %v5688
        %5690 = vst [vmem:[%s5582 + $0xb4] sm:$0xf] %v5689
        %5691 = vst.msk [vmem:[%s5582 + $0xb8] sm:$0xf] %vm256, %v5532
        %v5692 = vld [vmem:[%s5582 + $0xbc] sm:$0x1]
        %v5693 = vsel %vm267, %v5533, %v5692
        %5694 = vst [vmem:[%s5582 + $0xbc] sm:$0x1] %v5693
        %v5695 = vld [vmem:[#allocation3] sm:$0xf]
        %v5696 = vld [vmem:[#allocation3 + $0x4] sm:$0xf]
        %v5697 = vld [vmem:[#allocation3 + $0xc] sm:$0xf]
        %v5698 = vld [vmem:[#allocation3 + $0x10] sm:$0xf]
        %v5699 = vld [vmem:[#allocation3 + $0x18] sm:$0xf]
        %v5700 = vld [vmem:[#allocation3 + $0x1c] sm:$0xf]
        %v5701 = vld [vmem:[#allocation3 + $0x24] sm:$0xf]
        %v5702 = vld [vmem:[#allocation3 + $0x28] sm:$0xf]
        %v5703 = vld [vmem:[#allocation3 + $0x30] sm:$0xf]
        %v5704 = vld [vmem:[#allocation3 + $0x34] sm:$0xf]
        %v5705 = vld [vmem:[#allocation3 + $0x3c] sm:$0xf]
        %v5706 = vld [vmem:[#allocation3 + $0x40] sm:$0xf]
        %v5707 = vld [vmem:[#allocation3 + $0x48] sm:$0xf]
        %v5708 = vld [vmem:[#allocation3 + $0x4c] sm:$0xf]
        %v5709 = vld [vmem:[#allocation3 + $0x54] sm:$0xf]
        %v5710 = vld [vmem:[#allocation3 + $0x58] sm:$0xf]
        %v5711 = vld [vmem:[#allocation3 + $0x60] sm:$0xf]
        %v5712 = vld [vmem:[#allocation3 + $0x64] sm:$0xf]
        %v5713 = vld [vmem:[#allocation3 + $0x6c] sm:$0xf]
        %v5714 = vld [vmem:[#allocation3 + $0x70] sm:$0xf]
        %v5715 = vld [vmem:[#allocation3 + $0x78] sm:$0xf]
        %v5716 = vld [vmem:[#allocation3 + $0x7c] sm:$0xf]
        %v5717 = vld [vmem:[#allocation3 + $0x84] sm:$0xf]
        %v5718 = vld [vmem:[#allocation3 + $0x88] sm:$0xf]
        %v5719 = vld [vmem:[#allocation3 + $0x90] sm:$0xf]
        %v5720 = vld [vmem:[#allocation3 + $0x94] sm:$0xf]
        %v5721 = vld [vmem:[#allocation3 + $0x9c] sm:$0xf]
        %v5722 = vld [vmem:[#allocation3 + $0xa0] sm:$0xf]
        %v5723 = vld [vmem:[#allocation3 + $0xa8] sm:$0xf]
        %v5724 = vld [vmem:[#allocation3 + $0xac] sm:$0xf]
        %v5725 = vld [vmem:[#allocation3 + $0xb4] sm:$0xf]
        %v5726 = vld [vmem:[#allocation3 + $0xb8] sm:$0xf]
        %5727 = vst.msk [vmem:[#allocation5] sm:$0xf] %vm256, %v5695
        %5728 = vst.msk [vmem:[#allocation5 + $0x14] sm:$0xf] %vm256, %v5696
        %5729 = vst.msk [vmem:[#allocation5 + $0x28] sm:$0xf] %vm256, %v5697
        %5730 = vst.msk [vmem:[#allocation5 + $0x3c] sm:$0xf] %vm256, %v5698
        %5731 = vst.msk [vmem:[#allocation5 + $0x50] sm:$0xf] %vm256, %v5699
        %5732 = vst.msk [vmem:[#allocation5 + $0x64] sm:$0xf] %vm256, %v5700
        %5733 = vst.msk [vmem:[#allocation5 + $0x78] sm:$0xf] %vm256, %v5701
        %5734 = vst.msk [vmem:[#allocation5 + $0x8c] sm:$0xf] %vm256, %v5702
        %5735 = vst.msk [vmem:[#allocation5 + $0xa0] sm:$0xf] %vm256, %v5703
        %5736 = vst.msk [vmem:[#allocation5 + $0xb4] sm:$0xf] %vm256, %v5704
        %5737 = vst.msk [vmem:[#allocation5 + $0xc8] sm:$0xf] %vm256, %v5705
        %5738 = vst.msk [vmem:[#allocation5 + $0xdc] sm:$0xf] %vm256, %v5706
        %5739 = vst.msk [vmem:[#allocation5 + $0xf0] sm:$0xf] %vm256, %v5707
        %5740 = vst.msk [vmem:[#allocation5 + $0x104] sm:$0xf] %vm256, %v5708
        %5741 = vst.msk [vmem:[#allocation5 + $0x118] sm:$0xf] %vm256, %v5709
        %5742 = vst.msk [vmem:[#allocation5 + $0x12c] sm:$0xf] %vm256, %v5710
        %5743 = vst.msk [vmem:[#allocation5 + $0x140] sm:$0xf] %vm256, %v5711
        %5744 = vst.msk [vmem:[#allocation5 + $0x154] sm:$0xf] %vm256, %v5712
        %5745 = vst.msk [vmem:[#allocation5 + $0x168] sm:$0xf] %vm256, %v5713
        %5746 = vst.msk [vmem:[#allocation5 + $0x17c] sm:$0xf] %vm256, %v5714
        %5747 = vst.msk [vmem:[#allocation5 + $0x190] sm:$0xf] %vm256, %v5715
        %5748 = vst.msk [vmem:[#allocation5 + $0x1a4] sm:$0xf] %vm256, %v5716
        %5749 = vst.msk [vmem:[#allocation5 + $0x1b8] sm:$0xf] %vm256, %v5717
        %5750 = vst.msk [vmem:[#allocation5 + $0x1cc] sm:$0xf] %vm256, %v5718
        %5751 = vst.msk [vmem:[#allocation5 + $0x1e0] sm:$0xf] %vm256, %v5719
        %5752 = vst.msk [vmem:[#allocation5 + $0x1f4] sm:$0xf] %vm256, %v5720
        %5753 = vst.msk [vmem:[#allocation5 + $0x208] sm:$0xf] %vm256, %v5721
        %5754 = vst.msk [vmem:[#allocation5 + $0x21c] sm:$0xf] %vm256, %v5722
        %5755 = vst.msk [vmem:[#allocation5 + $0x230] sm:$0xf] %vm256, %v5723
        %5756 = vst.msk [vmem:[#allocation5 + $0x244] sm:$0xf] %vm256, %v5724
        %5757 = vst.msk [vmem:[#allocation5 + $0x258] sm:$0xf] %vm256, %v5725
        %5758 = vst.msk [vmem:[#allocation5 + $0x26c] sm:$0xf] %vm256, %v5726
        %v5759 = vld [vmem:[#allocation3] sm:$0xf]
        %v5760 = vld [vmem:[#allocation3 + $0x4] sm:$0xf]
        %v5761 = vld [vmem:[#allocation3 + $0x8] sm:$0x1]
        %v5762 = vld [vmem:[#allocation3 + $0xc] sm:$0xf]
        %v5763 = vld [vmem:[#allocation3 + $0x10] sm:$0xf]
        %v5764 = vld [vmem:[#allocation3 + $0x14] sm:$0x1]
        %v5765 = vld [vmem:[#allocation3 + $0x18] sm:$0xf]
        %v5766 = vld [vmem:[#allocation3 + $0x1c] sm:$0xf]
        %v5767 = vld [vmem:[#allocation3 + $0x20] sm:$0x1]
        %v5768 = vld [vmem:[#allocation3 + $0x24] sm:$0xf]
        %v5769 = vld [vmem:[#allocation3 + $0x28] sm:$0xf]
        %v5770 = vld [vmem:[#allocation3 + $0x2c] sm:$0x1]
        %v5771 = vld [vmem:[#allocation3 + $0x30] sm:$0xf]
        %v5772 = vld [vmem:[#allocation3 + $0x34] sm:$0xf]
        %v5773 = vld [vmem:[#allocation3 + $0x38] sm:$0x1]
        %v5774 = vld [vmem:[#allocation3 + $0x3c] sm:$0xf]
        %v5775 = vld [vmem:[#allocation3 + $0x40] sm:$0xf]
        %v5776 = vld [vmem:[#allocation3 + $0x44] sm:$0x1]
        %v5777 = vld [vmem:[#allocation3 + $0x48] sm:$0xf]
        %v5778 = vld [vmem:[#allocation3 + $0x4c] sm:$0xf]
        %v5779 = vld [vmem:[#allocation3 + $0x50] sm:$0x1]
        %v5780 = vld [vmem:[#allocation3 + $0x54] sm:$0xf]
        %v5781 = vld [vmem:[#allocation3 + $0x58] sm:$0xf]
        %v5782 = vld [vmem:[#allocation3 + $0x5c] sm:$0x1]
        %v5783 = vld [vmem:[#allocation3 + $0x60] sm:$0xf]
        %v5784 = vld [vmem:[#allocation3 + $0x64] sm:$0xf]
        %v5785 = vld [vmem:[#allocation3 + $0x68] sm:$0x1]
        %v5786 = vld [vmem:[#allocation3 + $0x6c] sm:$0xf]
        %v5787 = vld [vmem:[#allocation3 + $0x70] sm:$0xf]
        %v5788 = vld [vmem:[#allocation3 + $0x74] sm:$0x1]
        %v5789 = vld [vmem:[#allocation3 + $0x78] sm:$0xf]
        %v5790 = vld [vmem:[#allocation3 + $0x7c] sm:$0xf]
        %v5791 = vld [vmem:[#allocation3 + $0x80] sm:$0x1]
        %v5792 = vld [vmem:[#allocation3 + $0x84] sm:$0xf]
        %v5793 = vld [vmem:[#allocation3 + $0x88] sm:$0xf]
        %v5794 = vld [vmem:[#allocation3 + $0x8c] sm:$0x1]
        %v5795 = vld [vmem:[#allocation3 + $0x90] sm:$0xf]
        %v5796 = vld [vmem:[#allocation3 + $0x94] sm:$0xf]
        %v5797 = vld [vmem:[#allocation3 + $0x98] sm:$0x1]
        %v5798 = vld [vmem:[#allocation3 + $0x9c] sm:$0xf]
        %v5799 = vld [vmem:[#allocation3 + $0xa0] sm:$0xf]
        %v5800 = vld [vmem:[#allocation3 + $0xa4] sm:$0x1]
        %v5801 = vld [vmem:[#allocation3 + $0xa8] sm:$0xf]
        %v5802 = vld [vmem:[#allocation3 + $0xac] sm:$0xf]
        %v5803 = vld [vmem:[#allocation3 + $0xb0] sm:$0x1]
        %v5804 = vld [vmem:[#allocation3 + $0xb4] sm:$0xf]
        %v5805 = vld [vmem:[#allocation3 + $0xb8] sm:$0xf]
        %v5806 = vld [vmem:[#allocation3 + $0xbc] sm:$0x1]
        %v5808 = vshrl.u32 %v5759, 16
        %v5810 = vrot.slane %v5808, 4
        %v5811 = vshll.u32 %v5759, 16
        %v5813 = vrot.slane %v5811, 5
        %v5814 = vor.u32 %v5810, %v5813
        %v5815 = vrot.slane %v5814, 4
        %v5817 = vshll.u32 %v5760, 16
        %v5819 = vrot.slane %v5817, 5
        %v5820 = vsel %vm929, %v5815, %v5819
        %v5821 = vshrl.u32 %v5760, 16
        %v5823 = vrot.slane %v5821, 4
        %v5824 = vor.u32 %v5823, %v5819
        %v5825 = vrot.slane %v5824, 4
        %v5827 = vshll.u32 %v5761, 16
        %v5829 = vrot.slane %v5827, 5
        %v5830 = vsel %vm929, %v5825, %v5829
        %v5832 = vshrl.u32 %v5762, 16
        %v5834 = vrot.slane %v5832, 4
        %v5835 = vshll.u32 %v5762, 16
        %v5837 = vrot.slane %v5835, 5
        %v5838 = vor.u32 %v5834, %v5837
        %v5839 = vrot.slane %v5838, 4
        %v5841 = vshll.u32 %v5763, 16
        %v5843 = vrot.slane %v5841, 5
        %v5844 = vsel %vm929, %v5839, %v5843
        %v5845 = vshrl.u32 %v5763, 16
        %v5847 = vrot.slane %v5845, 4
        %v5848 = vor.u32 %v5847, %v5843
        %v5849 = vrot.slane %v5848, 4
        %v5851 = vshll.u32 %v5764, 16
        %v5853 = vrot.slane %v5851, 5
        %v5854 = vsel %vm929, %v5849, %v5853
        %v5856 = vshrl.u32 %v5765, 16
        %v5858 = vrot.slane %v5856, 4
        %v5859 = vshll.u32 %v5765, 16
        %v5861 = vrot.slane %v5859, 5
        %v5862 = vor.u32 %v5858, %v5861
        %v5863 = vrot.slane %v5862, 4
        %v5865 = vshll.u32 %v5766, 16
        %v5867 = vrot.slane %v5865, 5
        %v5868 = vsel %vm929, %v5863, %v5867
        %v5869 = vshrl.u32 %v5766, 16
        %v5871 = vrot.slane %v5869, 4
        %v5872 = vor.u32 %v5871, %v5867
        %v5873 = vrot.slane %v5872, 4
        %v5875 = vshll.u32 %v5767, 16
        %v5877 = vrot.slane %v5875, 5
        %v5878 = vsel %vm929, %v5873, %v5877
        %v5880 = vshrl.u32 %v5768, 16
        %v5882 = vrot.slane %v5880, 4
        %v5883 = vshll.u32 %v5768, 16
        %v5885 = vrot.slane %v5883, 5
        %v5886 = vor.u32 %v5882, %v5885
        %v5887 = vrot.slane %v5886, 4
        %v5889 = vshll.u32 %v5769, 16
        %v5891 = vrot.slane %v5889, 5
        %v5892 = vsel %vm929, %v5887, %v5891
        %v5893 = vshrl.u32 %v5769, 16
        %v5895 = vrot.slane %v5893, 4
        %v5896 = vor.u32 %v5895, %v5891
        %v5897 = vrot.slane %v5896, 4
        %v5899 = vshll.u32 %v5770, 16
        %v5901 = vrot.slane %v5899, 5
        %v5902 = vsel %vm929, %v5897, %v5901
        %v5904 = vshrl.u32 %v5771, 16
        %v5906 = vrot.slane %v5904, 4
        %v5907 = vshll.u32 %v5771, 16
        %v5909 = vrot.slane %v5907, 5
        %v5910 = vor.u32 %v5906, %v5909
        %v5911 = vrot.slane %v5910, 4
        %v5913 = vshll.u32 %v5772, 16
        %v5915 = vrot.slane %v5913, 5
        %v5916 = vsel %vm929, %v5911, %v5915
        %v5917 = vshrl.u32 %v5772, 16
        %v5919 = vrot.slane %v5917, 4
        %v5920 = vor.u32 %v5919, %v5915
        %v5921 = vrot.slane %v5920, 4
        %v5923 = vshll.u32 %v5773, 16
        %v5925 = vrot.slane %v5923, 5
        %v5926 = vsel %vm929, %v5921, %v5925
        %v5928 = vshrl.u32 %v5774, 16
        %v5930 = vrot.slane %v5928, 4
        %v5931 = vshll.u32 %v5774, 16
        %v5933 = vrot.slane %v5931, 5
        %v5934 = vor.u32 %v5930, %v5933
        %v5935 = vrot.slane %v5934, 4
        %v5937 = vshll.u32 %v5775, 16
        %v5939 = vrot.slane %v5937, 5
        %v5940 = vsel %vm929, %v5935, %v5939
        %v5941 = vshrl.u32 %v5775, 16
        %v5943 = vrot.slane %v5941, 4
        %v5944 = vor.u32 %v5943, %v5939
        %v5945 = vrot.slane %v5944, 4
        %v5947 = vshll.u32 %v5776, 16
        %v5949 = vrot.slane %v5947, 5
        %v5950 = vsel %vm929, %v5945, %v5949
        %v5952 = vshrl.u32 %v5777, 16
        %v5954 = vrot.slane %v5952, 4
        %v5955 = vshll.u32 %v5777, 16
        %v5957 = vrot.slane %v5955, 5
        %v5958 = vor.u32 %v5954, %v5957
        %v5959 = vrot.slane %v5958, 4
        %v5961 = vshll.u32 %v5778, 16
        %v5963 = vrot.slane %v5961, 5
        %v5964 = vsel %vm929, %v5959, %v5963
        %v5965 = vshrl.u32 %v5778, 16
        %v5967 = vrot.slane %v5965, 4
        %v5968 = vor.u32 %v5967, %v5963
        %v5969 = vrot.slane %v5968, 4
        %v5971 = vshll.u32 %v5779, 16
        %v5973 = vrot.slane %v5971, 5
        %v5974 = vsel %vm929, %v5969, %v5973
        %v5976 = vshrl.u32 %v5780, 16
        %v5978 = vrot.slane %v5976, 4
        %v5979 = vshll.u32 %v5780, 16
        %v5981 = vrot.slane %v5979, 5
        %v5982 = vor.u32 %v5978, %v5981
        %v5983 = vrot.slane %v5982, 4
        %v5985 = vshll.u32 %v5781, 16
        %v5987 = vrot.slane %v5985, 5
        %v5988 = vsel %vm929, %v5983, %v5987
        %v5989 = vshrl.u32 %v5781, 16
        %v5991 = vrot.slane %v5989, 4
        %v5992 = vor.u32 %v5991, %v5987
        %v5993 = vrot.slane %v5992, 4
        %v5995 = vshll.u32 %v5782, 16
        %v5997 = vrot.slane %v5995, 5
        %v5998 = vsel %vm929, %v5993, %v5997
        %v6000 = vshrl.u32 %v5783, 16
        %v6002 = vrot.slane %v6000, 4
        %v6003 = vshll.u32 %v5783, 16
        %v6005 = vrot.slane %v6003, 5
        %v6006 = vor.u32 %v6002, %v6005
        %v6007 = vrot.slane %v6006, 4
        %v6009 = vshll.u32 %v5784, 16
        %v6011 = vrot.slane %v6009, 5
        %v6012 = vsel %vm929, %v6007, %v6011
        %v6013 = vshrl.u32 %v5784, 16
        %v6015 = vrot.slane %v6013, 4
        %v6016 = vor.u32 %v6015, %v6011
        %v6017 = vrot.slane %v6016, 4
        %v6019 = vshll.u32 %v5785, 16
        %v6021 = vrot.slane %v6019, 5
        %v6022 = vsel %vm929, %v6017, %v6021
        %v6024 = vshrl.u32 %v5786, 16
        %v6026 = vrot.slane %v6024, 4
        %v6027 = vshll.u32 %v5786, 16
        %v6029 = vrot.slane %v6027, 5
        %v6030 = vor.u32 %v6026, %v6029
        %v6031 = vrot.slane %v6030, 4
        %v6033 = vshll.u32 %v5787, 16
        %v6035 = vrot.slane %v6033, 5
        %v6036 = vsel %vm929, %v6031, %v6035
        %v6037 = vshrl.u32 %v5787, 16
        %v6039 = vrot.slane %v6037, 4
        %v6040 = vor.u32 %v6039, %v6035
        %v6041 = vrot.slane %v6040, 4
        %v6043 = vshll.u32 %v5788, 16
        %v6045 = vrot.slane %v6043, 5
        %v6046 = vsel %vm929, %v6041, %v6045
        %v6048 = vshrl.u32 %v5789, 16
        %v6050 = vrot.slane %v6048, 4
        %v6051 = vshll.u32 %v5789, 16
        %v6053 = vrot.slane %v6051, 5
        %v6054 = vor.u32 %v6050, %v6053
        %v6055 = vrot.slane %v6054, 4
        %v6057 = vshll.u32 %v5790, 16
        %v6059 = vrot.slane %v6057, 5
        %v6060 = vsel %vm929, %v6055, %v6059
        %v6061 = vshrl.u32 %v5790, 16
        %v6063 = vrot.slane %v6061, 4
        %v6064 = vor.u32 %v6063, %v6059
        %v6065 = vrot.slane %v6064, 4
        %v6067 = vshll.u32 %v5791, 16
        %v6069 = vrot.slane %v6067, 5
        %v6070 = vsel %vm929, %v6065, %v6069
        %v6072 = vshrl.u32 %v5792, 16
        %v6074 = vrot.slane %v6072, 4
        %v6075 = vshll.u32 %v5792, 16
        %v6077 = vrot.slane %v6075, 5
        %v6078 = vor.u32 %v6074, %v6077
        %v6079 = vrot.slane %v6078, 4
        %v6081 = vshll.u32 %v5793, 16
        %v6083 = vrot.slane %v6081, 5
        %v6084 = vsel %vm929, %v6079, %v6083
        %v6085 = vshrl.u32 %v5793, 16
        %v6087 = vrot.slane %v6085, 4
        %v6088 = vor.u32 %v6087, %v6083
        %v6089 = vrot.slane %v6088, 4
        %v6091 = vshll.u32 %v5794, 16
        %v6093 = vrot.slane %v6091, 5
        %v6094 = vsel %vm929, %v6089, %v6093
        %v6096 = vshrl.u32 %v5795, 16
        %v6098 = vrot.slane %v6096, 4
        %v6099 = vshll.u32 %v5795, 16
        %v6101 = vrot.slane %v6099, 5
        %v6102 = vor.u32 %v6098, %v6101
        %v6103 = vrot.slane %v6102, 4
        %v6105 = vshll.u32 %v5796, 16
        %v6107 = vrot.slane %v6105, 5
        %v6108 = vsel %vm929, %v6103, %v6107
        %v6109 = vshrl.u32 %v5796, 16
        %v6111 = vrot.slane %v6109, 4
        %v6112 = vor.u32 %v6111, %v6107
        %v6113 = vrot.slane %v6112, 4
        %v6115 = vshll.u32 %v5797, 16
        %v6117 = vrot.slane %v6115, 5
        %v6118 = vsel %vm929, %v6113, %v6117
        %v6120 = vshrl.u32 %v5798, 16
        %v6122 = vrot.slane %v6120, 4
        %v6123 = vshll.u32 %v5798, 16
        %v6125 = vrot.slane %v6123, 5
        %v6126 = vor.u32 %v6122, %v6125
        %v6127 = vrot.slane %v6126, 4
        %v6129 = vshll.u32 %v5799, 16
        %v6131 = vrot.slane %v6129, 5
        %v6132 = vsel %vm929, %v6127, %v6131
        %v6133 = vshrl.u32 %v5799, 16
        %v6135 = vrot.slane %v6133, 4
        %v6136 = vor.u32 %v6135, %v6131
        %v6137 = vrot.slane %v6136, 4
        %v6139 = vshll.u32 %v5800, 16
        %v6141 = vrot.slane %v6139, 5
        %v6142 = vsel %vm929, %v6137, %v6141
        %v6144 = vshrl.u32 %v5801, 16
        %v6146 = vrot.slane %v6144, 4
        %v6147 = vshll.u32 %v5801, 16
        %v6149 = vrot.slane %v6147, 5
        %v6150 = vor.u32 %v6146, %v6149
        %v6151 = vrot.slane %v6150, 4
        %v6153 = vshll.u32 %v5802, 16
        %v6155 = vrot.slane %v6153, 5
        %v6156 = vsel %vm929, %v6151, %v6155
        %v6157 = vshrl.u32 %v5802, 16
        %v6159 = vrot.slane %v6157, 4
        %v6160 = vor.u32 %v6159, %v6155
        %v6161 = vrot.slane %v6160, 4
        %v6163 = vshll.u32 %v5803, 16
        %v6165 = vrot.slane %v6163, 5
        %v6166 = vsel %vm929, %v6161, %v6165
        %v6168 = vshrl.u32 %v5804, 16
        %v6170 = vrot.slane %v6168, 4
        %v6171 = vshll.u32 %v5804, 16
        %v6173 = vrot.slane %v6171, 5
        %v6174 = vor.u32 %v6170, %v6173
        %v6175 = vrot.slane %v6174, 4
        %v6177 = vshll.u32 %v5805, 16
        %v6179 = vrot.slane %v6177, 5
        %v6180 = vsel %vm929, %v6175, %v6179
        %v6181 = vshrl.u32 %v5805, 16
        %v6183 = vrot.slane %v6181, 4
        %v6184 = vor.u32 %v6183, %v6179
        %v6185 = vrot.slane %v6184, 4
        %v6187 = vshll.u32 %v5806, 16
        %v6189 = vrot.slane %v6187, 5
        %v6190 = vsel %vm929, %v6185, %v6189
        %6191 = vrot.lane.b32.xlu0 %v5820, 64
        %v6192 = vpop.permute.xlu0 %6191
        %6193 = vrot.lane.b32.xlu0 %v5830, 64
        %v6194 = vpop.permute.xlu0 %6193
        %6195 = vrot.lane.b32.xlu0 %v5844, 64
        %v6196 = vpop.permute.xlu0 %6195
        %6197 = vrot.lane.b32.xlu0 %v5854, 64
        %v6198 = vpop.permute.xlu0 %6197
        %6199 = vrot.lane.b32.xlu0 %v5868, 64
        %v6200 = vpop.permute.xlu0 %6199
        %6201 = vrot.lane.b32.xlu0 %v5878, 64
        %v6202 = vpop.permute.xlu0 %6201
        %6203 = vrot.lane.b32.xlu0 %v5892, 64
        %v6204 = vpop.permute.xlu0 %6203
        %6205 = vrot.lane.b32.xlu0 %v5902, 64
        %v6206 = vpop.permute.xlu0 %6205
        %6207 = vrot.lane.b32.xlu0 %v5916, 64
        %v6208 = vpop.permute.xlu0 %6207
        %6209 = vrot.lane.b32.xlu0 %v5926, 64
        %v6210 = vpop.permute.xlu0 %6209
        %6211 = vrot.lane.b32.xlu0 %v5940, 64
        %v6212 = vpop.permute.xlu0 %6211
        %6213 = vrot.lane.b32.xlu0 %v5950, 64
        %v6214 = vpop.permute.xlu0 %6213
        %6215 = vrot.lane.b32.xlu0 %v5964, 64
        %v6216 = vpop.permute.xlu0 %6215
        %6217 = vrot.lane.b32.xlu0 %v5974, 64
        %v6218 = vpop.permute.xlu0 %6217
        %6219 = vrot.lane.b32.xlu0 %v5988, 64
        %v6220 = vpop.permute.xlu0 %6219
        %6221 = vrot.lane.b32.xlu0 %v5998, 64
        %v6222 = vpop.permute.xlu0 %6221
        %6223 = vrot.lane.b32.xlu0 %v6012, 64
        %v6224 = vpop.permute.xlu0 %6223
        %6225 = vrot.lane.b32.xlu0 %v6022, 64
        %v6226 = vpop.permute.xlu0 %6225
        %6227 = vrot.lane.b32.xlu0 %v6036, 64
        %v6228 = vpop.permute.xlu0 %6227
        %6229 = vrot.lane.b32.xlu0 %v6046, 64
        %v6230 = vpop.permute.xlu0 %6229
        %6231 = vrot.lane.b32.xlu0 %v6060, 64
        %v6232 = vpop.permute.xlu0 %6231
        %6233 = vrot.lane.b32.xlu0 %v6070, 64
        %v6234 = vpop.permute.xlu0 %6233
        %6235 = vrot.lane.b32.xlu0 %v6084, 64
        %v6236 = vpop.permute.xlu0 %6235
        %6237 = vrot.lane.b32.xlu0 %v6094, 64
        %v6238 = vpop.permute.xlu0 %6237
        %6239 = vrot.lane.b32.xlu0 %v6108, 64
        %v6240 = vpop.permute.xlu0 %6239
        %6241 = vrot.lane.b32.xlu0 %v6118, 64
        %v6242 = vpop.permute.xlu0 %6241
        %6243 = vrot.lane.b32.xlu0 %v6132, 64
        %v6244 = vpop.permute.xlu0 %6243
        %6245 = vrot.lane.b32.xlu0 %v6142, 64
        %v6246 = vpop.permute.xlu0 %6245
        %6247 = vrot.lane.b32.xlu0 %v6156, 64
        %v6248 = vpop.permute.xlu0 %6247
        %6249 = vrot.lane.b32.xlu0 %v6166, 64
        %v6250 = vpop.permute.xlu0 %6249
        %6251 = vrot.lane.b32.xlu0 %v6180, 64
        %v6252 = vpop.permute.xlu0 %6251
        %6253 = vrot.lane.b32.xlu0 %v6190, 64
        %v6254 = vpop.permute.xlu0 %6253
        %6287 = vst.msk [vmem:[#allocation5] sm:$0xf] %vm1410, %v6192
        %6288 = vst.msk [vmem:[#allocation5 + $0x14] sm:$0xf] %vm1410, %v6194
        %6289 = vst.msk [vmem:[#allocation5 + $0x28] sm:$0xf] %vm1410, %v6196
        %6290 = vst.msk [vmem:[#allocation5 + $0x3c] sm:$0xf] %vm1410, %v6198
        %6291 = vst.msk [vmem:[#allocation5 + $0x50] sm:$0xf] %vm1410, %v6200
        %6292 = vst.msk [vmem:[#allocation5 + $0x64] sm:$0xf] %vm1410, %v6202
        %6293 = vst.msk [vmem:[#allocation5 + $0x78] sm:$0xf] %vm1410, %v6204
        %6294 = vst.msk [vmem:[#allocation5 + $0x8c] sm:$0xf] %vm1410, %v6206
        %6295 = vst.msk [vmem:[#allocation5 + $0xa0] sm:$0xf] %vm1410, %v6208
        %6296 = vst.msk [vmem:[#allocation5 + $0xb4] sm:$0xf] %vm1410, %v6210
        %6297 = vst.msk [vmem:[#allocation5 + $0xc8] sm:$0xf] %vm1410, %v6212
        %6298 = vst.msk [vmem:[#allocation5 + $0xdc] sm:$0xf] %vm1410, %v6214
        %6299 = vst.msk [vmem:[#allocation5 + $0xf0] sm:$0xf] %vm1410, %v6216
        %6300 = vst.msk [vmem:[#allocation5 + $0x104] sm:$0xf] %vm1410, %v6218
        %6301 = vst.msk [vmem:[#allocation5 + $0x118] sm:$0xf] %vm1410, %v6220
        %6302 = vst.msk [vmem:[#allocation5 + $0x12c] sm:$0xf] %vm1410, %v6222
        %6303 = vst.msk [vmem:[#allocation5 + $0x140] sm:$0xf] %vm1410, %v6224
        %6304 = vst.msk [vmem:[#allocation5 + $0x154] sm:$0xf] %vm1410, %v6226
        %6305 = vst.msk [vmem:[#allocation5 + $0x168] sm:$0xf] %vm1410, %v6228
        %6306 = vst.msk [vmem:[#allocation5 + $0x17c] sm:$0xf] %vm1410, %v6230
        %6307 = vst.msk [vmem:[#allocation5 + $0x190] sm:$0xf] %vm1410, %v6232
        %6308 = vst.msk [vmem:[#allocation5 + $0x1a4] sm:$0xf] %vm1410, %v6234
        %6309 = vst.msk [vmem:[#allocation5 + $0x1b8] sm:$0xf] %vm1410, %v6236
        %6310 = vst.msk [vmem:[#allocation5 + $0x1cc] sm:$0xf] %vm1410, %v6238
        %6311 = vst.msk [vmem:[#allocation5 + $0x1e0] sm:$0xf] %vm1410, %v6240
        %6312 = vst.msk [vmem:[#allocation5 + $0x1f4] sm:$0xf] %vm1410, %v6242
        %6313 = vst.msk [vmem:[#allocation5 + $0x208] sm:$0xf] %vm1410, %v6244
        %6314 = vst.msk [vmem:[#allocation5 + $0x21c] sm:$0xf] %vm1410, %v6246
        %6315 = vst.msk [vmem:[#allocation5 + $0x230] sm:$0xf] %vm1410, %v6248
        %6316 = vst.msk [vmem:[#allocation5 + $0x244] sm:$0xf] %vm1410, %v6250
        %6317 = vst.msk [vmem:[#allocation5 + $0x258] sm:$0xf] %vm1410, %v6252
        %6318 = vst.msk [vmem:[#allocation5 + $0x26c] sm:$0xf] %vm1410, %v6254
        %v6319 = vld [vmem:[#allocation3] sm:$0xe]
        %v6320 = vld [vmem:[#allocation3 + $0x4] sm:$0xf]
        %v6321 = vld [vmem:[#allocation3 + $0x8] sm:$0x1]
        %v6322 = vld [vmem:[#allocation3 + $0xc] sm:$0xe]
        %v6323 = vld [vmem:[#allocation3 + $0x10] sm:$0xf]
        %v6324 = vld [vmem:[#allocation3 + $0x14] sm:$0x1]
        %v6325 = vld [vmem:[#allocation3 + $0x18] sm:$0xe]
        %v6326 = vld [vmem:[#allocation3 + $0x1c] sm:$0xf]
        %v6327 = vld [vmem:[#allocation3 + $0x20] sm:$0x1]
        %v6328 = vld [vmem:[#allocation3 + $0x24] sm:$0xe]
        %v6329 = vld [vmem:[#allocation3 + $0x28] sm:$0xf]
        %v6330 = vld [vmem:[#allocation3 + $0x2c] sm:$0x1]
        %v6331 = vld [vmem:[#allocation3 + $0x30] sm:$0xe]
        %v6332 = vld [vmem:[#allocation3 + $0x34] sm:$0xf]
        %v6333 = vld [vmem:[#allocation3 + $0x38] sm:$0x1]
        %v6334 = vld [vmem:[#allocation3 + $0x3c] sm:$0xe]
        %v6335 = vld [vmem:[#allocation3 + $0x40] sm:$0xf]
        %v6336 = vld [vmem:[#allocation3 + $0x44] sm:$0x1]
        %v6337 = vld [vmem:[#allocation3 + $0x48] sm:$0xe]
        %v6338 = vld [vmem:[#allocation3 + $0x4c] sm:$0xf]
        %v6339 = vld [vmem:[#allocation3 + $0x50] sm:$0x1]
        %v6340 = vld [vmem:[#allocation3 + $0x54] sm:$0xe]
        %v6341 = vld [vmem:[#allocation3 + $0x58] sm:$0xf]
        %v6342 = vld [vmem:[#allocation3 + $0x5c] sm:$0x1]
        %v6343 = vld [vmem:[#allocation3 + $0x60] sm:$0xe]
        %v6344 = vld [vmem:[#allocation3 + $0x64] sm:$0xf]
        %v6345 = vld [vmem:[#allocation3 + $0x68] sm:$0x1]
        %v6346 = vld [vmem:[#allocation3 + $0x6c] sm:$0xe]
        %v6347 = vld [vmem:[#allocation3 + $0x70] sm:$0xf]
        %v6348 = vld [vmem:[#allocation3 + $0x74] sm:$0x1]
        %v6349 = vld [vmem:[#allocation3 + $0x78] sm:$0xe]
        %v6350 = vld [vmem:[#allocation3 + $0x7c] sm:$0xf]
        %v6351 = vld [vmem:[#allocation3 + $0x80] sm:$0x1]
        %v6352 = vld [vmem:[#allocation3 + $0x84] sm:$0xe]
        %v6353 = vld [vmem:[#allocation3 + $0x88] sm:$0xf]
        %v6354 = vld [vmem:[#allocation3 + $0x8c] sm:$0x1]
        %v6355 = vld [vmem:[#allocation3 + $0x90] sm:$0xe]
        %v6356 = vld [vmem:[#allocation3 + $0x94] sm:$0xf]
        %v6357 = vld [vmem:[#allocation3 + $0x98] sm:$0x1]
        %v6358 = vld [vmem:[#allocation3 + $0x9c] sm:$0xe]
        %v6359 = vld [vmem:[#allocation3 + $0xa0] sm:$0xf]
        %v6360 = vld [vmem:[#allocation3 + $0xa4] sm:$0x1]
        %v6361 = vld [vmem:[#allocation3 + $0xa8] sm:$0xe]
        %v6362 = vld [vmem:[#allocation3 + $0xac] sm:$0xf]
        %v6363 = vld [vmem:[#allocation3 + $0xb0] sm:$0x1]
        %v6364 = vld [vmem:[#allocation3 + $0xb4] sm:$0xe]
        %v6365 = vld [vmem:[#allocation3 + $0xb8] sm:$0xf]
        %v6366 = vld [vmem:[#allocation3 + $0xbc] sm:$0x1]
        %v6415 = vrot.slane %v6319, 5
        %v6416 = vrot.slane %v6415, 4
        %v6417 = vrot.slane %v6320, 5
        %v6418 = vsel %vm1541, %v6416, %v6417
        %v6419 = vrot.slane %v6417, 4
        %v6420 = vrot.slane %v6321, 5
        %v6421 = vsel %vm1541, %v6419, %v6420
        %v6422 = vrot.slane %v6322, 5
        %v6423 = vrot.slane %v6422, 4
        %v6424 = vrot.slane %v6323, 5
        %v6425 = vsel %vm1541, %v6423, %v6424
        %v6426 = vrot.slane %v6424, 4
        %v6427 = vrot.slane %v6324, 5
        %v6428 = vsel %vm1541, %v6426, %v6427
        %v6429 = vrot.slane %v6325, 5
        %v6430 = vrot.slane %v6429, 4
        %v6431 = vrot.slane %v6326, 5
        %v6432 = vsel %vm1541, %v6430, %v6431
        %v6433 = vrot.slane %v6431, 4
        %v6434 = vrot.slane %v6327, 5
        %v6435 = vsel %vm1541, %v6433, %v6434
        %v6436 = vrot.slane %v6328, 5
        %v6437 = vrot.slane %v6436, 4
        %v6438 = vrot.slane %v6329, 5
        %v6439 = vsel %vm1541, %v6437, %v6438
        %v6440 = vrot.slane %v6438, 4
        %v6441 = vrot.slane %v6330, 5
        %v6442 = vsel %vm1541, %v6440, %v6441
        %v6443 = vrot.slane %v6331, 5
        %v6444 = vrot.slane %v6443, 4
        %v6445 = vrot.slane %v6332, 5
        %v6446 = vsel %vm1541, %v6444, %v6445
        %v6447 = vrot.slane %v6445, 4
        %v6448 = vrot.slane %v6333, 5
        %v6449 = vsel %vm1541, %v6447, %v6448
        %v6450 = vrot.slane %v6334, 5
        %v6451 = vrot.slane %v6450, 4
        %v6452 = vrot.slane %v6335, 5
        %v6453 = vsel %vm1541, %v6451, %v6452
        %v6454 = vrot.slane %v6452, 4
        %v6455 = vrot.slane %v6336, 5
        %v6456 = vsel %vm1541, %v6454, %v6455
        %v6457 = vrot.slane %v6337, 5
        %v6458 = vrot.slane %v6457, 4
        %v6459 = vrot.slane %v6338, 5
        %v6460 = vsel %vm1541, %v6458, %v6459
        %v6461 = vrot.slane %v6459, 4
        %v6462 = vrot.slane %v6339, 5
        %v6463 = vsel %vm1541, %v6461, %v6462
        %v6464 = vrot.slane %v6340, 5
        %v6465 = vrot.slane %v6464, 4
        %v6466 = vrot.slane %v6341, 5
        %v6467 = vsel %vm1541, %v6465, %v6466
        %v6468 = vrot.slane %v6466, 4
        %v6469 = vrot.slane %v6342, 5
        %v6470 = vsel %vm1541, %v6468, %v6469
        %v6471 = vrot.slane %v6343, 5
        %v6472 = vrot.slane %v6471, 4
        %v6473 = vrot.slane %v6344, 5
        %v6474 = vsel %vm1541, %v6472, %v6473
        %v6475 = vrot.slane %v6473, 4
        %v6476 = vrot.slane %v6345, 5
        %v6477 = vsel %vm1541, %v6475, %v6476
        %v6478 = vrot.slane %v6346, 5
        %v6479 = vrot.slane %v6478, 4
        %v6480 = vrot.slane %v6347, 5
        %v6481 = vsel %vm1541, %v6479, %v6480
        %v6482 = vrot.slane %v6480, 4
        %v6483 = vrot.slane %v6348, 5
        %v6484 = vsel %vm1541, %v6482, %v6483
        %v6485 = vrot.slane %v6349, 5
        %v6486 = vrot.slane %v6485, 4
        %v6487 = vrot.slane %v6350, 5
        %v6488 = vsel %vm1541, %v6486, %v6487
        %v6489 = vrot.slane %v6487, 4
        %v6490 = vrot.slane %v6351, 5
        %v6491 = vsel %vm1541, %v6489, %v6490
        %v6492 = vrot.slane %v6352, 5
        %v6493 = vrot.slane %v6492, 4
        %v6494 = vrot.slane %v6353, 5
        %v6495 = vsel %vm1541, %v6493, %v6494
        %v6496 = vrot.slane %v6494, 4
        %v6497 = vrot.slane %v6354, 5
        %v6498 = vsel %vm1541, %v6496, %v6497
        %v6499 = vrot.slane %v6355, 5
        %v6500 = vrot.slane %v6499, 4
        %v6501 = vrot.slane %v6356, 5
        %v6502 = vsel %vm1541, %v6500, %v6501
        %v6503 = vrot.slane %v6501, 4
        %v6504 = vrot.slane %v6357, 5
        %v6505 = vsel %vm1541, %v6503, %v6504
        %v6506 = vrot.slane %v6358, 5
        %v6507 = vrot.slane %v6506, 4
        %v6508 = vrot.slane %v6359, 5
        %v6509 = vsel %vm1541, %v6507, %v6508
        %v6510 = vrot.slane %v6508, 4
        %v6511 = vrot.slane %v6360, 5
        %v6512 = vsel %vm1541, %v6510, %v6511
        %v6513 = vrot.slane %v6361, 5
        %v6514 = vrot.slane %v6513, 4
        %v6515 = vrot.slane %v6362, 5
        %v6516 = vsel %vm1541, %v6514, %v6515
        %v6517 = vrot.slane %v6515, 4
        %v6518 = vrot.slane %v6363, 5
        %v6519 = vsel %vm1541, %v6517, %v6518
        %v6520 = vrot.slane %v6364, 5
        %v6521 = vrot.slane %v6520, 4
        %v6522 = vrot.slane %v6365, 5
        %v6523 = vsel %vm1541, %v6521, %v6522
        %v6524 = vrot.slane %v6522, 4
        %v6525 = vrot.slane %v6366, 5
        %v6526 = vsel %vm1541, %v6524, %v6525
        %6559 = vst.msk [vmem:[#allocation5 + $0x4] sm:$0xf] %vm256, %v6418
        %6560 = vst.msk [vmem:[#allocation5 + $0x18] sm:$0xf] %vm256, %v6421
        %6561 = vst.msk [vmem:[#allocation5 + $0x2c] sm:$0xf] %vm256, %v6425
        %6562 = vst.msk [vmem:[#allocation5 + $0x40] sm:$0xf] %vm256, %v6428
        %6563 = vst.msk [vmem:[#allocation5 + $0x54] sm:$0xf] %vm256, %v6432
        %6564 = vst.msk [vmem:[#allocation5 + $0x68] sm:$0xf] %vm256, %v6435
        %6565 = vst.msk [vmem:[#allocation5 + $0x7c] sm:$0xf] %vm256, %v6439
        %6566 = vst.msk [vmem:[#allocation5 + $0x90] sm:$0xf] %vm256, %v6442
        %6567 = vst.msk [vmem:[#allocation5 + $0xa4] sm:$0xf] %vm256, %v6446
        %6568 = vst.msk [vmem:[#allocation5 + $0xb8] sm:$0xf] %vm256, %v6449
        %6569 = vst.msk [vmem:[#allocation5 + $0xcc] sm:$0xf] %vm256, %v6453
        %6570 = vst.msk [vmem:[#allocation5 + $0xe0] sm:$0xf] %vm256, %v6456
        %6571 = vst.msk [vmem:[#allocation5 + $0xf4] sm:$0xf] %vm256, %v6460
        %6572 = vst.msk [vmem:[#allocation5 + $0x108] sm:$0xf] %vm256, %v6463
        %6573 = vst.msk [vmem:[#allocation5 + $0x11c] sm:$0xf] %vm256, %v6467
        %6574 = vst.msk [vmem:[#allocation5 + $0x130] sm:$0xf] %vm256, %v6470
        %6575 = vst.msk [vmem:[#allocation5 + $0x144] sm:$0xf] %vm256, %v6474
        %6576 = vst.msk [vmem:[#allocation5 + $0x158] sm:$0xf] %vm256, %v6477
        %6577 = vst.msk [vmem:[#allocation5 + $0x16c] sm:$0xf] %vm256, %v6481
        %6578 = vst.msk [vmem:[#allocation5 + $0x180] sm:$0xf] %vm256, %v6484
        %6579 = vst.msk [vmem:[#allocation5 + $0x194] sm:$0xf] %vm256, %v6488
        %6580 = vst.msk [vmem:[#allocation5 + $0x1a8] sm:$0xf] %vm256, %v6491
        %6581 = vst.msk [vmem:[#allocation5 + $0x1bc] sm:$0xf] %vm256, %v6495
        %6582 = vst.msk [vmem:[#allocation5 + $0x1d0] sm:$0xf] %vm256, %v6498
        %6583 = vst.msk [vmem:[#allocation5 + $0x1e4] sm:$0xf] %vm256, %v6502
        %6584 = vst.msk [vmem:[#allocation5 + $0x1f8] sm:$0xf] %vm256, %v6505
        %6585 = vst.msk [vmem:[#allocation5 + $0x20c] sm:$0xf] %vm256, %v6509
        %6586 = vst.msk [vmem:[#allocation5 + $0x220] sm:$0xf] %vm256, %v6512
        %6587 = vst.msk [vmem:[#allocation5 + $0x234] sm:$0xf] %vm256, %v6516
        %6588 = vst.msk [vmem:[#allocation5 + $0x248] sm:$0xf] %vm256, %v6519
        %6589 = vst.msk [vmem:[#allocation5 + $0x25c] sm:$0xf] %vm256, %v6523
        %6590 = vst.msk [vmem:[#allocation5 + $0x270] sm:$0xf] %vm256, %v6526
        %v6591 = vld [vmem:[%s5582] sm:$0xf]
        %v6592 = vld [vmem:[%s5582 + $0x4] sm:$0xf]
        %v6593 = vld [vmem:[%s5582 + $0xc] sm:$0xf]
        %v6594 = vld [vmem:[%s5582 + $0x10] sm:$0xf]
        %v6595 = vld [vmem:[%s5582 + $0x18] sm:$0xf]
        %v6596 = vld [vmem:[%s5582 + $0x1c] sm:$0xf]
        %v6597 = vld [vmem:[%s5582 + $0x24] sm:$0xf]
        %v6598 = vld [vmem:[%s5582 + $0x28] sm:$0xf]
        %v6599 = vld [vmem:[%s5582 + $0x30] sm:$0xf]
        %v6600 = vld [vmem:[%s5582 + $0x34] sm:$0xf]
        %v6601 = vld [vmem:[%s5582 + $0x3c] sm:$0xf]
        %v6602 = vld [vmem:[%s5582 + $0x40] sm:$0xf]
        %v6603 = vld [vmem:[%s5582 + $0x48] sm:$0xf]
        %v6604 = vld [vmem:[%s5582 + $0x4c] sm:$0xf]
        %v6605 = vld [vmem:[%s5582 + $0x54] sm:$0xf]
        %v6606 = vld [vmem:[%s5582 + $0x58] sm:$0xf]
        %v6607 = vld [vmem:[%s5582 + $0x60] sm:$0xf]
        %v6608 = vld [vmem:[%s5582 + $0x64] sm:$0xf]
        %v6609 = vld [vmem:[%s5582 + $0x6c] sm:$0xf]
        %v6610 = vld [vmem:[%s5582 + $0x70] sm:$0xf]
        %v6611 = vld [vmem:[%s5582 + $0x78] sm:$0xf]
        %v6612 = vld [vmem:[%s5582 + $0x7c] sm:$0xf]
        %v6613 = vld [vmem:[%s5582 + $0x84] sm:$0xf]
        %v6614 = vld [vmem:[%s5582 + $0x88] sm:$0xf]
        %v6615 = vld [vmem:[%s5582 + $0x90] sm:$0xf]
        %v6616 = vld [vmem:[%s5582 + $0x94] sm:$0xf]
        %v6617 = vld [vmem:[%s5582 + $0x9c] sm:$0xf]
        %v6618 = vld [vmem:[%s5582 + $0xa0] sm:$0xf]
        %v6619 = vld [vmem:[%s5582 + $0xa8] sm:$0xf]
        %v6620 = vld [vmem:[%s5582 + $0xac] sm:$0xf]
        %v6621 = vld [vmem:[%s5582 + $0xb4] sm:$0xf]
        %v6622 = vld [vmem:[%s5582 + $0xb8] sm:$0xf]
        %6655 = vrot.lane.b32.xlu0 %v6591, 64
        %v6656 = vpop.permute.xlu0 %6655
        %6657 = vrot.lane.b32.xlu0 %v6592, 64
        %v6658 = vpop.permute.xlu0 %6657
        %6659 = vrot.lane.b32.xlu0 %v6593, 64
        %v6660 = vpop.permute.xlu0 %6659
        %6661 = vrot.lane.b32.xlu0 %v6594, 64
        %v6662 = vpop.permute.xlu0 %6661
        %6663 = vrot.lane.b32.xlu0 %v6595, 64
        %v6664 = vpop.permute.xlu0 %6663
        %6665 = vrot.lane.b32.xlu0 %v6596, 64
        %v6666 = vpop.permute.xlu0 %6665
        %6667 = vrot.lane.b32.xlu0 %v6597, 64
        %v6668 = vpop.permute.xlu0 %6667
        %6669 = vrot.lane.b32.xlu0 %v6598, 64
        %v6670 = vpop.permute.xlu0 %6669
        %6671 = vrot.lane.b32.xlu0 %v6599, 64
        %v6672 = vpop.permute.xlu0 %6671
        %6673 = vrot.lane.b32.xlu0 %v6600, 64
        %v6674 = vpop.permute.xlu0 %6673
        %6675 = vrot.lane.b32.xlu0 %v6601, 64
        %v6676 = vpop.permute.xlu0 %6675
        %6677 = vrot.lane.b32.xlu0 %v6602, 64
        %v6678 = vpop.permute.xlu0 %6677
        %6679 = vrot.lane.b32.xlu0 %v6603, 64
        %v6680 = vpop.permute.xlu0 %6679
        %6681 = vrot.lane.b32.xlu0 %v6604, 64
        %v6682 = vpop.permute.xlu0 %6681
        %6683 = vrot.lane.b32.xlu0 %v6605, 64
        %v6684 = vpop.permute.xlu0 %6683
        %6685 = vrot.lane.b32.xlu0 %v6606, 64
        %v6686 = vpop.permute.xlu0 %6685
        %6687 = vrot.lane.b32.xlu0 %v6607, 64
        %v6688 = vpop.permute.xlu0 %6687
        %6689 = vrot.lane.b32.xlu0 %v6608, 64
        %v6690 = vpop.permute.xlu0 %6689
        %6691 = vrot.lane.b32.xlu0 %v6609, 64
        %v6692 = vpop.permute.xlu0 %6691
        %6693 = vrot.lane.b32.xlu0 %v6610, 64
        %v6694 = vpop.permute.xlu0 %6693
        %6695 = vrot.lane.b32.xlu0 %v6611, 64
        %v6696 = vpop.permute.xlu0 %6695
        %6697 = vrot.lane.b32.xlu0 %v6612, 64
        %v6698 = vpop.permute.xlu0 %6697
        %6699 = vrot.lane.b32.xlu0 %v6613, 64
        %v6700 = vpop.permute.xlu0 %6699
        %6701 = vrot.lane.b32.xlu0 %v6614, 64
        %v6702 = vpop.permute.xlu0 %6701
        %6703 = vrot.lane.b32.xlu0 %v6615, 64
        %v6704 = vpop.permute.xlu0 %6703
        %6705 = vrot.lane.b32.xlu0 %v6616, 64
        %v6706 = vpop.permute.xlu0 %6705
        %6707 = vrot.lane.b32.xlu0 %v6617, 64
        %v6708 = vpop.permute.xlu0 %6707
        %6709 = vrot.lane.b32.xlu0 %v6618, 64
        %v6710 = vpop.permute.xlu0 %6709
        %6711 = vrot.lane.b32.xlu0 %v6619, 64
        %v6712 = vpop.permute.xlu0 %6711
        %6713 = vrot.lane.b32.xlu0 %v6620, 64
        %v6714 = vpop.permute.xlu0 %6713
        %6715 = vrot.lane.b32.xlu0 %v6621, 64
        %v6716 = vpop.permute.xlu0 %6715
        %6717 = vrot.lane.b32.xlu0 %v6622, 64
        %v6718 = vpop.permute.xlu0 %6717
        %6751 = vst.msk [vmem:[#allocation5 + $0x4] sm:$0xf] %vm1410, %v6656
        %6752 = vst.msk [vmem:[#allocation5 + $0x18] sm:$0xf] %vm1410, %v6658
        %6753 = vst.msk [vmem:[#allocation5 + $0x2c] sm:$0xf] %vm1410, %v6660
        %6754 = vst.msk [vmem:[#allocation5 + $0x40] sm:$0xf] %vm1410, %v6662
        %6755 = vst.msk [vmem:[#allocation5 + $0x54] sm:$0xf] %vm1410, %v6664
        %6756 = vst.msk [vmem:[#allocation5 + $0x68] sm:$0xf] %vm1410, %v6666
        %6757 = vst.msk [vmem:[#allocation5 + $0x7c] sm:$0xf] %vm1410, %v6668
        %6758 = vst.msk [vmem:[#allocation5 + $0x90] sm:$0xf] %vm1410, %v6670
        %6759 = vst.msk [vmem:[#allocation5 + $0xa4] sm:$0xf] %vm1410, %v6672
        %6760 = vst.msk [vmem:[#allocation5 + $0xb8] sm:$0xf] %vm1410, %v6674
        %6761 = vst.msk [vmem:[#allocation5 + $0xcc] sm:$0xf] %vm1410, %v6676
        %6762 = vst.msk [vmem:[#allocation5 + $0xe0] sm:$0xf] %vm1410, %v6678
        %6763 = vst.msk [vmem:[#allocation5 + $0xf4] sm:$0xf] %vm1410, %v6680
        %6764 = vst.msk [vmem:[#allocation5 + $0x108] sm:$0xf] %vm1410, %v6682
        %6765 = vst.msk [vmem:[#allocation5 + $0x11c] sm:$0xf] %vm1410, %v6684
        %6766 = vst.msk [vmem:[#allocation5 + $0x130] sm:$0xf] %vm1410, %v6686
        %6767 = vst.msk [vmem:[#allocation5 + $0x144] sm:$0xf] %vm1410, %v6688
        %6768 = vst.msk [vmem:[#allocation5 + $0x158] sm:$0xf] %vm1410, %v6690
        %6769 = vst.msk [vmem:[#allocation5 + $0x16c] sm:$0xf] %vm1410, %v6692
        %6770 = vst.msk [vmem:[#allocation5 + $0x180] sm:$0xf] %vm1410, %v6694
        %6771 = vst.msk [vmem:[#allocation5 + $0x194] sm:$0xf] %vm1410, %v6696
        %6772 = vst.msk [vmem:[#allocation5 + $0x1a8] sm:$0xf] %vm1410, %v6698
        %6773 = vst.msk [vmem:[#allocation5 + $0x1bc] sm:$0xf] %vm1410, %v6700
        %6774 = vst.msk [vmem:[#allocation5 + $0x1d0] sm:$0xf] %vm1410, %v6702
        %6775 = vst.msk [vmem:[#allocation5 + $0x1e4] sm:$0xf] %vm1410, %v6704
        %6776 = vst.msk [vmem:[#allocation5 + $0x1f8] sm:$0xf] %vm1410, %v6706
        %6777 = vst.msk [vmem:[#allocation5 + $0x20c] sm:$0xf] %vm1410, %v6708
        %6778 = vst.msk [vmem:[#allocation5 + $0x220] sm:$0xf] %vm1410, %v6710
        %6779 = vst.msk [vmem:[#allocation5 + $0x234] sm:$0xf] %vm1410, %v6712
        %6780 = vst.msk [vmem:[#allocation5 + $0x248] sm:$0xf] %vm1410, %v6714
        %6781 = vst.msk [vmem:[#allocation5 + $0x25c] sm:$0xf] %vm1410, %v6716
        %6782 = vst.msk [vmem:[#allocation5 + $0x270] sm:$0xf] %vm1410, %v6718
        %v6783 = vld [vmem:[%s5582] sm:$0xf]
        %v6784 = vld [vmem:[%s5582 + $0x4] sm:$0xf]
        %v6785 = vld [vmem:[%s5582 + $0x8] sm:$0x1]
        %v6786 = vld [vmem:[%s5582 + $0xc] sm:$0xf]
        %v6787 = vld [vmem:[%s5582 + $0x10] sm:$0xf]
        %v6788 = vld [vmem:[%s5582 + $0x14] sm:$0x1]
        %v6789 = vld [vmem:[%s5582 + $0x18] sm:$0xf]
        %v6790 = vld [vmem:[%s5582 + $0x1c] sm:$0xf]
        %v6791 = vld [vmem:[%s5582 + $0x20] sm:$0x1]
        %v6792 = vld [vmem:[%s5582 + $0x24] sm:$0xf]
        %v6793 = vld [vmem:[%s5582 + $0x28] sm:$0xf]
        %v6794 = vld [vmem:[%s5582 + $0x2c] sm:$0x1]
        %v6795 = vld [vmem:[%s5582 + $0x30] sm:$0xf]
        %v6796 = vld [vmem:[%s5582 + $0x34] sm:$0xf]
        %v6797 = vld [vmem:[%s5582 + $0x38] sm:$0x1]
        %v6798 = vld [vmem:[%s5582 + $0x3c] sm:$0xf]
        %v6799 = vld [vmem:[%s5582 + $0x40] sm:$0xf]
        %v6800 = vld [vmem:[%s5582 + $0x44] sm:$0x1]
        %v6801 = vld [vmem:[%s5582 + $0x48] sm:$0xf]
        %v6802 = vld [vmem:[%s5582 + $0x4c] sm:$0xf]
        %v6803 = vld [vmem:[%s5582 + $0x50] sm:$0x1]
        %v6804 = vld [vmem:[%s5582 + $0x54] sm:$0xf]
        %v6805 = vld [vmem:[%s5582 + $0x58] sm:$0xf]
        %v6806 = vld [vmem:[%s5582 + $0x5c] sm:$0x1]
        %v6807 = vld [vmem:[%s5582 + $0x60] sm:$0xf]
        %v6808 = vld [vmem:[%s5582 + $0x64] sm:$0xf]
        %v6809 = vld [vmem:[%s5582 + $0x68] sm:$0x1]
        %v6810 = vld [vmem:[%s5582 + $0x6c] sm:$0xf]
        %v6811 = vld [vmem:[%s5582 + $0x70] sm:$0xf]
        %v6812 = vld [vmem:[%s5582 + $0x74] sm:$0x1]
        %v6813 = vld [vmem:[%s5582 + $0x78] sm:$0xf]
        %v6814 = vld [vmem:[%s5582 + $0x7c] sm:$0xf]
        %v6815 = vld [vmem:[%s5582 + $0x80] sm:$0x1]
        %v6816 = vld [vmem:[%s5582 + $0x84] sm:$0xf]
        %v6817 = vld [vmem:[%s5582 + $0x88] sm:$0xf]
        %v6818 = vld [vmem:[%s5582 + $0x8c] sm:$0x1]
        %v6819 = vld [vmem:[%s5582 + $0x90] sm:$0xf]
        %v6820 = vld [vmem:[%s5582 + $0x94] sm:$0xf]
        %v6821 = vld [vmem:[%s5582 + $0x98] sm:$0x1]
        %v6822 = vld [vmem:[%s5582 + $0x9c] sm:$0xf]
        %v6823 = vld [vmem:[%s5582 + $0xa0] sm:$0xf]
        %v6824 = vld [vmem:[%s5582 + $0xa4] sm:$0x1]
        %v6825 = vld [vmem:[%s5582 + $0xa8] sm:$0xf]
        %v6826 = vld [vmem:[%s5582 + $0xac] sm:$0xf]
        %v6827 = vld [vmem:[%s5582 + $0xb0] sm:$0x1]
        %v6828 = vld [vmem:[%s5582 + $0xb4] sm:$0xf]
        %v6829 = vld [vmem:[%s5582 + $0xb8] sm:$0xf]
        %v6830 = vld [vmem:[%s5582 + $0xbc] sm:$0x1]
        %v6832 = vshrl.u32 %v6783, 16
        %v6834 = vrot.slane %v6832, 4
        %v6835 = vshll.u32 %v6783, 16
        %v6837 = vrot.slane %v6835, 5
        %v6838 = vor.u32 %v6834, %v6837
        %v6839 = vrot.slane %v6838, 4
        %v6841 = vshll.u32 %v6784, 16
        %v6843 = vrot.slane %v6841, 5
        %v6844 = vsel %vm929, %v6839, %v6843
        %v6845 = vshrl.u32 %v6784, 16
        %v6847 = vrot.slane %v6845, 4
        %v6848 = vor.u32 %v6847, %v6843
        %v6849 = vrot.slane %v6848, 4
        %v6851 = vshll.u32 %v6785, 16
        %v6853 = vrot.slane %v6851, 5
        %v6854 = vsel %vm929, %v6849, %v6853
        %v6856 = vshrl.u32 %v6786, 16
        %v6858 = vrot.slane %v6856, 4
        %v6859 = vshll.u32 %v6786, 16
        %v6861 = vrot.slane %v6859, 5
        %v6862 = vor.u32 %v6858, %v6861
        %v6863 = vrot.slane %v6862, 4
        %v6865 = vshll.u32 %v6787, 16
        %v6867 = vrot.slane %v6865, 5
        %v6868 = vsel %vm929, %v6863, %v6867
        %v6869 = vshrl.u32 %v6787, 16
        %v6871 = vrot.slane %v6869, 4
        %v6872 = vor.u32 %v6871, %v6867
        %v6873 = vrot.slane %v6872, 4
        %v6875 = vshll.u32 %v6788, 16
        %v6877 = vrot.slane %v6875, 5
        %v6878 = vsel %vm929, %v6873, %v6877
        %v6880 = vshrl.u32 %v6789, 16
        %v6882 = vrot.slane %v6880, 4
        %v6883 = vshll.u32 %v6789, 16
        %v6885 = vrot.slane %v6883, 5
        %v6886 = vor.u32 %v6882, %v6885
        %v6887 = vrot.slane %v6886, 4
        %v6889 = vshll.u32 %v6790, 16
        %v6891 = vrot.slane %v6889, 5
        %v6892 = vsel %vm929, %v6887, %v6891
        %v6893 = vshrl.u32 %v6790, 16
        %v6895 = vrot.slane %v6893, 4
        %v6896 = vor.u32 %v6895, %v6891
        %v6897 = vrot.slane %v6896, 4
        %v6899 = vshll.u32 %v6791, 16
        %v6901 = vrot.slane %v6899, 5
        %v6902 = vsel %vm929, %v6897, %v6901
        %v6904 = vshrl.u32 %v6792, 16
        %v6906 = vrot.slane %v6904, 4
        %v6907 = vshll.u32 %v6792, 16
        %v6909 = vrot.slane %v6907, 5
        %v6910 = vor.u32 %v6906, %v6909
        %v6911 = vrot.slane %v6910, 4
        %v6913 = vshll.u32 %v6793, 16
        %v6915 = vrot.slane %v6913, 5
        %v6916 = vsel %vm929, %v6911, %v6915
        %v6917 = vshrl.u32 %v6793, 16
        %v6919 = vrot.slane %v6917, 4
        %v6920 = vor.u32 %v6919, %v6915
        %v6921 = vrot.slane %v6920, 4
        %v6923 = vshll.u32 %v6794, 16
        %v6925 = vrot.slane %v6923, 5
        %v6926 = vsel %vm929, %v6921, %v6925
        %v6928 = vshrl.u32 %v6795, 16
        %v6930 = vrot.slane %v6928, 4
        %v6931 = vshll.u32 %v6795, 16
        %v6933 = vrot.slane %v6931, 5
        %v6934 = vor.u32 %v6930, %v6933
        %v6935 = vrot.slane %v6934, 4
        %v6937 = vshll.u32 %v6796, 16
        %v6939 = vrot.slane %v6937, 5
        %v6940 = vsel %vm929, %v6935, %v6939
        %v6941 = vshrl.u32 %v6796, 16
        %v6943 = vrot.slane %v6941, 4
        %v6944 = vor.u32 %v6943, %v6939
        %v6945 = vrot.slane %v6944, 4
        %v6947 = vshll.u32 %v6797, 16
        %v6949 = vrot.slane %v6947, 5
        %v6950 = vsel %vm929, %v6945, %v6949
        %v6952 = vshrl.u32 %v6798, 16
        %v6954 = vrot.slane %v6952, 4
        %v6955 = vshll.u32 %v6798, 16
        %v6957 = vrot.slane %v6955, 5
        %v6958 = vor.u32 %v6954, %v6957
        %v6959 = vrot.slane %v6958, 4
        %v6961 = vshll.u32 %v6799, 16
        %v6963 = vrot.slane %v6961, 5
        %v6964 = vsel %vm929, %v6959, %v6963
        %v6965 = vshrl.u32 %v6799, 16
        %v6967 = vrot.slane %v6965, 4
        %v6968 = vor.u32 %v6967, %v6963
        %v6969 = vrot.slane %v6968, 4
        %v6971 = vshll.u32 %v6800, 16
        %v6973 = vrot.slane %v6971, 5
        %v6974 = vsel %vm929, %v6969, %v6973
        %v6976 = vshrl.u32 %v6801, 16
        %v6978 = vrot.slane %v6976, 4
        %v6979 = vshll.u32 %v6801, 16
        %v6981 = vrot.slane %v6979, 5
        %v6982 = vor.u32 %v6978, %v6981
        %v6983 = vrot.slane %v6982, 4
        %v6985 = vshll.u32 %v6802, 16
        %v6987 = vrot.slane %v6985, 5
        %v6988 = vsel %vm929, %v6983, %v6987
        %v6989 = vshrl.u32 %v6802, 16
        %v6991 = vrot.slane %v6989, 4
        %v6992 = vor.u32 %v6991, %v6987
        %v6993 = vrot.slane %v6992, 4
        %v6995 = vshll.u32 %v6803, 16
        %v6997 = vrot.slane %v6995, 5
        %v6998 = vsel %vm929, %v6993, %v6997
        %v7000 = vshrl.u32 %v6804, 16
        %v7002 = vrot.slane %v7000, 4
        %v7003 = vshll.u32 %v6804, 16
        %v7005 = vrot.slane %v7003, 5
        %v7006 = vor.u32 %v7002, %v7005
        %v7007 = vrot.slane %v7006, 4
        %v7009 = vshll.u32 %v6805, 16
        %v7011 = vrot.slane %v7009, 5
        %v7012 = vsel %vm929, %v7007, %v7011
        %v7013 = vshrl.u32 %v6805, 16
        %v7015 = vrot.slane %v7013, 4
        %v7016 = vor.u32 %v7015, %v7011
        %v7017 = vrot.slane %v7016, 4
        %v7019 = vshll.u32 %v6806, 16
        %v7021 = vrot.slane %v7019, 5
        %v7022 = vsel %vm929, %v7017, %v7021
        %v7024 = vshrl.u32 %v6807, 16
        %v7026 = vrot.slane %v7024, 4
        %v7027 = vshll.u32 %v6807, 16
        %v7029 = vrot.slane %v7027, 5
        %v7030 = vor.u32 %v7026, %v7029
        %v7031 = vrot.slane %v7030, 4
        %v7033 = vshll.u32 %v6808, 16
        %v7035 = vrot.slane %v7033, 5
        %v7036 = vsel %vm929, %v7031, %v7035
        %v7037 = vshrl.u32 %v6808, 16
        %v7039 = vrot.slane %v7037, 4
        %v7040 = vor.u32 %v7039, %v7035
        %v7041 = vrot.slane %v7040, 4
        %v7043 = vshll.u32 %v6809, 16
        %v7045 = vrot.slane %v7043, 5
        %v7046 = vsel %vm929, %v7041, %v7045
        %v7048 = vshrl.u32 %v6810, 16
        %v7050 = vrot.slane %v7048, 4
        %v7051 = vshll.u32 %v6810, 16
        %v7053 = vrot.slane %v7051, 5
        %v7054 = vor.u32 %v7050, %v7053
        %v7055 = vrot.slane %v7054, 4
        %v7057 = vshll.u32 %v6811, 16
        %v7059 = vrot.slane %v7057, 5
        %v7060 = vsel %vm929, %v7055, %v7059
        %v7061 = vshrl.u32 %v6811, 16
        %v7063 = vrot.slane %v7061, 4
        %v7064 = vor.u32 %v7063, %v7059
        %v7065 = vrot.slane %v7064, 4
        %v7067 = vshll.u32 %v6812, 16
        %v7069 = vrot.slane %v7067, 5
        %v7070 = vsel %vm929, %v7065, %v7069
        %v7072 = vshrl.u32 %v6813, 16
        %v7074 = vrot.slane %v7072, 4
        %v7075 = vshll.u32 %v6813, 16
        %v7077 = vrot.slane %v7075, 5
        %v7078 = vor.u32 %v7074, %v7077
        %v7079 = vrot.slane %v7078, 4
        %v7081 = vshll.u32 %v6814, 16
        %v7083 = vrot.slane %v7081, 5
        %v7084 = vsel %vm929, %v7079, %v7083
        %v7085 = vshrl.u32 %v6814, 16
        %v7087 = vrot.slane %v7085, 4
        %v7088 = vor.u32 %v7087, %v7083
        %v7089 = vrot.slane %v7088, 4
        %v7091 = vshll.u32 %v6815, 16
        %v7093 = vrot.slane %v7091, 5
        %v7094 = vsel %vm929, %v7089, %v7093
        %v7096 = vshrl.u32 %v6816, 16
        %v7098 = vrot.slane %v7096, 4
        %v7099 = vshll.u32 %v6816, 16
        %v7101 = vrot.slane %v7099, 5
        %v7102 = vor.u32 %v7098, %v7101
        %v7103 = vrot.slane %v7102, 4
        %v7105 = vshll.u32 %v6817, 16
        %v7107 = vrot.slane %v7105, 5
        %v7108 = vsel %vm929, %v7103, %v7107
        %v7109 = vshrl.u32 %v6817, 16
        %v7111 = vrot.slane %v7109, 4
        %v7112 = vor.u32 %v7111, %v7107
        %v7113 = vrot.slane %v7112, 4
        %v7115 = vshll.u32 %v6818, 16
        %v7117 = vrot.slane %v7115, 5
        %v7118 = vsel %vm929, %v7113, %v7117
        %v7120 = vshrl.u32 %v6819, 16
        %v7122 = vrot.slane %v7120, 4
        %v7123 = vshll.u32 %v6819, 16
        %v7125 = vrot.slane %v7123, 5
        %v7126 = vor.u32 %v7122, %v7125
        %v7127 = vrot.slane %v7126, 4
        %v7129 = vshll.u32 %v6820, 16
        %v7131 = vrot.slane %v7129, 5
        %v7132 = vsel %vm929, %v7127, %v7131
        %v7133 = vshrl.u32 %v6820, 16
        %v7135 = vrot.slane %v7133, 4
        %v7136 = vor.u32 %v7135, %v7131
        %v7137 = vrot.slane %v7136, 4
        %v7139 = vshll.u32 %v6821, 16
        %v7141 = vrot.slane %v7139, 5
        %v7142 = vsel %vm929, %v7137, %v7141
        %v7144 = vshrl.u32 %v6822, 16
        %v7146 = vrot.slane %v7144, 4
        %v7147 = vshll.u32 %v6822, 16
        %v7149 = vrot.slane %v7147, 5
        %v7150 = vor.u32 %v7146, %v7149
        %v7151 = vrot.slane %v7150, 4
        %v7153 = vshll.u32 %v6823, 16
        %v7155 = vrot.slane %v7153, 5
        %v7156 = vsel %vm929, %v7151, %v7155
        %v7157 = vshrl.u32 %v6823, 16
        %v7159 = vrot.slane %v7157, 4
        %v7160 = vor.u32 %v7159, %v7155
        %v7161 = vrot.slane %v7160, 4
        %v7163 = vshll.u32 %v6824, 16
        %v7165 = vrot.slane %v7163, 5
        %v7166 = vsel %vm929, %v7161, %v7165
        %v7168 = vshrl.u32 %v6825, 16
        %v7170 = vrot.slane %v7168, 4
        %v7171 = vshll.u32 %v6825, 16
        %v7173 = vrot.slane %v7171, 5
        %v7174 = vor.u32 %v7170, %v7173
        %v7175 = vrot.slane %v7174, 4
        %v7177 = vshll.u32 %v6826, 16
        %v7179 = vrot.slane %v7177, 5
        %v7180 = vsel %vm929, %v7175, %v7179
        %v7181 = vshrl.u32 %v6826, 16
        %v7183 = vrot.slane %v7181, 4
        %v7184 = vor.u32 %v7183, %v7179
        %v7185 = vrot.slane %v7184, 4
        %v7187 = vshll.u32 %v6827, 16
        %v7189 = vrot.slane %v7187, 5
        %v7190 = vsel %vm929, %v7185, %v7189
        %v7192 = vshrl.u32 %v6828, 16
        %v7194 = vrot.slane %v7192, 4
        %v7195 = vshll.u32 %v6828, 16
        %v7197 = vrot.slane %v7195, 5
        %v7198 = vor.u32 %v7194, %v7197
        %v7199 = vrot.slane %v7198, 4
        %v7201 = vshll.u32 %v6829, 16
        %v7203 = vrot.slane %v7201, 5
        %v7204 = vsel %vm929, %v7199, %v7203
        %v7205 = vshrl.u32 %v6829, 16
        %v7207 = vrot.slane %v7205, 4
        %v7208 = vor.u32 %v7207, %v7203
        %v7209 = vrot.slane %v7208, 4
        %v7211 = vshll.u32 %v6830, 16
        %v7213 = vrot.slane %v7211, 5
        %v7214 = vsel %vm929, %v7209, %v7213
        %7247 = vst.msk [vmem:[#allocation5 + $0x8] sm:$0xf] %vm256, %v6844
        %7248 = vst.msk [vmem:[#allocation5 + $0x1c] sm:$0xf] %vm256, %v6854
        %7249 = vst.msk [vmem:[#allocation5 + $0x30] sm:$0xf] %vm256, %v6868
        %7250 = vst.msk [vmem:[#allocation5 + $0x44] sm:$0xf] %vm256, %v6878
        %7251 = vst.msk [vmem:[#allocation5 + $0x58] sm:$0xf] %vm256, %v6892
        %7252 = vst.msk [vmem:[#allocation5 + $0x6c] sm:$0xf] %vm256, %v6902
        %7253 = vst.msk [vmem:[#allocation5 + $0x80] sm:$0xf] %vm256, %v6916
        %7254 = vst.msk [vmem:[#allocation5 + $0x94] sm:$0xf] %vm256, %v6926
        %7255 = vst.msk [vmem:[#allocation5 + $0xa8] sm:$0xf] %vm256, %v6940
        %7256 = vst.msk [vmem:[#allocation5 + $0xbc] sm:$0xf] %vm256, %v6950
        %7257 = vst.msk [vmem:[#allocation5 + $0xd0] sm:$0xf] %vm256, %v6964
        %7258 = vst.msk [vmem:[#allocation5 + $0xe4] sm:$0xf] %vm256, %v6974
        %7259 = vst.msk [vmem:[#allocation5 + $0xf8] sm:$0xf] %vm256, %v6988
        %7260 = vst.msk [vmem:[#allocation5 + $0x10c] sm:$0xf] %vm256, %v6998
        %7261 = vst.msk [vmem:[#allocation5 + $0x120] sm:$0xf] %vm256, %v7012
        %7262 = vst.msk [vmem:[#allocation5 + $0x134] sm:$0xf] %vm256, %v7022
        %7263 = vst.msk [vmem:[#allocation5 + $0x148] sm:$0xf] %vm256, %v7036
        %7264 = vst.msk [vmem:[#allocation5 + $0x15c] sm:$0xf] %vm256, %v7046
        %7265 = vst.msk [vmem:[#allocation5 + $0x170] sm:$0xf] %vm256, %v7060
        %7266 = vst.msk [vmem:[#allocation5 + $0x184] sm:$0xf] %vm256, %v7070
        %7267 = vst.msk [vmem:[#allocation5 + $0x198] sm:$0xf] %vm256, %v7084
        %7268 = vst.msk [vmem:[#allocation5 + $0x1ac] sm:$0xf] %vm256, %v7094
        %7269 = vst.msk [vmem:[#allocation5 + $0x1c0] sm:$0xf] %vm256, %v7108
        %7270 = vst.msk [vmem:[#allocation5 + $0x1d4] sm:$0xf] %vm256, %v7118
        %7271 = vst.msk [vmem:[#allocation5 + $0x1e8] sm:$0xf] %vm256, %v7132
        %7272 = vst.msk [vmem:[#allocation5 + $0x1fc] sm:$0xf] %vm256, %v7142
        %7273 = vst.msk [vmem:[#allocation5 + $0x210] sm:$0xf] %vm256, %v7156
        %7274 = vst.msk [vmem:[#allocation5 + $0x224] sm:$0xf] %vm256, %v7166
        %7275 = vst.msk [vmem:[#allocation5 + $0x238] sm:$0xf] %vm256, %v7180
        %7276 = vst.msk [vmem:[#allocation5 + $0x24c] sm:$0xf] %vm256, %v7190
        %7277 = vst.msk [vmem:[#allocation5 + $0x260] sm:$0xf] %vm256, %v7204
        %7278 = vst.msk [vmem:[#allocation5 + $0x274] sm:$0xf] %vm256, %v7214
        %v7279 = vld [vmem:[%s5582] sm:$0xe]
        %v7280 = vld [vmem:[%s5582 + $0x4] sm:$0xf]
        %v7281 = vld [vmem:[%s5582 + $0x8] sm:$0x1]
        %v7282 = vld [vmem:[%s5582 + $0xc] sm:$0xe]
        %v7283 = vld [vmem:[%s5582 + $0x10] sm:$0xf]
        %v7284 = vld [vmem:[%s5582 + $0x14] sm:$0x1]
        %v7285 = vld [vmem:[%s5582 + $0x18] sm:$0xe]
        %v7286 = vld [vmem:[%s5582 + $0x1c] sm:$0xf]
        %v7287 = vld [vmem:[%s5582 + $0x20] sm:$0x1]
        %v7288 = vld [vmem:[%s5582 + $0x24] sm:$0xe]
        %v7289 = vld [vmem:[%s5582 + $0x28] sm:$0xf]
        %v7290 = vld [vmem:[%s5582 + $0x2c] sm:$0x1]
        %v7291 = vld [vmem:[%s5582 + $0x30] sm:$0xe]
        %v7292 = vld [vmem:[%s5582 + $0x34] sm:$0xf]
        %v7293 = vld [vmem:[%s5582 + $0x38] sm:$0x1]
        %v7294 = vld [vmem:[%s5582 + $0x3c] sm:$0xe]
        %v7295 = vld [vmem:[%s5582 + $0x40] sm:$0xf]
        %v7296 = vld [vmem:[%s5582 + $0x44] sm:$0x1]
        %v7297 = vld [vmem:[%s5582 + $0x48] sm:$0xe]
        %v7298 = vld [vmem:[%s5582 + $0x4c] sm:$0xf]
        %v7299 = vld [vmem:[%s5582 + $0x50] sm:$0x1]
        %v7300 = vld [vmem:[%s5582 + $0x54] sm:$0xe]
        %v7301 = vld [vmem:[%s5582 + $0x58] sm:$0xf]
        %v7302 = vld [vmem:[%s5582 + $0x5c] sm:$0x1]
        %v7303 = vld [vmem:[%s5582 + $0x60] sm:$0xe]
        %v7304 = vld [vmem:[%s5582 + $0x64] sm:$0xf]
        %v7305 = vld [vmem:[%s5582 + $0x68] sm:$0x1]
        %v7306 = vld [vmem:[%s5582 + $0x6c] sm:$0xe]
        %v7307 = vld [vmem:[%s5582 + $0x70] sm:$0xf]
        %v7308 = vld [vmem:[%s5582 + $0x74] sm:$0x1]
        %v7309 = vld [vmem:[%s5582 + $0x78] sm:$0xe]
        %v7310 = vld [vmem:[%s5582 + $0x7c] sm:$0xf]
        %v7311 = vld [vmem:[%s5582 + $0x80] sm:$0x1]
        %v7312 = vld [vmem:[%s5582 + $0x84] sm:$0xe]
        %v7313 = vld [vmem:[%s5582 + $0x88] sm:$0xf]
        %v7314 = vld [vmem:[%s5582 + $0x8c] sm:$0x1]
        %v7315 = vld [vmem:[%s5582 + $0x90] sm:$0xe]
        %v7316 = vld [vmem:[%s5582 + $0x94] sm:$0xf]
        %v7317 = vld [vmem:[%s5582 + $0x98] sm:$0x1]
        %v7318 = vld [vmem:[%s5582 + $0x9c] sm:$0xe]
        %v7319 = vld [vmem:[%s5582 + $0xa0] sm:$0xf]
        %v7320 = vld [vmem:[%s5582 + $0xa4] sm:$0x1]
        %v7321 = vld [vmem:[%s5582 + $0xa8] sm:$0xe]
        %v7322 = vld [vmem:[%s5582 + $0xac] sm:$0xf]
        %v7323 = vld [vmem:[%s5582 + $0xb0] sm:$0x1]
        %v7324 = vld [vmem:[%s5582 + $0xb4] sm:$0xe]
        %v7325 = vld [vmem:[%s5582 + $0xb8] sm:$0xf]
        %v7326 = vld [vmem:[%s5582 + $0xbc] sm:$0x1]
        %v7375 = vrot.slane %v7279, 5
        %v7376 = vrot.slane %v7375, 4
        %v7377 = vrot.slane %v7280, 5
        %v7378 = vsel %vm1541, %v7376, %v7377
        %v7379 = vrot.slane %v7377, 4
        %v7380 = vrot.slane %v7281, 5
        %v7381 = vsel %vm1541, %v7379, %v7380
        %v7382 = vrot.slane %v7282, 5
        %v7383 = vrot.slane %v7382, 4
        %v7384 = vrot.slane %v7283, 5
        %v7385 = vsel %vm1541, %v7383, %v7384
        %v7386 = vrot.slane %v7384, 4
        %v7387 = vrot.slane %v7284, 5
        %v7388 = vsel %vm1541, %v7386, %v7387
        %v7389 = vrot.slane %v7285, 5
        %v7390 = vrot.slane %v7389, 4
        %v7391 = vrot.slane %v7286, 5
        %v7392 = vsel %vm1541, %v7390, %v7391
        %v7393 = vrot.slane %v7391, 4
        %v7394 = vrot.slane %v7287, 5
        %v7395 = vsel %vm1541, %v7393, %v7394
        %v7396 = vrot.slane %v7288, 5
        %v7397 = vrot.slane %v7396, 4
        %v7398 = vrot.slane %v7289, 5
        %v7399 = vsel %vm1541, %v7397, %v7398
        %v7400 = vrot.slane %v7398, 4
        %v7401 = vrot.slane %v7290, 5
        %v7402 = vsel %vm1541, %v7400, %v7401
        %v7403 = vrot.slane %v7291, 5
        %v7404 = vrot.slane %v7403, 4
        %v7405 = vrot.slane %v7292, 5
        %v7406 = vsel %vm1541, %v7404, %v7405
        %v7407 = vrot.slane %v7405, 4
        %v7408 = vrot.slane %v7293, 5
        %v7409 = vsel %vm1541, %v7407, %v7408
        %v7410 = vrot.slane %v7294, 5
        %v7411 = vrot.slane %v7410, 4
        %v7412 = vrot.slane %v7295, 5
        %v7413 = vsel %vm1541, %v7411, %v7412
        %v7414 = vrot.slane %v7412, 4
        %v7415 = vrot.slane %v7296, 5
        %v7416 = vsel %vm1541, %v7414, %v7415
        %v7417 = vrot.slane %v7297, 5
        %v7418 = vrot.slane %v7417, 4
        %v7419 = vrot.slane %v7298, 5
        %v7420 = vsel %vm1541, %v7418, %v7419
        %v7421 = vrot.slane %v7419, 4
        %v7422 = vrot.slane %v7299, 5
        %v7423 = vsel %vm1541, %v7421, %v7422
        %v7424 = vrot.slane %v7300, 5
        %v7425 = vrot.slane %v7424, 4
        %v7426 = vrot.slane %v7301, 5
        %v7427 = vsel %vm1541, %v7425, %v7426
        %v7428 = vrot.slane %v7426, 4
        %v7429 = vrot.slane %v7302, 5
        %v7430 = vsel %vm1541, %v7428, %v7429
        %v7431 = vrot.slane %v7303, 5
        %v7432 = vrot.slane %v7431, 4
        %v7433 = vrot.slane %v7304, 5
        %v7434 = vsel %vm1541, %v7432, %v7433
        %v7435 = vrot.slane %v7433, 4
        %v7436 = vrot.slane %v7305, 5
        %v7437 = vsel %vm1541, %v7435, %v7436
        %v7438 = vrot.slane %v7306, 5
        %v7439 = vrot.slane %v7438, 4
        %v7440 = vrot.slane %v7307, 5
        %v7441 = vsel %vm1541, %v7439, %v7440
        %v7442 = vrot.slane %v7440, 4
        %v7443 = vrot.slane %v7308, 5
        %v7444 = vsel %vm1541, %v7442, %v7443
        %v7445 = vrot.slane %v7309, 5
        %v7446 = vrot.slane %v7445, 4
        %v7447 = vrot.slane %v7310, 5
        %v7448 = vsel %vm1541, %v7446, %v7447
        %v7449 = vrot.slane %v7447, 4
        %v7450 = vrot.slane %v7311, 5
        %v7451 = vsel %vm1541, %v7449, %v7450
        %v7452 = vrot.slane %v7312, 5
        %v7453 = vrot.slane %v7452, 4
        %v7454 = vrot.slane %v7313, 5
        %v7455 = vsel %vm1541, %v7453, %v7454
        %v7456 = vrot.slane %v7454, 4
        %v7457 = vrot.slane %v7314, 5
        %v7458 = vsel %vm1541, %v7456, %v7457
        %v7459 = vrot.slane %v7315, 5
        %v7460 = vrot.slane %v7459, 4
        %v7461 = vrot.slane %v7316, 5
        %v7462 = vsel %vm1541, %v7460, %v7461
        %v7463 = vrot.slane %v7461, 4
        %v7464 = vrot.slane %v7317, 5
        %v7465 = vsel %vm1541, %v7463, %v7464
        %v7466 = vrot.slane %v7318, 5
        %v7467 = vrot.slane %v7466, 4
        %v7468 = vrot.slane %v7319, 5
        %v7469 = vsel %vm1541, %v7467, %v7468
        %v7470 = vrot.slane %v7468, 4
        %v7471 = vrot.slane %v7320, 5
        %v7472 = vsel %vm1541, %v7470, %v7471
        %v7473 = vrot.slane %v7321, 5
        %v7474 = vrot.slane %v7473, 4
        %v7475 = vrot.slane %v7322, 5
        %v7476 = vsel %vm1541, %v7474, %v7475
        %v7477 = vrot.slane %v7475, 4
        %v7478 = vrot.slane %v7323, 5
        %v7479 = vsel %vm1541, %v7477, %v7478
        %v7480 = vrot.slane %v7324, 5
        %v7481 = vrot.slane %v7480, 4
        %v7482 = vrot.slane %v7325, 5
        %v7483 = vsel %vm1541, %v7481, %v7482
        %v7484 = vrot.slane %v7482, 4
        %v7485 = vrot.slane %v7326, 5
        %v7486 = vsel %vm1541, %v7484, %v7485
        %7487 = vrot.lane.b32.xlu0 %v7378, 64
        %v7488 = vpop.permute.xlu0 %7487
        %7489 = vrot.lane.b32.xlu0 %v7381, 64
        %v7490 = vpop.permute.xlu0 %7489
        %7491 = vrot.lane.b32.xlu0 %v7385, 64
        %v7492 = vpop.permute.xlu0 %7491
        %7493 = vrot.lane.b32.xlu0 %v7388, 64
        %v7494 = vpop.permute.xlu0 %7493
        %7495 = vrot.lane.b32.xlu0 %v7392, 64
        %v7496 = vpop.permute.xlu0 %7495
        %7497 = vrot.lane.b32.xlu0 %v7395, 64
        %v7498 = vpop.permute.xlu0 %7497
        %7499 = vrot.lane.b32.xlu0 %v7399, 64
        %v7500 = vpop.permute.xlu0 %7499
        %7501 = vrot.lane.b32.xlu0 %v7402, 64
        %v7502 = vpop.permute.xlu0 %7501
        %7503 = vrot.lane.b32.xlu0 %v7406, 64
        %v7504 = vpop.permute.xlu0 %7503
        %7505 = vrot.lane.b32.xlu0 %v7409, 64
        %v7506 = vpop.permute.xlu0 %7505
        %7507 = vrot.lane.b32.xlu0 %v7413, 64
        %v7508 = vpop.permute.xlu0 %7507
        %7509 = vrot.lane.b32.xlu0 %v7416, 64
        %v7510 = vpop.permute.xlu0 %7509
        %7511 = vrot.lane.b32.xlu0 %v7420, 64
        %v7512 = vpop.permute.xlu0 %7511
        %7513 = vrot.lane.b32.xlu0 %v7423, 64
        %v7514 = vpop.permute.xlu0 %7513
        %7515 = vrot.lane.b32.xlu0 %v7427, 64
        %v7516 = vpop.permute.xlu0 %7515
        %7517 = vrot.lane.b32.xlu0 %v7430, 64
        %v7518 = vpop.permute.xlu0 %7517
        %7519 = vrot.lane.b32.xlu0 %v7434, 64
        %v7520 = vpop.permute.xlu0 %7519
        %7521 = vrot.lane.b32.xlu0 %v7437, 64
        %v7522 = vpop.permute.xlu0 %7521
        %7523 = vrot.lane.b32.xlu0 %v7441, 64
        %v7524 = vpop.permute.xlu0 %7523
        %7525 = vrot.lane.b32.xlu0 %v7444, 64
        %v7526 = vpop.permute.xlu0 %7525
        %7527 = vrot.lane.b32.xlu0 %v7448, 64
        %v7528 = vpop.permute.xlu0 %7527
        %7529 = vrot.lane.b32.xlu0 %v7451, 64
        %v7530 = vpop.permute.xlu0 %7529
        %7531 = vrot.lane.b32.xlu0 %v7455, 64
        %v7532 = vpop.permute.xlu0 %7531
        %7533 = vrot.lane.b32.xlu0 %v7458, 64
        %v7534 = vpop.permute.xlu0 %7533
        %7535 = vrot.lane.b32.xlu0 %v7462, 64
        %v7536 = vpop.permute.xlu0 %7535
        %7537 = vrot.lane.b32.xlu0 %v7465, 64
        %v7538 = vpop.permute.xlu0 %7537
        %7539 = vrot.lane.b32.xlu0 %v7469, 64
        %v7540 = vpop.permute.xlu0 %7539
        %7541 = vrot.lane.b32.xlu0 %v7472, 64
        %v7542 = vpop.permute.xlu0 %7541
        %7543 = vrot.lane.b32.xlu0 %v7476, 64
        %v7544 = vpop.permute.xlu0 %7543
        %7545 = vrot.lane.b32.xlu0 %v7479, 64
        %v7546 = vpop.permute.xlu0 %7545
        %7547 = vrot.lane.b32.xlu0 %v7483, 64
        %v7548 = vpop.permute.xlu0 %7547
        %7549 = vrot.lane.b32.xlu0 %v7486, 64
        %v7550 = vpop.permute.xlu0 %7549
        %7583 = vst.msk [vmem:[#allocation5 + $0x8] sm:$0xf] %vm1410, %v7488
        %7584 = vst.msk [vmem:[#allocation5 + $0x1c] sm:$0xf] %vm1410, %v7490
        %7585 = vst.msk [vmem:[#allocation5 + $0x30] sm:$0xf] %vm1410, %v7492
        %7586 = vst.msk [vmem:[#allocation5 + $0x44] sm:$0xf] %vm1410, %v7494
        %7587 = vst.msk [vmem:[#allocation5 + $0x58] sm:$0xf] %vm1410, %v7496
        %7588 = vst.msk [vmem:[#allocation5 + $0x6c] sm:$0xf] %vm1410, %v7498
        %7589 = vst.msk [vmem:[#allocation5 + $0x80] sm:$0xf] %vm1410, %v7500
        %7590 = vst.msk [vmem:[#allocation5 + $0x94] sm:$0xf] %vm1410, %v7502
        %7591 = vst.msk [vmem:[#allocation5 + $0xa8] sm:$0xf] %vm1410, %v7504
        %7592 = vst.msk [vmem:[#allocation5 + $0xbc] sm:$0xf] %vm1410, %v7506
        %7593 = vst.msk [vmem:[#allocation5 + $0xd0] sm:$0xf] %vm1410, %v7508
        %7594 = vst.msk [vmem:[#allocation5 + $0xe4] sm:$0xf] %vm1410, %v7510
        %7595 = vst.msk [vmem:[#allocation5 + $0xf8] sm:$0xf] %vm1410, %v7512
        %7596 = vst.msk [vmem:[#allocation5 + $0x10c] sm:$0xf] %vm1410, %v7514
        %7597 = vst.msk [vmem:[#allocation5 + $0x120] sm:$0xf] %vm1410, %v7516
        %7598 = vst.msk [vmem:[#allocation5 + $0x134] sm:$0xf] %vm1410, %v7518
        %7599 = vst.msk [vmem:[#allocation5 + $0x148] sm:$0xf] %vm1410, %v7520
        %7600 = vst.msk [vmem:[#allocation5 + $0x15c] sm:$0xf] %vm1410, %v7522
        %7601 = vst.msk [vmem:[#allocation5 + $0x170] sm:$0xf] %vm1410, %v7524
        %7602 = vst.msk [vmem:[#allocation5 + $0x184] sm:$0xf] %vm1410, %v7526
        %7603 = vst.msk [vmem:[#allocation5 + $0x198] sm:$0xf] %vm1410, %v7528
        %7604 = vst.msk [vmem:[#allocation5 + $0x1ac] sm:$0xf] %vm1410, %v7530
        %7605 = vst.msk [vmem:[#allocation5 + $0x1c0] sm:$0xf] %vm1410, %v7532
        %7606 = vst.msk [vmem:[#allocation5 + $0x1d4] sm:$0xf] %vm1410, %v7534
        %7607 = vst.msk [vmem:[#allocation5 + $0x1e8] sm:$0xf] %vm1410, %v7536
        %7608 = vst.msk [vmem:[#allocation5 + $0x1fc] sm:$0xf] %vm1410, %v7538
        %7609 = vst.msk [vmem:[#allocation5 + $0x210] sm:$0xf] %vm1410, %v7540
        %7610 = vst.msk [vmem:[#allocation5 + $0x224] sm:$0xf] %vm1410, %v7542
        %7611 = vst.msk [vmem:[#allocation5 + $0x238] sm:$0xf] %vm1410, %v7544
        %7612 = vst.msk [vmem:[#allocation5 + $0x24c] sm:$0xf] %vm1410, %v7546
        %7613 = vst.msk [vmem:[#allocation5 + $0x260] sm:$0xf] %vm1410, %v7548
        %7614 = vst.msk [vmem:[#allocation5 + $0x274] sm:$0xf] %vm1410, %v7550
        %s7615 = scalar_lea.vmem [#allocation3], 24
        %v7616 = vld [vmem:[%s7615] sm:$0xf]
        %v7617 = vld [vmem:[%s7615 + $0x4] sm:$0xf]
        %v7618 = vld [vmem:[%s7615 + $0xc] sm:$0xf]
        %v7619 = vld [vmem:[%s7615 + $0x10] sm:$0xf]
        %v7620 = vld [vmem:[%s7615 + $0x18] sm:$0xf]
        %v7621 = vld [vmem:[%s7615 + $0x1c] sm:$0xf]
        %v7622 = vld [vmem:[%s7615 + $0x24] sm:$0xf]
        %v7623 = vld [vmem:[%s7615 + $0x28] sm:$0xf]
        %v7624 = vld [vmem:[%s7615 + $0x30] sm:$0xf]
        %v7625 = vld [vmem:[%s7615 + $0x34] sm:$0xf]
        %v7626 = vld [vmem:[%s7615 + $0x3c] sm:$0xf]
        %v7627 = vld [vmem:[%s7615 + $0x40] sm:$0xf]
        %v7628 = vld [vmem:[%s7615 + $0x48] sm:$0xf]
        %v7629 = vld [vmem:[%s7615 + $0x4c] sm:$0xf]
        %v7630 = vld [vmem:[%s7615 + $0x54] sm:$0xf]
        %v7631 = vld [vmem:[%s7615 + $0x58] sm:$0xf]
        %v7632 = vld [vmem:[%s7615 + $0x60] sm:$0xf]
        %v7633 = vld [vmem:[%s7615 + $0x64] sm:$0xf]
        %v7634 = vld [vmem:[%s7615 + $0x6c] sm:$0xf]
        %v7635 = vld [vmem:[%s7615 + $0x70] sm:$0xf]
        %v7636 = vld [vmem:[%s7615 + $0x78] sm:$0xf]
        %v7637 = vld [vmem:[%s7615 + $0x7c] sm:$0xf]
        %v7638 = vld [vmem:[%s7615 + $0x84] sm:$0xf]
        %v7639 = vld [vmem:[%s7615 + $0x88] sm:$0xf]
        %v7640 = vld [vmem:[%s7615 + $0x90] sm:$0xf]
        %v7641 = vld [vmem:[%s7615 + $0x94] sm:$0xf]
        %v7642 = vld [vmem:[%s7615 + $0x9c] sm:$0xf]
        %v7643 = vld [vmem:[%s7615 + $0xa0] sm:$0xf]
        %v7644 = vld [vmem:[%s7615 + $0xa8] sm:$0xf]
        %v7645 = vld [vmem:[%s7615 + $0xac] sm:$0xf]
        %v7646 = vld [vmem:[%s7615 + $0xb4] sm:$0xf]
        %v7647 = vld [vmem:[%s7615 + $0xb8] sm:$0xf]
        %7648 = vst.msk [vmem:[#allocation5 + $0xc] sm:$0xf] %vm256, %v7616
        %7649 = vst.msk [vmem:[#allocation5 + $0x20] sm:$0xf] %vm256, %v7617
        %7650 = vst.msk [vmem:[#allocation5 + $0x34] sm:$0xf] %vm256, %v7618
        %7651 = vst.msk [vmem:[#allocation5 + $0x48] sm:$0xf] %vm256, %v7619
        %7652 = vst.msk [vmem:[#allocation5 + $0x5c] sm:$0xf] %vm256, %v7620
        %7653 = vst.msk [vmem:[#allocation5 + $0x70] sm:$0xf] %vm256, %v7621
        %7654 = vst.msk [vmem:[#allocation5 + $0x84] sm:$0xf] %vm256, %v7622
        %7655 = vst.msk [vmem:[#allocation5 + $0x98] sm:$0xf] %vm256, %v7623
        %7656 = vst.msk [vmem:[#allocation5 + $0xac] sm:$0xf] %vm256, %v7624
        %7657 = vst.msk [vmem:[#allocation5 + $0xc0] sm:$0xf] %vm256, %v7625
        %7658 = vst.msk [vmem:[#allocation5 + $0xd4] sm:$0xf] %vm256, %v7626
        %7659 = vst.msk [vmem:[#allocation5 + $0xe8] sm:$0xf] %vm256, %v7627
        %7660 = vst.msk [vmem:[#allocation5 + $0xfc] sm:$0xf] %vm256, %v7628
        %7661 = vst.msk [vmem:[#allocation5 + $0x110] sm:$0xf] %vm256, %v7629
        %7662 = vst.msk [vmem:[#allocation5 + $0x124] sm:$0xf] %vm256, %v7630
        %7663 = vst.msk [vmem:[#allocation5 + $0x138] sm:$0xf] %vm256, %v7631
        %7664 = vst.msk [vmem:[#allocation5 + $0x14c] sm:$0xf] %vm256, %v7632
        %7665 = vst.msk [vmem:[#allocation5 + $0x160] sm:$0xf] %vm256, %v7633
        %7666 = vst.msk [vmem:[#allocation5 + $0x174] sm:$0xf] %vm256, %v7634
        %7667 = vst.msk [vmem:[#allocation5 + $0x188] sm:$0xf] %vm256, %v7635
        %7668 = vst.msk [vmem:[#allocation5 + $0x19c] sm:$0xf] %vm256, %v7636
        %7669 = vst.msk [vmem:[#allocation5 + $0x1b0] sm:$0xf] %vm256, %v7637
        %7670 = vst.msk [vmem:[#allocation5 + $0x1c4] sm:$0xf] %vm256, %v7638
        %7671 = vst.msk [vmem:[#allocation5 + $0x1d8] sm:$0xf] %vm256, %v7639
        %7672 = vst.msk [vmem:[#allocation5 + $0x1ec] sm:$0xf] %vm256, %v7640
        %7673 = vst.msk [vmem:[#allocation5 + $0x200] sm:$0xf] %vm256, %v7641
        %7674 = vst.msk [vmem:[#allocation5 + $0x214] sm:$0xf] %vm256, %v7642
        %7675 = vst.msk [vmem:[#allocation5 + $0x228] sm:$0xf] %vm256, %v7643
        %7676 = vst.msk [vmem:[#allocation5 + $0x23c] sm:$0xf] %vm256, %v7644
        %7677 = vst.msk [vmem:[#allocation5 + $0x250] sm:$0xf] %vm256, %v7645
        %7678 = vst.msk [vmem:[#allocation5 + $0x264] sm:$0xf] %vm256, %v7646
        %7679 = vst.msk [vmem:[#allocation5 + $0x278] sm:$0xf] %vm256, %v7647
        %v7680 = vld [vmem:[%s7615] sm:$0xf]
        %v7681 = vld [vmem:[%s7615 + $0x4] sm:$0xf]
        %v7682 = vld [vmem:[%s7615 + $0x8] sm:$0x1]
        %v7683 = vld [vmem:[%s7615 + $0xc] sm:$0xf]
        %v7684 = vld [vmem:[%s7615 + $0x10] sm:$0xf]
        %v7685 = vld [vmem:[%s7615 + $0x14] sm:$0x1]
        %v7686 = vld [vmem:[%s7615 + $0x18] sm:$0xf]
        %v7687 = vld [vmem:[%s7615 + $0x1c] sm:$0xf]
        %v7688 = vld [vmem:[%s7615 + $0x20] sm:$0x1]
        %v7689 = vld [vmem:[%s7615 + $0x24] sm:$0xf]
        %v7690 = vld [vmem:[%s7615 + $0x28] sm:$0xf]
        %v7691 = vld [vmem:[%s7615 + $0x2c] sm:$0x1]
        %v7692 = vld [vmem:[%s7615 + $0x30] sm:$0xf]
        %v7693 = vld [vmem:[%s7615 + $0x34] sm:$0xf]
        %v7694 = vld [vmem:[%s7615 + $0x38] sm:$0x1]
        %v7695 = vld [vmem:[%s7615 + $0x3c] sm:$0xf]
        %v7696 = vld [vmem:[%s7615 + $0x40] sm:$0xf]
        %v7697 = vld [vmem:[%s7615 + $0x44] sm:$0x1]
        %v7698 = vld [vmem:[%s7615 + $0x48] sm:$0xf]
        %v7699 = vld [vmem:[%s7615 + $0x4c] sm:$0xf]
        %v7700 = vld [vmem:[%s7615 + $0x50] sm:$0x1]
        %v7701 = vld [vmem:[%s7615 + $0x54] sm:$0xf]
        %v7702 = vld [vmem:[%s7615 + $0x58] sm:$0xf]
        %v7703 = vld [vmem:[%s7615 + $0x5c] sm:$0x1]
        %v7704 = vld [vmem:[%s7615 + $0x60] sm:$0xf]
        %v7705 = vld [vmem:[%s7615 + $0x64] sm:$0xf]
        %v7706 = vld [vmem:[%s7615 + $0x68] sm:$0x1]
        %v7707 = vld [vmem:[%s7615 + $0x6c] sm:$0xf]
        %v7708 = vld [vmem:[%s7615 + $0x70] sm:$0xf]
        %v7709 = vld [vmem:[%s7615 + $0x74] sm:$0x1]
        %v7710 = vld [vmem:[%s7615 + $0x78] sm:$0xf]
        %v7711 = vld [vmem:[%s7615 + $0x7c] sm:$0xf]
        %v7712 = vld [vmem:[%s7615 + $0x80] sm:$0x1]
        %v7713 = vld [vmem:[%s7615 + $0x84] sm:$0xf]
        %v7714 = vld [vmem:[%s7615 + $0x88] sm:$0xf]
        %v7715 = vld [vmem:[%s7615 + $0x8c] sm:$0x1]
        %v7716 = vld [vmem:[%s7615 + $0x90] sm:$0xf]
        %v7717 = vld [vmem:[%s7615 + $0x94] sm:$0xf]
        %v7718 = vld [vmem:[%s7615 + $0x98] sm:$0x1]
        %v7719 = vld [vmem:[%s7615 + $0x9c] sm:$0xf]
        %v7720 = vld [vmem:[%s7615 + $0xa0] sm:$0xf]
        %v7721 = vld [vmem:[%s7615 + $0xa4] sm:$0x1]
        %v7722 = vld [vmem:[%s7615 + $0xa8] sm:$0xf]
        %v7723 = vld [vmem:[%s7615 + $0xac] sm:$0xf]
        %v7724 = vld [vmem:[%s7615 + $0xb0] sm:$0x1]
        %v7725 = vld [vmem:[%s7615 + $0xb4] sm:$0xf]
        %v7726 = vld [vmem:[%s7615 + $0xb8] sm:$0xf]
        %v7727 = vld [vmem:[%s7615 + $0xbc] sm:$0x1]
        %v7729 = vshrl.u32 %v7680, 16
        %v7731 = vrot.slane %v7729, 4
        %v7732 = vshll.u32 %v7680, 16
        %v7734 = vrot.slane %v7732, 5
        %v7735 = vor.u32 %v7731, %v7734
        %v7736 = vrot.slane %v7735, 4
        %v7738 = vshll.u32 %v7681, 16
        %v7740 = vrot.slane %v7738, 5
        %v7741 = vsel %vm929, %v7736, %v7740
        %v7742 = vshrl.u32 %v7681, 16
        %v7744 = vrot.slane %v7742, 4
        %v7745 = vor.u32 %v7744, %v7740
        %v7746 = vrot.slane %v7745, 4
        %v7748 = vshll.u32 %v7682, 16
        %v7750 = vrot.slane %v7748, 5
        %v7751 = vsel %vm929, %v7746, %v7750
        %v7753 = vshrl.u32 %v7683, 16
        %v7755 = vrot.slane %v7753, 4
        %v7756 = vshll.u32 %v7683, 16
        %v7758 = vrot.slane %v7756, 5
        %v7759 = vor.u32 %v7755, %v7758
        %v7760 = vrot.slane %v7759, 4
        %v7762 = vshll.u32 %v7684, 16
        %v7764 = vrot.slane %v7762, 5
        %v7765 = vsel %vm929, %v7760, %v7764
        %v7766 = vshrl.u32 %v7684, 16
        %v7768 = vrot.slane %v7766, 4
        %v7769 = vor.u32 %v7768, %v7764
        %v7770 = vrot.slane %v7769, 4
        %v7772 = vshll.u32 %v7685, 16
        %v7774 = vrot.slane %v7772, 5
        %v7775 = vsel %vm929, %v7770, %v7774
        %v7777 = vshrl.u32 %v7686, 16
        %v7779 = vrot.slane %v7777, 4
        %v7780 = vshll.u32 %v7686, 16
        %v7782 = vrot.slane %v7780, 5
        %v7783 = vor.u32 %v7779, %v7782
        %v7784 = vrot.slane %v7783, 4
        %v7786 = vshll.u32 %v7687, 16
        %v7788 = vrot.slane %v7786, 5
        %v7789 = vsel %vm929, %v7784, %v7788
        %v7790 = vshrl.u32 %v7687, 16
        %v7792 = vrot.slane %v7790, 4
        %v7793 = vor.u32 %v7792, %v7788
        %v7794 = vrot.slane %v7793, 4
        %v7796 = vshll.u32 %v7688, 16
        %v7798 = vrot.slane %v7796, 5
        %v7799 = vsel %vm929, %v7794, %v7798
        %v7801 = vshrl.u32 %v7689, 16
        %v7803 = vrot.slane %v7801, 4
        %v7804 = vshll.u32 %v7689, 16
        %v7806 = vrot.slane %v7804, 5
        %v7807 = vor.u32 %v7803, %v7806
        %v7808 = vrot.slane %v7807, 4
        %v7810 = vshll.u32 %v7690, 16
        %v7812 = vrot.slane %v7810, 5
        %v7813 = vsel %vm929, %v7808, %v7812
        %v7814 = vshrl.u32 %v7690, 16
        %v7816 = vrot.slane %v7814, 4
        %v7817 = vor.u32 %v7816, %v7812
        %v7818 = vrot.slane %v7817, 4
        %v7820 = vshll.u32 %v7691, 16
        %v7822 = vrot.slane %v7820, 5
        %v7823 = vsel %vm929, %v7818, %v7822
        %v7825 = vshrl.u32 %v7692, 16
        %v7827 = vrot.slane %v7825, 4
        %v7828 = vshll.u32 %v7692, 16
        %v7830 = vrot.slane %v7828, 5
        %v7831 = vor.u32 %v7827, %v7830
        %v7832 = vrot.slane %v7831, 4
        %v7834 = vshll.u32 %v7693, 16
        %v7836 = vrot.slane %v7834, 5
        %v7837 = vsel %vm929, %v7832, %v7836
        %v7838 = vshrl.u32 %v7693, 16
        %v7840 = vrot.slane %v7838, 4
        %v7841 = vor.u32 %v7840, %v7836
        %v7842 = vrot.slane %v7841, 4
        %v7844 = vshll.u32 %v7694, 16
        %v7846 = vrot.slane %v7844, 5
        %v7847 = vsel %vm929, %v7842, %v7846
        %v7849 = vshrl.u32 %v7695, 16
        %v7851 = vrot.slane %v7849, 4
        %v7852 = vshll.u32 %v7695, 16
        %v7854 = vrot.slane %v7852, 5
        %v7855 = vor.u32 %v7851, %v7854
        %v7856 = vrot.slane %v7855, 4
        %v7858 = vshll.u32 %v7696, 16
        %v7860 = vrot.slane %v7858, 5
        %v7861 = vsel %vm929, %v7856, %v7860
        %v7862 = vshrl.u32 %v7696, 16
        %v7864 = vrot.slane %v7862, 4
        %v7865 = vor.u32 %v7864, %v7860
        %v7866 = vrot.slane %v7865, 4
        %v7868 = vshll.u32 %v7697, 16
        %v7870 = vrot.slane %v7868, 5
        %v7871 = vsel %vm929, %v7866, %v7870
        %v7873 = vshrl.u32 %v7698, 16
        %v7875 = vrot.slane %v7873, 4
        %v7876 = vshll.u32 %v7698, 16
        %v7878 = vrot.slane %v7876, 5
        %v7879 = vor.u32 %v7875, %v7878
        %v7880 = vrot.slane %v7879, 4
        %v7882 = vshll.u32 %v7699, 16
        %v7884 = vrot.slane %v7882, 5
        %v7885 = vsel %vm929, %v7880, %v7884
        %v7886 = vshrl.u32 %v7699, 16
        %v7888 = vrot.slane %v7886, 4
        %v7889 = vor.u32 %v7888, %v7884
        %v7890 = vrot.slane %v7889, 4
        %v7892 = vshll.u32 %v7700, 16
        %v7894 = vrot.slane %v7892, 5
        %v7895 = vsel %vm929, %v7890, %v7894
        %v7897 = vshrl.u32 %v7701, 16
        %v7899 = vrot.slane %v7897, 4
        %v7900 = vshll.u32 %v7701, 16
        %v7902 = vrot.slane %v7900, 5
        %v7903 = vor.u32 %v7899, %v7902
        %v7904 = vrot.slane %v7903, 4
        %v7906 = vshll.u32 %v7702, 16
        %v7908 = vrot.slane %v7906, 5
        %v7909 = vsel %vm929, %v7904, %v7908
        %v7910 = vshrl.u32 %v7702, 16
        %v7912 = vrot.slane %v7910, 4
        %v7913 = vor.u32 %v7912, %v7908
        %v7914 = vrot.slane %v7913, 4
        %v7916 = vshll.u32 %v7703, 16
        %v7918 = vrot.slane %v7916, 5
        %v7919 = vsel %vm929, %v7914, %v7918
        %v7921 = vshrl.u32 %v7704, 16
        %v7923 = vrot.slane %v7921, 4
        %v7924 = vshll.u32 %v7704, 16
        %v7926 = vrot.slane %v7924, 5
        %v7927 = vor.u32 %v7923, %v7926
        %v7928 = vrot.slane %v7927, 4
        %v7930 = vshll.u32 %v7705, 16
        %v7932 = vrot.slane %v7930, 5
        %v7933 = vsel %vm929, %v7928, %v7932
        %v7934 = vshrl.u32 %v7705, 16
        %v7936 = vrot.slane %v7934, 4
        %v7937 = vor.u32 %v7936, %v7932
        %v7938 = vrot.slane %v7937, 4
        %v7940 = vshll.u32 %v7706, 16
        %v7942 = vrot.slane %v7940, 5
        %v7943 = vsel %vm929, %v7938, %v7942
        %v7945 = vshrl.u32 %v7707, 16
        %v7947 = vrot.slane %v7945, 4
        %v7948 = vshll.u32 %v7707, 16
        %v7950 = vrot.slane %v7948, 5
        %v7951 = vor.u32 %v7947, %v7950
        %v7952 = vrot.slane %v7951, 4
        %v7954 = vshll.u32 %v7708, 16
        %v7956 = vrot.slane %v7954, 5
        %v7957 = vsel %vm929, %v7952, %v7956
        %v7958 = vshrl.u32 %v7708, 16
        %v7960 = vrot.slane %v7958, 4
        %v7961 = vor.u32 %v7960, %v7956
        %v7962 = vrot.slane %v7961, 4
        %v7964 = vshll.u32 %v7709, 16
        %v7966 = vrot.slane %v7964, 5
        %v7967 = vsel %vm929, %v7962, %v7966
        %v7969 = vshrl.u32 %v7710, 16
        %v7971 = vrot.slane %v7969, 4
        %v7972 = vshll.u32 %v7710, 16
        %v7974 = vrot.slane %v7972, 5
        %v7975 = vor.u32 %v7971, %v7974
        %v7976 = vrot.slane %v7975, 4
        %v7978 = vshll.u32 %v7711, 16
        %v7980 = vrot.slane %v7978, 5
        %v7981 = vsel %vm929, %v7976, %v7980
        %v7982 = vshrl.u32 %v7711, 16
        %v7984 = vrot.slane %v7982, 4
        %v7985 = vor.u32 %v7984, %v7980
        %v7986 = vrot.slane %v7985, 4
        %v7988 = vshll.u32 %v7712, 16
        %v7990 = vrot.slane %v7988, 5
        %v7991 = vsel %vm929, %v7986, %v7990
        %v7993 = vshrl.u32 %v7713, 16
        %v7995 = vrot.slane %v7993, 4
        %v7996 = vshll.u32 %v7713, 16
        %v7998 = vrot.slane %v7996, 5
        %v7999 = vor.u32 %v7995, %v7998
        %v8000 = vrot.slane %v7999, 4
        %v8002 = vshll.u32 %v7714, 16
        %v8004 = vrot.slane %v8002, 5
        %v8005 = vsel %vm929, %v8000, %v8004
        %v8006 = vshrl.u32 %v7714, 16
        %v8008 = vrot.slane %v8006, 4
        %v8009 = vor.u32 %v8008, %v8004
        %v8010 = vrot.slane %v8009, 4
        %v8012 = vshll.u32 %v7715, 16
        %v8014 = vrot.slane %v8012, 5
        %v8015 = vsel %vm929, %v8010, %v8014
        %v8017 = vshrl.u32 %v7716, 16
        %v8019 = vrot.slane %v8017, 4
        %v8020 = vshll.u32 %v7716, 16
        %v8022 = vrot.slane %v8020, 5
        %v8023 = vor.u32 %v8019, %v8022
        %v8024 = vrot.slane %v8023, 4
        %v8026 = vshll.u32 %v7717, 16
        %v8028 = vrot.slane %v8026, 5
        %v8029 = vsel %vm929, %v8024, %v8028
        %v8030 = vshrl.u32 %v7717, 16
        %v8032 = vrot.slane %v8030, 4
        %v8033 = vor.u32 %v8032, %v8028
        %v8034 = vrot.slane %v8033, 4
        %v8036 = vshll.u32 %v7718, 16
        %v8038 = vrot.slane %v8036, 5
        %v8039 = vsel %vm929, %v8034, %v8038
        %v8041 = vshrl.u32 %v7719, 16
        %v8043 = vrot.slane %v8041, 4
        %v8044 = vshll.u32 %v7719, 16
        %v8046 = vrot.slane %v8044, 5
        %v8047 = vor.u32 %v8043, %v8046
        %v8048 = vrot.slane %v8047, 4
        %v8050 = vshll.u32 %v7720, 16
        %v8052 = vrot.slane %v8050, 5
        %v8053 = vsel %vm929, %v8048, %v8052
        %v8054 = vshrl.u32 %v7720, 16
        %v8056 = vrot.slane %v8054, 4
        %v8057 = vor.u32 %v8056, %v8052
        %v8058 = vrot.slane %v8057, 4
        %v8060 = vshll.u32 %v7721, 16
        %v8062 = vrot.slane %v8060, 5
        %v8063 = vsel %vm929, %v8058, %v8062
        %v8065 = vshrl.u32 %v7722, 16
        %v8067 = vrot.slane %v8065, 4
        %v8068 = vshll.u32 %v7722, 16
        %v8070 = vrot.slane %v8068, 5
        %v8071 = vor.u32 %v8067, %v8070
        %v8072 = vrot.slane %v8071, 4
        %v8074 = vshll.u32 %v7723, 16
        %v8076 = vrot.slane %v8074, 5
        %v8077 = vsel %vm929, %v8072, %v8076
        %v8078 = vshrl.u32 %v7723, 16
        %v8080 = vrot.slane %v8078, 4
        %v8081 = vor.u32 %v8080, %v8076
        %v8082 = vrot.slane %v8081, 4
        %v8084 = vshll.u32 %v7724, 16
        %v8086 = vrot.slane %v8084, 5
        %v8087 = vsel %vm929, %v8082, %v8086
        %v8089 = vshrl.u32 %v7725, 16
        %v8091 = vrot.slane %v8089, 4
        %v8092 = vshll.u32 %v7725, 16
        %v8094 = vrot.slane %v8092, 5
        %v8095 = vor.u32 %v8091, %v8094
        %v8096 = vrot.slane %v8095, 4
        %v8098 = vshll.u32 %v7726, 16
        %v8100 = vrot.slane %v8098, 5
        %v8101 = vsel %vm929, %v8096, %v8100
        %v8102 = vshrl.u32 %v7726, 16
        %v8104 = vrot.slane %v8102, 4
        %v8105 = vor.u32 %v8104, %v8100
        %v8106 = vrot.slane %v8105, 4
        %v8108 = vshll.u32 %v7727, 16
        %v8110 = vrot.slane %v8108, 5
        %v8111 = vsel %vm929, %v8106, %v8110
        %8112 = vrot.lane.b32.xlu0 %v7741, 64
        %v8113 = vpop.permute.xlu0 %8112
        %8114 = vrot.lane.b32.xlu0 %v7751, 64
        %v8115 = vpop.permute.xlu0 %8114
        %8116 = vrot.lane.b32.xlu0 %v7765, 64
        %v8117 = vpop.permute.xlu0 %8116
        %8118 = vrot.lane.b32.xlu0 %v7775, 64
        %v8119 = vpop.permute.xlu0 %8118
        %8120 = vrot.lane.b32.xlu0 %v7789, 64
        %v8121 = vpop.permute.xlu0 %8120
        %8122 = vrot.lane.b32.xlu0 %v7799, 64
        %v8123 = vpop.permute.xlu0 %8122
        %8124 = vrot.lane.b32.xlu0 %v7813, 64
        %v8125 = vpop.permute.xlu0 %8124
        %8126 = vrot.lane.b32.xlu0 %v7823, 64
        %v8127 = vpop.permute.xlu0 %8126
        %8128 = vrot.lane.b32.xlu0 %v7837, 64
        %v8129 = vpop.permute.xlu0 %8128
        %8130 = vrot.lane.b32.xlu0 %v7847, 64
        %v8131 = vpop.permute.xlu0 %8130
        %8132 = vrot.lane.b32.xlu0 %v7861, 64
        %v8133 = vpop.permute.xlu0 %8132
        %8134 = vrot.lane.b32.xlu0 %v7871, 64
        %v8135 = vpop.permute.xlu0 %8134
        %8136 = vrot.lane.b32.xlu0 %v7885, 64
        %v8137 = vpop.permute.xlu0 %8136
        %8138 = vrot.lane.b32.xlu0 %v7895, 64
        %v8139 = vpop.permute.xlu0 %8138
        %8140 = vrot.lane.b32.xlu0 %v7909, 64
        %v8141 = vpop.permute.xlu0 %8140
        %8142 = vrot.lane.b32.xlu0 %v7919, 64
        %v8143 = vpop.permute.xlu0 %8142
        %8144 = vrot.lane.b32.xlu0 %v7933, 64
        %v8145 = vpop.permute.xlu0 %8144
        %8146 = vrot.lane.b32.xlu0 %v7943, 64
        %v8147 = vpop.permute.xlu0 %8146
        %8148 = vrot.lane.b32.xlu0 %v7957, 64
        %v8149 = vpop.permute.xlu0 %8148
        %8150 = vrot.lane.b32.xlu0 %v7967, 64
        %v8151 = vpop.permute.xlu0 %8150
        %8152 = vrot.lane.b32.xlu0 %v7981, 64
        %v8153 = vpop.permute.xlu0 %8152
        %8154 = vrot.lane.b32.xlu0 %v7991, 64
        %v8155 = vpop.permute.xlu0 %8154
        %8156 = vrot.lane.b32.xlu0 %v8005, 64
        %v8157 = vpop.permute.xlu0 %8156
        %8158 = vrot.lane.b32.xlu0 %v8015, 64
        %v8159 = vpop.permute.xlu0 %8158
        %8160 = vrot.lane.b32.xlu0 %v8029, 64
        %v8161 = vpop.permute.xlu0 %8160
        %8162 = vrot.lane.b32.xlu0 %v8039, 64
        %v8163 = vpop.permute.xlu0 %8162
        %8164 = vrot.lane.b32.xlu0 %v8053, 64
        %v8165 = vpop.permute.xlu0 %8164
        %8166 = vrot.lane.b32.xlu0 %v8063, 64
        %v8167 = vpop.permute.xlu0 %8166
        %8168 = vrot.lane.b32.xlu0 %v8077, 64
        %v8169 = vpop.permute.xlu0 %8168
        %8170 = vrot.lane.b32.xlu0 %v8087, 64
        %v8171 = vpop.permute.xlu0 %8170
        %8172 = vrot.lane.b32.xlu0 %v8101, 64
        %v8173 = vpop.permute.xlu0 %8172
        %8174 = vrot.lane.b32.xlu0 %v8111, 64
        %v8175 = vpop.permute.xlu0 %8174
        %8208 = vst.msk [vmem:[#allocation5 + $0xc] sm:$0xf] %vm1410, %v8113
        %8209 = vst.msk [vmem:[#allocation5 + $0x20] sm:$0xf] %vm1410, %v8115
        %8210 = vst.msk [vmem:[#allocation5 + $0x34] sm:$0xf] %vm1410, %v8117
        %8211 = vst.msk [vmem:[#allocation5 + $0x48] sm:$0xf] %vm1410, %v8119
        %8212 = vst.msk [vmem:[#allocation5 + $0x5c] sm:$0xf] %vm1410, %v8121
        %8213 = vst.msk [vmem:[#allocation5 + $0x70] sm:$0xf] %vm1410, %v8123
        %8214 = vst.msk [vmem:[#allocation5 + $0x84] sm:$0xf] %vm1410, %v8125
        %8215 = vst.msk [vmem:[#allocation5 + $0x98] sm:$0xf] %vm1410, %v8127
        %8216 = vst.msk [vmem:[#allocation5 + $0xac] sm:$0xf] %vm1410, %v8129
        %8217 = vst.msk [vmem:[#allocation5 + $0xc0] sm:$0xf] %vm1410, %v8131
        %8218 = vst.msk [vmem:[#allocation5 + $0xd4] sm:$0xf] %vm1410, %v8133
        %8219 = vst.msk [vmem:[#allocation5 + $0xe8] sm:$0xf] %vm1410, %v8135
        %8220 = vst.msk [vmem:[#allocation5 + $0xfc] sm:$0xf] %vm1410, %v8137
        %8221 = vst.msk [vmem:[#allocation5 + $0x110] sm:$0xf] %vm1410, %v8139
        %8222 = vst.msk [vmem:[#allocation5 + $0x124] sm:$0xf] %vm1410, %v8141
        %8223 = vst.msk [vmem:[#allocation5 + $0x138] sm:$0xf] %vm1410, %v8143
        %8224 = vst.msk [vmem:[#allocation5 + $0x14c] sm:$0xf] %vm1410, %v8145
        %8225 = vst.msk [vmem:[#allocation5 + $0x160] sm:$0xf] %vm1410, %v8147
        %8226 = vst.msk [vmem:[#allocation5 + $0x174] sm:$0xf] %vm1410, %v8149
        %8227 = vst.msk [vmem:[#allocation5 + $0x188] sm:$0xf] %vm1410, %v8151
        %8228 = vst.msk [vmem:[#allocation5 + $0x19c] sm:$0xf] %vm1410, %v8153
        %8229 = vst.msk [vmem:[#allocation5 + $0x1b0] sm:$0xf] %vm1410, %v8155
        %8230 = vst.msk [vmem:[#allocation5 + $0x1c4] sm:$0xf] %vm1410, %v8157
        %8231 = vst.msk [vmem:[#allocation5 + $0x1d8] sm:$0xf] %vm1410, %v8159
        %8232 = vst.msk [vmem:[#allocation5 + $0x1ec] sm:$0xf] %vm1410, %v8161
        %8233 = vst.msk [vmem:[#allocation5 + $0x200] sm:$0xf] %vm1410, %v8163
        %8234 = vst.msk [vmem:[#allocation5 + $0x214] sm:$0xf] %vm1410, %v8165
        %8235 = vst.msk [vmem:[#allocation5 + $0x228] sm:$0xf] %vm1410, %v8167
        %8236 = vst.msk [vmem:[#allocation5 + $0x23c] sm:$0xf] %vm1410, %v8169
        %8237 = vst.msk [vmem:[#allocation5 + $0x250] sm:$0xf] %vm1410, %v8171
        %8238 = vst.msk [vmem:[#allocation5 + $0x264] sm:$0xf] %vm1410, %v8173
        %8239 = vst.msk [vmem:[#allocation5 + $0x278] sm:$0xf] %vm1410, %v8175
        %v8240 = vld [vmem:[%s7615] sm:$0xe]
        %v8241 = vld [vmem:[%s7615 + $0x4] sm:$0xf]
        %v8242 = vld [vmem:[%s7615 + $0x8] sm:$0x1]
        %v8243 = vld [vmem:[%s7615 + $0xc] sm:$0xe]
        %v8244 = vld [vmem:[%s7615 + $0x10] sm:$0xf]
        %v8245 = vld [vmem:[%s7615 + $0x14] sm:$0x1]
        %v8246 = vld [vmem:[%s7615 + $0x18] sm:$0xe]
        %v8247 = vld [vmem:[%s7615 + $0x1c] sm:$0xf]
        %v8248 = vld [vmem:[%s7615 + $0x20] sm:$0x1]
        %v8249 = vld [vmem:[%s7615 + $0x24] sm:$0xe]
        %v8250 = vld [vmem:[%s7615 + $0x28] sm:$0xf]
        %v8251 = vld [vmem:[%s7615 + $0x2c] sm:$0x1]
        %v8252 = vld [vmem:[%s7615 + $0x30] sm:$0xe]
        %v8253 = vld [vmem:[%s7615 + $0x34] sm:$0xf]
        %v8254 = vld [vmem:[%s7615 + $0x38] sm:$0x1]
        %v8255 = vld [vmem:[%s7615 + $0x3c] sm:$0xe]
        %v8256 = vld [vmem:[%s7615 + $0x40] sm:$0xf]
        %v8257 = vld [vmem:[%s7615 + $0x44] sm:$0x1]
        %v8258 = vld [vmem:[%s7615 + $0x48] sm:$0xe]
        %v8259 = vld [vmem:[%s7615 + $0x4c] sm:$0xf]
        %v8260 = vld [vmem:[%s7615 + $0x50] sm:$0x1]
        %v8261 = vld [vmem:[%s7615 + $0x54] sm:$0xe]
        %v8262 = vld [vmem:[%s7615 + $0x58] sm:$0xf]
        %v8263 = vld [vmem:[%s7615 + $0x5c] sm:$0x1]
        %v8264 = vld [vmem:[%s7615 + $0x60] sm:$0xe]
        %v8265 = vld [vmem:[%s7615 + $0x64] sm:$0xf]
        %v8266 = vld [vmem:[%s7615 + $0x68] sm:$0x1]
        %v8267 = vld [vmem:[%s7615 + $0x6c] sm:$0xe]
        %v8268 = vld [vmem:[%s7615 + $0x70] sm:$0xf]
        %v8269 = vld [vmem:[%s7615 + $0x74] sm:$0x1]
        %v8270 = vld [vmem:[%s7615 + $0x78] sm:$0xe]
        %v8271 = vld [vmem:[%s7615 + $0x7c] sm:$0xf]
        %v8272 = vld [vmem:[%s7615 + $0x80] sm:$0x1]
        %v8273 = vld [vmem:[%s7615 + $0x84] sm:$0xe]
        %v8274 = vld [vmem:[%s7615 + $0x88] sm:$0xf]
        %v8275 = vld [vmem:[%s7615 + $0x8c] sm:$0x1]
        %v8276 = vld [vmem:[%s7615 + $0x90] sm:$0xe]
        %v8277 = vld [vmem:[%s7615 + $0x94] sm:$0xf]
        %v8278 = vld [vmem:[%s7615 + $0x98] sm:$0x1]
        %v8279 = vld [vmem:[%s7615 + $0x9c] sm:$0xe]
        %v8280 = vld [vmem:[%s7615 + $0xa0] sm:$0xf]
        %v8281 = vld [vmem:[%s7615 + $0xa4] sm:$0x1]
        %v8282 = vld [vmem:[%s7615 + $0xa8] sm:$0xe]
        %v8283 = vld [vmem:[%s7615 + $0xac] sm:$0xf]
        %v8284 = vld [vmem:[%s7615 + $0xb0] sm:$0x1]
        %v8285 = vld [vmem:[%s7615 + $0xb4] sm:$0xe]
        %v8286 = vld [vmem:[%s7615 + $0xb8] sm:$0xf]
        %v8287 = vld [vmem:[%s7615 + $0xbc] sm:$0x1]
        %v8336 = vrot.slane %v8240, 5
        %v8337 = vrot.slane %v8336, 4
        %v8338 = vrot.slane %v8241, 5
        %v8339 = vsel %vm1541, %v8337, %v8338
        %v8340 = vrot.slane %v8338, 4
        %v8341 = vrot.slane %v8242, 5
        %v8342 = vsel %vm1541, %v8340, %v8341
        %v8343 = vrot.slane %v8243, 5
        %v8344 = vrot.slane %v8343, 4
        %v8345 = vrot.slane %v8244, 5
        %v8346 = vsel %vm1541, %v8344, %v8345
        %v8347 = vrot.slane %v8345, 4
        %v8348 = vrot.slane %v8245, 5
        %v8349 = vsel %vm1541, %v8347, %v8348
        %v8350 = vrot.slane %v8246, 5
        %v8351 = vrot.slane %v8350, 4
        %v8352 = vrot.slane %v8247, 5
        %v8353 = vsel %vm1541, %v8351, %v8352
        %v8354 = vrot.slane %v8352, 4
        %v8355 = vrot.slane %v8248, 5
        %v8356 = vsel %vm1541, %v8354, %v8355
        %v8357 = vrot.slane %v8249, 5
        %v8358 = vrot.slane %v8357, 4
        %v8359 = vrot.slane %v8250, 5
        %v8360 = vsel %vm1541, %v8358, %v8359
        %v8361 = vrot.slane %v8359, 4
        %v8362 = vrot.slane %v8251, 5
        %v8363 = vsel %vm1541, %v8361, %v8362
        %v8364 = vrot.slane %v8252, 5
        %v8365 = vrot.slane %v8364, 4
        %v8366 = vrot.slane %v8253, 5
        %v8367 = vsel %vm1541, %v8365, %v8366
        %v8368 = vrot.slane %v8366, 4
        %v8369 = vrot.slane %v8254, 5
        %v8370 = vsel %vm1541, %v8368, %v8369
        %v8371 = vrot.slane %v8255, 5
        %v8372 = vrot.slane %v8371, 4
        %v8373 = vrot.slane %v8256, 5
        %v8374 = vsel %vm1541, %v8372, %v8373
        %v8375 = vrot.slane %v8373, 4
        %v8376 = vrot.slane %v8257, 5
        %v8377 = vsel %vm1541, %v8375, %v8376
        %v8378 = vrot.slane %v8258, 5
        %v8379 = vrot.slane %v8378, 4
        %v8380 = vrot.slane %v8259, 5
        %v8381 = vsel %vm1541, %v8379, %v8380
        %v8382 = vrot.slane %v8380, 4
        %v8383 = vrot.slane %v8260, 5
        %v8384 = vsel %vm1541, %v8382, %v8383
        %v8385 = vrot.slane %v8261, 5
        %v8386 = vrot.slane %v8385, 4
        %v8387 = vrot.slane %v8262, 5
        %v8388 = vsel %vm1541, %v8386, %v8387
        %v8389 = vrot.slane %v8387, 4
        %v8390 = vrot.slane %v8263, 5
        %v8391 = vsel %vm1541, %v8389, %v8390
        %v8392 = vrot.slane %v8264, 5
        %v8393 = vrot.slane %v8392, 4
        %v8394 = vrot.slane %v8265, 5
        %v8395 = vsel %vm1541, %v8393, %v8394
        %v8396 = vrot.slane %v8394, 4
        %v8397 = vrot.slane %v8266, 5
        %v8398 = vsel %vm1541, %v8396, %v8397
        %v8399 = vrot.slane %v8267, 5
        %v8400 = vrot.slane %v8399, 4
        %v8401 = vrot.slane %v8268, 5
        %v8402 = vsel %vm1541, %v8400, %v8401
        %v8403 = vrot.slane %v8401, 4
        %v8404 = vrot.slane %v8269, 5
        %v8405 = vsel %vm1541, %v8403, %v8404
        %v8406 = vrot.slane %v8270, 5
        %v8407 = vrot.slane %v8406, 4
        %v8408 = vrot.slane %v8271, 5
        %v8409 = vsel %vm1541, %v8407, %v8408
        %v8410 = vrot.slane %v8408, 4
        %v8411 = vrot.slane %v8272, 5
        %v8412 = vsel %vm1541, %v8410, %v8411
        %v8413 = vrot.slane %v8273, 5
        %v8414 = vrot.slane %v8413, 4
        %v8415 = vrot.slane %v8274, 5
        %v8416 = vsel %vm1541, %v8414, %v8415
        %v8417 = vrot.slane %v8415, 4
        %v8418 = vrot.slane %v8275, 5
        %v8419 = vsel %vm1541, %v8417, %v8418
        %v8420 = vrot.slane %v8276, 5
        %v8421 = vrot.slane %v8420, 4
        %v8422 = vrot.slane %v8277, 5
        %v8423 = vsel %vm1541, %v8421, %v8422
        %v8424 = vrot.slane %v8422, 4
        %v8425 = vrot.slane %v8278, 5
        %v8426 = vsel %vm1541, %v8424, %v8425
        %v8427 = vrot.slane %v8279, 5
        %v8428 = vrot.slane %v8427, 4
        %v8429 = vrot.slane %v8280, 5
        %v8430 = vsel %vm1541, %v8428, %v8429
        %v8431 = vrot.slane %v8429, 4
        %v8432 = vrot.slane %v8281, 5
        %v8433 = vsel %vm1541, %v8431, %v8432
        %v8434 = vrot.slane %v8282, 5
        %v8435 = vrot.slane %v8434, 4
        %v8436 = vrot.slane %v8283, 5
        %v8437 = vsel %vm1541, %v8435, %v8436
        %v8438 = vrot.slane %v8436, 4
        %v8439 = vrot.slane %v8284, 5
        %v8440 = vsel %vm1541, %v8438, %v8439
        %v8441 = vrot.slane %v8285, 5
        %v8442 = vrot.slane %v8441, 4
        %v8443 = vrot.slane %v8286, 5
        %v8444 = vsel %vm1541, %v8442, %v8443
        %v8445 = vrot.slane %v8443, 4
        %v8446 = vrot.slane %v8287, 5
        %v8447 = vsel %vm1541, %v8445, %v8446
        %8480 = vst.msk [vmem:[#allocation5 + $0x10] sm:$0xf] %vm256, %v8339
        %8481 = vst.msk [vmem:[#allocation5 + $0x24] sm:$0xf] %vm256, %v8342
        %8482 = vst.msk [vmem:[#allocation5 + $0x38] sm:$0xf] %vm256, %v8346
        %8483 = vst.msk [vmem:[#allocation5 + $0x4c] sm:$0xf] %vm256, %v8349
        %8484 = vst.msk [vmem:[#allocation5 + $0x60] sm:$0xf] %vm256, %v8353
        %8485 = vst.msk [vmem:[#allocation5 + $0x74] sm:$0xf] %vm256, %v8356
        %8486 = vst.msk [vmem:[#allocation5 + $0x88] sm:$0xf] %vm256, %v8360
        %8487 = vst.msk [vmem:[#allocation5 + $0x9c] sm:$0xf] %vm256, %v8363
        %8488 = vst.msk [vmem:[#allocation5 + $0xb0] sm:$0xf] %vm256, %v8367
        %8489 = vst.msk [vmem:[#allocation5 + $0xc4] sm:$0xf] %vm256, %v8370
        %8490 = vst.msk [vmem:[#allocation5 + $0xd8] sm:$0xf] %vm256, %v8374
        %8491 = vst.msk [vmem:[#allocation5 + $0xec] sm:$0xf] %vm256, %v8377
        %8492 = vst.msk [vmem:[#allocation5 + $0x100] sm:$0xf] %vm256, %v8381
        %8493 = vst.msk [vmem:[#allocation5 + $0x114] sm:$0xf] %vm256, %v8384
        %8494 = vst.msk [vmem:[#allocation5 + $0x128] sm:$0xf] %vm256, %v8388
        %8495 = vst.msk [vmem:[#allocation5 + $0x13c] sm:$0xf] %vm256, %v8391
        %8496 = vst.msk [vmem:[#allocation5 + $0x150] sm:$0xf] %vm256, %v8395
        %8497 = vst.msk [vmem:[#allocation5 + $0x164] sm:$0xf] %vm256, %v8398
        %8498 = vst.msk [vmem:[#allocation5 + $0x178] sm:$0xf] %vm256, %v8402
        %8499 = vst.msk [vmem:[#allocation5 + $0x18c] sm:$0xf] %vm256, %v8405
        %8500 = vst.msk [vmem:[#allocation5 + $0x1a0] sm:$0xf] %vm256, %v8409
        %8501 = vst.msk [vmem:[#allocation5 + $0x1b4] sm:$0xf] %vm256, %v8412
        %8502 = vst.msk [vmem:[#allocation5 + $0x1c8] sm:$0xf] %vm256, %v8416
        %8503 = vst.msk [vmem:[#allocation5 + $0x1dc] sm:$0xf] %vm256, %v8419
        %8504 = vst.msk [vmem:[#allocation5 + $0x1f0] sm:$0xf] %vm256, %v8423
        %8505 = vst.msk [vmem:[#allocation5 + $0x204] sm:$0xf] %vm256, %v8426
        %8506 = vst.msk [vmem:[#allocation5 + $0x218] sm:$0xf] %vm256, %v8430
        %8507 = vst.msk [vmem:[#allocation5 + $0x22c] sm:$0xf] %vm256, %v8433
        %8508 = vst.msk [vmem:[#allocation5 + $0x240] sm:$0xf] %vm256, %v8437
        %8509 = vst.msk [vmem:[#allocation5 + $0x254] sm:$0xf] %vm256, %v8440
        %8510 = vst.msk [vmem:[#allocation5 + $0x268] sm:$0xf] %vm256, %v8444
        %8511 = vst.msk [vmem:[#allocation5 + $0x27c] sm:$0xf] %vm256, %v8447
        %v8512 = vld [vmem:[#allocation5] sm:$0xff]
        %v8513 = vld [vmem:[#allocation5 + $0x8] sm:$0xff]
        %v8514 = vld [vmem:[#allocation5 + $0x10] sm:$0xf]
        %v8515 = vld [vmem:[#allocation5 + $0x14] sm:$0xff]
        %v8516 = vld [vmem:[#allocation5 + $0x1c] sm:$0xff]
        %v8517 = vld [vmem:[#allocation5 + $0x24] sm:$0xf]
        %v8518 = vld [vmem:[#allocation5 + $0x28] sm:$0xff]
        %v8519 = vld [vmem:[#allocation5 + $0x30] sm:$0xff]
        %v8520 = vld [vmem:[#allocation5 + $0x38] sm:$0xf]
        %v8521 = vld [vmem:[#allocation5 + $0x3c] sm:$0xff]
        %v8522 = vld [vmem:[#allocation5 + $0x44] sm:$0xff]
        %v8523 = vld [vmem:[#allocation5 + $0x4c] sm:$0xf]
        %v8524 = vld [vmem:[#allocation5 + $0x50] sm:$0xff]
        %v8525 = vld [vmem:[#allocation5 + $0x58] sm:$0xff]
        %v8526 = vld [vmem:[#allocation5 + $0x60] sm:$0xf]
        %v8527 = vld [vmem:[#allocation5 + $0x64] sm:$0xff]
        %v8528 = vld [vmem:[#allocation5 + $0x6c] sm:$0xff]
        %v8529 = vld [vmem:[#allocation5 + $0x74] sm:$0xf]
        %v8530 = vld [vmem:[#allocation5 + $0x78] sm:$0xff]
        %v8531 = vld [vmem:[#allocation5 + $0x80] sm:$0xff]
        %v8532 = vld [vmem:[#allocation5 + $0x88] sm:$0xf]
        %v8533 = vld [vmem:[#allocation5 + $0x8c] sm:$0xff]
        %v8534 = vld [vmem:[#allocation5 + $0x94] sm:$0xff]
        %v8535 = vld [vmem:[#allocation5 + $0x9c] sm:$0xf]
        %v8536 = vld [vmem:[#allocation5 + $0xa0] sm:$0xff]
        %v8537 = vld [vmem:[#allocation5 + $0xa8] sm:$0xff]
        %v8538 = vld [vmem:[#allocation5 + $0xb0] sm:$0xf]
        %v8539 = vld [vmem:[#allocation5 + $0xb4] sm:$0xff]
        %v8540 = vld [vmem:[#allocation5 + $0xbc] sm:$0xff]
        %v8541 = vld [vmem:[#allocation5 + $0xc4] sm:$0xf]
        %v8542 = vld [vmem:[#allocation5 + $0xc8] sm:$0xff]
        %v8543 = vld [vmem:[#allocation5 + $0xd0] sm:$0xff]
        %v8544 = vld [vmem:[#allocation5 + $0xd8] sm:$0xf]
        %v8545 = vld [vmem:[#allocation5 + $0xdc] sm:$0xff]
        %v8546 = vld [vmem:[#allocation5 + $0xe4] sm:$0xff]
        %v8547 = vld [vmem:[#allocation5 + $0xec] sm:$0xf]
        %v8548 = vld [vmem:[#allocation5 + $0xf0] sm:$0xff]
        %v8549 = vld [vmem:[#allocation5 + $0xf8] sm:$0xff]
        %v8550 = vld [vmem:[#allocation5 + $0x100] sm:$0xf]
        %v8551 = vld [vmem:[#allocation5 + $0x104] sm:$0xff]
        %v8552 = vld [vmem:[#allocation5 + $0x10c] sm:$0xff]
        %v8553 = vld [vmem:[#allocation5 + $0x114] sm:$0xf]
        %v8554 = vld [vmem:[#allocation5 + $0x118] sm:$0xff]
        %v8555 = vld [vmem:[#allocation5 + $0x120] sm:$0xff]
        %v8556 = vld [vmem:[#allocation5 + $0x128] sm:$0xf]
        %v8557 = vld [vmem:[#allocation5 + $0x12c] sm:$0xff]
        %v8558 = vld [vmem:[#allocation5 + $0x134] sm:$0xff]
        %v8559 = vld [vmem:[#allocation5 + $0x13c] sm:$0xf]
        %v8560 = vld [vmem:[#allocation5 + $0x140] sm:$0xff]
        %v8561 = vld [vmem:[#allocation5 + $0x148] sm:$0xff]
        %v8562 = vld [vmem:[#allocation5 + $0x150] sm:$0xf]
        %v8563 = vld [vmem:[#allocation5 + $0x154] sm:$0xff]
        %v8564 = vld [vmem:[#allocation5 + $0x15c] sm:$0xff]
        %v8565 = vld [vmem:[#allocation5 + $0x164] sm:$0xf]
        %v8566 = vld [vmem:[#allocation5 + $0x168] sm:$0xff]
        %v8567 = vld [vmem:[#allocation5 + $0x170] sm:$0xff]
        %v8568 = vld [vmem:[#allocation5 + $0x178] sm:$0xf]
        %v8569 = vld [vmem:[#allocation5 + $0x17c] sm:$0xff]
        %v8570 = vld [vmem:[#allocation5 + $0x184] sm:$0xff]
        %v8571 = vld [vmem:[#allocation5 + $0x18c] sm:$0xf]
        %v8572 = vld [vmem:[#allocation5 + $0x190] sm:$0xff]
        %v8573 = vld [vmem:[#allocation5 + $0x198] sm:$0xff]
        %v8574 = vld [vmem:[#allocation5 + $0x1a0] sm:$0xf]
        %v8575 = vld [vmem:[#allocation5 + $0x1a4] sm:$0xff]
        %v8576 = vld [vmem:[#allocation5 + $0x1ac] sm:$0xff]
        %v8577 = vld [vmem:[#allocation5 + $0x1b4] sm:$0xf]
        %v8578 = vld [vmem:[#allocation5 + $0x1b8] sm:$0xff]
        %v8579 = vld [vmem:[#allocation5 + $0x1c0] sm:$0xff]
        %v8580 = vld [vmem:[#allocation5 + $0x1c8] sm:$0xf]
        %v8581 = vld [vmem:[#allocation5 + $0x1cc] sm:$0xff]
        %v8582 = vld [vmem:[#allocation5 + $0x1d4] sm:$0xff]
        %v8583 = vld [vmem:[#allocation5 + $0x1dc] sm:$0xf]
        %v8584 = vld [vmem:[#allocation5 + $0x1e0] sm:$0xff]
        %v8585 = vld [vmem:[#allocation5 + $0x1e8] sm:$0xff]
        %v8586 = vld [vmem:[#allocation5 + $0x1f0] sm:$0xf]
        %v8587 = vld [vmem:[#allocation5 + $0x1f4] sm:$0xff]
        %v8588 = vld [vmem:[#allocation5 + $0x1fc] sm:$0xff]
        %v8589 = vld [vmem:[#allocation5 + $0x204] sm:$0xf]
        %v8590 = vld [vmem:[#allocation5 + $0x208] sm:$0xff]
        %v8591 = vld [vmem:[#allocation5 + $0x210] sm:$0xff]
        %v8592 = vld [vmem:[#allocation5 + $0x218] sm:$0xf]
        %v8593 = vld [vmem:[#allocation5 + $0x21c] sm:$0xff]
        %v8594 = vld [vmem:[#allocation5 + $0x224] sm:$0xff]
        %v8595 = vld [vmem:[#allocation5 + $0x22c] sm:$0xf]
        %v8596 = vld [vmem:[#allocation5 + $0x230] sm:$0xff]
        %v8597 = vld [vmem:[#allocation5 + $0x238] sm:$0xff]
        %v8598 = vld [vmem:[#allocation5 + $0x240] sm:$0xf]
        %v8599 = vld [vmem:[#allocation5 + $0x244] sm:$0xff]
        %v8600 = vld [vmem:[#allocation5 + $0x24c] sm:$0xff]
        %v8601 = vld [vmem:[#allocation5 + $0x254] sm:$0xf]
        %v8602 = vld [vmem:[#allocation5 + $0x258] sm:$0xff]
        %v8603 = vld [vmem:[#allocation5 + $0x260] sm:$0xff]
        %v8604 = vld [vmem:[#allocation5 + $0x268] sm:$0xf]
        %v8605 = vld [vmem:[#allocation5 + $0x26c] sm:$0xff]
        %v8606 = vld [vmem:[#allocation5 + $0x274] sm:$0xff]
        %v8607 = vld [vmem:[#allocation5 + $0x27c] sm:$0xf]
        %v8608 = vld [vmem:[%s2] sm:$0xf]
        %v8609 = vld [vmem:[%s2 + $0x4] sm:$0xf]
        %v8610 = vld [vmem:[%s2 + $0x8] sm:$0xf]
        %v8611 = vld [vmem:[%s2 + $0xc] sm:$0xf]
        %v8612 = vld [vmem:[%s2 + $0x10] sm:$0xf]
        %v8613 = vld [vmem:[%s2 + $0x14] sm:$0xf]
        %v8614 = vld [vmem:[%s2 + $0x18] sm:$0xf]
        %v8615 = vld [vmem:[%s2 + $0x1c] sm:$0xf]
        %v8616 = vld [vmem:[%s2 + $0x20] sm:$0xf]
        %v8617 = vld [vmem:[%s2 + $0x24] sm:$0xf]
        %v8618 = vld [vmem:[%s2 + $0x28] sm:$0xf]
        %v8619 = vld [vmem:[%s2 + $0x2c] sm:$0xf]
        %v8620 = vld [vmem:[%s2 + $0x30] sm:$0xf]
        %v8621 = vld [vmem:[%s2 + $0x34] sm:$0xf]
        %v8622 = vld [vmem:[%s2 + $0x38] sm:$0xf]
        %v8623 = vld [vmem:[%s2 + $0x3c] sm:$0xf]
        %v8624 = vld [vmem:[%s2 + $0x40] sm:$0xf]
        %v8625 = vld [vmem:[%s2 + $0x44] sm:$0xf]
        %v8626 = vld [vmem:[%s2 + $0x48] sm:$0xf]
        %v8627 = vld [vmem:[%s2 + $0x4c] sm:$0xf]
        %v8628 = vld [vmem:[%s2 + $0x50] sm:$0xf]
        %v8629 = vld [vmem:[%s2 + $0x54] sm:$0xf]
        %v8630 = vld [vmem:[%s2 + $0x58] sm:$0xf]
        %v8631 = vld [vmem:[%s2 + $0x5c] sm:$0xf]
        %v8632 = vld [vmem:[%s2 + $0x60] sm:$0xf]
        %v8633 = vld [vmem:[%s2 + $0x64] sm:$0xf]
        %v8634 = vld [vmem:[%s2 + $0x68] sm:$0xf]
        %v8635 = vld [vmem:[%s2 + $0x6c] sm:$0xf]
        %v8636 = vld [vmem:[%s2 + $0x70] sm:$0xf]
        %v8637 = vld [vmem:[%s2 + $0x74] sm:$0xf]
        %v8638 = vld [vmem:[%s2 + $0x78] sm:$0xf]
        %v8639 = vld [vmem:[%s2 + $0x7c] sm:$0xf]
        %v8640 = vld [vmem:[%s2 + $0x80] sm:$0xf]
        %v8641 = vld [vmem:[%s2 + $0x84] sm:$0xf]
        %v8642 = vld [vmem:[%s2 + $0x88] sm:$0xf]
        %v8643 = vld [vmem:[%s2 + $0x8c] sm:$0xf]
        %v8644 = vld [vmem:[%s2 + $0x90] sm:$0xf]
        %v8645 = vld [vmem:[%s2 + $0x94] sm:$0xf]
        %v8646 = vld [vmem:[%s2 + $0x98] sm:$0xf]
        %v8647 = vld [vmem:[%s2 + $0x9c] sm:$0xf]
        %v8648 = vld [vmem:[%s2 + $0xa0] sm:$0xf]
        %v8649 = vld [vmem:[%s2 + $0xa4] sm:$0xf]
        %v8650 = vld [vmem:[%s2 + $0xa8] sm:$0xf]
        %v8651 = vld [vmem:[%s2 + $0xac] sm:$0xf]
        %v8652 = vld [vmem:[%s2 + $0xb0] sm:$0xf]
        %v8653 = vld [vmem:[%s2 + $0xb4] sm:$0xf]
        %v8654 = vld [vmem:[%s2 + $0xb8] sm:$0xf]
        %v8655 = vld [vmem:[%s2 + $0xbc] sm:$0xf]
        %v8656 = vld [vmem:[%s2 + $0xc0] sm:$0xf]
        %v8657 = vld [vmem:[%s2 + $0xc4] sm:$0xf]
        %v8658 = vld [vmem:[%s2 + $0xc8] sm:$0xf]
        %v8659 = vld [vmem:[%s2 + $0xcc] sm:$0xf]
        %v8660 = vld [vmem:[%s2 + $0xd0] sm:$0xf]
        %v8661 = vld [vmem:[%s2 + $0xd4] sm:$0xf]
        %v8662 = vld [vmem:[%s2 + $0xd8] sm:$0xf]
        %v8663 = vld [vmem:[%s2 + $0xdc] sm:$0xf]
        %v8664 = vld [vmem:[%s2 + $0xe0] sm:$0xf]
        %v8665 = vld [vmem:[%s2 + $0xe4] sm:$0xf]
        %v8666 = vld [vmem:[%s2 + $0xe8] sm:$0xf]
        %v8667 = vld [vmem:[%s2 + $0xec] sm:$0xf]
        %v8668 = vld [vmem:[%s2 + $0xf0] sm:$0xf]
        %v8669 = vld [vmem:[%s2 + $0xf4] sm:$0xf]
        %v8670 = vld [vmem:[%s2 + $0xf8] sm:$0xf]
        %v8671 = vld [vmem:[%s2 + $0xfc] sm:$0xf]
        %v8672 = vld [vmem:[%s2 + $0x100] sm:$0xf]
        %v8673 = vld [vmem:[%s2 + $0x104] sm:$0xf]
        %v8674 = vld [vmem:[%s2 + $0x108] sm:$0xf]
        %v8675 = vld [vmem:[%s2 + $0x10c] sm:$0xf]
        %v8676 = vld [vmem:[%s2 + $0x110] sm:$0xf]
        %v8677 = vld [vmem:[%s2 + $0x114] sm:$0xf]
        %v8678 = vld [vmem:[%s2 + $0x118] sm:$0xf]
        %v8679 = vld [vmem:[%s2 + $0x11c] sm:$0xf]
        %v8776 = vunpack.c.l.b16 %v8512
        %v8777 = vunpack.c.h.b16 %v8512
        %v8778 = vunpack.c.l.b16 %v8513
        %v8779 = vunpack.c.h.b16 %v8513
        %v8780 = vunpack.c.l.b16 %v8514
        %v8781 = vunpack.c.l.b16 %v8515
        %v8782 = vunpack.c.h.b16 %v8515
        %v8783 = vunpack.c.l.b16 %v8516
        %v8784 = vunpack.c.h.b16 %v8516
        %v8785 = vunpack.c.l.b16 %v8517
        %v8786 = vunpack.c.l.b16 %v8518
        %v8787 = vunpack.c.h.b16 %v8518
        %v8788 = vunpack.c.l.b16 %v8519
        %v8789 = vunpack.c.h.b16 %v8519
        %v8790 = vunpack.c.l.b16 %v8520
        %v8791 = vunpack.c.l.b16 %v8521
        %v8792 = vunpack.c.h.b16 %v8521
        %v8793 = vunpack.c.l.b16 %v8522
        %v8794 = vunpack.c.h.b16 %v8522
        %v8795 = vunpack.c.l.b16 %v8523
        %v8796 = vunpack.c.l.b16 %v8524
        %v8797 = vunpack.c.h.b16 %v8524
        %v8798 = vunpack.c.l.b16 %v8525
        %v8799 = vunpack.c.h.b16 %v8525
        %v8800 = vunpack.c.l.b16 %v8526
        %v8801 = vunpack.c.l.b16 %v8527
        %v8802 = vunpack.c.h.b16 %v8527
        %v8803 = vunpack.c.l.b16 %v8528
        %v8804 = vunpack.c.h.b16 %v8528
        %v8805 = vunpack.c.l.b16 %v8529
        %v8806 = vunpack.c.l.b16 %v8530
        %v8807 = vunpack.c.h.b16 %v8530
        %v8808 = vunpack.c.l.b16 %v8531
        %v8809 = vunpack.c.h.b16 %v8531
        %v8810 = vunpack.c.l.b16 %v8532
        %v8811 = vunpack.c.l.b16 %v8533
        %v8812 = vunpack.c.h.b16 %v8533
        %v8813 = vunpack.c.l.b16 %v8534
        %v8814 = vunpack.c.h.b16 %v8534
        %v8815 = vunpack.c.l.b16 %v8535
        %v8816 = vunpack.c.l.b16 %v8536
        %v8817 = vunpack.c.h.b16 %v8536
        %v8818 = vunpack.c.l.b16 %v8537
        %v8819 = vunpack.c.h.b16 %v8537
        %v8820 = vunpack.c.l.b16 %v8538
        %v8821 = vunpack.c.l.b16 %v8539
        %v8822 = vunpack.c.h.b16 %v8539
        %v8823 = vunpack.c.l.b16 %v8540
        %v8824 = vunpack.c.h.b16 %v8540
        %v8825 = vunpack.c.l.b16 %v8541
        %v8826 = vunpack.c.l.b16 %v8542
        %v8827 = vunpack.c.h.b16 %v8542
        %v8828 = vunpack.c.l.b16 %v8543
        %v8829 = vunpack.c.h.b16 %v8543
        %v8830 = vunpack.c.l.b16 %v8544
        %v8831 = vunpack.c.l.b16 %v8545
        %v8832 = vunpack.c.h.b16 %v8545
        %v8833 = vunpack.c.l.b16 %v8546
        %v8834 = vunpack.c.h.b16 %v8546
        %v8835 = vunpack.c.l.b16 %v8547
        %v8836 = vunpack.c.l.b16 %v8548
        %v8837 = vunpack.c.h.b16 %v8548
        %v8838 = vunpack.c.l.b16 %v8549
        %v8839 = vunpack.c.h.b16 %v8549
        %v8840 = vunpack.c.l.b16 %v8550
        %v8841 = vunpack.c.l.b16 %v8551
        %v8842 = vunpack.c.h.b16 %v8551
        %v8843 = vunpack.c.l.b16 %v8552
        %v8844 = vunpack.c.h.b16 %v8552
        %v8845 = vunpack.c.l.b16 %v8553
        %v8846 = vunpack.c.l.b16 %v8554
        %v8847 = vunpack.c.h.b16 %v8554
        %v8848 = vunpack.c.l.b16 %v8555
        %v8849 = vunpack.c.h.b16 %v8555
        %v8850 = vunpack.c.l.b16 %v8556
        %v8851 = vunpack.c.l.b16 %v8557
        %v8852 = vunpack.c.h.b16 %v8557
        %v8853 = vunpack.c.l.b16 %v8558
        %v8854 = vunpack.c.h.b16 %v8558
        %v8855 = vunpack.c.l.b16 %v8559
        %v8856 = vunpack.c.l.b16 %v8560
        %v8857 = vunpack.c.h.b16 %v8560
        %v8858 = vunpack.c.l.b16 %v8561
        %v8859 = vunpack.c.h.b16 %v8561
        %v8860 = vunpack.c.l.b16 %v8562
        %v8861 = vunpack.c.l.b16 %v8563
        %v8862 = vunpack.c.h.b16 %v8563
        %v8863 = vunpack.c.l.b16 %v8564
        %v8864 = vunpack.c.h.b16 %v8564
        %v8865 = vunpack.c.l.b16 %v8565
        %v8866 = vunpack.c.l.b16 %v8566
        %v8867 = vunpack.c.h.b16 %v8566
        %v8868 = vunpack.c.l.b16 %v8567
        %v8869 = vunpack.c.h.b16 %v8567
        %v8870 = vunpack.c.l.b16 %v8568
        %v8871 = vunpack.c.l.b16 %v8569
        %v8872 = vunpack.c.h.b16 %v8569
        %v8873 = vunpack.c.l.b16 %v8570
        %v8874 = vunpack.c.h.b16 %v8570
        %v8875 = vunpack.c.l.b16 %v8571
        %v8876 = vunpack.c.l.b16 %v8572
        %v8877 = vunpack.c.h.b16 %v8572
        %v8878 = vunpack.c.l.b16 %v8573
        %v8879 = vunpack.c.h.b16 %v8573
        %v8880 = vunpack.c.l.b16 %v8574
        %v8881 = vunpack.c.l.b16 %v8575
        %v8882 = vunpack.c.h.b16 %v8575
        %v8883 = vunpack.c.l.b16 %v8576
        %v8884 = vunpack.c.h.b16 %v8576
        %v8885 = vunpack.c.l.b16 %v8577
        %v8886 = vunpack.c.l.b16 %v8578
        %v8887 = vunpack.c.h.b16 %v8578
        %v8888 = vunpack.c.l.b16 %v8579
        %v8889 = vunpack.c.h.b16 %v8579
        %v8890 = vunpack.c.l.b16 %v8580
        %v8891 = vunpack.c.l.b16 %v8581
        %v8892 = vunpack.c.h.b16 %v8581
        %v8893 = vunpack.c.l.b16 %v8582
        %v8894 = vunpack.c.h.b16 %v8582
        %v8895 = vunpack.c.l.b16 %v8583
        %v8896 = vunpack.c.l.b16 %v8584
        %v8897 = vunpack.c.h.b16 %v8584
        %v8898 = vunpack.c.l.b16 %v8585
        %v8899 = vunpack.c.h.b16 %v8585
        %v8900 = vunpack.c.l.b16 %v8586
        %v8901 = vunpack.c.l.b16 %v8587
        %v8902 = vunpack.c.h.b16 %v8587
        %v8903 = vunpack.c.l.b16 %v8588
        %v8904 = vunpack.c.h.b16 %v8588
        %v8905 = vunpack.c.l.b16 %v8589
        %v8906 = vunpack.c.l.b16 %v8590
        %v8907 = vunpack.c.h.b16 %v8590
        %v8908 = vunpack.c.l.b16 %v8591
        %v8909 = vunpack.c.h.b16 %v8591
        %v8910 = vunpack.c.l.b16 %v8592
        %v8911 = vunpack.c.l.b16 %v8593
        %v8912 = vunpack.c.h.b16 %v8593
        %v8913 = vunpack.c.l.b16 %v8594
        %v8914 = vunpack.c.h.b16 %v8594
        %v8915 = vunpack.c.l.b16 %v8595
        %v8916 = vunpack.c.l.b16 %v8596
        %v8917 = vunpack.c.h.b16 %v8596
        %v8918 = vunpack.c.l.b16 %v8597
        %v8919 = vunpack.c.h.b16 %v8597
        %v8920 = vunpack.c.l.b16 %v8598
        %v8921 = vunpack.c.l.b16 %v8599
        %v8922 = vunpack.c.h.b16 %v8599
        %v8923 = vunpack.c.l.b16 %v8600
        %v8924 = vunpack.c.h.b16 %v8600
        %v8925 = vunpack.c.l.b16 %v8601
        %v8926 = vunpack.c.l.b16 %v8602
        %v8927 = vunpack.c.h.b16 %v8602
        %v8928 = vunpack.c.l.b16 %v8603
        %v8929 = vunpack.c.h.b16 %v8603
        %v8930 = vunpack.c.l.b16 %v8604
        %v8931 = vunpack.c.l.b16 %v8605
        %v8932 = vunpack.c.h.b16 %v8605
        %v8933 = vunpack.c.l.b16 %v8606
        %v8934 = vunpack.c.h.b16 %v8606
        %v8935 = vunpack.c.l.b16 %v8607
        %v8936 = vpack.c.b16 %v8781, %v8776
        %v8937 = vpack.c.b16 %v8782, %v8777
        %v8938 = vpack.c.b16 %v8783, %v8778
        %v8939 = vpack.c.b16 %v8784, %v8779
        %v8940 = vpack.c.b16 %v8785, %v8780
        %v8941 = vpack.c.b16 %v8791, %v8786
        %v8942 = vpack.c.b16 %v8792, %v8787
        %v8943 = vpack.c.b16 %v8793, %v8788
        %v8944 = vpack.c.b16 %v8794, %v8789
        %v8945 = vpack.c.b16 %v8795, %v8790
        %v8946 = vpack.c.b16 %v8801, %v8796
        %v8947 = vpack.c.b16 %v8802, %v8797
        %v8948 = vpack.c.b16 %v8803, %v8798
        %v8949 = vpack.c.b16 %v8804, %v8799
        %v8950 = vpack.c.b16 %v8805, %v8800
        %v8951 = vpack.c.b16 %v8811, %v8806
        %v8952 = vpack.c.b16 %v8812, %v8807
        %v8953 = vpack.c.b16 %v8813, %v8808
        %v8954 = vpack.c.b16 %v8814, %v8809
        %v8955 = vpack.c.b16 %v8815, %v8810
        %v8956 = vpack.c.b16 %v8821, %v8816
        %v8957 = vpack.c.b16 %v8822, %v8817
        %v8958 = vpack.c.b16 %v8823, %v8818
        %v8959 = vpack.c.b16 %v8824, %v8819
        %v8960 = vpack.c.b16 %v8825, %v8820
        %v8961 = vpack.c.b16 %v8831, %v8826
        %v8962 = vpack.c.b16 %v8832, %v8827
        %v8963 = vpack.c.b16 %v8833, %v8828
        %v8964 = vpack.c.b16 %v8834, %v8829
        %v8965 = vpack.c.b16 %v8835, %v8830
        %v8966 = vpack.c.b16 %v8841, %v8836
        %v8967 = vpack.c.b16 %v8842, %v8837
        %v8968 = vpack.c.b16 %v8843, %v8838
        %v8969 = vpack.c.b16 %v8844, %v8839
        %v8970 = vpack.c.b16 %v8845, %v8840
        %v8971 = vpack.c.b16 %v8851, %v8846
        %v8972 = vpack.c.b16 %v8852, %v8847
        %v8973 = vpack.c.b16 %v8853, %v8848
        %v8974 = vpack.c.b16 %v8854, %v8849
        %v8975 = vpack.c.b16 %v8855, %v8850
        %v8976 = vpack.c.b16 %v8861, %v8856
        %v8977 = vpack.c.b16 %v8862, %v8857
        %v8978 = vpack.c.b16 %v8863, %v8858
        %v8979 = vpack.c.b16 %v8864, %v8859
        %v8980 = vpack.c.b16 %v8865, %v8860
        %v8981 = vpack.c.b16 %v8871, %v8866
        %v8982 = vpack.c.b16 %v8872, %v8867
        %v8983 = vpack.c.b16 %v8873, %v8868
        %v8984 = vpack.c.b16 %v8874, %v8869
        %v8985 = vpack.c.b16 %v8875, %v8870
        %v8986 = vpack.c.b16 %v8881, %v8876
        %v8987 = vpack.c.b16 %v8882, %v8877
        %v8988 = vpack.c.b16 %v8883, %v8878
        %v8989 = vpack.c.b16 %v8884, %v8879
        %v8990 = vpack.c.b16 %v8885, %v8880
        %v8991 = vpack.c.b16 %v8891, %v8886
        %v8992 = vpack.c.b16 %v8892, %v8887
        %v8993 = vpack.c.b16 %v8893, %v8888
        %v8994 = vpack.c.b16 %v8894, %v8889
        %v8995 = vpack.c.b16 %v8895, %v8890
        %v8996 = vpack.c.b16 %v8901, %v8896
        %v8997 = vpack.c.b16 %v8902, %v8897
        %v8998 = vpack.c.b16 %v8903, %v8898
        %v8999 = vpack.c.b16 %v8904, %v8899
        %v9000 = vpack.c.b16 %v8905, %v8900
        %v9001 = vpack.c.b16 %v8911, %v8906
        %v9002 = vpack.c.b16 %v8912, %v8907
        %v9003 = vpack.c.b16 %v8913, %v8908
        %v9004 = vpack.c.b16 %v8914, %v8909
        %v9005 = vpack.c.b16 %v8915, %v8910
        %v9006 = vpack.c.b16 %v8921, %v8916
        %v9007 = vpack.c.b16 %v8922, %v8917
        %v9008 = vpack.c.b16 %v8923, %v8918
        %v9009 = vpack.c.b16 %v8924, %v8919
        %v9010 = vpack.c.b16 %v8925, %v8920
        %v9011 = vpack.c.b16 %v8931, %v8926
        %v9012 = vpack.c.b16 %v8932, %v8927
        %v9013 = vpack.c.b16 %v8933, %v8928
        %v9014 = vpack.c.b16 %v8934, %v8929
        %v9015 = vpack.c.b16 %v8935, %v8930
        %v9152 = vunpack.c.l.b16 %v8608
        %v9153 = vunpack.c.l.b16 %v8609
        %v9154 = vunpack.c.l.b16 %v8610
        %v9155 = vunpack.c.l.b16 %v8611
        %v9156 = vunpack.c.l.b16 %v8612
        %v9157 = vunpack.c.l.b16 %v8613
        %v9158 = vunpack.c.l.b16 %v8614
        %v9159 = vunpack.c.l.b16 %v8615
        %v9160 = vunpack.c.l.b16 %v8616
        %v9161 = vunpack.c.l.b16 %v8617
        %v9162 = vunpack.c.l.b16 %v8618
        %v9163 = vunpack.c.l.b16 %v8619
        %v9164 = vunpack.c.l.b16 %v8620
        %v9165 = vunpack.c.l.b16 %v8621
        %v9166 = vunpack.c.l.b16 %v8622
        %v9167 = vunpack.c.l.b16 %v8623
        %v9168 = vunpack.c.l.b16 %v8624
        %v9169 = vunpack.c.l.b16 %v8625
        %v9170 = vunpack.c.l.b16 %v8626
        %v9171 = vunpack.c.l.b16 %v8627
        %v9172 = vunpack.c.l.b16 %v8628
        %v9173 = vunpack.c.l.b16 %v8629
        %v9174 = vunpack.c.l.b16 %v8630
        %v9175 = vunpack.c.l.b16 %v8631
        %v9176 = vunpack.c.l.b16 %v8632
        %v9177 = vunpack.c.l.b16 %v8633
        %v9178 = vunpack.c.l.b16 %v8634
        %v9179 = vunpack.c.l.b16 %v8635
        %v9180 = vunpack.c.l.b16 %v8636
        %v9181 = vunpack.c.l.b16 %v8637
        %v9182 = vunpack.c.l.b16 %v8638
        %v9183 = vunpack.c.l.b16 %v8639
        %v9184 = vunpack.c.l.b16 %v8640
        %v9185 = vunpack.c.l.b16 %v8641
        %v9186 = vunpack.c.l.b16 %v8642
        %v9187 = vunpack.c.l.b16 %v8643
        %v9188 = vunpack.c.l.b16 %v8644
        %v9189 = vunpack.c.l.b16 %v8645
        %v9190 = vunpack.c.l.b16 %v8646
        %v9191 = vunpack.c.l.b16 %v8647
        %v9192 = vunpack.c.l.b16 %v8648
        %v9193 = vunpack.c.l.b16 %v8649
        %v9194 = vunpack.c.l.b16 %v8650
        %v9195 = vunpack.c.l.b16 %v8651
        %v9196 = vunpack.c.l.b16 %v8652
        %v9197 = vunpack.c.l.b16 %v8653
        %v9198 = vunpack.c.l.b16 %v8654
        %v9199 = vunpack.c.l.b16 %v8655
        %v9200 = vunpack.c.l.b16 %v8656
        %v9201 = vunpack.c.l.b16 %v8657
        %v9202 = vunpack.c.l.b16 %v8658
        %v9203 = vunpack.c.l.b16 %v8659
        %v9204 = vunpack.c.l.b16 %v8660
        %v9205 = vunpack.c.l.b16 %v8661
        %v9206 = vunpack.c.l.b16 %v8662
        %v9207 = vunpack.c.l.b16 %v8663
        %v9208 = vunpack.c.l.b16 %v8664
        %v9209 = vunpack.c.l.b16 %v8665
        %v9210 = vunpack.c.l.b16 %v8666
        %v9211 = vunpack.c.l.b16 %v8667
        %v9212 = vunpack.c.l.b16 %v8668
        %v9213 = vunpack.c.l.b16 %v8669
        %v9214 = vunpack.c.l.b16 %v8670
        %v9215 = vunpack.c.l.b16 %v8671
        %v9216 = vunpack.c.l.b16 %v8672
        %v9217 = vunpack.c.l.b16 %v8673
        %v9218 = vunpack.c.l.b16 %v8674
        %v9219 = vunpack.c.l.b16 %v8675
        %v9220 = vunpack.c.l.b16 %v8676
        %v9221 = vunpack.c.l.b16 %v8677
        %v9222 = vunpack.c.l.b16 %v8678
        %v9223 = vunpack.c.l.b16 %v8679
        %v9224 = vpack.c.b16 %v9153, %v9152
        %v9225 = vpack.c.b16 %v9155, %v9154
        %v9226 = vpack.c.b16 %v9157, %v9156
        %v9227 = vpack.c.b16 %v9159, %v9158
        %v9228 = vpack.c.b16 %v9161, %v9160
        %v9229 = vpack.c.b16 %v9163, %v9162
        %v9230 = vpack.c.b16 %v9165, %v9164
        %v9231 = vpack.c.b16 %v9167, %v9166
        %v9232 = vpack.c.b16 %v9169, %v9168
        %v9233 = vpack.c.b16 %v9171, %v9170
        %v9234 = vpack.c.b16 %v9173, %v9172
        %v9235 = vpack.c.b16 %v9175, %v9174
        %v9236 = vpack.c.b16 %v9177, %v9176
        %v9237 = vpack.c.b16 %v9179, %v9178
        %v9238 = vpack.c.b16 %v9181, %v9180
        %v9239 = vpack.c.b16 %v9183, %v9182
        %v9240 = vpack.c.b16 %v9185, %v9184
        %v9241 = vpack.c.b16 %v9187, %v9186
        %v9242 = vpack.c.b16 %v9189, %v9188
        %v9243 = vpack.c.b16 %v9191, %v9190
        %v9244 = vpack.c.b16 %v9193, %v9192
        %v9245 = vpack.c.b16 %v9195, %v9194
        %v9246 = vpack.c.b16 %v9197, %v9196
        %v9247 = vpack.c.b16 %v9199, %v9198
        %v9248 = vpack.c.b16 %v9201, %v9200
        %v9249 = vpack.c.b16 %v9203, %v9202
        %v9250 = vpack.c.b16 %v9205, %v9204
        %v9251 = vpack.c.b16 %v9207, %v9206
        %v9252 = vpack.c.b16 %v9209, %v9208
        %v9253 = vpack.c.b16 %v9211, %v9210
        %v9254 = vpack.c.b16 %v9213, %v9212
        %v9255 = vpack.c.b16 %v9215, %v9214
        %v9256 = vpack.c.b16 %v9217, %v9216
        %v9257 = vpack.c.b16 %v9219, %v9218
        %v9258 = vpack.c.b16 %v9221, %v9220
        %v9259 = vpack.c.b16 %v9223, %v9222
        %v9297 = vsel %vm4423, %v8940, 0
        %v9300 = vsel %vm4423, %v8945, 0
        %v9303 = vsel %vm4423, %v8950, 0
        %v9306 = vsel %vm4423, %v8955, 0
        %v9309 = vsel %vm4423, %v8960, 0
        %v9312 = vsel %vm4423, %v8965, 0
        %v9315 = vsel %vm4423, %v8970, 0
        %v9318 = vsel %vm4423, %v8975, 0
        %v9321 = vsel %vm4423, %v8980, 0
        %v9324 = vsel %vm4423, %v8985, 0
        %v9327 = vsel %vm4423, %v8990, 0
        %v9330 = vsel %vm4423, %v8995, 0
        %v9333 = vsel %vm4423, %v9000, 0
        %v9336 = vsel %vm4423, %v9005, 0
        %v9339 = vsel %vm4423, %v9010, 0
        %v9342 = vsel %vm4423, %v9015, 0
        %9344 = vmatprep.subr.bf16.mxu0 0
        %9345 = vmatpush1.bf16.msra.mxu0 %v9231
        %9346 = vmatprep.subr.bf16.mxu0 0
        %9347 = vmatpush1.bf16.msra.mxu0 %v9230
        %9348 = vmatprep.subr.bf16.mxu0 0
        %9349 = vmatpush1.bf16.msra.mxu0 %v9229
        %9350 = vmatprep.subr.bf16.mxu0 0
        %9351 = vmatpush1.bf16.msra.mxu0 %v9228
        %9352 = vmatprep.subr.bf16.mxu0 0
        %9353 = vmatpush1.bf16.msra.mxu0 %v9227
        %9354 = vmatprep.subr.bf16.mxu0 0
        %9355 = vmatpush1.bf16.msra.mxu0 %v9226
        %9356 = vmatprep.subr.bf16.mxu0 0
        %9357 = vmatpush1.bf16.msra.mxu0 %v9225
        %9358 = vmatprep.subr.bf16.mxu0 0
        %9359 = vmatpush1.bf16.msra.mxu0 %v9224
        %9360 = vmatprep.subr.bf16.mxu0 0
        %9361 = vmatpush2.bf16.msra.mxu0 %v9239
        %9362 = vmatprep.subr.bf16.mxu0 0
        %9363 = vmatpush2.bf16.msra.mxu0 %v9238
        %9364 = vmatprep.subr.bf16.mxu0 0
        %9365 = vmatpush2.bf16.msra.mxu0 %v9237
        %9366 = vmatprep.subr.bf16.mxu0 0
        %9367 = vmatpush2.bf16.msra.mxu0 %v9236
        %9368 = vmatprep.subr.bf16.mxu0 0
        %9369 = vmatpush2.bf16.msra.mxu0 %v9235
        %9370 = vmatprep.subr.bf16.mxu0 0
        %9371 = vmatpush2.bf16.msra.mxu0 %v9234
        %9372 = vmatprep.subr.bf16.mxu0 0
        %9373 = vmatpush2.bf16.msra.mxu0 %v9233
        %9374 = vmatprep.subr.bf16.mxu0 0
        %9375 = vmatpush2.bf16.msra.mxu0 %v9232
        %9376 = vmatprep.mubr.bf16.mxu0 %v8937
        %9377 = vmatmul.mubr.bf16.gmra.mxu0 %v8936
        %v9378 = vpop.f32.mrf.mxu0
        %v9379 = vadd.f32 0.0, %v9378
        %v9380 = vpop.f32.mrf.mxu0
        %v9381 = vpop.f32.mrf.mxu0
        %v9382 = vadd.f32 0.0, %v9381
        %v9383 = vpop.f32.mrf.mxu0
        %9384 = vmatprep.mubr.bf16.mxu0 %v8942
        %9385 = vmatmul.mubr.bf16.gmra.mxu0 %v8941
        %v9386 = vpop.f32.mrf.mxu0
        %v9387 = vadd.f32 0.0, %v9386
        %v9388 = vpop.f32.mrf.mxu0
        %v9389 = vpop.f32.mrf.mxu0
        %v9390 = vadd.f32 0.0, %v9389
        %v9391 = vpop.f32.mrf.mxu0
        %9392 = vmatprep.mubr.bf16.mxu0 %v8947
        %9393 = vmatmul.mubr.bf16.gmra.mxu0 %v8946
        %v9394 = vpop.f32.mrf.mxu0
        %v9395 = vadd.f32 0.0, %v9394
        %v9396 = vpop.f32.mrf.mxu0
        %v9397 = vpop.f32.mrf.mxu0
        %v9398 = vadd.f32 0.0, %v9397
        %v9399 = vpop.f32.mrf.mxu0
        %9400 = vmatprep.mubr.bf16.mxu0 %v8952
        %9401 = vmatmul.mubr.bf16.gmra.mxu0 %v8951
        %v9402 = vpop.f32.mrf.mxu0
        %v9403 = vadd.f32 0.0, %v9402
        %v9404 = vpop.f32.mrf.mxu0
        %v9405 = vpop.f32.mrf.mxu0
        %v9406 = vadd.f32 0.0, %v9405
        %v9407 = vpop.f32.mrf.mxu0
        %9408 = vmatprep.mubr.bf16.mxu0 %v8957
        %9409 = vmatmul.mubr.bf16.gmra.mxu0 %v8956
        %v9410 = vpop.f32.mrf.mxu0
        %v9411 = vadd.f32 0.0, %v9410
        %v9412 = vpop.f32.mrf.mxu0
        %v9413 = vpop.f32.mrf.mxu0
        %v9414 = vadd.f32 0.0, %v9413
        %v9415 = vpop.f32.mrf.mxu0
        %9416 = vmatprep.mubr.bf16.mxu0 %v8962
        %9417 = vmatmul.mubr.bf16.gmra.mxu0 %v8961
        %v9418 = vpop.f32.mrf.mxu0
        %v9419 = vadd.f32 0.0, %v9418
        %v9420 = vpop.f32.mrf.mxu0
        %v9421 = vpop.f32.mrf.mxu0
        %v9422 = vadd.f32 0.0, %v9421
        %v9423 = vpop.f32.mrf.mxu0
        %9424 = vmatprep.mubr.bf16.mxu0 %v8967
        %9425 = vmatmul.mubr.bf16.gmra.mxu0 %v8966
        %v9426 = vpop.f32.mrf.mxu0
        %v9427 = vadd.f32 0.0, %v9426
        %v9428 = vpop.f32.mrf.mxu0
        %v9429 = vpop.f32.mrf.mxu0
        %v9430 = vadd.f32 0.0, %v9429
        %v9431 = vpop.f32.mrf.mxu0
        %9432 = vmatprep.mubr.bf16.mxu0 %v8972
        %9433 = vmatmul.mubr.bf16.gmra.mxu0 %v8971
        %v9434 = vpop.f32.mrf.mxu0
        %v9435 = vadd.f32 0.0, %v9434
        %v9436 = vpop.f32.mrf.mxu0
        %v9437 = vpop.f32.mrf.mxu0
        %v9438 = vadd.f32 0.0, %v9437
        %v9439 = vpop.f32.mrf.mxu0
        %9440 = vmatprep.mubr.bf16.mxu0 %v8977
        %9441 = vmatmul.mubr.bf16.gmra.mxu0 %v8976
        %v9442 = vpop.f32.mrf.mxu0
        %v9443 = vadd.f32 0.0, %v9442
        %v9444 = vpop.f32.mrf.mxu0
        %v9445 = vpop.f32.mrf.mxu0
        %v9446 = vadd.f32 0.0, %v9445
        %v9447 = vpop.f32.mrf.mxu0
        %9448 = vmatprep.mubr.bf16.mxu0 %v8982
        %9449 = vmatmul.mubr.bf16.gmra.mxu0 %v8981
        %v9450 = vpop.f32.mrf.mxu0
        %v9451 = vadd.f32 0.0, %v9450
        %v9452 = vpop.f32.mrf.mxu0
        %v9453 = vpop.f32.mrf.mxu0
        %v9454 = vadd.f32 0.0, %v9453
        %v9455 = vpop.f32.mrf.mxu0
        %9456 = vmatprep.mubr.bf16.mxu0 %v8987
        %9457 = vmatmul.mubr.bf16.gmra.mxu0 %v8986
        %v9458 = vpop.f32.mrf.mxu0
        %v9459 = vadd.f32 0.0, %v9458
        %v9460 = vpop.f32.mrf.mxu0
        %v9461 = vpop.f32.mrf.mxu0
        %v9462 = vadd.f32 0.0, %v9461
        %v9463 = vpop.f32.mrf.mxu0
        %9464 = vmatprep.mubr.bf16.mxu0 %v8992
        %9465 = vmatmul.mubr.bf16.gmra.mxu0 %v8991
        %v9466 = vpop.f32.mrf.mxu0
        %v9467 = vadd.f32 0.0, %v9466
        %v9468 = vpop.f32.mrf.mxu0
        %v9469 = vpop.f32.mrf.mxu0
        %v9470 = vadd.f32 0.0, %v9469
        %v9471 = vpop.f32.mrf.mxu0
        %9472 = vmatprep.mubr.bf16.mxu0 %v8997
        %9473 = vmatmul.mubr.bf16.gmra.mxu0 %v8996
        %v9474 = vpop.f32.mrf.mxu0
        %v9475 = vadd.f32 0.0, %v9474
        %v9476 = vpop.f32.mrf.mxu0
        %v9477 = vpop.f32.mrf.mxu0
        %v9478 = vadd.f32 0.0, %v9477
        %v9479 = vpop.f32.mrf.mxu0
        %9480 = vmatprep.mubr.bf16.mxu0 %v9002
        %9481 = vmatmul.mubr.bf16.gmra.mxu0 %v9001
        %v9482 = vpop.f32.mrf.mxu0
        %v9483 = vadd.f32 0.0, %v9482
        %v9484 = vpop.f32.mrf.mxu0
        %v9485 = vpop.f32.mrf.mxu0
        %v9486 = vadd.f32 0.0, %v9485
        %v9487 = vpop.f32.mrf.mxu0
        %9488 = vmatprep.mubr.bf16.mxu0 %v9007
        %9489 = vmatmul.mubr.bf16.gmra.mxu0 %v9006
        %v9490 = vpop.f32.mrf.mxu0
        %v9491 = vadd.f32 0.0, %v9490
        %v9492 = vpop.f32.mrf.mxu0
        %v9493 = vpop.f32.mrf.mxu0
        %v9494 = vadd.f32 0.0, %v9493
        %v9495 = vpop.f32.mrf.mxu0
        %9496 = vmatprep.mubr.bf16.mxu0 %v9012
        %9497 = vmatmul.mubr.bf16.gmra.mxu0 %v9011
        %v9498 = vpop.f32.mrf.mxu0
        %v9499 = vadd.f32 0.0, %v9498
        %v9500 = vpop.f32.mrf.mxu0
        %v9501 = vpop.f32.mrf.mxu0
        %v9502 = vadd.f32 0.0, %v9501
        %v9503 = vpop.f32.mrf.mxu0
        %9504 = vdwg.mxu0
        %9505 = vmatprep.subr.bf16.mxu0 0
        %9506 = vmatpush1.bf16.msra.mxu0 %v9247
        %9507 = vmatprep.subr.bf16.mxu0 0
        %9508 = vmatpush1.bf16.msra.mxu0 %v9246
        %9509 = vmatprep.subr.bf16.mxu0 0
        %9510 = vmatpush1.bf16.msra.mxu0 %v9245
        %9511 = vmatprep.subr.bf16.mxu0 0
        %9512 = vmatpush1.bf16.msra.mxu0 %v9244
        %9513 = vmatprep.subr.bf16.mxu0 0
        %9514 = vmatpush1.bf16.msra.mxu0 %v9243
        %9515 = vmatprep.subr.bf16.mxu0 0
        %9516 = vmatpush1.bf16.msra.mxu0 %v9242
        %9517 = vmatprep.subr.bf16.mxu0 0
        %9518 = vmatpush1.bf16.msra.mxu0 %v9241
        %9519 = vmatprep.subr.bf16.mxu0 0
        %9520 = vmatpush1.bf16.msra.mxu0 %v9240
        %9521 = vmatprep.subr.bf16.mxu0 0
        %9522 = vmatpush2.bf16.msra.mxu0 %v9255
        %9523 = vmatprep.subr.bf16.mxu0 0
        %9524 = vmatpush2.bf16.msra.mxu0 %v9254
        %9525 = vmatprep.subr.bf16.mxu0 0
        %9526 = vmatpush2.bf16.msra.mxu0 %v9253
        %9527 = vmatprep.subr.bf16.mxu0 0
        %9528 = vmatpush2.bf16.msra.mxu0 %v9252
        %9529 = vmatprep.subr.bf16.mxu0 0
        %9530 = vmatpush2.bf16.msra.mxu0 %v9251
        %9531 = vmatprep.subr.bf16.mxu0 0
        %9532 = vmatpush2.bf16.msra.mxu0 %v9250
        %9533 = vmatprep.subr.bf16.mxu0 0
        %9534 = vmatpush2.bf16.msra.mxu0 %v9249
        %9535 = vmatprep.subr.bf16.mxu0 0
        %9536 = vmatpush2.bf16.msra.mxu0 %v9248
        %9537 = vmatprep.mubr.bf16.mxu0 %v8939
        %9538 = vmatmul.mubr.bf16.gmra.mxu0 %v8938
        %v9539 = vpop.f32.mrf.mxu0
        %v9540 = vadd.f32 %v9379, %v9539
        %v9541 = vpop.f32.mrf.mxu0
        %v9542 = vpop.f32.mrf.mxu0
        %v9543 = vadd.f32 %v9382, %v9542
        %v9544 = vpop.f32.mrf.mxu0
        %9545 = vmatprep.mubr.bf16.mxu0 %v8944
        %9546 = vmatmul.mubr.bf16.gmra.mxu0 %v8943
        %v9547 = vpop.f32.mrf.mxu0
        %v9548 = vadd.f32 %v9387, %v9547
        %v9549 = vpop.f32.mrf.mxu0
        %v9550 = vpop.f32.mrf.mxu0
        %v9551 = vadd.f32 %v9390, %v9550
        %v9552 = vpop.f32.mrf.mxu0
        %9553 = vmatprep.mubr.bf16.mxu0 %v8949
        %9554 = vmatmul.mubr.bf16.gmra.mxu0 %v8948
        %v9555 = vpop.f32.mrf.mxu0
        %v9556 = vadd.f32 %v9395, %v9555
        %v9557 = vpop.f32.mrf.mxu0
        %v9558 = vpop.f32.mrf.mxu0
        %v9559 = vadd.f32 %v9398, %v9558
        %v9560 = vpop.f32.mrf.mxu0
        %9561 = vmatprep.mubr.bf16.mxu0 %v8954
        %9562 = vmatmul.mubr.bf16.gmra.mxu0 %v8953
        %v9563 = vpop.f32.mrf.mxu0
        %v9564 = vadd.f32 %v9403, %v9563
        %v9565 = vpop.f32.mrf.mxu0
        %v9566 = vpop.f32.mrf.mxu0
        %v9567 = vadd.f32 %v9406, %v9566
        %v9568 = vpop.f32.mrf.mxu0
        %9569 = vmatprep.mubr.bf16.mxu0 %v8959
        %9570 = vmatmul.mubr.bf16.gmra.mxu0 %v8958
        %v9571 = vpop.f32.mrf.mxu0
        %v9572 = vadd.f32 %v9411, %v9571
        %v9573 = vpop.f32.mrf.mxu0
        %v9574 = vpop.f32.mrf.mxu0
        %v9575 = vadd.f32 %v9414, %v9574
        %v9576 = vpop.f32.mrf.mxu0
        %9577 = vmatprep.mubr.bf16.mxu0 %v8964
        %9578 = vmatmul.mubr.bf16.gmra.mxu0 %v8963
        %v9579 = vpop.f32.mrf.mxu0
        %v9580 = vadd.f32 %v9419, %v9579
        %v9581 = vpop.f32.mrf.mxu0
        %v9582 = vpop.f32.mrf.mxu0
        %v9583 = vadd.f32 %v9422, %v9582
        %v9584 = vpop.f32.mrf.mxu0
        %9585 = vmatprep.mubr.bf16.mxu0 %v8969
        %9586 = vmatmul.mubr.bf16.gmra.mxu0 %v8968
        %v9587 = vpop.f32.mrf.mxu0
        %v9588 = vadd.f32 %v9427, %v9587
        %v9589 = vpop.f32.mrf.mxu0
        %v9590 = vpop.f32.mrf.mxu0
        %v9591 = vadd.f32 %v9430, %v9590
        %v9592 = vpop.f32.mrf.mxu0
        %9593 = vmatprep.mubr.bf16.mxu0 %v8974
        %9594 = vmatmul.mubr.bf16.gmra.mxu0 %v8973
        %v9595 = vpop.f32.mrf.mxu0
        %v9596 = vadd.f32 %v9435, %v9595
        %v9597 = vpop.f32.mrf.mxu0
        %v9598 = vpop.f32.mrf.mxu0
        %v9599 = vadd.f32 %v9438, %v9598
        %v9600 = vpop.f32.mrf.mxu0
        %9601 = vmatprep.mubr.bf16.mxu0 %v8979
        %9602 = vmatmul.mubr.bf16.gmra.mxu0 %v8978
        %v9603 = vpop.f32.mrf.mxu0
        %v9604 = vadd.f32 %v9443, %v9603
        %v9605 = vpop.f32.mrf.mxu0
        %v9606 = vpop.f32.mrf.mxu0
        %v9607 = vadd.f32 %v9446, %v9606
        %v9608 = vpop.f32.mrf.mxu0
        %9609 = vmatprep.mubr.bf16.mxu0 %v8984
        %9610 = vmatmul.mubr.bf16.gmra.mxu0 %v8983
        %v9611 = vpop.f32.mrf.mxu0
        %v9612 = vadd.f32 %v9451, %v9611
        %v9613 = vpop.f32.mrf.mxu0
        %v9614 = vpop.f32.mrf.mxu0
        %v9615 = vadd.f32 %v9454, %v9614
        %v9616 = vpop.f32.mrf.mxu0
        %9617 = vmatprep.mubr.bf16.mxu0 %v8989
        %9618 = vmatmul.mubr.bf16.gmra.mxu0 %v8988
        %v9619 = vpop.f32.mrf.mxu0
        %v9620 = vadd.f32 %v9459, %v9619
        %v9621 = vpop.f32.mrf.mxu0
        %v9622 = vpop.f32.mrf.mxu0
        %v9623 = vadd.f32 %v9462, %v9622
        %v9624 = vpop.f32.mrf.mxu0
        %9625 = vmatprep.mubr.bf16.mxu0 %v8994
        %9626 = vmatmul.mubr.bf16.gmra.mxu0 %v8993
        %v9627 = vpop.f32.mrf.mxu0
        %v9628 = vadd.f32 %v9467, %v9627
        %v9629 = vpop.f32.mrf.mxu0
        %v9630 = vpop.f32.mrf.mxu0
        %v9631 = vadd.f32 %v9470, %v9630
        %v9632 = vpop.f32.mrf.mxu0
        %9633 = vmatprep.mubr.bf16.mxu0 %v8999
        %9634 = vmatmul.mubr.bf16.gmra.mxu0 %v8998
        %v9635 = vpop.f32.mrf.mxu0
        %v9636 = vadd.f32 %v9475, %v9635
        %v9637 = vpop.f32.mrf.mxu0
        %v9638 = vpop.f32.mrf.mxu0
        %v9639 = vadd.f32 %v9478, %v9638
        %v9640 = vpop.f32.mrf.mxu0
        %9641 = vmatprep.mubr.bf16.mxu0 %v9004
        %9642 = vmatmul.mubr.bf16.gmra.mxu0 %v9003
        %v9643 = vpop.f32.mrf.mxu0
        %v9644 = vadd.f32 %v9483, %v9643
        %v9645 = vpop.f32.mrf.mxu0
        %v9646 = vpop.f32.mrf.mxu0
        %v9647 = vadd.f32 %v9486, %v9646
        %v9648 = vpop.f32.mrf.mxu0
        %9649 = vmatprep.mubr.bf16.mxu0 %v9009
        %9650 = vmatmul.mubr.bf16.gmra.mxu0 %v9008
        %v9651 = vpop.f32.mrf.mxu0
        %v9652 = vadd.f32 %v9491, %v9651
        %v9653 = vpop.f32.mrf.mxu0
        %v9654 = vpop.f32.mrf.mxu0
        %v9655 = vadd.f32 %v9494, %v9654
        %v9656 = vpop.f32.mrf.mxu0
        %9657 = vmatprep.mubr.bf16.mxu0 %v9014
        %9658 = vmatmul.mubr.bf16.gmra.mxu0 %v9013
        %v9659 = vpop.f32.mrf.mxu0
        %v9660 = vadd.f32 %v9499, %v9659
        %v9661 = vpop.f32.mrf.mxu0
        %v9662 = vpop.f32.mrf.mxu0
        %v9663 = vadd.f32 %v9502, %v9662
        %v9664 = vpop.f32.mrf.mxu0
        %9665 = vdwg.mxu0
        %9666 = vmatprep.subr.bf16.mxu0 0
        %9667 = vmatpush1.bf16.msra.mxu0 0
        %9668 = vmatprep.subr.bf16.mxu0 0
        %9669 = vmatpush1.bf16.msra.mxu0 0
        %9670 = vmatprep.subr.bf16.mxu0 0
        %9671 = vmatpush1.bf16.msra.mxu0 0
        %9672 = vmatprep.subr.bf16.mxu0 0
        %9673 = vmatpush1.bf16.msra.mxu0 0
        %9674 = vmatprep.subr.bf16.mxu0 0
        %9675 = vmatpush1.bf16.msra.mxu0 %v9259
        %9676 = vmatprep.subr.bf16.mxu0 0
        %9677 = vmatpush1.bf16.msra.mxu0 %v9258
        %9678 = vmatprep.subr.bf16.mxu0 0
        %9679 = vmatpush1.bf16.msra.mxu0 %v9257
        %9680 = vmatprep.subr.bf16.mxu0 0
        %9681 = vmatpush1.bf16.msra.mxu0 %v9256
        %9682 = vmatprep.subr.bf16.mxu0 0
        %9683 = vmatpush2.bf16.msra.mxu0 0
        %9684 = vmatprep.subr.bf16.mxu0 0
        %9685 = vmatpush2.bf16.msra.mxu0 0
        %9686 = vmatprep.subr.bf16.mxu0 0
        %9687 = vmatpush2.bf16.msra.mxu0 0
        %9688 = vmatprep.subr.bf16.mxu0 0
        %9689 = vmatpush2.bf16.msra.mxu0 0
        %9690 = vmatprep.subr.bf16.mxu0 0
        %9691 = vmatpush2.bf16.msra.mxu0 0
        %9692 = vmatprep.subr.bf16.mxu0 0
        %9693 = vmatpush2.bf16.msra.mxu0 0
        %9694 = vmatprep.subr.bf16.mxu0 0
        %9695 = vmatpush2.bf16.msra.mxu0 0
        %9696 = vmatprep.subr.bf16.mxu0 0
        %9697 = vmatpush2.bf16.msra.mxu0 0
        %9698 = vmatprep.mubr.bf16.mxu0 0
        %9699 = vmatmul.mubr.bf16.gmra.mxu0 %v9297
        %v9700 = vpop.f32.mrf.mxu0
        %v9701 = vadd.f32 %v9540, %v9700
        %v9702 = vpop.f32.mrf.mxu0
        %v9703 = vpop.f32.mrf.mxu0
        %v9704 = vadd.f32 %v9543, %v9703
        %v9705 = vpop.f32.mrf.mxu0
        %9706 = vmatprep.mubr.bf16.mxu0 0
        %9707 = vmatmul.mubr.bf16.gmra.mxu0 %v9300
        %v9708 = vpop.f32.mrf.mxu0
        %v9709 = vadd.f32 %v9548, %v9708
        %v9710 = vpop.f32.mrf.mxu0
        %v9711 = vpop.f32.mrf.mxu0
        %v9712 = vadd.f32 %v9551, %v9711
        %v9713 = vpop.f32.mrf.mxu0
        %9714 = vmatprep.mubr.bf16.mxu0 0
        %9715 = vmatmul.mubr.bf16.gmra.mxu0 %v9303
        %v9716 = vpop.f32.mrf.mxu0
        %v9717 = vadd.f32 %v9556, %v9716
        %v9718 = vpop.f32.mrf.mxu0
        %v9719 = vpop.f32.mrf.mxu0
        %v9720 = vadd.f32 %v9559, %v9719
        %v9721 = vpop.f32.mrf.mxu0
        %9722 = vmatprep.mubr.bf16.mxu0 0
        %9723 = vmatmul.mubr.bf16.gmra.mxu0 %v9306
        %v9724 = vpop.f32.mrf.mxu0
        %v9725 = vadd.f32 %v9564, %v9724
        %v9726 = vpop.f32.mrf.mxu0
        %v9727 = vpop.f32.mrf.mxu0
        %v9728 = vadd.f32 %v9567, %v9727
        %v9729 = vpop.f32.mrf.mxu0
        %9730 = vmatprep.mubr.bf16.mxu0 0
        %9731 = vmatmul.mubr.bf16.gmra.mxu0 %v9309
        %v9732 = vpop.f32.mrf.mxu0
        %v9733 = vadd.f32 %v9572, %v9732
        %v9734 = vpop.f32.mrf.mxu0
        %v9735 = vpop.f32.mrf.mxu0
        %v9736 = vadd.f32 %v9575, %v9735
        %v9737 = vpop.f32.mrf.mxu0
        %9738 = vmatprep.mubr.bf16.mxu0 0
        %9739 = vmatmul.mubr.bf16.gmra.mxu0 %v9312
        %v9740 = vpop.f32.mrf.mxu0
        %v9741 = vadd.f32 %v9580, %v9740
        %v9742 = vpop.f32.mrf.mxu0
        %v9743 = vpop.f32.mrf.mxu0
        %v9744 = vadd.f32 %v9583, %v9743
        %v9745 = vpop.f32.mrf.mxu0
        %9746 = vmatprep.mubr.bf16.mxu0 0
        %9747 = vmatmul.mubr.bf16.gmra.mxu0 %v9315
        %v9748 = vpop.f32.mrf.mxu0
        %v9749 = vadd.f32 %v9588, %v9748
        %v9750 = vpop.f32.mrf.mxu0
        %v9751 = vpop.f32.mrf.mxu0
        %v9752 = vadd.f32 %v9591, %v9751
        %v9753 = vpop.f32.mrf.mxu0
        %9754 = vmatprep.mubr.bf16.mxu0 0
        %9755 = vmatmul.mubr.bf16.gmra.mxu0 %v9318
        %v9756 = vpop.f32.mrf.mxu0
        %v9757 = vadd.f32 %v9596, %v9756
        %v9758 = vpop.f32.mrf.mxu0
        %v9759 = vpop.f32.mrf.mxu0
        %v9760 = vadd.f32 %v9599, %v9759
        %v9761 = vpop.f32.mrf.mxu0
        %9762 = vmatprep.mubr.bf16.mxu0 0
        %9763 = vmatmul.mubr.bf16.gmra.mxu0 %v9321
        %v9764 = vpop.f32.mrf.mxu0
        %v9765 = vadd.f32 %v9604, %v9764
        %v9766 = vpop.f32.mrf.mxu0
        %v9767 = vpop.f32.mrf.mxu0
        %v9768 = vadd.f32 %v9607, %v9767
        %v9769 = vpop.f32.mrf.mxu0
        %9770 = vmatprep.mubr.bf16.mxu0 0
        %9771 = vmatmul.mubr.bf16.gmra.mxu0 %v9324
        %v9772 = vpop.f32.mrf.mxu0
        %v9773 = vadd.f32 %v9612, %v9772
        %v9774 = vpop.f32.mrf.mxu0
        %v9775 = vpop.f32.mrf.mxu0
        %v9776 = vadd.f32 %v9615, %v9775
        %v9777 = vpop.f32.mrf.mxu0
        %9778 = vmatprep.mubr.bf16.mxu0 0
        %9779 = vmatmul.mubr.bf16.gmra.mxu0 %v9327
        %v9780 = vpop.f32.mrf.mxu0
        %v9781 = vadd.f32 %v9620, %v9780
        %v9782 = vpop.f32.mrf.mxu0
        %v9783 = vpop.f32.mrf.mxu0
        %v9784 = vadd.f32 %v9623, %v9783
        %v9785 = vpop.f32.mrf.mxu0
        %9786 = vmatprep.mubr.bf16.mxu0 0
        %9787 = vmatmul.mubr.bf16.gmra.mxu0 %v9330
        %v9788 = vpop.f32.mrf.mxu0
        %v9789 = vadd.f32 %v9628, %v9788
        %v9790 = vpop.f32.mrf.mxu0
        %v9791 = vpop.f32.mrf.mxu0
        %v9792 = vadd.f32 %v9631, %v9791
        %v9793 = vpop.f32.mrf.mxu0
        %9794 = vmatprep.mubr.bf16.mxu0 0
        %9795 = vmatmul.mubr.bf16.gmra.mxu0 %v9333
        %v9796 = vpop.f32.mrf.mxu0
        %v9797 = vadd.f32 %v9636, %v9796
        %v9798 = vpop.f32.mrf.mxu0
        %v9799 = vpop.f32.mrf.mxu0
        %v9800 = vadd.f32 %v9639, %v9799
        %v9801 = vpop.f32.mrf.mxu0
        %9802 = vmatprep.mubr.bf16.mxu0 0
        %9803 = vmatmul.mubr.bf16.gmra.mxu0 %v9336
        %v9804 = vpop.f32.mrf.mxu0
        %v9805 = vadd.f32 %v9644, %v9804
        %v9806 = vpop.f32.mrf.mxu0
        %v9807 = vpop.f32.mrf.mxu0
        %v9808 = vadd.f32 %v9647, %v9807
        %v9809 = vpop.f32.mrf.mxu0
        %9810 = vmatprep.mubr.bf16.mxu0 0
        %9811 = vmatmul.mubr.bf16.gmra.mxu0 %v9339
        %v9812 = vpop.f32.mrf.mxu0
        %v9813 = vadd.f32 %v9652, %v9812
        %v9814 = vpop.f32.mrf.mxu0
        %v9815 = vpop.f32.mrf.mxu0
        %v9816 = vadd.f32 %v9655, %v9815
        %v9817 = vpop.f32.mrf.mxu0
        %9818 = vmatprep.mubr.bf16.mxu0 0
        %9819 = vmatmul.mubr.bf16.gmra.mxu0 %v9342
        %v9820 = vpop.f32.mrf.mxu0
        %v9821 = vadd.f32 %v9660, %v9820
        %v9822 = vpop.f32.mrf.mxu0
        %v9823 = vpop.f32.mrf.mxu0
        %v9824 = vadd.f32 %v9663, %v9823
        %v9825 = vpop.f32.mrf.mxu0
        %9826 = vdwg.mxu0
        %vm9827 = vcmp.ge.f32.partialorder %v9701, 0.0
        %vm9828 = vcmp.ge.f32.partialorder %v9704, 0.0
        %vm9829 = vcmp.ge.f32.partialorder %v9709, 0.0
        %vm9830 = vcmp.ge.f32.partialorder %v9712, 0.0
        %vm9831 = vcmp.ge.f32.partialorder %v9717, 0.0
        %vm9832 = vcmp.ge.f32.partialorder %v9720, 0.0
        %vm9833 = vcmp.ge.f32.partialorder %v9725, 0.0
        %vm9834 = vcmp.ge.f32.partialorder %v9728, 0.0
        %vm9835 = vcmp.ge.f32.partialorder %v9733, 0.0
        %vm9836 = vcmp.ge.f32.partialorder %v9736, 0.0
        %vm9837 = vcmp.ge.f32.partialorder %v9741, 0.0
        %vm9838 = vcmp.ge.f32.partialorder %v9744, 0.0
        %vm9839 = vcmp.ge.f32.partialorder %v9749, 0.0
        %vm9840 = vcmp.ge.f32.partialorder %v9752, 0.0
        %vm9841 = vcmp.ge.f32.partialorder %v9757, 0.0
        %vm9842 = vcmp.ge.f32.partialorder %v9760, 0.0
        %vm9843 = vcmp.ge.f32.partialorder %v9765, 0.0
        %vm9844 = vcmp.ge.f32.partialorder %v9768, 0.0
        %vm9845 = vcmp.ge.f32.partialorder %v9773, 0.0
        %vm9846 = vcmp.ge.f32.partialorder %v9776, 0.0
        %vm9847 = vcmp.ge.f32.partialorder %v9781, 0.0
        %vm9848 = vcmp.ge.f32.partialorder %v9784, 0.0
        %vm9849 = vcmp.ge.f32.partialorder %v9789, 0.0
        %vm9850 = vcmp.ge.f32.partialorder %v9792, 0.0
        %vm9851 = vcmp.ge.f32.partialorder %v9797, 0.0
        %vm9852 = vcmp.ge.f32.partialorder %v9800, 0.0
        %vm9853 = vcmp.ge.f32.partialorder %v9805, 0.0
        %vm9854 = vcmp.ge.f32.partialorder %v9808, 0.0
        %vm9855 = vcmp.ge.f32.partialorder %v9813, 0.0
        %vm9856 = vcmp.ge.f32.partialorder %v9816, 0.0
        %vm9857 = vcmp.ge.f32.partialorder %v9821, 0.0
        %vm9858 = vcmp.ge.f32.partialorder %v9824, 0.0
        %v9859 = vmul.f32 %v9701, 0.2
        %v9860 = vmul.f32 %v9704, 0.2
        %v9861 = vmul.f32 %v9709, 0.2
        %v9862 = vmul.f32 %v9712, 0.2
        %v9863 = vmul.f32 %v9717, 0.2
        %v9864 = vmul.f32 %v9720, 0.2
        %v9865 = vmul.f32 %v9725, 0.2
        %v9866 = vmul.f32 %v9728, 0.2
        %v9867 = vmul.f32 %v9733, 0.2
        %v9868 = vmul.f32 %v9736, 0.2
        %v9869 = vmul.f32 %v9741, 0.2
        %v9870 = vmul.f32 %v9744, 0.2
        %v9871 = vmul.f32 %v9749, 0.2
        %v9872 = vmul.f32 %v9752, 0.2
        %v9873 = vmul.f32 %v9757, 0.2
        %v9874 = vmul.f32 %v9760, 0.2
        %v9875 = vmul.f32 %v9765, 0.2
        %v9876 = vmul.f32 %v9768, 0.2
        %v9877 = vmul.f32 %v9773, 0.2
        %v9878 = vmul.f32 %v9776, 0.2
        %v9879 = vmul.f32 %v9781, 0.2
        %v9880 = vmul.f32 %v9784, 0.2
        %v9881 = vmul.f32 %v9789, 0.2
        %v9882 = vmul.f32 %v9792, 0.2
        %v9883 = vmul.f32 %v9797, 0.2
        %v9884 = vmul.f32 %v9800, 0.2
        %v9885 = vmul.f32 %v9805, 0.2
        %v9886 = vmul.f32 %v9808, 0.2
        %v9887 = vmul.f32 %v9813, 0.2
        %v9888 = vmul.f32 %v9816, 0.2
        %v9889 = vmul.f32 %v9821, 0.2
        %v9890 = vmul.f32 %v9824, 0.2
        %v9891 = vsel %vm9827, %v9701, %v9859
        %v9892 = vsel %vm9828, %v9704, %v9860
        %v9893 = vsel %vm9829, %v9709, %v9861
        %v9894 = vsel %vm9830, %v9712, %v9862
        %v9895 = vsel %vm9831, %v9717, %v9863
        %v9896 = vsel %vm9832, %v9720, %v9864
        %v9897 = vsel %vm9833, %v9725, %v9865
        %v9898 = vsel %vm9834, %v9728, %v9866
        %v9899 = vsel %vm9835, %v9733, %v9867
        %v9900 = vsel %vm9836, %v9736, %v9868
        %v9901 = vsel %vm9837, %v9741, %v9869
        %v9902 = vsel %vm9838, %v9744, %v9870
        %v9903 = vsel %vm9839, %v9749, %v9871
        %v9904 = vsel %vm9840, %v9752, %v9872
        %v9905 = vsel %vm9841, %v9757, %v9873
        %v9906 = vsel %vm9842, %v9760, %v9874
        %v9907 = vsel %vm9843, %v9765, %v9875
        %v9908 = vsel %vm9844, %v9768, %v9876
        %v9909 = vsel %vm9845, %v9773, %v9877
        %v9910 = vsel %vm9846, %v9776, %v9878
        %v9911 = vsel %vm9847, %v9781, %v9879
        %v9912 = vsel %vm9848, %v9784, %v9880
        %v9913 = vsel %vm9849, %v9789, %v9881
        %v9914 = vsel %vm9850, %v9792, %v9882
        %v9915 = vsel %vm9851, %v9797, %v9883
        %v9916 = vsel %vm9852, %v9800, %v9884
        %v9917 = vsel %vm9853, %v9805, %v9885
        %v9918 = vsel %vm9854, %v9808, %v9886
        %v9919 = vsel %vm9855, %v9813, %v9887
        %v9920 = vsel %vm9856, %v9816, %v9888
        %v9921 = vsel %vm9857, %v9821, %v9889
        %v9922 = vsel %vm9858, %v9824, %v9890
        %v9923 = vld [vmem:[%s3] sm:$0xf]
        %v9924 = vld [vmem:[%s3 + $0x4] sm:$0xf]
        %v9925 = vld [vmem:[%s3 + $0x8] sm:$0xf]
        %v9926 = vld [vmem:[%s3 + $0xc] sm:$0xf]
        %v9927 = vld [vmem:[%s3 + $0x10] sm:$0xf]
        %v9928 = vld [vmem:[%s3 + $0x14] sm:$0xf]
        %v9929 = vld [vmem:[%s3 + $0x18] sm:$0xf]
        %v9930 = vld [vmem:[%s3 + $0x1c] sm:$0xf]
        %v9931 = vld [vmem:[%s4] sm:$0x1]
        %v9933 = vlaneseq
        %v9934 = vshrl.u32 %v9933, 7
        %v9935 = vsub.s32 0, %v9934
        %v9936 = vrot.slane %v9931, %v9935
        %v9970 = vunpack.c.l.b16 %v224
        %v9971 = vunpack.c.l.b16 %v225
        %v9972 = vunpack.c.l.b16 %v226
        %v9973 = vunpack.c.l.b16 %v227
        %v9974 = vunpack.c.l.b16 %v228
        %v9975 = vunpack.c.l.b16 %v229
        %v9976 = vunpack.c.l.b16 %v230
        %v9977 = vunpack.c.l.b16 %v231
        %v9978 = vunpack.c.l.b16 %v232
        %v9979 = vunpack.c.l.b16 %v233
        %v9980 = vunpack.c.l.b16 %v234
        %v9981 = vunpack.c.l.b16 %v235
        %v9982 = vunpack.c.l.b16 %v236
        %v9983 = vunpack.c.l.b16 %v237
        %v9984 = vunpack.c.l.b16 %v238
        %v9985 = vunpack.c.l.b16 %v239
        %v9986 = vunpack.c.l.b16 %v240
        %v9987 = vunpack.c.l.b16 %v241
        %v9988 = vunpack.c.l.b16 %v242
        %v9989 = vunpack.c.l.b16 %v243
        %v9990 = vunpack.c.l.b16 %v244
        %v9991 = vunpack.c.l.b16 %v245
        %v9992 = vunpack.c.l.b16 %v246
        %v9993 = vunpack.c.l.b16 %v247
        %v9994 = vunpack.c.l.b16 %v248
        %v9995 = vunpack.c.l.b16 %v249
        %v9996 = vunpack.c.l.b16 %v250
        %v9997 = vunpack.c.l.b16 %v251
        %v9998 = vunpack.c.l.b16 %v252
        %v9999 = vunpack.c.l.b16 %v253
        %v10000 = vunpack.c.l.b16 %v254
        %v10001 = vunpack.c.l.b16 %v255
        %v10002 = vpack.c.b16 %v9971, %v9970
        %v10003 = vpack.c.b16 %v9973, %v9972
        %v10004 = vpack.c.b16 %v9975, %v9974
        %v10005 = vpack.c.b16 %v9977, %v9976
        %v10006 = vpack.c.b16 %v9979, %v9978
        %v10007 = vpack.c.b16 %v9981, %v9980
        %v10008 = vpack.c.b16 %v9983, %v9982
        %v10009 = vpack.c.b16 %v9985, %v9984
        %v10010 = vpack.c.b16 %v9987, %v9986
        %v10011 = vpack.c.b16 %v9989, %v9988
        %v10012 = vpack.c.b16 %v9991, %v9990
        %v10013 = vpack.c.b16 %v9993, %v9992
        %v10014 = vpack.c.b16 %v9995, %v9994
        %v10015 = vpack.c.b16 %v9997, %v9996
        %v10016 = vpack.c.b16 %v9999, %v9998
        %v10017 = vpack.c.b16 %v10001, %v10000
        %v10026 = vunpack.c.l.b16 %v9923
        %v10027 = vunpack.c.l.b16 %v9924
        %v10028 = vunpack.c.l.b16 %v9925
        %v10029 = vunpack.c.l.b16 %v9926
        %v10030 = vunpack.c.l.b16 %v9927
        %v10031 = vunpack.c.l.b16 %v9928
        %v10032 = vunpack.c.l.b16 %v9929
        %v10033 = vunpack.c.l.b16 %v9930
        %v10034 = vpack.c.b16 %v10027, %v10026
        %v10035 = vpack.c.b16 %v10029, %v10028
        %v10036 = vpack.c.b16 %v10031, %v10030
        %v10037 = vpack.c.b16 %v10033, %v10032
        %v10043 = vsel %vm4423, %v10002, 0
        %v10046 = vsel %vm4423, %v10003, 0
        %v10049 = vsel %vm4423, %v10004, 0
        %v10052 = vsel %vm4423, %v10005, 0
        %v10055 = vsel %vm4423, %v10006, 0
        %v10058 = vsel %vm4423, %v10007, 0
        %v10061 = vsel %vm4423, %v10008, 0
        %v10064 = vsel %vm4423, %v10009, 0
        %v10067 = vsel %vm4423, %v10010, 0
        %v10070 = vsel %vm4423, %v10011, 0
        %v10073 = vsel %vm4423, %v10012, 0
        %v10076 = vsel %vm4423, %v10013, 0
        %v10079 = vsel %vm4423, %v10014, 0
        %v10082 = vsel %vm4423, %v10015, 0
        %v10085 = vsel %vm4423, %v10016, 0
        %v10088 = vsel %vm4423, %v10017, 0
        %10090 = vmatprep.subr.bf16.mxu0 0
        %10091 = vmatpush1.bf16.msra.mxu0 0
        %10092 = vmatprep.subr.bf16.mxu0 0
        %10093 = vmatpush1.bf16.msra.mxu0 0
        %10094 = vmatprep.subr.bf16.mxu0 0
        %10095 = vmatpush1.bf16.msra.mxu0 0
        %10096 = vmatprep.subr.bf16.mxu0 0
        %10097 = vmatpush1.bf16.msra.mxu0 0
        %10098 = vmatprep.subr.bf16.mxu0 0
        %10099 = vmatpush1.bf16.msra.mxu0 %v10037
        %10100 = vmatprep.subr.bf16.mxu0 0
        %10101 = vmatpush1.bf16.msra.mxu0 %v10036
        %10102 = vmatprep.subr.bf16.mxu0 0
        %10103 = vmatpush1.bf16.msra.mxu0 %v10035
        %10104 = vmatprep.subr.bf16.mxu0 0
        %10105 = vmatpush1.bf16.msra.mxu0 %v10034
        %10106 = vmatprep.subr.bf16.mxu0 0
        %10107 = vmatpush2.bf16.msra.mxu0 0
        %10108 = vmatprep.subr.bf16.mxu0 0
        %10109 = vmatpush2.bf16.msra.mxu0 0
        %10110 = vmatprep.subr.bf16.mxu0 0
        %10111 = vmatpush2.bf16.msra.mxu0 0
        %10112 = vmatprep.subr.bf16.mxu0 0
        %10113 = vmatpush2.bf16.msra.mxu0 0
        %10114 = vmatprep.subr.bf16.mxu0 0
        %10115 = vmatpush2.bf16.msra.mxu0 0
        %10116 = vmatprep.subr.bf16.mxu0 0
        %10117 = vmatpush2.bf16.msra.mxu0 0
        %10118 = vmatprep.subr.bf16.mxu0 0
        %10119 = vmatpush2.bf16.msra.mxu0 0
        %10120 = vmatprep.subr.bf16.mxu0 0
        %10121 = vmatpush2.bf16.msra.mxu0 0
        %10122 = vmatprep.mubr.bf16.mxu0 0
        %10123 = vmatmul.mubr.bf16.gmra.mxu0 %v10043
        %v10124 = vpop.f32.mrf.mxu0
        %v10125 = vadd.f32 %v9936, %v10124
        %v10126 = vpop.f32.mrf.mxu0
        %v10127 = vpop.f32.mrf.mxu0
        %v10128 = vadd.f32 %v9936, %v10127
        %v10129 = vpop.f32.mrf.mxu0
        %10130 = vmatprep.mubr.bf16.mxu0 0
        %10131 = vmatmul.mubr.bf16.gmra.mxu0 %v10046
        %v10132 = vpop.f32.mrf.mxu0
        %v10133 = vadd.f32 %v9936, %v10132
        %v10134 = vpop.f32.mrf.mxu0
        %v10135 = vpop.f32.mrf.mxu0
        %v10136 = vadd.f32 %v9936, %v10135
        %v10137 = vpop.f32.mrf.mxu0
        %10138 = vmatprep.mubr.bf16.mxu0 0
        %10139 = vmatmul.mubr.bf16.gmra.mxu0 %v10049
        %v10140 = vpop.f32.mrf.mxu0
        %v10141 = vadd.f32 %v9936, %v10140
        %v10142 = vpop.f32.mrf.mxu0
        %v10143 = vpop.f32.mrf.mxu0
        %v10144 = vadd.f32 %v9936, %v10143
        %v10145 = vpop.f32.mrf.mxu0
        %10146 = vmatprep.mubr.bf16.mxu0 0
        %10147 = vmatmul.mubr.bf16.gmra.mxu0 %v10052
        %v10148 = vpop.f32.mrf.mxu0
        %v10149 = vadd.f32 %v9936, %v10148
        %v10150 = vpop.f32.mrf.mxu0
        %v10151 = vpop.f32.mrf.mxu0
        %v10152 = vadd.f32 %v9936, %v10151
        %v10153 = vpop.f32.mrf.mxu0
        %10154 = vmatprep.mubr.bf16.mxu0 0
        %10155 = vmatmul.mubr.bf16.gmra.mxu0 %v10055
        %v10156 = vpop.f32.mrf.mxu0
        %v10157 = vadd.f32 %v9936, %v10156
        %v10158 = vpop.f32.mrf.mxu0
        %v10159 = vpop.f32.mrf.mxu0
        %v10160 = vadd.f32 %v9936, %v10159
        %v10161 = vpop.f32.mrf.mxu0
        %10162 = vmatprep.mubr.bf16.mxu0 0
        %10163 = vmatmul.mubr.bf16.gmra.mxu0 %v10058
        %v10164 = vpop.f32.mrf.mxu0
        %v10165 = vadd.f32 %v9936, %v10164
        %v10166 = vpop.f32.mrf.mxu0
        %v10167 = vpop.f32.mrf.mxu0
        %v10168 = vadd.f32 %v9936, %v10167
        %v10169 = vpop.f32.mrf.mxu0
        %10170 = vmatprep.mubr.bf16.mxu0 0
        %10171 = vmatmul.mubr.bf16.gmra.mxu0 %v10061
        %v10172 = vpop.f32.mrf.mxu0
        %v10173 = vadd.f32 %v9936, %v10172
        %v10174 = vpop.f32.mrf.mxu0
        %v10175 = vpop.f32.mrf.mxu0
        %v10176 = vadd.f32 %v9936, %v10175
        %v10177 = vpop.f32.mrf.mxu0
        %10178 = vmatprep.mubr.bf16.mxu0 0
        %10179 = vmatmul.mubr.bf16.gmra.mxu0 %v10064
        %v10180 = vpop.f32.mrf.mxu0
        %v10181 = vadd.f32 %v9936, %v10180
        %v10182 = vpop.f32.mrf.mxu0
        %v10183 = vpop.f32.mrf.mxu0
        %v10184 = vadd.f32 %v9936, %v10183
        %v10185 = vpop.f32.mrf.mxu0
        %10186 = vmatprep.mubr.bf16.mxu0 0
        %10187 = vmatmul.mubr.bf16.gmra.mxu0 %v10067
        %v10188 = vpop.f32.mrf.mxu0
        %v10189 = vadd.f32 %v9936, %v10188
        %v10190 = vpop.f32.mrf.mxu0
        %v10191 = vpop.f32.mrf.mxu0
        %v10192 = vadd.f32 %v9936, %v10191
        %v10193 = vpop.f32.mrf.mxu0
        %10194 = vmatprep.mubr.bf16.mxu0 0
        %10195 = vmatmul.mubr.bf16.gmra.mxu0 %v10070
        %v10196 = vpop.f32.mrf.mxu0
        %v10197 = vadd.f32 %v9936, %v10196
        %v10198 = vpop.f32.mrf.mxu0
        %v10199 = vpop.f32.mrf.mxu0
        %v10200 = vadd.f32 %v9936, %v10199
        %v10201 = vpop.f32.mrf.mxu0
        %10202 = vmatprep.mubr.bf16.mxu0 0
        %10203 = vmatmul.mubr.bf16.gmra.mxu0 %v10073
        %v10204 = vpop.f32.mrf.mxu0
        %v10205 = vadd.f32 %v9936, %v10204
        %v10206 = vpop.f32.mrf.mxu0
        %v10207 = vpop.f32.mrf.mxu0
        %v10208 = vadd.f32 %v9936, %v10207
        %v10209 = vpop.f32.mrf.mxu0
        %10210 = vmatprep.mubr.bf16.mxu0 0
        %10211 = vmatmul.mubr.bf16.gmra.mxu0 %v10076
        %v10212 = vpop.f32.mrf.mxu0
        %v10213 = vadd.f32 %v9936, %v10212
        %v10214 = vpop.f32.mrf.mxu0
        %v10215 = vpop.f32.mrf.mxu0
        %v10216 = vadd.f32 %v9936, %v10215
        %v10217 = vpop.f32.mrf.mxu0
        %10218 = vmatprep.mubr.bf16.mxu0 0
        %10219 = vmatmul.mubr.bf16.gmra.mxu0 %v10079
        %v10220 = vpop.f32.mrf.mxu0
        %v10221 = vadd.f32 %v9936, %v10220
        %v10222 = vpop.f32.mrf.mxu0
        %v10223 = vpop.f32.mrf.mxu0
        %v10224 = vadd.f32 %v9936, %v10223
        %v10225 = vpop.f32.mrf.mxu0
        %10226 = vmatprep.mubr.bf16.mxu0 0
        %10227 = vmatmul.mubr.bf16.gmra.mxu0 %v10082
        %v10228 = vpop.f32.mrf.mxu0
        %v10229 = vadd.f32 %v9936, %v10228
        %v10230 = vpop.f32.mrf.mxu0
        %v10231 = vpop.f32.mrf.mxu0
        %v10232 = vadd.f32 %v9936, %v10231
        %v10233 = vpop.f32.mrf.mxu0
        %10234 = vmatprep.mubr.bf16.mxu0 0
        %10235 = vmatmul.mubr.bf16.gmra.mxu0 %v10085
        %v10236 = vpop.f32.mrf.mxu0
        %v10237 = vadd.f32 %v9936, %v10236
        %v10238 = vpop.f32.mrf.mxu0
        %v10239 = vpop.f32.mrf.mxu0
        %v10240 = vadd.f32 %v9936, %v10239
        %v10241 = vpop.f32.mrf.mxu0
        %10242 = vmatprep.mubr.bf16.mxu0 0
        %10243 = vmatmul.mubr.bf16.gmra.mxu0 %v10088
        %v10244 = vpop.f32.mrf.mxu0
        %v10245 = vadd.f32 %v9936, %v10244
        %v10246 = vpop.f32.mrf.mxu0
        %v10247 = vpop.f32.mrf.mxu0
        %v10248 = vadd.f32 %v9936, %v10247
        %v10249 = vpop.f32.mrf.mxu0
        %10250 = vdwg.mxu0
        %v10251 = vadd.f32 %v9891, %v10125
        %v10252 = vadd.f32 %v9892, %v10128
        %v10253 = vadd.f32 %v9893, %v10133
        %v10254 = vadd.f32 %v9894, %v10136
        %v10255 = vadd.f32 %v9895, %v10141
        %v10256 = vadd.f32 %v9896, %v10144
        %v10257 = vadd.f32 %v9897, %v10149
        %v10258 = vadd.f32 %v9898, %v10152
        %v10259 = vadd.f32 %v9899, %v10157
        %v10260 = vadd.f32 %v9900, %v10160
        %v10261 = vadd.f32 %v9901, %v10165
        %v10262 = vadd.f32 %v9902, %v10168
        %v10263 = vadd.f32 %v9903, %v10173
        %v10264 = vadd.f32 %v9904, %v10176
        %v10265 = vadd.f32 %v9905, %v10181
        %v10266 = vadd.f32 %v9906, %v10184
        %v10267 = vadd.f32 %v9907, %v10189
        %v10268 = vadd.f32 %v9908, %v10192
        %v10269 = vadd.f32 %v9909, %v10197
        %v10270 = vadd.f32 %v9910, %v10200
        %v10271 = vadd.f32 %v9911, %v10205
        %v10272 = vadd.f32 %v9912, %v10208
        %v10273 = vadd.f32 %v9913, %v10213
        %v10274 = vadd.f32 %v9914, %v10216
        %v10275 = vadd.f32 %v9915, %v10221
        %v10276 = vadd.f32 %v9916, %v10224
        %v10277 = vadd.f32 %v9917, %v10229
        %v10278 = vadd.f32 %v9918, %v10232
        %v10279 = vadd.f32 %v9919, %v10237
        %v10280 = vadd.f32 %v9920, %v10240
        %v10281 = vadd.f32 %v9921, %v10245
        %v10282 = vadd.f32 %v9922, %v10248
        %10283 = vst [vmem:[%s217] sm:$0xff] %v10251
        %10284 = vst [vmem:[%s217 + $0x8] sm:$0xff] %v10252
        %10285 = vst [vmem:[%s217 + $0x10] sm:$0xff] %v10253
        %10286 = vst [vmem:[%s217 + $0x18] sm:$0xff] %v10254
        %10287 = vst [vmem:[%s217 + $0x20] sm:$0xff] %v10255
        %10288 = vst [vmem:[%s217 + $0x28] sm:$0xff] %v10256
        %10289 = vst [vmem:[%s217 + $0x30] sm:$0xff] %v10257
        %10290 = vst [vmem:[%s217 + $0x38] sm:$0xff] %v10258
        %10291 = vst [vmem:[%s217 + $0x40] sm:$0xff] %v10259
        %10292 = vst [vmem:[%s217 + $0x48] sm:$0xff] %v10260
        %10293 = vst [vmem:[%s217 + $0x50] sm:$0xff] %v10261
        %10294 = vst [vmem:[%s217 + $0x58] sm:$0xff] %v10262
        %10295 = vst [vmem:[%s217 + $0x60] sm:$0xff] %v10263
        %10296 = vst [vmem:[%s217 + $0x68] sm:$0xff] %v10264
        %10297 = vst [vmem:[%s217 + $0x70] sm:$0xff] %v10265
        %10298 = vst [vmem:[%s217 + $0x78] sm:$0xff] %v10266
        %10299 = vst [vmem:[%s217 + $0x80] sm:$0xff] %v10267
        %10300 = vst [vmem:[%s217 + $0x88] sm:$0xff] %v10268
        %10301 = vst [vmem:[%s217 + $0x90] sm:$0xff] %v10269
        %10302 = vst [vmem:[%s217 + $0x98] sm:$0xff] %v10270
        %10303 = vst [vmem:[%s217 + $0xa0] sm:$0xff] %v10271
        %10304 = vst [vmem:[%s217 + $0xa8] sm:$0xff] %v10272
        %10305 = vst [vmem:[%s217 + $0xb0] sm:$0xff] %v10273
        %10306 = vst [vmem:[%s217 + $0xb8] sm:$0xff] %v10274
        %10307 = vst [vmem:[%s217 + $0xc0] sm:$0xff] %v10275
        %10308 = vst [vmem:[%s217 + $0xc8] sm:$0xff] %v10276
        %10309 = vst [vmem:[%s217 + $0xd0] sm:$0xff] %v10277
        %10310 = vst [vmem:[%s217 + $0xd8] sm:$0xff] %v10278
        %10311 = vst [vmem:[%s217 + $0xe0] sm:$0xff] %v10279
        %10312 = vst [vmem:[%s217 + $0xe8] sm:$0xff] %v10280
        %10313 = vst [vmem:[%s217 + $0xf0] sm:$0xff] %v10281
        %10314 = vst [vmem:[%s217 + $0xf8] sm:$0xff] %v10282
        %s10315 = sand.u32 %s137, 1
        %s10316 = scalar_lea.sflag [#allocation7], %s10315
        %s10317 = sand.u32 %s137, 1
        %s10318 = smul.addr %s10317, 256
        %s10319 = scalar_lea.vmem [#allocation6], %s10318
        // Predicated region
        $region41: #{resblock_forward.1} parent=39 // pred_check
          %p10320 = pneg %p147
        $region42: #{resblock_forward.1} parent=39 // pred_check_branch
          %10322 = sbr.rel (%p10320) target = $region44
        $region43: #{resblock_forward.1} parent=39 // pred_region
          %s10324 = ssub.s32 4096, 4096
          %10325 = vsyncadd %s10316, %s10324
          %s10326 = smul.addr %s19, 32
          %s10327 = smul.addr %s10326, 128
          %s10328 = scalar_lea.hbm %s5, %s10327
          %s10329 = sshll.u32 %s10319, 4
          %s10330 = int_to_ptr.vmem [resolvable:$true] %s10329
          %10335 = dma.vmem_to_hbm [thread:$0]  %s10330, 4096, %s10328, %s10316, 128, 128, 8
        $region44: #{resblock_forward.1} parent=39 // pred_fallthru
          _
      $region40: #{resblock_forward.1} parent=5 // pred_fallthru
        _
      %p10336 = scmp.le.s32.totalorder 2, %s14
      // Predicated region
      $region45: #{resblock_forward.1} parent=5 // pred_check
        %p10337 = pneg %p10336
      $region46: #{resblock_forward.1} parent=5 // pred_check_branch
        %10339 = sbr.rel (%p10337) target = $region48
      $region47: #{resblock_forward.1} parent=5 // pred_region
        %s10340 = ssub.s32 %s14, 2
        // Predicated region
        $region49: #{resblock_forward.1} parent=47 // pred_check
          %p10341 = pneg %p153
        $region50: #{resblock_forward.1} parent=47 // pred_check_branch
          %10343 = sbr.rel (%p10341) target = $region52
        $region51: #{resblock_forward.1} parent=47 // pred_region
          %s10344 = sand.u32 %s138, 1
          %s10345 = scalar_lea.sflag [#allocation7], %s10344
          %s10346 = sand.u32 %s138, 1
          %s10347 = smul.addr %s10346, 256
          %s10348 = scalar_lea.vmem [#allocation6], %s10347
          %10349 = dma.done %s10345, 4096
        $region52: #{resblock_forward.1} parent=47 // pred_fallthru
          _
      $region48: #{resblock_forward.1} parent=5 // pred_fallthru
        _
    $region6: #{resblock_forward.1} parent=1 // loop_footer
      %s18 = sadd.s32 1, %s14
    $region7: #{resblock_forward.1} parent=1 // loop_footer_branch
      %13 = sbr.rel target = $region3
    $region8: #{resblock_forward.1} parent=1 // loop_exit
      _
    %10350 = vsyncpa [#allocation7], 1
    %s10351 = scalar_lea.sflag [#allocation7], 1
    %10352 = vsyncpa %s10351, 1

</llo_original>
